<compile_context>
chip_gen: v5e
topology: v5e:2x2
jax: 0.10.0
libtpu: 0.0.40
codegen_flags: <defaults>
</compile_context>

<pallas_src>
import jax
import jax.numpy as jnp
from jax.experimental import pallas as pl
from jax.experimental.pallas import tpu as pltpu


def _pointnet_fused_kernel(x_ref, w1_ref, b1_ref, w2_ref, b2_ref, w3_ref,
                           b3_ref, wf1_ref, bf1_ref, wf2_ref, bf2_ref,
                           wa_ref, wb_ref, bc_ref, out_ref,
                           gf_scr, pool_scr, bias_scr):
    p = pl.program_id(1)                     # 0: encode + pool, 1: segment
    t = pl.program_id(2)                     # N-tile index
    tn = x_ref.shape[1]                      # points per tile
    row = pl.multiple_of(t * tn, tn)         # aligned offset into gf scratch

    # ---------------- pass 0: per-point MLP + running max-pool --------------
    @pl.when(p == 0)
    def _encode_tile():
        x = x_ref[0]                                              # (TN, 3) f32
        # conv1 (K=3) on the VPU: three broadcast FMAs (avoids a K=3 MXU op).
        h1 = (x[:, 0:1] * w1_ref[0:1, :]
              + x[:, 1:2] * w1_ref[1:2, :]
              + x[:, 2:3] * w1_ref[2:3, :]
              + b1_ref[...])
        h1 = jnp.maximum(h1, 0.0).astype(jnp.bfloat16)            # (TN, 64)
        h2 = jnp.dot(h1, w2_ref[...],
                     preferred_element_type=jnp.float32) + b2_ref[...]
        h2 = jnp.maximum(h2, 0.0).astype(jnp.bfloat16)            # (TN, 128)
        gf = jnp.dot(h2, w3_ref[...],
                     preferred_element_type=jnp.float32) + b3_ref[...]
        gf = jnp.maximum(gf, 0.0)                                 # (TN, 1024) f32
        # gf stays resident in VMEM (bf16) -- no HBM round trip.
        gf_scr[pl.ds(row, tn), :] = gf.astype(jnp.bfloat16)
        # Running global max-pool over points, in f32.
        @pl.when(t == 0)
        def _init_pool():
            pool_scr[...] = jnp.full((1, 1024), -jnp.inf, jnp.float32)
        pool_scr[...] = jnp.maximum(pool_scr[...],
                                    jnp.max(gf, axis=0, keepdims=True))

    # ---------------- pass 1: global head + per-point segmentation ----------
    @pl.when(p == 1)
    def _segment_tile():
        # fc1 -> fc2 -> fold into the fc3 bias: once per batch element (not
        # per N-tile).  Kept in-kernel because full fusion means the pooled
        # vector never leaves VMEM.
        @pl.when(t == 0)
        def _global_head():
            g = pool_scr[...].astype(jnp.bfloat16)                # (1, 1024)
            h = jnp.dot(g, wf1_ref[...],
                        preferred_element_type=jnp.float32) + bf1_ref[...]
            h = jnp.maximum(h, 0.0).astype(jnp.bfloat16)          # (1, 512)
            # TODO(synk): nn.Dropout(0.3) is identity in eval mode; omitted.
            g2 = jnp.dot(h, wf2_ref[...],
                         preferred_element_type=jnp.float32) + bf2_ref[...]
            g2 = jnp.maximum(g2, 0.0).astype(jnp.bfloat16)        # (1, 256)
            bias_scr[...] = (jnp.dot(g2, wb_ref[...],
                                     preferred_element_type=jnp.float32)
                             + bc_ref[...])                       # (1, C_pad)
        gf_t = gf_scr[pl.ds(row, tn), :]                          # (TN, 1024) bf16
        out = (jnp.dot(gf_t, wa_ref[...],
                       preferred_element_type=jnp.float32)
               + bias_scr[...])                                   # (TN, C_pad)
        out_ref[0] = out


def pointnet_forward(x_ncl, params, num_classes, *, tile_n=256):
    """x_ncl: (B, 3, N) float32 (PyTorch NCL layout).
    Returns (B, N, num_classes) == PyTorch's pointwise_output.permute(0, 2, 1)."""
    B, cin, N = x_ncl.shape
    assert cin == 3
    (w1, b1, w2, b2, w3, b3, wf1, bf1, wf2, bf2, wa, wb, bc) = params
    c_pad = wa.shape[1]                      # num_classes padded to mult of 128

    tn = min(tile_n, N)
    assert N % tn == 0 and tn % 8 == 0, (N, tn)
    nt = N // tn

    x = jnp.transpose(x_ncl, (0, 2, 1)).astype(jnp.float32)       # (B, N, 3)

    # grid = (batch, pass, n_tile)
    # pass 1 keeps the last-fetched x tile (no extra DMA); output blocks are
    # only ever flushed with data written in pass 1.
    x_map = lambda b, p, t: (b, t * (1 - p) + (nt - 1) * p, 0)
    out_map = lambda b, p, t: (b, t * p, 0)
    const = lambda b, p, t: (0, 0)

    def wspec(shape):
        # Constant index map => fetched once; default buffering (see header).
        return pl.BlockSpec(shape, const)

    out_padded = pl.pallas_call(
        _pointnet_fused_kernel,
        out_shape=jax.ShapeDtypeStruct((B, N, c_pad), jnp.float32),
        grid=(B, 2, nt),
        in_specs=[
            pl.BlockSpec((1, tn, 3), x_map),
            wspec((3, 64)), wspec((1, 64)),                        # conv1 (f32, VPU)
            wspec((64, 128)), wspec((1, 128)),                     # conv2
            wspec((128, 1024)), wspec((1, 1024)),                  # conv3
            wspec((1024, 512)), wspec((1, 512)),                   # fc1
            wspec((512, 256)), wspec((1, 256)),                    # fc2
            wspec((1024, c_pad)), wspec((256, c_pad)), wspec((1, c_pad)),  # fc3 split
        ],
        out_specs=pl.BlockSpec((1, tn, c_pad), out_map),
        scratch_shapes=[
            pltpu.VMEM((N, 1024), jnp.bfloat16),   # gf, resident per batch elem
            pltpu.VMEM((1, 1024), jnp.float32),    # running max-pool
            pltpu.VMEM((1, c_pad), jnp.float32),   # per-batch head bias
        ],
        compiler_params=pltpu.CompilerParams(
            dimension_semantics=("parallel", "arbitrary", "arbitrary"),
            vmem_limit_bytes=32 * 1024 * 1024),
    )(x, w1, b1, w2, b2, w3, b3, wf1, bf1, wf2, bf2, wa, wb, bc)

    return out_padded[..., :num_classes]                          # (B, N, C)


def init_params(key, num_classes):
    """Deterministic synthetic weights, stored transposed vs. PyTorch so each
    layer is a right-multiply (y = x @ W + b).  MXU weights are bfloat16; the
    class dimension is zero-padded to a multiple of 128 for lane-dense stores."""
    c_pad = ((num_classes + 127) // 128) * 128
    ks = jax.random.split(key, 7)

    def lin(k, cin, cout):
        scale = 1.0 / jnp.sqrt(jnp.float32(cin))
        w = jax.random.normal(k, (cin, cout), jnp.float32) * scale
        b = jnp.full((1, cout), 0.01, jnp.float32)
        return w, b

    w1, b1 = lin(ks[0], 3, 64)                      # conv1 (kept f32; VPU path)
    w2, b2 = lin(ks[1], 64, 128)                    # conv2
    w3, b3 = lin(ks[2], 128, 1024)                  # conv3
    wf1, bf1 = lin(ks[3], 1024, 512)                # fc1
    wf2, bf2 = lin(ks[4], 512, 256)                 # fc2
    # TODO(synk): PyTorch declares fc3 = Conv1d(256, num_classes, 1) but feeds
    # it 1024+256=1280 channels (that forward would raise in PyTorch); we
    # implement the intended 1280 -> C pointwise conv split into the
    # global-feature part (Wa: 1024 -> C) and the broadcast-fc2 part
    # (Wb: 256 -> C); only Wa's bias is kept.
    wa, bc = lin(ks[5], 1024, num_classes)
    wb, _ = lin(ks[6], 256, num_classes)

    def pad_c(a):
        return jnp.pad(a, ((0, 0), (0, c_pad - num_classes)))

    return (w1, b1,
            w2.astype(jnp.bfloat16), b2,
            w3.astype(jnp.bfloat16), b3,
            wf1.astype(jnp.bfloat16), bf1,
            wf2.astype(jnp.bfloat16), bf2,
            pad_c(wa).astype(jnp.bfloat16),
            pad_c(wb).astype(jnp.bfloat16),
            pad_c(bc))


if __name__ == "__main__":
    B, N, NUM_CLASSES = 2, 512, 4
    key = jax.random.PRNGKey(0)
    k_x, k_p = jax.random.split(key)

    x = jax.random.normal(k_x, (B, 3, N), jnp.float32)   # PyTorch NCL layout
    params = init_params(k_p, NUM_CLASSES)

    out = pointnet_forward(x, params, NUM_CLASSES, tile_n=256)
    out = jax.block_until_ready(out)
    assert out.shape == (B, N, NUM_CLASSES), out.shape
    print("KERNEL_OK")
</pallas_src>

<mosaic_0001>
module attributes {stable_mosaic.version = 11 : i64} {
  func.func @_pointnet_fused_kernel(%arg0: i32, %arg1: i32, %arg2: i32, %arg3: memref<1x256x3xf32, #tpu.memory_space<vmem>>, %arg4: memref<3x64xf32, #tpu.memory_space<vmem>>, %arg5: memref<1x64xf32, #tpu.memory_space<vmem>>, %arg6: memref<64x128xbf16, #tpu.memory_space<vmem>>, %arg7: memref<1x128xf32, #tpu.memory_space<vmem>>, %arg8: memref<128x1024xbf16, #tpu.memory_space<vmem>>, %arg9: memref<1x1024xf32, #tpu.memory_space<vmem>>, %arg10: memref<1024x512xbf16, #tpu.memory_space<vmem>>, %arg11: memref<1x512xf32, #tpu.memory_space<vmem>>, %arg12: memref<512x256xbf16, #tpu.memory_space<vmem>>, %arg13: memref<1x256xf32, #tpu.memory_space<vmem>>, %arg14: memref<1024x128xbf16, #tpu.memory_space<vmem>>, %arg15: memref<256x128xbf16, #tpu.memory_space<vmem>>, %arg16: memref<1x128xf32, #tpu.memory_space<vmem>>, %arg17: memref<1x256x128xf32, #tpu.memory_space<vmem>>, %arg18: memref<512x1024xbf16, #tpu.memory_space<vmem>>, %arg19: memref<1x1024xf32, #tpu.memory_space<vmem>>, %arg20: memref<1x128xf32, #tpu.memory_space<vmem>>) attributes {dimension_semantics = [#tpu.dimension_semantics<parallel>, #tpu.dimension_semantics<arbitrary>, #tpu.dimension_semantics<arbitrary>], iteration_bounds = array<i64: 2, 2, 2>, scalar_prefetch = 0 : i64, scratch_operands = 3 : i64, tpu.core_type = #tpu.core_type<tc>, window_params = [{transform_indices = @transform_0, window_bounds = array<i64: 1, 256, 3>}, {pipeline_mode = #tpu.pipeline_mode<synchronous>, transform_indices = @transform_1, window_bounds = array<i64: 3, 64>}, {pipeline_mode = #tpu.pipeline_mode<synchronous>, transform_indices = @transform_2, window_bounds = array<i64: 1, 64>}, {pipeline_mode = #tpu.pipeline_mode<synchronous>, transform_indices = @transform_3, window_bounds = array<i64: 64, 128>}, {pipeline_mode = #tpu.pipeline_mode<synchronous>, transform_indices = @transform_4, window_bounds = array<i64: 1, 128>}, {pipeline_mode = #tpu.pipeline_mode<synchronous>, transform_indices = @transform_5, window_bounds = array<i64: 128, 1024>}, {pipeline_mode = #tpu.pipeline_mode<synchronous>, transform_indices = @transform_6, window_bounds = array<i64: 1, 1024>}, {pipeline_mode = #tpu.pipeline_mode<synchronous>, transform_indices = @transform_7, window_bounds = array<i64: 1024, 512>}, {pipeline_mode = #tpu.pipeline_mode<synchronous>, transform_indices = @transform_8, window_bounds = array<i64: 1, 512>}, {pipeline_mode = #tpu.pipeline_mode<synchronous>, transform_indices = @transform_9, window_bounds = array<i64: 512, 256>}, {pipeline_mode = #tpu.pipeline_mode<synchronous>, transform_indices = @transform_10, window_bounds = array<i64: 1, 256>}, {pipeline_mode = #tpu.pipeline_mode<synchronous>, transform_indices = @transform_11, window_bounds = array<i64: 1024, 128>}, {pipeline_mode = #tpu.pipeline_mode<synchronous>, transform_indices = @transform_12, window_bounds = array<i64: 256, 128>}, {pipeline_mode = #tpu.pipeline_mode<synchronous>, transform_indices = @transform_13, window_bounds = array<i64: 1, 128>}, {transform_indices = @transform_14, window_bounds = array<i64: 1, 256, 128>}]} {
    %c256_i32 = arith.constant 256 : i32
    %0 = arith.muli %arg2, %c256_i32 : i32
    %1 = tpu.assume_multiple %0, 256 : i32
    %c0_i32 = arith.constant 0 : i32
    %2 = arith.cmpi eq, %arg1, %c0_i32 : i32
    %3 = arith.extui %2 : i1 to i32
    %c0_i32_0 = arith.constant 0 : i32
    %4 = arith.cmpi ne, %3, %c0_i32_0 : i32
    scf.if %4 {
      %c0 = arith.constant 0 : index
      %c0_2 = arith.constant 0 : index
      %c0_3 = arith.constant 0 : index
      %8 = vector.load %arg3[%c0, %c0_2, %c0_3] : memref<1x256x3xf32, #tpu.memory_space<vmem>>, vector<1x256x3xf32>
      %9 = vector.shape_cast %8 : vector<1x256x3xf32> to vector<256x3xf32>
      %10 = vector.extract_strided_slice %9 {offsets = [0, 0], sizes = [256, 1], strides = [1, 1]} : vector<256x3xf32> to vector<256x1xf32>
      %c0_4 = arith.constant 0 : index
      %c0_5 = arith.constant 0 : index
      %11 = vector.load %arg4[%c0_4, %c0_5] : memref<3x64xf32, #tpu.memory_space<vmem>>, vector<1x64xf32>
      %12 = vector.broadcast %10 : vector<256x1xf32> to vector<256x64xf32>
      %13 = vector.broadcast %11 : vector<1x64xf32> to vector<256x64xf32>
      %14 = arith.mulf %12, %13 : vector<256x64xf32>
      %15 = vector.extract_strided_slice %9 {offsets = [0, 1], sizes = [256, 1], strides = [1, 1]} : vector<256x3xf32> to vector<256x1xf32>
      %c1 = arith.constant 1 : index
      %c0_6 = arith.constant 0 : index
      %16 = vector.load %arg4[%c1, %c0_6] : memref<3x64xf32, #tpu.memory_space<vmem>>, vector<1x64xf32>
      %17 = vector.broadcast %15 : vector<256x1xf32> to vector<256x64xf32>
      %18 = vector.broadcast %16 : vector<1x64xf32> to vector<256x64xf32>
      %19 = arith.mulf %17, %18 : vector<256x64xf32>
      %20 = arith.addf %14, %19 : vector<256x64xf32>
      %21 = vector.extract_strided_slice %9 {offsets = [0, 2], sizes = [256, 1], strides = [1, 1]} : vector<256x3xf32> to vector<256x1xf32>
      %c2 = arith.constant 2 : index
      %c0_7 = arith.constant 0 : index
      %22 = vector.load %arg4[%c2, %c0_7] : memref<3x64xf32, #tpu.memory_space<vmem>>, vector<1x64xf32>
      %23 = vector.broadcast %21 : vector<256x1xf32> to vector<256x64xf32>
      %24 = vector.broadcast %22 : vector<1x64xf32> to vector<256x64xf32>
      %25 = arith.mulf %23, %24 : vector<256x64xf32>
      %26 = arith.addf %20, %25 : vector<256x64xf32>
      %c0_8 = arith.constant 0 : index
      %c0_9 = arith.constant 0 : index
      %27 = vector.load %arg5[%c0_8, %c0_9] : memref<1x64xf32, #tpu.memory_space<vmem>>, vector<1x64xf32>
      %28 = vector.broadcast %27 : vector<1x64xf32> to vector<256x64xf32>
      %29 = arith.addf %26, %28 : vector<256x64xf32>
      %cst = arith.constant 0.000000e+00 : f32
      %30 = vector.broadcast %cst : f32 to vector<256x64xf32>
      %31 = arith.maximumf %29, %30 : vector<256x64xf32>
      %32 = arith.truncf %31 : vector<256x64xf32> to vector<256x64xbf16>
      %c0_10 = arith.constant 0 : index
      %c0_11 = arith.constant 0 : index
      %33 = vector.load %arg6[%c0_10, %c0_11] : memref<64x128xbf16, #tpu.memory_space<vmem>>, vector<64x128xbf16>
      %cst_12 = arith.constant dense<0.000000e+00> : vector<256x128xf32>
      %34 = tpu.matmul %32, %33, %cst_12 {dimension_numbers = #tpu.dot_dimension_numbers<[1], [0], [0], [1], [0, 0, 1, 1], [], []>} : vector<256x64xbf16>, vector<64x128xbf16>, vector<256x128xf32> -> vector<256x128xf32>
      %c0_13 = arith.constant 0 : index
      %c0_14 = arith.constant 0 : index
      %35 = vector.load %arg7[%c0_13, %c0_14] : memref<1x128xf32, #tpu.memory_space<vmem>>, vector<1x128xf32>
      %36 = vector.broadcast %35 : vector<1x128xf32> to vector<256x128xf32>
      %37 = arith.addf %34, %36 : vector<256x128xf32>
      %cst_15 = arith.constant 0.000000e+00 : f32
      %38 = vector.broadcast %cst_15 : f32 to vector<256x128xf32>
      %39 = arith.maximumf %37, %38 : vector<256x128xf32>
      %40 = arith.truncf %39 : vector<256x128xf32> to vector<256x128xbf16>
      %c0_16 = arith.constant 0 : index
      %c0_17 = arith.constant 0 : index
      %41 = vector.load %arg8[%c0_16, %c0_17] : memref<128x1024xbf16, #tpu.memory_space<vmem>>, vector<128x1024xbf16>
      %cst_18 = arith.constant dense<0.000000e+00> : vector<256x1024xf32>
      %42 = tpu.matmul %40, %41, %cst_18 {dimension_numbers = #tpu.dot_dimension_numbers<[1], [0], [0], [1], [0, 0, 1, 1], [], []>} : vector<256x128xbf16>, vector<128x1024xbf16>, vector<256x1024xf32> -> vector<256x1024xf32>
      %c0_19 = arith.constant 0 : index
      %c0_20 = arith.constant 0 : index
      %43 = vector.load %arg9[%c0_19, %c0_20] : memref<1x1024xf32, #tpu.memory_space<vmem>>, vector<1x1024xf32>
      %44 = vector.broadcast %43 : vector<1x1024xf32> to vector<256x1024xf32>
      %45 = arith.addf %42, %44 : vector<256x1024xf32>
      %cst_21 = arith.constant 0.000000e+00 : f32
      %46 = vector.broadcast %cst_21 : f32 to vector<256x1024xf32>
      %47 = arith.maximumf %45, %46 : vector<256x1024xf32>
      %48 = arith.truncf %47 : vector<256x1024xf32> to vector<256x1024xbf16>
      %49 = arith.index_cast %1 : i32 to index
      %c0_22 = arith.constant 0 : index
      %50 = vector.load %arg18[%49, %c0_22] : memref<512x1024xbf16, #tpu.memory_space<vmem>>, vector<256x1024xbf16>
      tpu.vector_store %arg18[%49, %c0_22], %48 {strides = array<i32>} : memref<512x1024xbf16, #tpu.memory_space<vmem>>, vector<256x1024xbf16>,
      %c0_i32_23 = arith.constant 0 : i32
      %51 = arith.cmpi eq, %arg2, %c0_i32_23 : i32
      %52 = arith.extui %51 : i1 to i32
      %c0_i32_24 = arith.constant 0 : i32
      %53 = arith.cmpi ne, %52, %c0_i32_24 : i32
      scf.if %53 {
        %cst_30 = arith.constant 0xFF800000 : f32
        %59 = vector.broadcast %cst_30 : f32 to vector<1x1024xf32>
        %c0_31 = arith.constant 0 : index
        %c0_32 = arith.constant 0 : index
        %60 = vector.load %arg19[%c0_31, %c0_32] : memref<1x1024xf32, #tpu.memory_space<vmem>>, vector<1x1024xf32>
        tpu.vector_store %arg19[%c0_31, %c0_32], %59 {strides = array<i32>} : memref<1x1024xf32, #tpu.memory_space<vmem>>, vector<1x1024xf32>,
      } else {
      }
      %c0_25 = arith.constant 0 : index
      %c0_26 = arith.constant 0 : index
      %54 = vector.load %arg19[%c0_25, %c0_26] : memref<1x1024xf32, #tpu.memory_space<vmem>>, vector<1x1024xf32>
      %cst_27 = arith.constant dense<0xFF800000> : vector<1024xf32>
      %55 = vector.multi_reduction <maximumf>, %47, %cst_27 [0] : vector<256x1024xf32> to vector<1024xf32>
      %56 = vector.shape_cast %55 : vector<1024xf32> to vector<1x1024xf32>
      %57 = arith.maximumf %54, %56 : vector<1x1024xf32>
      %c0_28 = arith.constant 0 : index
      %c0_29 = arith.constant 0 : index
      %58 = vector.load %arg19[%c0_28, %c0_29] : memref<1x1024xf32, #tpu.memory_space<vmem>>, vector<1x1024xf32>
      tpu.vector_store %arg19[%c0_28, %c0_29], %57 {strides = array<i32>} : memref<1x1024xf32, #tpu.memory_space<vmem>>, vector<1x1024xf32>,
    } else {
    }
    %c1_i32 = arith.constant 1 : i32
    %5 = arith.cmpi eq, %arg1, %c1_i32 : i32
    %6 = arith.extui %5 : i1 to i32
    %c0_i32_1 = arith.constant 0 : i32
    %7 = arith.cmpi ne, %6, %c0_i32_1 : i32
    scf.if %7 {
      %c0_i32_2 = arith.constant 0 : i32
      %8 = arith.cmpi eq, %arg2, %c0_i32_2 : i32
      %9 = arith.extui %8 : i1 to i32
      %c0_i32_3 = arith.constant 0 : i32
      %10 = arith.cmpi ne, %9, %c0_i32_3 : i32
      scf.if %10 {
        %c0_11 = arith.constant 0 : index
        %c0_12 = arith.constant 0 : index
        %21 = vector.load %arg19[%c0_11, %c0_12] : memref<1x1024xf32, #tpu.memory_space<vmem>>, vector<1x1024xf32>
        %22 = arith.truncf %21 : vector<1x1024xf32> to vector<1x1024xbf16>
        %c0_13 = arith.constant 0 : index
        %c0_14 = arith.constant 0 : index
        %23 = vector.load %arg10[%c0_13, %c0_14] : memref<1024x512xbf16, #tpu.memory_space<vmem>>, vector<1024x512xbf16>
        %cst_15 = arith.constant dense<0.000000e+00> : vector<1x512xf32>
        %24 = tpu.matmul %22, %23, %cst_15 {dimension_numbers = #tpu.dot_dimension_numbers<[1], [0], [0], [1], [0, 0, 1, 1], [], []>} : vector<1x1024xbf16>, vector<1024x512xbf16>, vector<1x512xf32> -> vector<1x512xf32>
        %c0_16 = arith.constant 0 : index
        %c0_17 = arith.constant 0 : index
        %25 = vector.load %arg11[%c0_16, %c0_17] : memref<1x512xf32, #tpu.memory_space<vmem>>, vector<1x512xf32>
        %26 = arith.addf %24, %25 : vector<1x512xf32>
        %cst_18 = arith.constant 0.000000e+00 : f32
        %27 = vector.broadcast %cst_18 : f32 to vector<1x512xf32>
        %28 = arith.maximumf %26, %27 : vector<1x512xf32>
        %29 = arith.truncf %28 : vector<1x512xf32> to vector<1x512xbf16>
        %c0_19 = arith.constant 0 : index
        %c0_20 = arith.constant 0 : index
        %30 = vector.load %arg12[%c0_19, %c0_20] : memref<512x256xbf16, #tpu.memory_space<vmem>>, vector<512x256xbf16>
        %cst_21 = arith.constant dense<0.000000e+00> : vector<1x256xf32>
        %31 = tpu.matmul %29, %30, %cst_21 {dimension_numbers = #tpu.dot_dimension_numbers<[1], [0], [0], [1], [0, 0, 1, 1], [], []>} : vector<1x512xbf16>, vector<512x256xbf16>, vector<1x256xf32> -> vector<1x256xf32>
        %c0_22 = arith.constant 0 : index
        %c0_23 = arith.constant 0 : index
        %32 = vector.load %arg13[%c0_22, %c0_23] : memref<1x256xf32, #tpu.memory_space<vmem>>, vector<1x256xf32>
        %33 = arith.addf %31, %32 : vector<1x256xf32>
        %cst_24 = arith.constant 0.000000e+00 : f32
        %34 = vector.broadcast %cst_24 : f32 to vector<1x256xf32>
        %35 = arith.maximumf %33, %34 : vector<1x256xf32>
        %36 = arith.truncf %35 : vector<1x256xf32> to vector<1x256xbf16>
        %c0_25 = arith.constant 0 : index
        %c0_26 = arith.constant 0 : index
        %37 = vector.load %arg15[%c0_25, %c0_26] : memref<256x128xbf16, #tpu.memory_space<vmem>>, vector<256x128xbf16>
        %cst_27 = arith.constant dense<0.000000e+00> : vector<1x128xf32>
        %38 = tpu.matmul %36, %37, %cst_27 {dimension_numbers = #tpu.dot_dimension_numbers<[1], [0], [0], [1], [0, 0, 1, 1], [], []>} : vector<1x256xbf16>, vector<256x128xbf16>, vector<1x128xf32> -> vector<1x128xf32>
        %c0_28 = arith.constant 0 : index
        %c0_29 = arith.constant 0 : index
        %39 = vector.load %arg16[%c0_28, %c0_29] : memref<1x128xf32, #tpu.memory_space<vmem>>, vector<1x128xf32>
        %40 = arith.addf %38, %39 : vector<1x128xf32>
        %c0_30 = arith.constant 0 : index
        %c0_31 = arith.constant 0 : index
        %41 = vector.load %arg20[%c0_30, %c0_31] : memref<1x128xf32, #tpu.memory_space<vmem>>, vector<1x128xf32>
        tpu.vector_store %arg20[%c0_30, %c0_31], %40 {strides = array<i32>} : memref<1x128xf32, #tpu.memory_space<vmem>>, vector<1x128xf32>,
      } else {
      }
      %11 = arith.index_cast %1 : i32 to index
      %c0 = arith.constant 0 : index
      %12 = vector.load %arg18[%11, %c0] : memref<512x1024xbf16, #tpu.memory_space<vmem>>, vector<256x1024xbf16>
      %c0_4 = arith.constant 0 : index
      %c0_5 = arith.constant 0 : index
      %13 = vector.load %arg14[%c0_4, %c0_5] : memref<1024x128xbf16, #tpu.memory_space<vmem>>, vector<1024x128xbf16>
      %cst = arith.constant dense<0.000000e+00> : vector<256x128xf32>
      %14 = tpu.matmul %12, %13, %cst {dimension_numbers = #tpu.dot_dimension_numbers<[1], [0], [0], [1], [0, 0, 1, 1], [], []>} : vector<256x1024xbf16>, vector<1024x128xbf16>, vector<256x128xf32> -> vector<256x128xf32>
      %c0_6 = arith.constant 0 : index
      %c0_7 = arith.constant 0 : index
      %15 = vector.load %arg20[%c0_6, %c0_7] : memref<1x128xf32, #tpu.memory_space<vmem>>, vector<1x128xf32>
      %16 = vector.broadcast %15 : vector<1x128xf32> to vector<256x128xf32>
      %17 = arith.addf %14, %16 : vector<256x128xf32>
      %c0_8 = arith.constant 0 : index
      %c0_9 = arith.constant 0 : index
      %c0_10 = arith.constant 0 : index
      %18 = vector.load %arg17[%c0_8, %c0_9, %c0_10] : memref<1x256x128xf32, #tpu.memory_space<vmem>>, vector<1x256x128xf32>
      %19 = vector.shape_cast %18 : vector<1x256x128xf32> to vector<256x128xf32>
      %20 = vector.shape_cast %17 : vector<256x128xf32> to vector<1x256x128xf32>
      tpu.vector_store %arg17[%c0_8, %c0_9, %c0_10], %20 {strides = array<i32>} : memref<1x256x128xf32, #tpu.memory_space<vmem>>, vector<1x256x128xf32>,
    } else {
    }
    return
  }
  func.func @transform_0(%arg0: i32, %arg1: i32, %arg2: i32) -> (i32, i32, i32) {
    %c1_i32 = arith.constant 1 : i32
    %0 = arith.subi %c1_i32, %arg1 : i32
    %1 = arith.muli %arg2, %0 : i32
    %c1_i32_0 = arith.constant 1 : i32
    %2 = arith.muli %c1_i32_0, %arg1 : i32
    %3 = arith.addi %1, %2 : i32
    %c0_i32 = arith.constant 0 : i32
    %c0_i32_1 = arith.constant 0 : i32
    return %arg0, %3, %c0_i32 : i32, i32, i32
  }
  func.func @transform_1(%arg0: i32, %arg1: i32, %arg2: i32) -> (i32, i32) {
    %c0_i32 = arith.constant 0 : i32
    %c0_i32_0 = arith.constant 0 : i32
    %c0_i32_1 = arith.constant 0 : i32
    return %c0_i32, %c0_i32_0 : i32, i32
  }
  func.func @transform_2(%arg0: i32, %arg1: i32, %arg2: i32) -> (i32, i32) {
    %c0_i32 = arith.constant 0 : i32
    %c0_i32_0 = arith.constant 0 : i32
    %c0_i32_1 = arith.constant 0 : i32
    return %c0_i32, %c0_i32_0 : i32, i32
  }
  func.func @transform_3(%arg0: i32, %arg1: i32, %arg2: i32) -> (i32, i32) {
    %c0_i32 = arith.constant 0 : i32
    %c0_i32_0 = arith.constant 0 : i32
    %c0_i32_1 = arith.constant 0 : i32
    return %c0_i32, %c0_i32_0 : i32, i32
  }
  func.func @transform_4(%arg0: i32, %arg1: i32, %arg2: i32) -> (i32, i32) {
    %c0_i32 = arith.constant 0 : i32
    %c0_i32_0 = arith.constant 0 : i32
    %c0_i32_1 = arith.constant 0 : i32
    return %c0_i32, %c0_i32_0 : i32, i32
  }
  func.func @transform_5(%arg0: i32, %arg1: i32, %arg2: i32) -> (i32, i32) {
    %c0_i32 = arith.constant 0 : i32
    %c0_i32_0 = arith.constant 0 : i32
    %c0_i32_1 = arith.constant 0 : i32
    return %c0_i32, %c0_i32_0 : i32, i32
  }
  func.func @transform_6(%arg0: i32, %arg1: i32, %arg2: i32) -> (i32, i32) {
    %c0_i32 = arith.constant 0 : i32
    %c0_i32_0 = arith.constant 0 : i32
    %c0_i32_1 = arith.constant 0 : i32
    return %c0_i32, %c0_i32_0 : i32, i32
  }
  func.func @transform_7(%arg0: i32, %arg1: i32, %arg2: i32) -> (i32, i32) {
    %c0_i32 = arith.constant 0 : i32
    %c0_i32_0 = arith.constant 0 : i32
    %c0_i32_1 = arith.constant 0 : i32
    return %c0_i32, %c0_i32_0 : i32, i32
  }
  func.func @transform_8(%arg0: i32, %arg1: i32, %arg2: i32) -> (i32, i32) {
    %c0_i32 = arith.constant 0 : i32
    %c0_i32_0 = arith.constant 0 : i32
    %c0_i32_1 = arith.constant 0 : i32
    return %c0_i32, %c0_i32_0 : i32, i32
  }
  func.func @transform_9(%arg0: i32, %arg1: i32, %arg2: i32) -> (i32, i32) {
    %c0_i32 = arith.constant 0 : i32
    %c0_i32_0 = arith.constant 0 : i32
    %c0_i32_1 = arith.constant 0 : i32
    return %c0_i32, %c0_i32_0 : i32, i32
  }
  func.func @transform_10(%arg0: i32, %arg1: i32, %arg2: i32) -> (i32, i32) {
    %c0_i32 = arith.constant 0 : i32
    %c0_i32_0 = arith.constant 0 : i32
    %c0_i32_1 = arith.constant 0 : i32
    return %c0_i32, %c0_i32_0 : i32, i32
  }
  func.func @transform_11(%arg0: i32, %arg1: i32, %arg2: i32) -> (i32, i32) {
    %c0_i32 = arith.constant 0 : i32
    %c0_i32_0 = arith.constant 0 : i32
    %c0_i32_1 = arith.constant 0 : i32
    return %c0_i32, %c0_i32_0 : i32, i32
  }
  func.func @transform_12(%arg0: i32, %arg1: i32, %arg2: i32) -> (i32, i32) {
    %c0_i32 = arith.constant 0 : i32
    %c0_i32_0 = arith.constant 0 : i32
    %c0_i32_1 = arith.constant 0 : i32
    return %c0_i32, %c0_i32_0 : i32, i32
  }
  func.func @transform_13(%arg0: i32, %arg1: i32, %arg2: i32) -> (i32, i32) {
    %c0_i32 = arith.constant 0 : i32
    %c0_i32_0 = arith.constant 0 : i32
    %c0_i32_1 = arith.constant 0 : i32
    return %c0_i32, %c0_i32_0 : i32, i32
  }
  func.func @transform_14(%arg0: i32, %arg1: i32, %arg2: i32) -> (i32, i32, i32) {
    %0 = arith.muli %arg2, %arg1 : i32
    %c0_i32 = arith.constant 0 : i32
    %c0_i32_0 = arith.constant 0 : i32
    return %arg0, %0, %c0_i32 : i32, i32, i32
  }
}

</mosaic_0001>

<llo_original>
// kernel: tpu_custom_call.1
$region0: #{tpu_custom_call.1}
  #allocation0 [shape = 'u32[]', space=smem, size = 0x4, offset = 0x4, fixed_abs, tag = 'smem constant byte address 0x4 - core index']
  #allocation1 [shape = 'u32[72,128]{1,0:T(1,128)}', space=vmem, size = 0x9000, scoped, tag = 'internal scratch']
  #allocation2 [shape = 'bf16[512,1024]{1,0:T(8,128)(2,1)}', space=vmem, size = 0x100000, scoped, tag = 'scratch operand']
  #allocation3 [shape = 'f32[1,1024]{1,0:T(1,128)}', space=vmem, size = 0x1000, scoped, tag = 'scratch operand']
  #allocation4 [shape = 'f32[1,128]{1,0:T(1,128)}', space=vmem, size = 0x200, scoped, tag = 'scratch operand']
  %s0 = inlined_call_operand.vmem [shape: f32[2,512,3], index: 0, kind: input, shape index: {}]
  %s1 = inlined_call_operand.vmem [shape: f32[3,64], index: 1, kind: input, shape index: {}]
  %s2 = inlined_call_operand.vmem [shape: f32[1,64], index: 2, kind: input, shape index: {}]
  %s3 = inlined_call_operand.hbm [shape: bf16[64,128], index: 3, kind: input, shape index: {}]
  %s4 = inlined_call_operand.vmem [shape: f32[1,128], index: 4, kind: input, shape index: {}]
  %s5 = inlined_call_operand.vmem [shape: bf16[128,1024], index: 5, kind: input, shape index: {}]
  %s6 = inlined_call_operand.vmem [shape: f32[1,1024], index: 6, kind: input, shape index: {}]
  %s7 = inlined_call_operand.hbm [shape: bf16[1024,512], index: 7, kind: input, shape index: {}]
  %s8 = inlined_call_operand.vmem [shape: f32[1,512], index: 8, kind: input, shape index: {}]
  %s9 = inlined_call_operand.vmem [shape: bf16[512,256], index: 9, kind: input, shape index: {}]
  %s10 = inlined_call_operand.vmem [shape: f32[1,256], index: 10, kind: input, shape index: {}]
  %s11 = inlined_call_operand.hbm [shape: bf16[1024,128], index: 11, kind: input, shape index: {}]
  %s12 = inlined_call_operand.hbm [shape: bf16[256,128], index: 12, kind: input, shape index: {}]
  %s13 = inlined_call_operand.vmem [shape: f32[1,128], index: 13, kind: input, shape index: {}]
  %s14 = inlined_call_operand.hbm [shape: f32[2,512,128], index: 14, kind: output, shape index: {}]
  %s15 = sld [smem:[#allocation0]]
  $region121: #{tpu_custom_call.1} parent=0
    _
  %s17 = ssub.s32 1, %s15
  %s18 = scalar_select 0, %s17, %s15
  $region1: #{tpu_custom_call.1} parent=0
    #allocation5 [shape = 'u8[16384]{0}', space=vmem, size = 0x4000, scoped, tag = 'input window, operand 3, single buffered']
    #allocation6 [shape = 's32[2]{0}', space=sflag, size = 0x8, scoped, tag = 'scoped memory for tpu_custom_call.1']
    #allocation7 [shape = 's32[2]{0}', space=sflag, size = 0x8, scoped, tag = 'scoped memory for tpu_custom_call.1']
    #allocation8 [shape = 'u8[1048576]{0}', space=vmem, size = 0x100000, scoped, tag = 'input window, operand 7, single buffered']
    #allocation9 [shape = 's32[1]{0}', space=sflag, size = 0x4, scoped, tag = 'scoped memory for tpu_custom_call.1']
    #allocation10 [shape = 'u8[262144]{0}', space=vmem, size = 0x40000, scoped, tag = 'input window, operand 11, single buffered']
    #allocation11 [shape = 'u8[65536]{0}', space=vmem, size = 0x10000, scoped, tag = 'input window, operand 12, single buffered']
    #allocation12 [shape = 's32[1]{0}', space=sflag, size = 0x4, scoped, tag = 'scoped memory for tpu_custom_call.1']
    #allocation13 [shape = 'u8[262144]{0}', space=vmem, size = 0x40000, scoped, tag = 'output window, operand 0']
    %19 = vsyncpa [#allocation6], 0
    %20 = vsyncpa [#allocation9], 0
    %21 = vsyncpa [#allocation12], 0
    %22 = vsyncpa [#allocation7], 0
    %s23 = scalar_lea.sflag [#allocation7], 1
    %24 = vsyncpa %s23, 0
    loop: start=0, step=1, limit=10
    $region2: #{tpu_custom_call.1} parent=1 // loop_pre_header
      _
    $region3: #{tpu_custom_call.1} parent=1 // loop_header
      %s26 = sphi 0, %s30
      %p27 = scmp.ge.s32.totalorder %s26, 10
      %s33 = sphi 0, %s52
      %s34 = sphi 0, %s48
      %s35 = sphi 0, %s44
      %s36 = sphi 0, %s33
      %s37 = sphi 0, %s34
      %s38 = sphi 0, %s35
      %s39 = sphi 0, %s36
      %s40 = sphi 0, %s37
      %s41 = sphi 0, %s38
      %s63 = sphi 0, %s65
      %s66 = sphi 0, %s63
      %s67 = sphi 0, %s66
      %s83 = sphi 0, %s67
      %s87 = sphi 0, %s87
      %s89 = sphi 0, %s87
      %s90 = sphi 0, %s89
      %s104 = sphi 0, %s90
      %s108 = sphi 0, %s108
      %s110 = sphi 0, %s108
      %s111 = sphi 0, %s110
      %s125 = sphi 0, %s111
      %s129 = sphi 0, %s129
      %s131 = sphi 0, %s129
      %s132 = sphi 0, %s131
      %s146 = sphi 0, %s132
      %s150 = sphi 0, %s150
      %s152 = sphi 0, %s150
      %s153 = sphi 0, %s152
      %s167 = sphi 0, %s153
      %s171 = sphi 0, %s171
      %s173 = sphi 0, %s171
      %s174 = sphi 0, %s173
      %s188 = sphi 0, %s174
      %s192 = sphi 0, %s192
      %s194 = sphi 0, %s192
      %s195 = sphi 0, %s194
      %s209 = sphi 0, %s195
      %s213 = sphi 0, %s213
      %s215 = sphi 0, %s213
      %s216 = sphi 0, %s215
      %s230 = sphi 0, %s216
      %s234 = sphi 0, %s234
      %s236 = sphi 0, %s234
      %s237 = sphi 0, %s236
      %s251 = sphi 0, %s237
      %s255 = sphi 0, %s255
      %s257 = sphi 0, %s255
      %s258 = sphi 0, %s257
      %s272 = sphi 0, %s258
      %s276 = sphi 0, %s276
      %s278 = sphi 0, %s276
      %s279 = sphi 0, %s278
      %s293 = sphi 0, %s279
      %s297 = sphi 0, %s297
      %s299 = sphi 0, %s297
      %s300 = sphi 0, %s299
      %s314 = sphi 0, %s300
      %s318 = sphi 0, %s318
      %s320 = sphi 0, %s318
      %s321 = sphi 0, %s320
      %s335 = sphi 0, %s321
      %s339 = sphi 0, %s339
      %s341 = sphi 0, %s339
      %s342 = sphi 0, %s341
      %s356 = sphi 0, %s342
      %s366 = sphi 0, %s368
      %s369 = sphi 0, %s366
      %s370 = sphi 0, %s369
      %s386 = sphi 0, %s370
    $region4: #{tpu_custom_call.1} parent=1 // loop_header_branch
      %29 = sbr.rel (%p27) target = $region8
    $region5: #{tpu_custom_call.1} parent=1 // loop_body
      %s31 = ssub.s32 %s26, 1
      %s32 = ssub.s32 %s26, 2
      %s42 = sadd.s32 1, %s35
      %p43 = scmp.ge.s32.totalorder %s42, 2
      %s44 = scalar_select %p43, 0, %s42
      %s45 = sadd.s32 1, %s34
      %s46 = scalar_select %p43, %s45, %s34
      %p47 = scmp.ge.s32.totalorder %s46, 2
      %s48 = scalar_select %p47, 0, %s46
      %s49 = sadd.s32 1, %s33
      %s50 = scalar_select %p47, %s49, %s33
      %p51 = scmp.ge.s32.totalorder %s50, 2
      %s52 = scalar_select %p51, 0, %s50
      %s53 = ssub.s32 1, %s34
      %s54 = smul.u32 %s35, %s53
      %s55 = sadd.s32 %s54, %s34
      %s56 = ssub.s32 1, %s48
      %s57 = smul.u32 %s44, %s56
      %s58 = sadd.s32 %s57, %s48
      %s59 = ssub.s32 %s33, %s52
      %s60 = ssub.s32 %s55, %s58
      %s61 = sor.u32 %s59, %s60
      %p62 = scmp.eq.s32.totalorder %s61, 0
      %s64 = sadd.s32 %s63, 1
      %s65 = scalar_select %p62, %s63, %s64
      %p68 = pneg %p62
      %p69 = scmp.eq.s32.totalorder %s26, 7
      %p70 = por %p68, %p69
      %p71 = scmp.ne.s32.totalorder %s63, %s66
      %p72 = scmp.eq.s32.totalorder %s26, 0
      %p73 = por %p71, %p72
      %p74 = scmp.ne.s32.totalorder %s63, %s66
      %p75 = scmp.eq.s32.totalorder %s31, 7
      %p76 = por %p74, %p75
      %p77 = scmp.ne.s32.totalorder %s66, %s67
      %p78 = scmp.eq.s32.totalorder %s31, 0
      %p79 = por %p77, %p78
      %p80 = scmp.ne.s32.totalorder %s66, %s67
      %p81 = scmp.eq.s32.totalorder %s32, 7
      %p82 = por %p80, %p81
      %p84 = scmp.ne.s32.totalorder %s67, %s83
      %p85 = scmp.eq.s32.totalorder %s32, 0
      %p86 = por %p84, %p85
      %s88 = sadd.s32 %s87, 1
      %p91 = scmp.eq.s32.totalorder %s26, 7
      %p92 = scmp.ne.s32.totalorder %s87, %s89
      %p93 = scmp.eq.s32.totalorder %s26, 0
      %p94 = por %p92, %p93
      %p95 = scmp.ne.s32.totalorder %s87, %s89
      %p96 = scmp.eq.s32.totalorder %s31, 7
      %p97 = por %p95, %p96
      %p98 = scmp.ne.s32.totalorder %s89, %s90
      %p99 = scmp.eq.s32.totalorder %s31, 0
      %p100 = por %p98, %p99
      %p101 = scmp.ne.s32.totalorder %s89, %s90
      %p102 = scmp.eq.s32.totalorder %s32, 7
      %p103 = por %p101, %p102
      %p105 = scmp.ne.s32.totalorder %s90, %s104
      %p106 = scmp.eq.s32.totalorder %s32, 0
      %p107 = por %p105, %p106
      %s109 = sadd.s32 %s108, 1
      %p112 = scmp.eq.s32.totalorder %s26, 7
      %p113 = scmp.ne.s32.totalorder %s108, %s110
      %p114 = scmp.eq.s32.totalorder %s26, 0
      %p115 = por %p113, %p114
      %p116 = scmp.ne.s32.totalorder %s108, %s110
      %p117 = scmp.eq.s32.totalorder %s31, 7
      %p118 = por %p116, %p117
      %p119 = scmp.ne.s32.totalorder %s110, %s111
      %p120 = scmp.eq.s32.totalorder %s31, 0
      %p121 = por %p119, %p120
      %p122 = scmp.ne.s32.totalorder %s110, %s111
      %p123 = scmp.eq.s32.totalorder %s32, 7
      %p124 = por %p122, %p123
      %p126 = scmp.ne.s32.totalorder %s111, %s125
      %p127 = scmp.eq.s32.totalorder %s32, 0
      %p128 = por %p126, %p127
      %s130 = sadd.s32 %s129, 1
      %p133 = scmp.eq.s32.totalorder %s26, 7
      %p134 = scmp.ne.s32.totalorder %s129, %s131
      %p135 = scmp.eq.s32.totalorder %s26, 0
      %p136 = por %p134, %p135
      %p137 = scmp.ne.s32.totalorder %s129, %s131
      %p138 = scmp.eq.s32.totalorder %s31, 7
      %p139 = por %p137, %p138
      %p140 = scmp.ne.s32.totalorder %s131, %s132
      %p141 = scmp.eq.s32.totalorder %s31, 0
      %p142 = por %p140, %p141
      %p143 = scmp.ne.s32.totalorder %s131, %s132
      %p144 = scmp.eq.s32.totalorder %s32, 7
      %p145 = por %p143, %p144
      %p147 = scmp.ne.s32.totalorder %s132, %s146
      %p148 = scmp.eq.s32.totalorder %s32, 0
      %p149 = por %p147, %p148
      %s151 = sadd.s32 %s150, 1
      %p154 = scmp.eq.s32.totalorder %s26, 7
      %p155 = scmp.ne.s32.totalorder %s150, %s152
      %p156 = scmp.eq.s32.totalorder %s26, 0
      %p157 = por %p155, %p156
      %p158 = scmp.ne.s32.totalorder %s150, %s152
      %p159 = scmp.eq.s32.totalorder %s31, 7
      %p160 = por %p158, %p159
      %p161 = scmp.ne.s32.totalorder %s152, %s153
      %p162 = scmp.eq.s32.totalorder %s31, 0
      %p163 = por %p161, %p162
      %p164 = scmp.ne.s32.totalorder %s152, %s153
      %p165 = scmp.eq.s32.totalorder %s32, 7
      %p166 = por %p164, %p165
      %p168 = scmp.ne.s32.totalorder %s153, %s167
      %p169 = scmp.eq.s32.totalorder %s32, 0
      %p170 = por %p168, %p169
      %s172 = sadd.s32 %s171, 1
      %p175 = scmp.eq.s32.totalorder %s26, 7
      %p176 = scmp.ne.s32.totalorder %s171, %s173
      %p177 = scmp.eq.s32.totalorder %s26, 0
      %p178 = por %p176, %p177
      %p179 = scmp.ne.s32.totalorder %s171, %s173
      %p180 = scmp.eq.s32.totalorder %s31, 7
      %p181 = por %p179, %p180
      %p182 = scmp.ne.s32.totalorder %s173, %s174
      %p183 = scmp.eq.s32.totalorder %s31, 0
      %p184 = por %p182, %p183
      %p185 = scmp.ne.s32.totalorder %s173, %s174
      %p186 = scmp.eq.s32.totalorder %s32, 7
      %p187 = por %p185, %p186
      %p189 = scmp.ne.s32.totalorder %s174, %s188
      %p190 = scmp.eq.s32.totalorder %s32, 0
      %p191 = por %p189, %p190
      %s193 = sadd.s32 %s192, 1
      %p196 = scmp.eq.s32.totalorder %s26, 7
      %p197 = scmp.ne.s32.totalorder %s192, %s194
      %p198 = scmp.eq.s32.totalorder %s26, 0
      %p199 = por %p197, %p198
      %p200 = scmp.ne.s32.totalorder %s192, %s194
      %p201 = scmp.eq.s32.totalorder %s31, 7
      %p202 = por %p200, %p201
      %p203 = scmp.ne.s32.totalorder %s194, %s195
      %p204 = scmp.eq.s32.totalorder %s31, 0
      %p205 = por %p203, %p204
      %p206 = scmp.ne.s32.totalorder %s194, %s195
      %p207 = scmp.eq.s32.totalorder %s32, 7
      %p208 = por %p206, %p207
      %p210 = scmp.ne.s32.totalorder %s195, %s209
      %p211 = scmp.eq.s32.totalorder %s32, 0
      %p212 = por %p210, %p211
      %s214 = sadd.s32 %s213, 1
      %p217 = scmp.eq.s32.totalorder %s26, 7
      %p218 = scmp.ne.s32.totalorder %s213, %s215
      %p219 = scmp.eq.s32.totalorder %s26, 0
      %p220 = por %p218, %p219
      %p221 = scmp.ne.s32.totalorder %s213, %s215
      %p222 = scmp.eq.s32.totalorder %s31, 7
      %p223 = por %p221, %p222
      %p224 = scmp.ne.s32.totalorder %s215, %s216
      %p225 = scmp.eq.s32.totalorder %s31, 0
      %p226 = por %p224, %p225
      %p227 = scmp.ne.s32.totalorder %s215, %s216
      %p228 = scmp.eq.s32.totalorder %s32, 7
      %p229 = por %p227, %p228
      %p231 = scmp.ne.s32.totalorder %s216, %s230
      %p232 = scmp.eq.s32.totalorder %s32, 0
      %p233 = por %p231, %p232
      %s235 = sadd.s32 %s234, 1
      %p238 = scmp.eq.s32.totalorder %s26, 7
      %p239 = scmp.ne.s32.totalorder %s234, %s236
      %p240 = scmp.eq.s32.totalorder %s26, 0
      %p241 = por %p239, %p240
      %p242 = scmp.ne.s32.totalorder %s234, %s236
      %p243 = scmp.eq.s32.totalorder %s31, 7
      %p244 = por %p242, %p243
      %p245 = scmp.ne.s32.totalorder %s236, %s237
      %p246 = scmp.eq.s32.totalorder %s31, 0
      %p247 = por %p245, %p246
      %p248 = scmp.ne.s32.totalorder %s236, %s237
      %p249 = scmp.eq.s32.totalorder %s32, 7
      %p250 = por %p248, %p249
      %p252 = scmp.ne.s32.totalorder %s237, %s251
      %p253 = scmp.eq.s32.totalorder %s32, 0
      %p254 = por %p252, %p253
      %s256 = sadd.s32 %s255, 1
      %p259 = scmp.eq.s32.totalorder %s26, 7
      %p260 = scmp.ne.s32.totalorder %s255, %s257
      %p261 = scmp.eq.s32.totalorder %s26, 0
      %p262 = por %p260, %p261
      %p263 = scmp.ne.s32.totalorder %s255, %s257
      %p264 = scmp.eq.s32.totalorder %s31, 7
      %p265 = por %p263, %p264
      %p266 = scmp.ne.s32.totalorder %s257, %s258
      %p267 = scmp.eq.s32.totalorder %s31, 0
      %p268 = por %p266, %p267
      %p269 = scmp.ne.s32.totalorder %s257, %s258
      %p270 = scmp.eq.s32.totalorder %s32, 7
      %p271 = por %p269, %p270
      %p273 = scmp.ne.s32.totalorder %s258, %s272
      %p274 = scmp.eq.s32.totalorder %s32, 0
      %p275 = por %p273, %p274
      %s277 = sadd.s32 %s276, 1
      %p280 = scmp.eq.s32.totalorder %s26, 7
      %p281 = scmp.ne.s32.totalorder %s276, %s278
      %p282 = scmp.eq.s32.totalorder %s26, 0
      %p283 = por %p281, %p282
      %p284 = scmp.ne.s32.totalorder %s276, %s278
      %p285 = scmp.eq.s32.totalorder %s31, 7
      %p286 = por %p284, %p285
      %p287 = scmp.ne.s32.totalorder %s278, %s279
      %p288 = scmp.eq.s32.totalorder %s31, 0
      %p289 = por %p287, %p288
      %p290 = scmp.ne.s32.totalorder %s278, %s279
      %p291 = scmp.eq.s32.totalorder %s32, 7
      %p292 = por %p290, %p291
      %p294 = scmp.ne.s32.totalorder %s279, %s293
      %p295 = scmp.eq.s32.totalorder %s32, 0
      %p296 = por %p294, %p295
      %s298 = sadd.s32 %s297, 1
      %p301 = scmp.eq.s32.totalorder %s26, 7
      %p302 = scmp.ne.s32.totalorder %s297, %s299
      %p303 = scmp.eq.s32.totalorder %s26, 0
      %p304 = por %p302, %p303
      %p305 = scmp.ne.s32.totalorder %s297, %s299
      %p306 = scmp.eq.s32.totalorder %s31, 7
      %p307 = por %p305, %p306
      %p308 = scmp.ne.s32.totalorder %s299, %s300
      %p309 = scmp.eq.s32.totalorder %s31, 0
      %p310 = por %p308, %p309
      %p311 = scmp.ne.s32.totalorder %s299, %s300
      %p312 = scmp.eq.s32.totalorder %s32, 7
      %p313 = por %p311, %p312
      %p315 = scmp.ne.s32.totalorder %s300, %s314
      %p316 = scmp.eq.s32.totalorder %s32, 0
      %p317 = por %p315, %p316
      %s319 = sadd.s32 %s318, 1
      %p322 = scmp.eq.s32.totalorder %s26, 7
      %p323 = scmp.ne.s32.totalorder %s318, %s320
      %p324 = scmp.eq.s32.totalorder %s26, 0
      %p325 = por %p323, %p324
      %p326 = scmp.ne.s32.totalorder %s318, %s320
      %p327 = scmp.eq.s32.totalorder %s31, 7
      %p328 = por %p326, %p327
      %p329 = scmp.ne.s32.totalorder %s320, %s321
      %p330 = scmp.eq.s32.totalorder %s31, 0
      %p331 = por %p329, %p330
      %p332 = scmp.ne.s32.totalorder %s320, %s321
      %p333 = scmp.eq.s32.totalorder %s32, 7
      %p334 = por %p332, %p333
      %p336 = scmp.ne.s32.totalorder %s321, %s335
      %p337 = scmp.eq.s32.totalorder %s32, 0
      %p338 = por %p336, %p337
      %s340 = sadd.s32 %s339, 1
      %p343 = scmp.eq.s32.totalorder %s26, 7
      %p344 = scmp.ne.s32.totalorder %s339, %s341
      %p345 = scmp.eq.s32.totalorder %s26, 0
      %p346 = por %p344, %p345
      %p347 = scmp.ne.s32.totalorder %s339, %s341
      %p348 = scmp.eq.s32.totalorder %s31, 7
      %p349 = por %p347, %p348
      %p350 = scmp.ne.s32.totalorder %s341, %s342
      %p351 = scmp.eq.s32.totalorder %s31, 0
      %p352 = por %p350, %p351
      %p353 = scmp.ne.s32.totalorder %s341, %s342
      %p354 = scmp.eq.s32.totalorder %s32, 7
      %p355 = por %p353, %p354
      %p357 = scmp.ne.s32.totalorder %s342, %s356
      %p358 = scmp.eq.s32.totalorder %s32, 0
      %p359 = por %p357, %p358
      %s360 = smul.u32 %s35, %s34
      %s361 = smul.u32 %s44, %s48
      %s362 = ssub.s32 %s33, %s52
      %s363 = ssub.s32 %s360, %s361
      %s364 = sor.u32 %s362, %s363
      %p365 = scmp.eq.s32.totalorder %s364, 0
      %s367 = sadd.s32 %s366, 1
      %s368 = scalar_select %p365, %s366, %s367
      %p371 = pneg %p365
      %p372 = scmp.eq.s32.totalorder %s26, 7
      %p373 = por %p371, %p372
      %p374 = scmp.ne.s32.totalorder %s366, %s369
      %p375 = scmp.eq.s32.totalorder %s26, 0
      %p376 = por %p374, %p375
      %p377 = scmp.ne.s32.totalorder %s366, %s369
      %p378 = scmp.eq.s32.totalorder %s31, 7
      %p379 = por %p377, %p378
      %p380 = scmp.ne.s32.totalorder %s369, %s370
      %p381 = scmp.eq.s32.totalorder %s31, 0
      %p382 = por %p380, %p381
      %p383 = scmp.ne.s32.totalorder %s369, %s370
      %p384 = scmp.eq.s32.totalorder %s32, 7
      %p385 = por %p383, %p384
      %p387 = scmp.ne.s32.totalorder %s370, %s386
      %p388 = scmp.eq.s32.totalorder %s32, 0
      %p389 = por %p387, %p388
      %p390 = scmp.le.s32.totalorder 1, %s26
      %p391 = scmp.lt.s32.totalorder %s26, 9
      %p392 = pnand %p390, %p391
      %p393 = pneg %p392
      // Predicated region
      $region9: #{tpu_custom_call.1} parent=5 // pred_check
        _
      $region10: #{tpu_custom_call.1} parent=5 // pred_check_branch
        %395 = sbr.rel (%p392) target = $region12
      $region11: #{tpu_custom_call.1} parent=5 // pred_region
        %s396 = ssub.s32 %s26, 1
        // Predicated region
        $region13: #{tpu_custom_call.1} parent=11 // pred_check
          %p397 = pneg %p100
        $region14: #{tpu_custom_call.1} parent=11 // pred_check_branch
          %399 = sbr.rel (%p397) target = $region16
        $region15: #{tpu_custom_call.1} parent=11 // pred_region
          _
        $region16: #{tpu_custom_call.1} parent=11 // pred_fallthru
          _
        // Predicated region
        $region17: #{tpu_custom_call.1} parent=11 // pred_check
          %p400 = pneg %p121
        $region18: #{tpu_custom_call.1} parent=11 // pred_check_branch
          %402 = sbr.rel (%p400) target = $region20
        $region19: #{tpu_custom_call.1} parent=11 // pred_region
          _
        $region20: #{tpu_custom_call.1} parent=11 // pred_fallthru
          _
        // Predicated region
        $region21: #{tpu_custom_call.1} parent=11 // pred_check
          %p403 = pneg %p142
        $region22: #{tpu_custom_call.1} parent=11 // pred_check_branch
          %405 = sbr.rel (%p403) target = $region24
        $region23: #{tpu_custom_call.1} parent=11 // pred_region
          %407 = vsyncadd [#allocation6], 0
          %s408 = sshll.u32 %s3, 4
          %s409 = int_to_ptr.hbm [resolvable:$true] %s408
          %s410 = sshll.u32 [#allocation5], 4
          %s411 = int_to_ptr.vmem [resolvable:$true] %s410
          %416 = dma.hbm_to_vmem [thread:$0]  %s409, 512, %s411, [#allocation6], 64, 64, 4
        $region24: #{tpu_custom_call.1} parent=11 // pred_fallthru
          _
        // Predicated region
        $region25: #{tpu_custom_call.1} parent=11 // pred_check
          %p417 = pneg %p163
        $region26: #{tpu_custom_call.1} parent=11 // pred_check_branch
          %419 = sbr.rel (%p417) target = $region28
        $region27: #{tpu_custom_call.1} parent=11 // pred_region
          _
        $region28: #{tpu_custom_call.1} parent=11 // pred_fallthru
          _
        // Predicated region
        $region29: #{tpu_custom_call.1} parent=11 // pred_check
          %p420 = pneg %p184
        $region30: #{tpu_custom_call.1} parent=11 // pred_check_branch
          %422 = sbr.rel (%p420) target = $region32
        $region31: #{tpu_custom_call.1} parent=11 // pred_region
          _
        $region32: #{tpu_custom_call.1} parent=11 // pred_fallthru
          _
        // Predicated region
        $region33: #{tpu_custom_call.1} parent=11 // pred_check
          %p423 = pneg %p205
        $region34: #{tpu_custom_call.1} parent=11 // pred_check_branch
          %425 = sbr.rel (%p423) target = $region36
        $region35: #{tpu_custom_call.1} parent=11 // pred_region
          _
        $region36: #{tpu_custom_call.1} parent=11 // pred_fallthru
          _
        // Predicated region
        $region37: #{tpu_custom_call.1} parent=11 // pred_check
          %p426 = pneg %p226
        $region38: #{tpu_custom_call.1} parent=11 // pred_check_branch
          %428 = sbr.rel (%p426) target = $region40
        $region39: #{tpu_custom_call.1} parent=11 // pred_region
          %430 = vsyncadd [#allocation9], 0
          %s431 = sshll.u32 %s7, 4
          %s432 = int_to_ptr.hbm [resolvable:$true] %s431
          %s433 = sshll.u32 [#allocation8], 4
          %s434 = int_to_ptr.vmem [resolvable:$true] %s433
          %439 = dma.hbm_to_vmem [thread:$0]  %s432, 32768, %s434, [#allocation9], 256, 256, 16
        $region40: #{tpu_custom_call.1} parent=11 // pred_fallthru
          _
        // Predicated region
        $region41: #{tpu_custom_call.1} parent=11 // pred_check
          %p440 = pneg %p247
        $region42: #{tpu_custom_call.1} parent=11 // pred_check_branch
          %442 = sbr.rel (%p440) target = $region44
        $region43: #{tpu_custom_call.1} parent=11 // pred_region
          _
        $region44: #{tpu_custom_call.1} parent=11 // pred_fallthru
          _
        // Predicated region
        $region45: #{tpu_custom_call.1} parent=11 // pred_check
          %p443 = pneg %p268
        $region46: #{tpu_custom_call.1} parent=11 // pred_check_branch
          %445 = sbr.rel (%p443) target = $region48
        $region47: #{tpu_custom_call.1} parent=11 // pred_region
          _
        $region48: #{tpu_custom_call.1} parent=11 // pred_fallthru
          _
        // Predicated region
        $region49: #{tpu_custom_call.1} parent=11 // pred_check
          %p446 = pneg %p289
        $region50: #{tpu_custom_call.1} parent=11 // pred_check_branch
          %448 = sbr.rel (%p446) target = $region52
        $region51: #{tpu_custom_call.1} parent=11 // pred_region
          _
        $region52: #{tpu_custom_call.1} parent=11 // pred_fallthru
          _
        // Predicated region
        $region53: #{tpu_custom_call.1} parent=11 // pred_check
          %p449 = pneg %p310
        $region54: #{tpu_custom_call.1} parent=11 // pred_check_branch
          %451 = sbr.rel (%p449) target = $region56
        $region55: #{tpu_custom_call.1} parent=11 // pred_region
          %453 = vsyncadd [#allocation9], 0
          %s454 = sshll.u32 %s11, 4
          %s455 = int_to_ptr.hbm [resolvable:$true] %s454
          %s456 = sshll.u32 [#allocation10], 4
          %s457 = int_to_ptr.vmem [resolvable:$true] %s456
          %462 = dma.hbm_to_vmem [thread:$0]  %s455, 8192, %s457, [#allocation9], 64, 64, 4
        $region56: #{tpu_custom_call.1} parent=11 // pred_fallthru
          _
        // Predicated region
        $region57: #{tpu_custom_call.1} parent=11 // pred_check
          %p463 = pneg %p331
        $region58: #{tpu_custom_call.1} parent=11 // pred_check_branch
          %465 = sbr.rel (%p463) target = $region60
        $region59: #{tpu_custom_call.1} parent=11 // pred_region
          %467 = vsyncadd [#allocation12], 0
          %s468 = sshll.u32 %s12, 4
          %s469 = int_to_ptr.hbm [resolvable:$true] %s468
          %s470 = sshll.u32 [#allocation11], 4
          %s471 = int_to_ptr.vmem [resolvable:$true] %s470
          %476 = dma.hbm_to_vmem [thread:$0]  %s469, 2048, %s471, [#allocation12], 64, 64, 4
        $region60: #{tpu_custom_call.1} parent=11 // pred_fallthru
          _
        // Predicated region
        $region61: #{tpu_custom_call.1} parent=11 // pred_check
          %p477 = pneg %p352
        $region62: #{tpu_custom_call.1} parent=11 // pred_check_branch
          %479 = sbr.rel (%p477) target = $region64
        $region63: #{tpu_custom_call.1} parent=11 // pred_region
          _
        $region64: #{tpu_custom_call.1} parent=11 // pred_fallthru
          _
      $region12: #{tpu_custom_call.1} parent=5 // pred_fallthru
        _
      %p480 = scmp.lt.s32.totalorder %s26, 8
      // Predicated region
      $region65: #{tpu_custom_call.1} parent=5 // pred_check
        %p481 = pneg %p480
      $region66: #{tpu_custom_call.1} parent=5 // pred_check_branch
        %483 = sbr.rel (%p481) target = $region68
      $region67: #{tpu_custom_call.1} parent=5 // pred_region
        // Predicated region
        $region69: #{tpu_custom_call.1} parent=67 // pred_check
          %p484 = pneg %p73
        $region70: #{tpu_custom_call.1} parent=67 // pred_check_branch
          %486 = sbr.rel (%p484) target = $region72
        $region71: #{tpu_custom_call.1} parent=67 // pred_region
          %s487 = ssub.s32 1, %s34
          %s488 = smul.u32 %s35, %s487
          %s489 = sadd.s32 %s488, %s34
          %s490 = smul.u32 32, %s489
          %p491 = scmp.lt.s32.totalorder %s33, 1
          %s492 = scalar_select %p491, %s33, 1
          %p493 = scmp.lt.s32.totalorder %s490, 63
          %s494 = scalar_select %p493, %s490, 63
          %s495 = smul.addr %s492, 64
          %s496 = sadd.s32 %s494, %s495
          %s497 = smul.addr %s496, 8
          %s498 = scalar_lea.vmem %s0, %s497
          %s499 = ssub.s32 1, %s34
          %s500 = smul.u32 %s35, %s499
          %s501 = sadd.s32 %s500, %s34
          %s502 = smul.u32 32, %s501
        $region72: #{tpu_custom_call.1} parent=67 // pred_fallthru
          _
      $region68: #{tpu_custom_call.1} parent=5 // pred_fallthru
        _
      %p503 = scmp.le.s32.totalorder 1, %s26
      %p504 = scmp.lt.s32.totalorder %s26, 9
      %p505 = pnand %p503, %p504
      %p506 = pneg %p505
      // Predicated region
      $region73: #{tpu_custom_call.1} parent=5 // pred_check
        _
      $region74: #{tpu_custom_call.1} parent=5 // pred_check_branch
        %508 = sbr.rel (%p505) target = $region76
      $region75: #{tpu_custom_call.1} parent=5 // pred_region
        %s509 = ssub.s32 %s26, 1
        // Predicated region
        $region77: #{tpu_custom_call.1} parent=75 // pred_check
          %p510 = pneg %p142
        $region78: #{tpu_custom_call.1} parent=75 // pred_check_branch
          %512 = sbr.rel (%p510) target = $region80
        $region79: #{tpu_custom_call.1} parent=75 // pred_region
          %514 = dma.done [#allocation6], 512
        $region80: #{tpu_custom_call.1} parent=75 // pred_fallthru
          _
        // Predicated region
        $region81: #{tpu_custom_call.1} parent=75 // pred_check
          %p515 = pneg %p226
        $region82: #{tpu_custom_call.1} parent=75 // pred_check_branch
          %517 = sbr.rel (%p515) target = $region84
        $region83: #{tpu_custom_call.1} parent=75 // pred_region
          %519 = dma.done [#allocation9], 32768
        $region84: #{tpu_custom_call.1} parent=75 // pred_fallthru
          _
        // Predicated region
        $region85: #{tpu_custom_call.1} parent=75 // pred_check
          %p520 = pneg %p310
        $region86: #{tpu_custom_call.1} parent=75 // pred_check_branch
          %522 = sbr.rel (%p520) target = $region88
        $region87: #{tpu_custom_call.1} parent=75 // pred_region
          %524 = dma.done [#allocation9], 8192
        $region88: #{tpu_custom_call.1} parent=75 // pred_fallthru
          _
        // Predicated region
        $region89: #{tpu_custom_call.1} parent=75 // pred_check
          %p525 = pneg %p331
        $region90: #{tpu_custom_call.1} parent=75 // pred_check_branch
          %527 = sbr.rel (%p525) target = $region92
        $region91: #{tpu_custom_call.1} parent=75 // pred_region
          %529 = dma.done [#allocation12], 2048
        $region92: #{tpu_custom_call.1} parent=75 // pred_fallthru
          _
        %s530 = ssub.s32 1, %s37
        %s531 = smul.u32 %s38, %s530
        %s532 = sadd.s32 %s531, %s37
        %s533 = smul.u32 32, %s532
        %p534 = scmp.lt.s32.totalorder %s36, 1
        %s535 = scalar_select %p534, %s36, 1
        %p536 = scmp.lt.s32.totalorder %s533, 63
        %s537 = scalar_select %p536, %s533, 63
        %s538 = smul.addr %s535, 64
        %s539 = sadd.s32 %s537, %s538
        %s540 = smul.addr %s539, 8
        %s541 = scalar_lea.vmem %s0, %s540
        %p542 = pneg %p79
        %p543 = pneg %p76
        %p544 = pneg %p100
        %p545 = pneg %p97
        %p546 = pneg %p121
        %p547 = pneg %p118
        %p548 = pneg %p142
        %p549 = pneg %p139
        %p550 = pneg %p163
        %p551 = pneg %p160
        %p552 = pneg %p184
        %p553 = pneg %p181
        %p554 = pneg %p205
        %p555 = pneg %p202
        %p556 = pneg %p226
        %p557 = pneg %p223
        %p558 = pneg %p247
        %p559 = pneg %p244
        %p560 = pneg %p268
        %p561 = pneg %p265
        %p562 = pneg %p289
        %p563 = pneg %p286
        %p564 = pneg %p310
        %p565 = pneg %p307
        %p566 = pneg %p331
        %p567 = pneg %p328
        %p568 = pneg %p352
        %p569 = pneg %p349
        %p570 = pneg %p382
        %p571 = pneg %p379
        %s572 = sand.u32 %s369, 1
        %s573 = scalar_lea.sflag [#allocation7], %s572
        %s574 = sand.u32 %s369, 1
        %s575 = smul.addr %s574, 256
        %s576 = scalar_lea.vmem [#allocation13], %s575
        %s577 = ssub.s32 1, %s37
        %s578 = smul.u32 %s38, %s577
        %s579 = sadd.s32 %s578, %s37
        %s580 = smul.u32 32, %s579
        %p581 = scmp.lt.s32.totalorder %s36, 1
        %s582 = scalar_select %p581, %s36, 1
        %p583 = scmp.lt.s32.totalorder %s580, 63
        %s584 = scalar_select %p583, %s580, 63
        %s585 = smul.addr %s582, 64
        %s586 = sadd.s32 %s584, %s585
        %s587 = smul.addr %s586, 8
        %s588 = scalar_lea.vmem %s0, %s587
        %s589 = ssub.s32 1, %s37
        %s590 = smul.u32 %s38, %s589
        %s591 = sadd.s32 %s590, %s37
        %s592 = smul.u32 32, %s591
        %s593 = smul.u32 %s38, %s37
        %s594 = smul.u32 32, %s593
        %s596 = smul.u32 %s38, 256
        %p597 = scmp.eq.s32.totalorder %s37, 0
        // Predicated region
        $region93: #{tpu_custom_call.1} parent=75 // pred_check
          %p598 = pneg %p597
        $region94: #{tpu_custom_call.1} parent=75 // pred_check_branch
          %600 = sbr.rel (%p598) target = $region96
        $region95: #{tpu_custom_call.1} parent=75 // pred_region
          %v601 = vld [vmem:[%s588] sm:$0xff]
          %v602 = vld [vmem:[%s588 + $0x8] sm:$0xff]
          %v603 = vld [vmem:[%s588 + $0x10] sm:$0xff]
          %v604 = vld [vmem:[%s588 + $0x18] sm:$0xff]
          %v605 = vld [vmem:[%s588 + $0x20] sm:$0xff]
          %v606 = vld [vmem:[%s588 + $0x28] sm:$0xff]
          %v607 = vld [vmem:[%s588 + $0x30] sm:$0xff]
          %v608 = vld [vmem:[%s588 + $0x38] sm:$0xff]
          %v609 = vld [vmem:[%s588 + $0x40] sm:$0xff]
          %v610 = vld [vmem:[%s588 + $0x48] sm:$0xff]
          %v611 = vld [vmem:[%s588 + $0x50] sm:$0xff]
          %v612 = vld [vmem:[%s588 + $0x58] sm:$0xff]
          %v613 = vld [vmem:[%s588 + $0x60] sm:$0xff]
          %v614 = vld [vmem:[%s588 + $0x68] sm:$0xff]
          %v615 = vld [vmem:[%s588 + $0x70] sm:$0xff]
          %v616 = vld [vmem:[%s588 + $0x78] sm:$0xff]
          %v617 = vld [vmem:[%s588 + $0x80] sm:$0xff]
          %v618 = vld [vmem:[%s588 + $0x88] sm:$0xff]
          %v619 = vld [vmem:[%s588 + $0x90] sm:$0xff]
          %v620 = vld [vmem:[%s588 + $0x98] sm:$0xff]
          %v621 = vld [vmem:[%s588 + $0xa0] sm:$0xff]
          %v622 = vld [vmem:[%s588 + $0xa8] sm:$0xff]
          %v623 = vld [vmem:[%s588 + $0xb0] sm:$0xff]
          %v624 = vld [vmem:[%s588 + $0xb8] sm:$0xff]
          %v625 = vld [vmem:[%s588 + $0xc0] sm:$0xff]
          %v626 = vld [vmem:[%s588 + $0xc8] sm:$0xff]
          %v627 = vld [vmem:[%s588 + $0xd0] sm:$0xff]
          %v628 = vld [vmem:[%s588 + $0xd8] sm:$0xff]
          %v629 = vld [vmem:[%s588 + $0xe0] sm:$0xff]
          %v630 = vld [vmem:[%s588 + $0xe8] sm:$0xff]
          %v631 = vld [vmem:[%s588 + $0xf0] sm:$0xff]
          %v632 = vld [vmem:[%s588 + $0xf8] sm:$0xff]
          %v633 = vld [vmem:[%s1] sm:$0x1]
          %635 = vset.pattern.permute.xlu0 0
          %636 = vperm.xlu0 %635, %v601
          %v637 = vpop.permute.xlu0 %636
          %640 = vset.pattern.permute.xlu0 0
          %641 = vperm.xlu0 %640, %v602
          %v642 = vpop.permute.xlu0 %641
          %645 = vset.pattern.permute.xlu0 0
          %646 = vperm.xlu0 %645, %v603
          %v647 = vpop.permute.xlu0 %646
          %650 = vset.pattern.permute.xlu0 0
          %651 = vperm.xlu0 %650, %v604
          %v652 = vpop.permute.xlu0 %651
          %655 = vset.pattern.permute.xlu0 0
          %656 = vperm.xlu0 %655, %v605
          %v657 = vpop.permute.xlu0 %656
          %660 = vset.pattern.permute.xlu0 0
          %661 = vperm.xlu0 %660, %v606
          %v662 = vpop.permute.xlu0 %661
          %665 = vset.pattern.permute.xlu0 0
          %666 = vperm.xlu0 %665, %v607
          %v667 = vpop.permute.xlu0 %666
          %670 = vset.pattern.permute.xlu0 0
          %671 = vperm.xlu0 %670, %v608
          %v672 = vpop.permute.xlu0 %671
          %675 = vset.pattern.permute.xlu0 0
          %676 = vperm.xlu0 %675, %v609
          %v677 = vpop.permute.xlu0 %676
          %680 = vset.pattern.permute.xlu0 0
          %681 = vperm.xlu0 %680, %v610
          %v682 = vpop.permute.xlu0 %681
          %685 = vset.pattern.permute.xlu0 0
          %686 = vperm.xlu0 %685, %v611
          %v687 = vpop.permute.xlu0 %686
          %690 = vset.pattern.permute.xlu0 0
          %691 = vperm.xlu0 %690, %v612
          %v692 = vpop.permute.xlu0 %691
          %695 = vset.pattern.permute.xlu0 0
          %696 = vperm.xlu0 %695, %v613
          %v697 = vpop.permute.xlu0 %696
          %700 = vset.pattern.permute.xlu0 0
          %701 = vperm.xlu0 %700, %v614
          %v702 = vpop.permute.xlu0 %701
          %705 = vset.pattern.permute.xlu0 0
          %706 = vperm.xlu0 %705, %v615
          %v707 = vpop.permute.xlu0 %706
          %710 = vset.pattern.permute.xlu0 0
          %711 = vperm.xlu0 %710, %v616
          %v712 = vpop.permute.xlu0 %711
          %715 = vset.pattern.permute.xlu0 0
          %716 = vperm.xlu0 %715, %v617
          %v717 = vpop.permute.xlu0 %716
          %720 = vset.pattern.permute.xlu0 0
          %721 = vperm.xlu0 %720, %v618
          %v722 = vpop.permute.xlu0 %721
          %725 = vset.pattern.permute.xlu0 0
          %726 = vperm.xlu0 %725, %v619
          %v727 = vpop.permute.xlu0 %726
          %730 = vset.pattern.permute.xlu0 0
          %731 = vperm.xlu0 %730, %v620
          %v732 = vpop.permute.xlu0 %731
          %735 = vset.pattern.permute.xlu0 0
          %736 = vperm.xlu0 %735, %v621
          %v737 = vpop.permute.xlu0 %736
          %740 = vset.pattern.permute.xlu0 0
          %741 = vperm.xlu0 %740, %v622
          %v742 = vpop.permute.xlu0 %741
          %745 = vset.pattern.permute.xlu0 0
          %746 = vperm.xlu0 %745, %v623
          %v747 = vpop.permute.xlu0 %746
          %750 = vset.pattern.permute.xlu0 0
          %751 = vperm.xlu0 %750, %v624
          %v752 = vpop.permute.xlu0 %751
          %755 = vset.pattern.permute.xlu0 0
          %756 = vperm.xlu0 %755, %v625
          %v757 = vpop.permute.xlu0 %756
          %760 = vset.pattern.permute.xlu0 0
          %761 = vperm.xlu0 %760, %v626
          %v762 = vpop.permute.xlu0 %761
          %765 = vset.pattern.permute.xlu0 0
          %766 = vperm.xlu0 %765, %v627
          %v767 = vpop.permute.xlu0 %766
          %770 = vset.pattern.permute.xlu0 0
          %771 = vperm.xlu0 %770, %v628
          %v772 = vpop.permute.xlu0 %771
          %775 = vset.pattern.permute.xlu0 0
          %776 = vperm.xlu0 %775, %v629
          %v777 = vpop.permute.xlu0 %776
          %780 = vset.pattern.permute.xlu0 0
          %781 = vperm.xlu0 %780, %v630
          %v782 = vpop.permute.xlu0 %781
          %785 = vset.pattern.permute.xlu0 0
          %786 = vperm.xlu0 %785, %v631
          %v787 = vpop.permute.xlu0 %786
          %790 = vset.pattern.permute.xlu0 0
          %791 = vperm.xlu0 %790, %v632
          %v792 = vpop.permute.xlu0 %791
          %v794 = vperm.slane %v633, 0
          %v795 = vmul.f32 %v637, %v794
          %v796 = vmul.f32 %v642, %v794
          %v797 = vmul.f32 %v647, %v794
          %v798 = vmul.f32 %v652, %v794
          %v799 = vmul.f32 %v657, %v794
          %v800 = vmul.f32 %v662, %v794
          %v801 = vmul.f32 %v667, %v794
          %v802 = vmul.f32 %v672, %v794
          %v803 = vmul.f32 %v677, %v794
          %v804 = vmul.f32 %v682, %v794
          %v805 = vmul.f32 %v687, %v794
          %v806 = vmul.f32 %v692, %v794
          %v807 = vmul.f32 %v697, %v794
          %v808 = vmul.f32 %v702, %v794
          %v809 = vmul.f32 %v707, %v794
          %v810 = vmul.f32 %v712, %v794
          %v811 = vmul.f32 %v717, %v794
          %v812 = vmul.f32 %v722, %v794
          %v813 = vmul.f32 %v727, %v794
          %v814 = vmul.f32 %v732, %v794
          %v815 = vmul.f32 %v737, %v794
          %v816 = vmul.f32 %v742, %v794
          %v817 = vmul.f32 %v747, %v794
          %v818 = vmul.f32 %v752, %v794
          %v819 = vmul.f32 %v757, %v794
          %v820 = vmul.f32 %v762, %v794
          %v821 = vmul.f32 %v767, %v794
          %v822 = vmul.f32 %v772, %v794
          %v823 = vmul.f32 %v777, %v794
          %v824 = vmul.f32 %v782, %v794
          %v825 = vmul.f32 %v787, %v794
          %v826 = vmul.f32 %v792, %v794
          %v827 = vld [vmem:[%s1 + $0x1] sm:$0x1]
          %828 = vset.pattern.permute.xlu0 1
          %829 = vperm.xlu0 %828, %v601
          %v830 = vpop.permute.xlu0 %829
          %832 = vset.pattern.permute.xlu0 1
          %833 = vperm.xlu0 %832, %v602
          %v834 = vpop.permute.xlu0 %833
          %836 = vset.pattern.permute.xlu0 1
          %837 = vperm.xlu0 %836, %v603
          %v838 = vpop.permute.xlu0 %837
          %840 = vset.pattern.permute.xlu0 1
          %841 = vperm.xlu0 %840, %v604
          %v842 = vpop.permute.xlu0 %841
          %844 = vset.pattern.permute.xlu0 1
          %845 = vperm.xlu0 %844, %v605
          %v846 = vpop.permute.xlu0 %845
          %848 = vset.pattern.permute.xlu0 1
          %849 = vperm.xlu0 %848, %v606
          %v850 = vpop.permute.xlu0 %849
          %852 = vset.pattern.permute.xlu0 1
          %853 = vperm.xlu0 %852, %v607
          %v854 = vpop.permute.xlu0 %853
          %856 = vset.pattern.permute.xlu0 1
          %857 = vperm.xlu0 %856, %v608
          %v858 = vpop.permute.xlu0 %857
          %860 = vset.pattern.permute.xlu0 1
          %861 = vperm.xlu0 %860, %v609
          %v862 = vpop.permute.xlu0 %861
          %864 = vset.pattern.permute.xlu0 1
          %865 = vperm.xlu0 %864, %v610
          %v866 = vpop.permute.xlu0 %865
          %868 = vset.pattern.permute.xlu0 1
          %869 = vperm.xlu0 %868, %v611
          %v870 = vpop.permute.xlu0 %869
          %872 = vset.pattern.permute.xlu0 1
          %873 = vperm.xlu0 %872, %v612
          %v874 = vpop.permute.xlu0 %873
          %876 = vset.pattern.permute.xlu0 1
          %877 = vperm.xlu0 %876, %v613
          %v878 = vpop.permute.xlu0 %877
          %880 = vset.pattern.permute.xlu0 1
          %881 = vperm.xlu0 %880, %v614
          %v882 = vpop.permute.xlu0 %881
          %884 = vset.pattern.permute.xlu0 1
          %885 = vperm.xlu0 %884, %v615
          %v886 = vpop.permute.xlu0 %885
          %888 = vset.pattern.permute.xlu0 1
          %889 = vperm.xlu0 %888, %v616
          %v890 = vpop.permute.xlu0 %889
          %892 = vset.pattern.permute.xlu0 1
          %893 = vperm.xlu0 %892, %v617
          %v894 = vpop.permute.xlu0 %893
          %896 = vset.pattern.permute.xlu0 1
          %897 = vperm.xlu0 %896, %v618
          %v898 = vpop.permute.xlu0 %897
          %900 = vset.pattern.permute.xlu0 1
          %901 = vperm.xlu0 %900, %v619
          %v902 = vpop.permute.xlu0 %901
          %904 = vset.pattern.permute.xlu0 1
          %905 = vperm.xlu0 %904, %v620
          %v906 = vpop.permute.xlu0 %905
          %908 = vset.pattern.permute.xlu0 1
          %909 = vperm.xlu0 %908, %v621
          %v910 = vpop.permute.xlu0 %909
          %912 = vset.pattern.permute.xlu0 1
          %913 = vperm.xlu0 %912, %v622
          %v914 = vpop.permute.xlu0 %913
          %916 = vset.pattern.permute.xlu0 1
          %917 = vperm.xlu0 %916, %v623
          %v918 = vpop.permute.xlu0 %917
          %920 = vset.pattern.permute.xlu0 1
          %921 = vperm.xlu0 %920, %v624
          %v922 = vpop.permute.xlu0 %921
          %924 = vset.pattern.permute.xlu0 1
          %925 = vperm.xlu0 %924, %v625
          %v926 = vpop.permute.xlu0 %925
          %928 = vset.pattern.permute.xlu0 1
          %929 = vperm.xlu0 %928, %v626
          %v930 = vpop.permute.xlu0 %929
          %932 = vset.pattern.permute.xlu0 1
          %933 = vperm.xlu0 %932, %v627
          %v934 = vpop.permute.xlu0 %933
          %936 = vset.pattern.permute.xlu0 1
          %937 = vperm.xlu0 %936, %v628
          %v938 = vpop.permute.xlu0 %937
          %940 = vset.pattern.permute.xlu0 1
          %941 = vperm.xlu0 %940, %v629
          %v942 = vpop.permute.xlu0 %941
          %944 = vset.pattern.permute.xlu0 1
          %945 = vperm.xlu0 %944, %v630
          %v946 = vpop.permute.xlu0 %945
          %948 = vset.pattern.permute.xlu0 1
          %949 = vperm.xlu0 %948, %v631
          %v950 = vpop.permute.xlu0 %949
          %952 = vset.pattern.permute.xlu0 1
          %953 = vperm.xlu0 %952, %v632
          %v954 = vpop.permute.xlu0 %953
          %v956 = vperm.slane %v827, 0
          %v957 = vmul.f32 %v830, %v956
          %v958 = vmul.f32 %v834, %v956
          %v959 = vmul.f32 %v838, %v956
          %v960 = vmul.f32 %v842, %v956
          %v961 = vmul.f32 %v846, %v956
          %v962 = vmul.f32 %v850, %v956
          %v963 = vmul.f32 %v854, %v956
          %v964 = vmul.f32 %v858, %v956
          %v965 = vmul.f32 %v862, %v956
          %v966 = vmul.f32 %v866, %v956
          %v967 = vmul.f32 %v870, %v956
          %v968 = vmul.f32 %v874, %v956
          %v969 = vmul.f32 %v878, %v956
          %v970 = vmul.f32 %v882, %v956
          %v971 = vmul.f32 %v886, %v956
          %v972 = vmul.f32 %v890, %v956
          %v973 = vmul.f32 %v894, %v956
          %v974 = vmul.f32 %v898, %v956
          %v975 = vmul.f32 %v902, %v956
          %v976 = vmul.f32 %v906, %v956
          %v977 = vmul.f32 %v910, %v956
          %v978 = vmul.f32 %v914, %v956
          %v979 = vmul.f32 %v918, %v956
          %v980 = vmul.f32 %v922, %v956
          %v981 = vmul.f32 %v926, %v956
          %v982 = vmul.f32 %v930, %v956
          %v983 = vmul.f32 %v934, %v956
          %v984 = vmul.f32 %v938, %v956
          %v985 = vmul.f32 %v942, %v956
          %v986 = vmul.f32 %v946, %v956
          %v987 = vmul.f32 %v950, %v956
          %v988 = vmul.f32 %v954, %v956
          %v989 = vadd.f32 %v795, %v957
          %v990 = vadd.f32 %v796, %v958
          %v991 = vadd.f32 %v797, %v959
          %v992 = vadd.f32 %v798, %v960
          %v993 = vadd.f32 %v799, %v961
          %v994 = vadd.f32 %v800, %v962
          %v995 = vadd.f32 %v801, %v963
          %v996 = vadd.f32 %v802, %v964
          %v997 = vadd.f32 %v803, %v965
          %v998 = vadd.f32 %v804, %v966
          %v999 = vadd.f32 %v805, %v967
          %v1000 = vadd.f32 %v806, %v968
          %v1001 = vadd.f32 %v807, %v969
          %v1002 = vadd.f32 %v808, %v970
          %v1003 = vadd.f32 %v809, %v971
          %v1004 = vadd.f32 %v810, %v972
          %v1005 = vadd.f32 %v811, %v973
          %v1006 = vadd.f32 %v812, %v974
          %v1007 = vadd.f32 %v813, %v975
          %v1008 = vadd.f32 %v814, %v976
          %v1009 = vadd.f32 %v815, %v977
          %v1010 = vadd.f32 %v816, %v978
          %v1011 = vadd.f32 %v817, %v979
          %v1012 = vadd.f32 %v818, %v980
          %v1013 = vadd.f32 %v819, %v981
          %v1014 = vadd.f32 %v820, %v982
          %v1015 = vadd.f32 %v821, %v983
          %v1016 = vadd.f32 %v822, %v984
          %v1017 = vadd.f32 %v823, %v985
          %v1018 = vadd.f32 %v824, %v986
          %v1019 = vadd.f32 %v825, %v987
          %v1020 = vadd.f32 %v826, %v988
          %v1021 = vld [vmem:[%s1 + $0x2] sm:$0x1]
          %1022 = vset.pattern.permute.xlu0 2
          %1023 = vperm.xlu0 %1022, %v601
          %v1024 = vpop.permute.xlu0 %1023
          %1026 = vset.pattern.permute.xlu0 2
          %1027 = vperm.xlu0 %1026, %v602
          %v1028 = vpop.permute.xlu0 %1027
          %1030 = vset.pattern.permute.xlu0 2
          %1031 = vperm.xlu0 %1030, %v603
          %v1032 = vpop.permute.xlu0 %1031
          %1034 = vset.pattern.permute.xlu0 2
          %1035 = vperm.xlu0 %1034, %v604
          %v1036 = vpop.permute.xlu0 %1035
          %1038 = vset.pattern.permute.xlu0 2
          %1039 = vperm.xlu0 %1038, %v605
          %v1040 = vpop.permute.xlu0 %1039
          %1042 = vset.pattern.permute.xlu0 2
          %1043 = vperm.xlu0 %1042, %v606
          %v1044 = vpop.permute.xlu0 %1043
          %1046 = vset.pattern.permute.xlu0 2
          %1047 = vperm.xlu0 %1046, %v607
          %v1048 = vpop.permute.xlu0 %1047
          %1050 = vset.pattern.permute.xlu0 2
          %1051 = vperm.xlu0 %1050, %v608
          %v1052 = vpop.permute.xlu0 %1051
          %1054 = vset.pattern.permute.xlu0 2
          %1055 = vperm.xlu0 %1054, %v609
          %v1056 = vpop.permute.xlu0 %1055
          %1058 = vset.pattern.permute.xlu0 2
          %1059 = vperm.xlu0 %1058, %v610
          %v1060 = vpop.permute.xlu0 %1059
          %1062 = vset.pattern.permute.xlu0 2
          %1063 = vperm.xlu0 %1062, %v611
          %v1064 = vpop.permute.xlu0 %1063
          %1066 = vset.pattern.permute.xlu0 2
          %1067 = vperm.xlu0 %1066, %v612
          %v1068 = vpop.permute.xlu0 %1067
          %1070 = vset.pattern.permute.xlu0 2
          %1071 = vperm.xlu0 %1070, %v613
          %v1072 = vpop.permute.xlu0 %1071
          %1074 = vset.pattern.permute.xlu0 2
          %1075 = vperm.xlu0 %1074, %v614
          %v1076 = vpop.permute.xlu0 %1075
          %1078 = vset.pattern.permute.xlu0 2
          %1079 = vperm.xlu0 %1078, %v615
          %v1080 = vpop.permute.xlu0 %1079
          %1082 = vset.pattern.permute.xlu0 2
          %1083 = vperm.xlu0 %1082, %v616
          %v1084 = vpop.permute.xlu0 %1083
          %1086 = vset.pattern.permute.xlu0 2
          %1087 = vperm.xlu0 %1086, %v617
          %v1088 = vpop.permute.xlu0 %1087
          %1090 = vset.pattern.permute.xlu0 2
          %1091 = vperm.xlu0 %1090, %v618
          %v1092 = vpop.permute.xlu0 %1091
          %1094 = vset.pattern.permute.xlu0 2
          %1095 = vperm.xlu0 %1094, %v619
          %v1096 = vpop.permute.xlu0 %1095
          %1098 = vset.pattern.permute.xlu0 2
          %1099 = vperm.xlu0 %1098, %v620
          %v1100 = vpop.permute.xlu0 %1099
          %1102 = vset.pattern.permute.xlu0 2
          %1103 = vperm.xlu0 %1102, %v621
          %v1104 = vpop.permute.xlu0 %1103
          %1106 = vset.pattern.permute.xlu0 2
          %1107 = vperm.xlu0 %1106, %v622
          %v1108 = vpop.permute.xlu0 %1107
          %1110 = vset.pattern.permute.xlu0 2
          %1111 = vperm.xlu0 %1110, %v623
          %v1112 = vpop.permute.xlu0 %1111
          %1114 = vset.pattern.permute.xlu0 2
          %1115 = vperm.xlu0 %1114, %v624
          %v1116 = vpop.permute.xlu0 %1115
          %1118 = vset.pattern.permute.xlu0 2
          %1119 = vperm.xlu0 %1118, %v625
          %v1120 = vpop.permute.xlu0 %1119
          %1122 = vset.pattern.permute.xlu0 2
          %1123 = vperm.xlu0 %1122, %v626
          %v1124 = vpop.permute.xlu0 %1123
          %1126 = vset.pattern.permute.xlu0 2
          %1127 = vperm.xlu0 %1126, %v627
          %v1128 = vpop.permute.xlu0 %1127
          %1130 = vset.pattern.permute.xlu0 2
          %1131 = vperm.xlu0 %1130, %v628
          %v1132 = vpop.permute.xlu0 %1131
          %1134 = vset.pattern.permute.xlu0 2
          %1135 = vperm.xlu0 %1134, %v629
          %v1136 = vpop.permute.xlu0 %1135
          %1138 = vset.pattern.permute.xlu0 2
          %1139 = vperm.xlu0 %1138, %v630
          %v1140 = vpop.permute.xlu0 %1139
          %1142 = vset.pattern.permute.xlu0 2
          %1143 = vperm.xlu0 %1142, %v631
          %v1144 = vpop.permute.xlu0 %1143
          %1146 = vset.pattern.permute.xlu0 2
          %1147 = vperm.xlu0 %1146, %v632
          %v1148 = vpop.permute.xlu0 %1147
          %v1150 = vperm.slane %v1021, 0
          %v1151 = vmul.f32 %v1024, %v1150
          %v1152 = vmul.f32 %v1028, %v1150
          %v1153 = vmul.f32 %v1032, %v1150
          %v1154 = vmul.f32 %v1036, %v1150
          %v1155 = vmul.f32 %v1040, %v1150
          %v1156 = vmul.f32 %v1044, %v1150
          %v1157 = vmul.f32 %v1048, %v1150
          %v1158 = vmul.f32 %v1052, %v1150
          %v1159 = vmul.f32 %v1056, %v1150
          %v1160 = vmul.f32 %v1060, %v1150
          %v1161 = vmul.f32 %v1064, %v1150
          %v1162 = vmul.f32 %v1068, %v1150
          %v1163 = vmul.f32 %v1072, %v1150
          %v1164 = vmul.f32 %v1076, %v1150
          %v1165 = vmul.f32 %v1080, %v1150
          %v1166 = vmul.f32 %v1084, %v1150
          %v1167 = vmul.f32 %v1088, %v1150
          %v1168 = vmul.f32 %v1092, %v1150
          %v1169 = vmul.f32 %v1096, %v1150
          %v1170 = vmul.f32 %v1100, %v1150
          %v1171 = vmul.f32 %v1104, %v1150
          %v1172 = vmul.f32 %v1108, %v1150
          %v1173 = vmul.f32 %v1112, %v1150
          %v1174 = vmul.f32 %v1116, %v1150
          %v1175 = vmul.f32 %v1120, %v1150
          %v1176 = vmul.f32 %v1124, %v1150
          %v1177 = vmul.f32 %v1128, %v1150
          %v1178 = vmul.f32 %v1132, %v1150
          %v1179 = vmul.f32 %v1136, %v1150
          %v1180 = vmul.f32 %v1140, %v1150
          %v1181 = vmul.f32 %v1144, %v1150
          %v1182 = vmul.f32 %v1148, %v1150
          %v1183 = vadd.f32 %v989, %v1151
          %v1184 = vadd.f32 %v990, %v1152
          %v1185 = vadd.f32 %v991, %v1153
          %v1186 = vadd.f32 %v992, %v1154
          %v1187 = vadd.f32 %v993, %v1155
          %v1188 = vadd.f32 %v994, %v1156
          %v1189 = vadd.f32 %v995, %v1157
          %v1190 = vadd.f32 %v996, %v1158
          %v1191 = vadd.f32 %v997, %v1159
          %v1192 = vadd.f32 %v998, %v1160
          %v1193 = vadd.f32 %v999, %v1161
          %v1194 = vadd.f32 %v1000, %v1162
          %v1195 = vadd.f32 %v1001, %v1163
          %v1196 = vadd.f32 %v1002, %v1164
          %v1197 = vadd.f32 %v1003, %v1165
          %v1198 = vadd.f32 %v1004, %v1166
          %v1199 = vadd.f32 %v1005, %v1167
          %v1200 = vadd.f32 %v1006, %v1168
          %v1201 = vadd.f32 %v1007, %v1169
          %v1202 = vadd.f32 %v1008, %v1170
          %v1203 = vadd.f32 %v1009, %v1171
          %v1204 = vadd.f32 %v1010, %v1172
          %v1205 = vadd.f32 %v1011, %v1173
          %v1206 = vadd.f32 %v1012, %v1174
          %v1207 = vadd.f32 %v1013, %v1175
          %v1208 = vadd.f32 %v1014, %v1176
          %v1209 = vadd.f32 %v1015, %v1177
          %v1210 = vadd.f32 %v1016, %v1178
          %v1211 = vadd.f32 %v1017, %v1179
          %v1212 = vadd.f32 %v1018, %v1180
          %v1213 = vadd.f32 %v1019, %v1181
          %v1214 = vadd.f32 %v1020, %v1182
          %v1215 = vld [vmem:[%s2] sm:$0x1]
          %v1217 = vperm.slane %v1215, 0
          %v1219 = vadd.f32 %v1183, %v1217
          %v1220 = vadd.f32 %v1184, %v1217
          %v1221 = vadd.f32 %v1185, %v1217
          %v1222 = vadd.f32 %v1186, %v1217
          %v1223 = vadd.f32 %v1187, %v1217
          %v1224 = vadd.f32 %v1188, %v1217
          %v1225 = vadd.f32 %v1189, %v1217
          %v1226 = vadd.f32 %v1190, %v1217
          %v1227 = vadd.f32 %v1191, %v1217
          %v1228 = vadd.f32 %v1192, %v1217
          %v1229 = vadd.f32 %v1193, %v1217
          %v1230 = vadd.f32 %v1194, %v1217
          %v1231 = vadd.f32 %v1195, %v1217
          %v1232 = vadd.f32 %v1196, %v1217
          %v1233 = vadd.f32 %v1197, %v1217
          %v1234 = vadd.f32 %v1198, %v1217
          %v1235 = vadd.f32 %v1199, %v1217
          %v1236 = vadd.f32 %v1200, %v1217
          %v1237 = vadd.f32 %v1201, %v1217
          %v1238 = vadd.f32 %v1202, %v1217
          %v1239 = vadd.f32 %v1203, %v1217
          %v1240 = vadd.f32 %v1204, %v1217
          %v1241 = vadd.f32 %v1205, %v1217
          %v1242 = vadd.f32 %v1206, %v1217
          %v1243 = vadd.f32 %v1207, %v1217
          %v1244 = vadd.f32 %v1208, %v1217
          %v1245 = vadd.f32 %v1209, %v1217
          %v1246 = vadd.f32 %v1210, %v1217
          %v1247 = vadd.f32 %v1211, %v1217
          %v1248 = vadd.f32 %v1212, %v1217
          %v1249 = vadd.f32 %v1213, %v1217
          %v1250 = vadd.f32 %v1214, %v1217
          %v1251 = vmax.f32 %v1219, 0.0
          %v1252 = vmax.f32 %v1220, 0.0
          %v1253 = vmax.f32 %v1221, 0.0
          %v1254 = vmax.f32 %v1222, 0.0
          %v1255 = vmax.f32 %v1223, 0.0
          %v1256 = vmax.f32 %v1224, 0.0
          %v1257 = vmax.f32 %v1225, 0.0
          %v1258 = vmax.f32 %v1226, 0.0
          %v1259 = vmax.f32 %v1227, 0.0
          %v1260 = vmax.f32 %v1228, 0.0
          %v1261 = vmax.f32 %v1229, 0.0
          %v1262 = vmax.f32 %v1230, 0.0
          %v1263 = vmax.f32 %v1231, 0.0
          %v1264 = vmax.f32 %v1232, 0.0
          %v1265 = vmax.f32 %v1233, 0.0
          %v1266 = vmax.f32 %v1234, 0.0
          %v1267 = vmax.f32 %v1235, 0.0
          %v1268 = vmax.f32 %v1236, 0.0
          %v1269 = vmax.f32 %v1237, 0.0
          %v1270 = vmax.f32 %v1238, 0.0
          %v1271 = vmax.f32 %v1239, 0.0
          %v1272 = vmax.f32 %v1240, 0.0
          %v1273 = vmax.f32 %v1241, 0.0
          %v1274 = vmax.f32 %v1242, 0.0
          %v1275 = vmax.f32 %v1243, 0.0
          %v1276 = vmax.f32 %v1244, 0.0
          %v1277 = vmax.f32 %v1245, 0.0
          %v1278 = vmax.f32 %v1246, 0.0
          %v1279 = vmax.f32 %v1247, 0.0
          %v1280 = vmax.f32 %v1248, 0.0
          %v1281 = vmax.f32 %v1249, 0.0
          %v1282 = vmax.f32 %v1250, 0.0
          %v1283 = vpack.c.bf16 %v1252, %v1251
          %v1284 = vpack.c.bf16 %v1254, %v1253
          %v1285 = vpack.c.bf16 %v1256, %v1255
          %v1286 = vpack.c.bf16 %v1258, %v1257
          %v1287 = vpack.c.bf16 %v1260, %v1259
          %v1288 = vpack.c.bf16 %v1262, %v1261
          %v1289 = vpack.c.bf16 %v1264, %v1263
          %v1290 = vpack.c.bf16 %v1266, %v1265
          %v1291 = vpack.c.bf16 %v1268, %v1267
          %v1292 = vpack.c.bf16 %v1270, %v1269
          %v1293 = vpack.c.bf16 %v1272, %v1271
          %v1294 = vpack.c.bf16 %v1274, %v1273
          %v1295 = vpack.c.bf16 %v1276, %v1275
          %v1296 = vpack.c.bf16 %v1278, %v1277
          %v1297 = vpack.c.bf16 %v1280, %v1279
          %v1298 = vpack.c.bf16 %v1282, %v1281
          %v1299 = vld [vmem:[#allocation5] sm:$0xf]
          %v1300 = vld [vmem:[#allocation5 + $0x4] sm:$0xf]
          %v1301 = vld [vmem:[#allocation5 + $0x8] sm:$0xf]
          %v1302 = vld [vmem:[#allocation5 + $0xc] sm:$0xf]
          %v1303 = vld [vmem:[#allocation5 + $0x10] sm:$0xf]
          %v1304 = vld [vmem:[#allocation5 + $0x14] sm:$0xf]
          %v1305 = vld [vmem:[#allocation5 + $0x18] sm:$0xf]
          %v1306 = vld [vmem:[#allocation5 + $0x1c] sm:$0xf]
          %v1307 = vld [vmem:[%s4] sm:$0x1]
          %v1309 = vperm.slane %v1307, 0
          %v1319 = vunpack.c.l.b16 %v1299
          %v1320 = vunpack.c.l.b16 %v1300
          %v1321 = vunpack.c.l.b16 %v1301
          %v1322 = vunpack.c.l.b16 %v1302
          %v1323 = vunpack.c.l.b16 %v1303
          %v1324 = vunpack.c.l.b16 %v1304
          %v1325 = vunpack.c.l.b16 %v1305
          %v1326 = vunpack.c.l.b16 %v1306
          %v1327 = vpack.c.b16 %v1320, %v1319
          %v1328 = vpack.c.b16 %v1322, %v1321
          %v1329 = vpack.c.b16 %v1324, %v1323
          %v1330 = vpack.c.b16 %v1326, %v1325
          %vm1335 = vcmask 523264
          %v1337 = vsel %vm1335, %v1283, 0
          %v1340 = vsel %vm1335, %v1284, 0
          %v1343 = vsel %vm1335, %v1285, 0
          %v1346 = vsel %vm1335, %v1286, 0
          %v1349 = vsel %vm1335, %v1287, 0
          %v1352 = vsel %vm1335, %v1288, 0
          %v1355 = vsel %vm1335, %v1289, 0
          %v1358 = vsel %vm1335, %v1290, 0
          %v1361 = vsel %vm1335, %v1291, 0
          %v1364 = vsel %vm1335, %v1292, 0
          %v1367 = vsel %vm1335, %v1293, 0
          %v1370 = vsel %vm1335, %v1294, 0
          %v1373 = vsel %vm1335, %v1295, 0
          %v1376 = vsel %vm1335, %v1296, 0
          %v1379 = vsel %vm1335, %v1297, 0
          %v1382 = vsel %vm1335, %v1298, 0
          %1384 = vmatpush.bf16.msra.mxu0 0
          %1385 = vmatpush.bf16.msra.mxu0 0
          %1386 = vmatpush.bf16.msra.mxu0 0
          %1387 = vmatpush.bf16.msra.mxu0 0
          %1388 = vmatpush.bf16.msra.mxu0 %v1330
          %1389 = vmatpush.bf16.msra.mxu0 %v1329
          %1390 = vmatpush.bf16.msra.mxu0 %v1328
          %1391 = vmatpush.bf16.msra.mxu0 %v1327
          %1392 = vmatmul.bf16.gmra.mxu0 %v1337
          %v1393 = vpop.f32.mrf.mxu0
          %v1394 = vadd.f32 %v1309, %v1393
          %v1395 = vpop.f32.mrf.mxu0
          %v1396 = vadd.f32 %v1309, %v1395
          %1397 = vmatmul.bf16.gmra.mxu0 %v1340
          %v1398 = vpop.f32.mrf.mxu0
          %v1399 = vadd.f32 %v1309, %v1398
          %v1400 = vpop.f32.mrf.mxu0
          %v1401 = vadd.f32 %v1309, %v1400
          %1402 = vmatmul.bf16.gmra.mxu0 %v1343
          %v1403 = vpop.f32.mrf.mxu0
          %v1404 = vadd.f32 %v1309, %v1403
          %v1405 = vpop.f32.mrf.mxu0
          %v1406 = vadd.f32 %v1309, %v1405
          %1407 = vmatmul.bf16.gmra.mxu0 %v1346
          %v1408 = vpop.f32.mrf.mxu0
          %v1409 = vadd.f32 %v1309, %v1408
          %v1410 = vpop.f32.mrf.mxu0
          %v1411 = vadd.f32 %v1309, %v1410
          %1412 = vmatmul.bf16.gmra.mxu0 %v1349
          %v1413 = vpop.f32.mrf.mxu0
          %v1414 = vadd.f32 %v1309, %v1413
          %v1415 = vpop.f32.mrf.mxu0
          %v1416 = vadd.f32 %v1309, %v1415
          %1417 = vmatmul.bf16.gmra.mxu0 %v1352
          %v1418 = vpop.f32.mrf.mxu0
          %v1419 = vadd.f32 %v1309, %v1418
          %v1420 = vpop.f32.mrf.mxu0
          %v1421 = vadd.f32 %v1309, %v1420
          %1422 = vmatmul.bf16.gmra.mxu0 %v1355
          %v1423 = vpop.f32.mrf.mxu0
          %v1424 = vadd.f32 %v1309, %v1423
          %v1425 = vpop.f32.mrf.mxu0
          %v1426 = vadd.f32 %v1309, %v1425
          %1427 = vmatmul.bf16.gmra.mxu0 %v1358
          %v1428 = vpop.f32.mrf.mxu0
          %v1429 = vadd.f32 %v1309, %v1428
          %v1430 = vpop.f32.mrf.mxu0
          %v1431 = vadd.f32 %v1309, %v1430
          %1432 = vmatmul.bf16.gmra.mxu0 %v1361
          %v1433 = vpop.f32.mrf.mxu0
          %v1434 = vadd.f32 %v1309, %v1433
          %v1435 = vpop.f32.mrf.mxu0
          %v1436 = vadd.f32 %v1309, %v1435
          %1437 = vmatmul.bf16.gmra.mxu0 %v1364
          %v1438 = vpop.f32.mrf.mxu0
          %v1439 = vadd.f32 %v1309, %v1438
          %v1440 = vpop.f32.mrf.mxu0
          %v1441 = vadd.f32 %v1309, %v1440
          %1442 = vmatmul.bf16.gmra.mxu0 %v1367
          %v1443 = vpop.f32.mrf.mxu0
          %v1444 = vadd.f32 %v1309, %v1443
          %v1445 = vpop.f32.mrf.mxu0
          %v1446 = vadd.f32 %v1309, %v1445
          %1447 = vmatmul.bf16.gmra.mxu0 %v1370
          %v1448 = vpop.f32.mrf.mxu0
          %v1449 = vadd.f32 %v1309, %v1448
          %v1450 = vpop.f32.mrf.mxu0
          %v1451 = vadd.f32 %v1309, %v1450
          %1452 = vmatmul.bf16.gmra.mxu0 %v1373
          %v1453 = vpop.f32.mrf.mxu0
          %v1454 = vadd.f32 %v1309, %v1453
          %v1455 = vpop.f32.mrf.mxu0
          %v1456 = vadd.f32 %v1309, %v1455
          %1457 = vmatmul.bf16.gmra.mxu0 %v1376
          %v1458 = vpop.f32.mrf.mxu0
          %v1459 = vadd.f32 %v1309, %v1458
          %v1460 = vpop.f32.mrf.mxu0
          %v1461 = vadd.f32 %v1309, %v1460
          %1462 = vmatmul.bf16.gmra.mxu0 %v1379
          %v1463 = vpop.f32.mrf.mxu0
          %v1464 = vadd.f32 %v1309, %v1463
          %v1465 = vpop.f32.mrf.mxu0
          %v1466 = vadd.f32 %v1309, %v1465
          %1467 = vmatmul.bf16.gmra.mxu0 %v1382
          %v1468 = vpop.f32.mrf.mxu0
          %v1469 = vadd.f32 %v1309, %v1468
          %v1470 = vpop.f32.mrf.mxu0
          %v1471 = vadd.f32 %v1309, %v1470
          %1472 = vdwg.mxu0
          %v1473 = vmax.f32 %v1394, 0.0
          %v1474 = vmax.f32 %v1396, 0.0
          %v1475 = vmax.f32 %v1399, 0.0
          %v1476 = vmax.f32 %v1401, 0.0
          %v1477 = vmax.f32 %v1404, 0.0
          %v1478 = vmax.f32 %v1406, 0.0
          %v1479 = vmax.f32 %v1409, 0.0
          %v1480 = vmax.f32 %v1411, 0.0
          %v1481 = vmax.f32 %v1414, 0.0
          %v1482 = vmax.f32 %v1416, 0.0
          %v1483 = vmax.f32 %v1419, 0.0
          %v1484 = vmax.f32 %v1421, 0.0
          %v1485 = vmax.f32 %v1424, 0.0
          %v1486 = vmax.f32 %v1426, 0.0
          %v1487 = vmax.f32 %v1429, 0.0
          %v1488 = vmax.f32 %v1431, 0.0
          %v1489 = vmax.f32 %v1434, 0.0
          %v1490 = vmax.f32 %v1436, 0.0
          %v1491 = vmax.f32 %v1439, 0.0
          %v1492 = vmax.f32 %v1441, 0.0
          %v1493 = vmax.f32 %v1444, 0.0
          %v1494 = vmax.f32 %v1446, 0.0
          %v1495 = vmax.f32 %v1449, 0.0
          %v1496 = vmax.f32 %v1451, 0.0
          %v1497 = vmax.f32 %v1454, 0.0
          %v1498 = vmax.f32 %v1456, 0.0
          %v1499 = vmax.f32 %v1459, 0.0
          %v1500 = vmax.f32 %v1461, 0.0
          %v1501 = vmax.f32 %v1464, 0.0
          %v1502 = vmax.f32 %v1466, 0.0
          %v1503 = vmax.f32 %v1469, 0.0
          %v1504 = vmax.f32 %v1471, 0.0
          %v1505 = vpack.c.bf16 %v1474, %v1473
          %v1506 = vpack.c.bf16 %v1476, %v1475
          %v1507 = vpack.c.bf16 %v1478, %v1477
          %v1508 = vpack.c.bf16 %v1480, %v1479
          %v1509 = vpack.c.bf16 %v1482, %v1481
          %v1510 = vpack.c.bf16 %v1484, %v1483
          %v1511 = vpack.c.bf16 %v1486, %v1485
          %v1512 = vpack.c.bf16 %v1488, %v1487
          %v1513 = vpack.c.bf16 %v1490, %v1489
          %v1514 = vpack.c.bf16 %v1492, %v1491
          %v1515 = vpack.c.bf16 %v1494, %v1493
          %v1516 = vpack.c.bf16 %v1496, %v1495
          %v1517 = vpack.c.bf16 %v1498, %v1497
          %v1518 = vpack.c.bf16 %v1500, %v1499
          %v1519 = vpack.c.bf16 %v1502, %v1501
          %v1520 = vpack.c.bf16 %v1504, %v1503
          %v1521 = vld [vmem:[%s5] sm:$0xff]
          %v1522 = vld [vmem:[%s5 + $0x8] sm:$0xff]
          %v1523 = vld [vmem:[%s5 + $0x10] sm:$0xff]
          %v1524 = vld [vmem:[%s5 + $0x18] sm:$0xff]
          %v1525 = vld [vmem:[%s5 + $0x20] sm:$0xff]
          %v1526 = vld [vmem:[%s5 + $0x28] sm:$0xff]
          %v1527 = vld [vmem:[%s5 + $0x30] sm:$0xff]
          %v1528 = vld [vmem:[%s5 + $0x38] sm:$0xff]
          %v1529 = vld [vmem:[%s5 + $0x40] sm:$0xff]
          %v1530 = vld [vmem:[%s5 + $0x48] sm:$0xff]
          %v1531 = vld [vmem:[%s5 + $0x50] sm:$0xff]
          %v1532 = vld [vmem:[%s5 + $0x58] sm:$0xff]
          %v1533 = vld [vmem:[%s5 + $0x60] sm:$0xff]
          %v1534 = vld [vmem:[%s5 + $0x68] sm:$0xff]
          %v1535 = vld [vmem:[%s5 + $0x70] sm:$0xff]
          %v1536 = vld [vmem:[%s5 + $0x78] sm:$0xff]
          %v1537 = vld [vmem:[%s5 + $0x80] sm:$0xff]
          %v1538 = vld [vmem:[%s5 + $0x88] sm:$0xff]
          %v1539 = vld [vmem:[%s5 + $0x90] sm:$0xff]
          %v1540 = vld [vmem:[%s5 + $0x98] sm:$0xff]
          %v1541 = vld [vmem:[%s5 + $0xa0] sm:$0xff]
          %v1542 = vld [vmem:[%s5 + $0xa8] sm:$0xff]
          %v1543 = vld [vmem:[%s5 + $0xb0] sm:$0xff]
          %v1544 = vld [vmem:[%s5 + $0xb8] sm:$0xff]
          %v1545 = vld [vmem:[%s5 + $0xc0] sm:$0xff]
          %v1546 = vld [vmem:[%s5 + $0xc8] sm:$0xff]
          %v1547 = vld [vmem:[%s5 + $0xd0] sm:$0xff]
          %v1548 = vld [vmem:[%s5 + $0xd8] sm:$0xff]
          %v1549 = vld [vmem:[%s5 + $0xe0] sm:$0xff]
          %v1550 = vld [vmem:[%s5 + $0xe8] sm:$0xff]
          %v1551 = vld [vmem:[%s5 + $0xf0] sm:$0xff]
          %v1552 = vld [vmem:[%s5 + $0xf8] sm:$0xff]
          %v1553 = vld [vmem:[%s5 + $0x100] sm:$0xff]
          %v1554 = vld [vmem:[%s5 + $0x108] sm:$0xff]
          %v1555 = vld [vmem:[%s5 + $0x110] sm:$0xff]
          %v1556 = vld [vmem:[%s5 + $0x118] sm:$0xff]
          %v1557 = vld [vmem:[%s5 + $0x120] sm:$0xff]
          %v1558 = vld [vmem:[%s5 + $0x128] sm:$0xff]
          %v1559 = vld [vmem:[%s5 + $0x130] sm:$0xff]
          %v1560 = vld [vmem:[%s5 + $0x138] sm:$0xff]
          %v1561 = vld [vmem:[%s5 + $0x140] sm:$0xff]
          %v1562 = vld [vmem:[%s5 + $0x148] sm:$0xff]
          %v1563 = vld [vmem:[%s5 + $0x150] sm:$0xff]
          %v1564 = vld [vmem:[%s5 + $0x158] sm:$0xff]
          %v1565 = vld [vmem:[%s5 + $0x160] sm:$0xff]
          %v1566 = vld [vmem:[%s5 + $0x168] sm:$0xff]
          %v1567 = vld [vmem:[%s5 + $0x170] sm:$0xff]
          %v1568 = vld [vmem:[%s5 + $0x178] sm:$0xff]
          %v1569 = vld [vmem:[%s5 + $0x180] sm:$0xff]
          %v1570 = vld [vmem:[%s5 + $0x188] sm:$0xff]
          %v1571 = vld [vmem:[%s5 + $0x190] sm:$0xff]
          %v1572 = vld [vmem:[%s5 + $0x198] sm:$0xff]
          %v1573 = vld [vmem:[%s5 + $0x1a0] sm:$0xff]
          %v1574 = vld [vmem:[%s5 + $0x1a8] sm:$0xff]
          %v1575 = vld [vmem:[%s5 + $0x1b0] sm:$0xff]
          %v1576 = vld [vmem:[%s5 + $0x1b8] sm:$0xff]
          %v1577 = vld [vmem:[%s5 + $0x1c0] sm:$0xff]
          %v1578 = vld [vmem:[%s5 + $0x1c8] sm:$0xff]
          %v1579 = vld [vmem:[%s5 + $0x1d0] sm:$0xff]
          %v1580 = vld [vmem:[%s5 + $0x1d8] sm:$0xff]
          %v1581 = vld [vmem:[%s5 + $0x1e0] sm:$0xff]
          %v1582 = vld [vmem:[%s5 + $0x1e8] sm:$0xff]
          %v1583 = vld [vmem:[%s5 + $0x1f0] sm:$0xff]
          %v1584 = vld [vmem:[%s5 + $0x1f8] sm:$0xff]
          %v1585 = vld [vmem:[%s6] sm:$0xff]
          %v1587 = vperm.slane %v1585, 0
          %v1588 = vperm.slane %v1585, 1
          %v1589 = vperm.slane %v1585, 2
          %v1590 = vperm.slane %v1585, 3
          %v1591 = vperm.slane %v1585, 4
          %v1592 = vperm.slane %v1585, 5
          %v1593 = vperm.slane %v1585, 6
          %v1594 = vperm.slane %v1585, 7
          %v1667 = vunpack.c.l.b16 %v1521
          %v1668 = vunpack.c.h.b16 %v1521
          %v1669 = vunpack.c.l.b16 %v1522
          %v1670 = vunpack.c.h.b16 %v1522
          %v1671 = vunpack.c.l.b16 %v1523
          %v1672 = vunpack.c.h.b16 %v1523
          %v1673 = vunpack.c.l.b16 %v1524
          %v1674 = vunpack.c.h.b16 %v1524
          %v1675 = vunpack.c.l.b16 %v1525
          %v1676 = vunpack.c.h.b16 %v1525
          %v1677 = vunpack.c.l.b16 %v1526
          %v1678 = vunpack.c.h.b16 %v1526
          %v1679 = vunpack.c.l.b16 %v1527
          %v1680 = vunpack.c.h.b16 %v1527
          %v1681 = vunpack.c.l.b16 %v1528
          %v1682 = vunpack.c.h.b16 %v1528
          %v1683 = vunpack.c.l.b16 %v1529
          %v1684 = vunpack.c.h.b16 %v1529
          %v1685 = vunpack.c.l.b16 %v1530
          %v1686 = vunpack.c.h.b16 %v1530
          %v1687 = vunpack.c.l.b16 %v1531
          %v1688 = vunpack.c.h.b16 %v1531
          %v1689 = vunpack.c.l.b16 %v1532
          %v1690 = vunpack.c.h.b16 %v1532
          %v1691 = vunpack.c.l.b16 %v1533
          %v1692 = vunpack.c.h.b16 %v1533
          %v1693 = vunpack.c.l.b16 %v1534
          %v1694 = vunpack.c.h.b16 %v1534
          %v1695 = vunpack.c.l.b16 %v1535
          %v1696 = vunpack.c.h.b16 %v1535
          %v1697 = vunpack.c.l.b16 %v1536
          %v1698 = vunpack.c.h.b16 %v1536
          %v1699 = vunpack.c.l.b16 %v1537
          %v1700 = vunpack.c.h.b16 %v1537
          %v1701 = vunpack.c.l.b16 %v1538
          %v1702 = vunpack.c.h.b16 %v1538
          %v1703 = vunpack.c.l.b16 %v1539
          %v1704 = vunpack.c.h.b16 %v1539
          %v1705 = vunpack.c.l.b16 %v1540
          %v1706 = vunpack.c.h.b16 %v1540
          %v1707 = vunpack.c.l.b16 %v1541
          %v1708 = vunpack.c.h.b16 %v1541
          %v1709 = vunpack.c.l.b16 %v1542
          %v1710 = vunpack.c.h.b16 %v1542
          %v1711 = vunpack.c.l.b16 %v1543
          %v1712 = vunpack.c.h.b16 %v1543
          %v1713 = vunpack.c.l.b16 %v1544
          %v1714 = vunpack.c.h.b16 %v1544
          %v1715 = vunpack.c.l.b16 %v1545
          %v1716 = vunpack.c.h.b16 %v1545
          %v1717 = vunpack.c.l.b16 %v1546
          %v1718 = vunpack.c.h.b16 %v1546
          %v1719 = vunpack.c.l.b16 %v1547
          %v1720 = vunpack.c.h.b16 %v1547
          %v1721 = vunpack.c.l.b16 %v1548
          %v1722 = vunpack.c.h.b16 %v1548
          %v1723 = vunpack.c.l.b16 %v1549
          %v1724 = vunpack.c.h.b16 %v1549
          %v1725 = vunpack.c.l.b16 %v1550
          %v1726 = vunpack.c.h.b16 %v1550
          %v1727 = vunpack.c.l.b16 %v1551
          %v1728 = vunpack.c.h.b16 %v1551
          %v1729 = vunpack.c.l.b16 %v1552
          %v1730 = vunpack.c.h.b16 %v1552
          %v1731 = vunpack.c.l.b16 %v1553
          %v1732 = vunpack.c.h.b16 %v1553
          %v1733 = vunpack.c.l.b16 %v1554
          %v1734 = vunpack.c.h.b16 %v1554
          %v1735 = vunpack.c.l.b16 %v1555
          %v1736 = vunpack.c.h.b16 %v1555
          %v1737 = vunpack.c.l.b16 %v1556
          %v1738 = vunpack.c.h.b16 %v1556
          %v1739 = vunpack.c.l.b16 %v1557
          %v1740 = vunpack.c.h.b16 %v1557
          %v1741 = vunpack.c.l.b16 %v1558
          %v1742 = vunpack.c.h.b16 %v1558
          %v1743 = vunpack.c.l.b16 %v1559
          %v1744 = vunpack.c.h.b16 %v1559
          %v1745 = vunpack.c.l.b16 %v1560
          %v1746 = vunpack.c.h.b16 %v1560
          %v1747 = vunpack.c.l.b16 %v1561
          %v1748 = vunpack.c.h.b16 %v1561
          %v1749 = vunpack.c.l.b16 %v1562
          %v1750 = vunpack.c.h.b16 %v1562
          %v1751 = vunpack.c.l.b16 %v1563
          %v1752 = vunpack.c.h.b16 %v1563
          %v1753 = vunpack.c.l.b16 %v1564
          %v1754 = vunpack.c.h.b16 %v1564
          %v1755 = vunpack.c.l.b16 %v1565
          %v1756 = vunpack.c.h.b16 %v1565
          %v1757 = vunpack.c.l.b16 %v1566
          %v1758 = vunpack.c.h.b16 %v1566
          %v1759 = vunpack.c.l.b16 %v1567
          %v1760 = vunpack.c.h.b16 %v1567
          %v1761 = vunpack.c.l.b16 %v1568
          %v1762 = vunpack.c.h.b16 %v1568
          %v1763 = vunpack.c.l.b16 %v1569
          %v1764 = vunpack.c.h.b16 %v1569
          %v1765 = vunpack.c.l.b16 %v1570
          %v1766 = vunpack.c.h.b16 %v1570
          %v1767 = vunpack.c.l.b16 %v1571
          %v1768 = vunpack.c.h.b16 %v1571
          %v1769 = vunpack.c.l.b16 %v1572
          %v1770 = vunpack.c.h.b16 %v1572
          %v1771 = vunpack.c.l.b16 %v1573
          %v1772 = vunpack.c.h.b16 %v1573
          %v1773 = vunpack.c.l.b16 %v1574
          %v1774 = vunpack.c.h.b16 %v1574
          %v1775 = vunpack.c.l.b16 %v1575
          %v1776 = vunpack.c.h.b16 %v1575
          %v1777 = vunpack.c.l.b16 %v1576
          %v1778 = vunpack.c.h.b16 %v1576
          %v1779 = vunpack.c.l.b16 %v1577
          %v1780 = vunpack.c.h.b16 %v1577
          %v1781 = vunpack.c.l.b16 %v1578
          %v1782 = vunpack.c.h.b16 %v1578
          %v1783 = vunpack.c.l.b16 %v1579
          %v1784 = vunpack.c.h.b16 %v1579
          %v1785 = vunpack.c.l.b16 %v1580
          %v1786 = vunpack.c.h.b16 %v1580
          %v1787 = vunpack.c.l.b16 %v1581
          %v1788 = vunpack.c.h.b16 %v1581
          %v1789 = vunpack.c.l.b16 %v1582
          %v1790 = vunpack.c.h.b16 %v1582
          %v1791 = vunpack.c.l.b16 %v1583
          %v1792 = vunpack.c.h.b16 %v1583
          %v1793 = vunpack.c.l.b16 %v1584
          %v1794 = vunpack.c.h.b16 %v1584
          %v1795 = vpack.c.b16 %v1675, %v1667
          %v1796 = vpack.c.b16 %v1676, %v1668
          %v1797 = vpack.c.b16 %v1677, %v1669
          %v1798 = vpack.c.b16 %v1678, %v1670
          %v1799 = vpack.c.b16 %v1679, %v1671
          %v1800 = vpack.c.b16 %v1680, %v1672
          %v1801 = vpack.c.b16 %v1681, %v1673
          %v1802 = vpack.c.b16 %v1682, %v1674
          %v1803 = vpack.c.b16 %v1691, %v1683
          %v1804 = vpack.c.b16 %v1692, %v1684
          %v1805 = vpack.c.b16 %v1693, %v1685
          %v1806 = vpack.c.b16 %v1694, %v1686
          %v1807 = vpack.c.b16 %v1695, %v1687
          %v1808 = vpack.c.b16 %v1696, %v1688
          %v1809 = vpack.c.b16 %v1697, %v1689
          %v1810 = vpack.c.b16 %v1698, %v1690
          %v1811 = vpack.c.b16 %v1707, %v1699
          %v1812 = vpack.c.b16 %v1708, %v1700
          %v1813 = vpack.c.b16 %v1709, %v1701
          %v1814 = vpack.c.b16 %v1710, %v1702
          %v1815 = vpack.c.b16 %v1711, %v1703
          %v1816 = vpack.c.b16 %v1712, %v1704
          %v1817 = vpack.c.b16 %v1713, %v1705
          %v1818 = vpack.c.b16 %v1714, %v1706
          %v1819 = vpack.c.b16 %v1723, %v1715
          %v1820 = vpack.c.b16 %v1724, %v1716
          %v1821 = vpack.c.b16 %v1725, %v1717
          %v1822 = vpack.c.b16 %v1726, %v1718
          %v1823 = vpack.c.b16 %v1727, %v1719
          %v1824 = vpack.c.b16 %v1728, %v1720
          %v1825 = vpack.c.b16 %v1729, %v1721
          %v1826 = vpack.c.b16 %v1730, %v1722
          %v1827 = vpack.c.b16 %v1739, %v1731
          %v1828 = vpack.c.b16 %v1740, %v1732
          %v1829 = vpack.c.b16 %v1741, %v1733
          %v1830 = vpack.c.b16 %v1742, %v1734
          %v1831 = vpack.c.b16 %v1743, %v1735
          %v1832 = vpack.c.b16 %v1744, %v1736
          %v1833 = vpack.c.b16 %v1745, %v1737
          %v1834 = vpack.c.b16 %v1746, %v1738
          %v1835 = vpack.c.b16 %v1755, %v1747
          %v1836 = vpack.c.b16 %v1756, %v1748
          %v1837 = vpack.c.b16 %v1757, %v1749
          %v1838 = vpack.c.b16 %v1758, %v1750
          %v1839 = vpack.c.b16 %v1759, %v1751
          %v1840 = vpack.c.b16 %v1760, %v1752
          %v1841 = vpack.c.b16 %v1761, %v1753
          %v1842 = vpack.c.b16 %v1762, %v1754
          %v1843 = vpack.c.b16 %v1771, %v1763
          %v1844 = vpack.c.b16 %v1772, %v1764
          %v1845 = vpack.c.b16 %v1773, %v1765
          %v1846 = vpack.c.b16 %v1774, %v1766
          %v1847 = vpack.c.b16 %v1775, %v1767
          %v1848 = vpack.c.b16 %v1776, %v1768
          %v1849 = vpack.c.b16 %v1777, %v1769
          %v1850 = vpack.c.b16 %v1778, %v1770
          %v1851 = vpack.c.b16 %v1787, %v1779
          %v1852 = vpack.c.b16 %v1788, %v1780
          %v1853 = vpack.c.b16 %v1789, %v1781
          %v1854 = vpack.c.b16 %v1790, %v1782
          %v1855 = vpack.c.b16 %v1791, %v1783
          %v1856 = vpack.c.b16 %v1792, %v1784
          %v1857 = vpack.c.b16 %v1793, %v1785
          %v1858 = vpack.c.b16 %v1794, %v1786
          %1923 = vmatpush.bf16.msra.mxu0 %v1851
          %1924 = vmatpush.bf16.msra.mxu0 %v1843
          %1925 = vmatpush.bf16.msra.mxu0 %v1835
          %1926 = vmatpush.bf16.msra.mxu0 %v1827
          %1927 = vmatpush.bf16.msra.mxu0 %v1819
          %1928 = vmatpush.bf16.msra.mxu0 %v1811
          %1929 = vmatpush.bf16.msra.mxu0 %v1803
          %1930 = vmatpush.bf16.msra.mxu0 %v1795
          %1931 = vmatmul.bf16.gmra.mxu0 %v1505
          %v1932 = vpop.f32.mrf.mxu0
          %v1933 = vadd.f32 %v1587, %v1932
          %v1934 = vpop.f32.mrf.mxu0
          %v1935 = vadd.f32 %v1587, %v1934
          %1936 = vmatmul.bf16.gmra.mxu0 %v1506
          %v1937 = vpop.f32.mrf.mxu0
          %v1938 = vadd.f32 %v1587, %v1937
          %v1939 = vpop.f32.mrf.mxu0
          %v1940 = vadd.f32 %v1587, %v1939
          %1941 = vmatmul.bf16.gmra.mxu0 %v1507
          %v1942 = vpop.f32.mrf.mxu0
          %v1943 = vadd.f32 %v1587, %v1942
          %v1944 = vpop.f32.mrf.mxu0
          %v1945 = vadd.f32 %v1587, %v1944
          %1946 = vmatmul.bf16.gmra.mxu0 %v1508
          %v1947 = vpop.f32.mrf.mxu0
          %v1948 = vadd.f32 %v1587, %v1947
          %v1949 = vpop.f32.mrf.mxu0
          %v1950 = vadd.f32 %v1587, %v1949
          %1951 = vmatmul.bf16.gmra.mxu0 %v1509
          %v1952 = vpop.f32.mrf.mxu0
          %v1953 = vadd.f32 %v1587, %v1952
          %v1954 = vpop.f32.mrf.mxu0
          %v1955 = vadd.f32 %v1587, %v1954
          %1956 = vmatmul.bf16.gmra.mxu0 %v1510
          %v1957 = vpop.f32.mrf.mxu0
          %v1958 = vadd.f32 %v1587, %v1957
          %v1959 = vpop.f32.mrf.mxu0
          %v1960 = vadd.f32 %v1587, %v1959
          %1961 = vmatmul.bf16.gmra.mxu0 %v1511
          %v1962 = vpop.f32.mrf.mxu0
          %v1963 = vadd.f32 %v1587, %v1962
          %v1964 = vpop.f32.mrf.mxu0
          %v1965 = vadd.f32 %v1587, %v1964
          %1966 = vmatmul.bf16.gmra.mxu0 %v1512
          %v1967 = vpop.f32.mrf.mxu0
          %v1968 = vadd.f32 %v1587, %v1967
          %v1969 = vpop.f32.mrf.mxu0
          %v1970 = vadd.f32 %v1587, %v1969
          %1971 = vmatmul.bf16.gmra.mxu0 %v1513
          %v1972 = vpop.f32.mrf.mxu0
          %v1973 = vadd.f32 %v1587, %v1972
          %v1974 = vpop.f32.mrf.mxu0
          %v1975 = vadd.f32 %v1587, %v1974
          %1976 = vmatmul.bf16.gmra.mxu0 %v1514
          %v1977 = vpop.f32.mrf.mxu0
          %v1978 = vadd.f32 %v1587, %v1977
          %v1979 = vpop.f32.mrf.mxu0
          %v1980 = vadd.f32 %v1587, %v1979
          %1981 = vmatmul.bf16.gmra.mxu0 %v1515
          %v1982 = vpop.f32.mrf.mxu0
          %v1983 = vadd.f32 %v1587, %v1982
          %v1984 = vpop.f32.mrf.mxu0
          %v1985 = vadd.f32 %v1587, %v1984
          %1986 = vmatmul.bf16.gmra.mxu0 %v1516
          %v1987 = vpop.f32.mrf.mxu0
          %v1988 = vadd.f32 %v1587, %v1987
          %v1989 = vpop.f32.mrf.mxu0
          %v1990 = vadd.f32 %v1587, %v1989
          %1991 = vmatmul.bf16.gmra.mxu0 %v1517
          %v1992 = vpop.f32.mrf.mxu0
          %v1993 = vadd.f32 %v1587, %v1992
          %v1994 = vpop.f32.mrf.mxu0
          %v1995 = vadd.f32 %v1587, %v1994
          %1996 = vmatmul.bf16.gmra.mxu0 %v1518
          %v1997 = vpop.f32.mrf.mxu0
          %v1998 = vadd.f32 %v1587, %v1997
          %v1999 = vpop.f32.mrf.mxu0
          %v2000 = vadd.f32 %v1587, %v1999
          %2001 = vmatmul.bf16.gmra.mxu0 %v1519
          %v2002 = vpop.f32.mrf.mxu0
          %v2003 = vadd.f32 %v1587, %v2002
          %v2004 = vpop.f32.mrf.mxu0
          %v2005 = vadd.f32 %v1587, %v2004
          %2006 = vmatmul.bf16.gmra.mxu0 %v1520
          %v2007 = vpop.f32.mrf.mxu0
          %v2008 = vadd.f32 %v1587, %v2007
          %v2009 = vpop.f32.mrf.mxu0
          %v2010 = vadd.f32 %v1587, %v2009
          %2011 = vdwg.mxu0
          %2012 = vmatpush.bf16.msra.mxu0 %v1852
          %2013 = vmatpush.bf16.msra.mxu0 %v1844
          %2014 = vmatpush.bf16.msra.mxu0 %v1836
          %2015 = vmatpush.bf16.msra.mxu0 %v1828
          %2016 = vmatpush.bf16.msra.mxu0 %v1820
          %2017 = vmatpush.bf16.msra.mxu0 %v1812
          %2018 = vmatpush.bf16.msra.mxu0 %v1804
          %2019 = vmatpush.bf16.msra.mxu0 %v1796
          %2020 = vmatmul.bf16.gmra.mxu0 %v1505
          %v2021 = vpop.f32.mrf.mxu0
          %v2022 = vadd.f32 %v1588, %v2021
          %v2023 = vpop.f32.mrf.mxu0
          %v2024 = vadd.f32 %v1588, %v2023
          %2025 = vmatmul.bf16.gmra.mxu0 %v1506
          %v2026 = vpop.f32.mrf.mxu0
          %v2027 = vadd.f32 %v1588, %v2026
          %v2028 = vpop.f32.mrf.mxu0
          %v2029 = vadd.f32 %v1588, %v2028
          %2030 = vmatmul.bf16.gmra.mxu0 %v1507
          %v2031 = vpop.f32.mrf.mxu0
          %v2032 = vadd.f32 %v1588, %v2031
          %v2033 = vpop.f32.mrf.mxu0
          %v2034 = vadd.f32 %v1588, %v2033
          %2035 = vmatmul.bf16.gmra.mxu0 %v1508
          %v2036 = vpop.f32.mrf.mxu0
          %v2037 = vadd.f32 %v1588, %v2036
          %v2038 = vpop.f32.mrf.mxu0
          %v2039 = vadd.f32 %v1588, %v2038
          %2040 = vmatmul.bf16.gmra.mxu0 %v1509
          %v2041 = vpop.f32.mrf.mxu0
          %v2042 = vadd.f32 %v1588, %v2041
          %v2043 = vpop.f32.mrf.mxu0
          %v2044 = vadd.f32 %v1588, %v2043
          %2045 = vmatmul.bf16.gmra.mxu0 %v1510
          %v2046 = vpop.f32.mrf.mxu0
          %v2047 = vadd.f32 %v1588, %v2046
          %v2048 = vpop.f32.mrf.mxu0
          %v2049 = vadd.f32 %v1588, %v2048
          %2050 = vmatmul.bf16.gmra.mxu0 %v1511
          %v2051 = vpop.f32.mrf.mxu0
          %v2052 = vadd.f32 %v1588, %v2051
          %v2053 = vpop.f32.mrf.mxu0
          %v2054 = vadd.f32 %v1588, %v2053
          %2055 = vmatmul.bf16.gmra.mxu0 %v1512
          %v2056 = vpop.f32.mrf.mxu0
          %v2057 = vadd.f32 %v1588, %v2056
          %v2058 = vpop.f32.mrf.mxu0
          %v2059 = vadd.f32 %v1588, %v2058
          %2060 = vmatmul.bf16.gmra.mxu0 %v1513
          %v2061 = vpop.f32.mrf.mxu0
          %v2062 = vadd.f32 %v1588, %v2061
          %v2063 = vpop.f32.mrf.mxu0
          %v2064 = vadd.f32 %v1588, %v2063
          %2065 = vmatmul.bf16.gmra.mxu0 %v1514
          %v2066 = vpop.f32.mrf.mxu0
          %v2067 = vadd.f32 %v1588, %v2066
          %v2068 = vpop.f32.mrf.mxu0
          %v2069 = vadd.f32 %v1588, %v2068
          %2070 = vmatmul.bf16.gmra.mxu0 %v1515
          %v2071 = vpop.f32.mrf.mxu0
          %v2072 = vadd.f32 %v1588, %v2071
          %v2073 = vpop.f32.mrf.mxu0
          %v2074 = vadd.f32 %v1588, %v2073
          %2075 = vmatmul.bf16.gmra.mxu0 %v1516
          %v2076 = vpop.f32.mrf.mxu0
          %v2077 = vadd.f32 %v1588, %v2076
          %v2078 = vpop.f32.mrf.mxu0
          %v2079 = vadd.f32 %v1588, %v2078
          %2080 = vmatmul.bf16.gmra.mxu0 %v1517
          %v2081 = vpop.f32.mrf.mxu0
          %v2082 = vadd.f32 %v1588, %v2081
          %v2083 = vpop.f32.mrf.mxu0
          %v2084 = vadd.f32 %v1588, %v2083
          %2085 = vmatmul.bf16.gmra.mxu0 %v1518
          %v2086 = vpop.f32.mrf.mxu0
          %v2087 = vadd.f32 %v1588, %v2086
          %v2088 = vpop.f32.mrf.mxu0
          %v2089 = vadd.f32 %v1588, %v2088
          %2090 = vmatmul.bf16.gmra.mxu0 %v1519
          %v2091 = vpop.f32.mrf.mxu0
          %v2092 = vadd.f32 %v1588, %v2091
          %v2093 = vpop.f32.mrf.mxu0
          %v2094 = vadd.f32 %v1588, %v2093
          %2095 = vmatmul.bf16.gmra.mxu0 %v1520
          %v2096 = vpop.f32.mrf.mxu0
          %v2097 = vadd.f32 %v1588, %v2096
          %v2098 = vpop.f32.mrf.mxu0
          %v2099 = vadd.f32 %v1588, %v2098
          %2100 = vdwg.mxu0
          %2101 = vmatpush.bf16.msra.mxu0 %v1853
          %2102 = vmatpush.bf16.msra.mxu0 %v1845
          %2103 = vmatpush.bf16.msra.mxu0 %v1837
          %2104 = vmatpush.bf16.msra.mxu0 %v1829
          %2105 = vmatpush.bf16.msra.mxu0 %v1821
          %2106 = vmatpush.bf16.msra.mxu0 %v1813
          %2107 = vmatpush.bf16.msra.mxu0 %v1805
          %2108 = vmatpush.bf16.msra.mxu0 %v1797
          %2109 = vmatmul.bf16.gmra.mxu0 %v1505
          %v2110 = vpop.f32.mrf.mxu0
          %v2111 = vadd.f32 %v1589, %v2110
          %v2112 = vpop.f32.mrf.mxu0
          %v2113 = vadd.f32 %v1589, %v2112
          %2114 = vmatmul.bf16.gmra.mxu0 %v1506
          %v2115 = vpop.f32.mrf.mxu0
          %v2116 = vadd.f32 %v1589, %v2115
          %v2117 = vpop.f32.mrf.mxu0
          %v2118 = vadd.f32 %v1589, %v2117
          %2119 = vmatmul.bf16.gmra.mxu0 %v1507
          %v2120 = vpop.f32.mrf.mxu0
          %v2121 = vadd.f32 %v1589, %v2120
          %v2122 = vpop.f32.mrf.mxu0
          %v2123 = vadd.f32 %v1589, %v2122
          %2124 = vmatmul.bf16.gmra.mxu0 %v1508
          %v2125 = vpop.f32.mrf.mxu0
          %v2126 = vadd.f32 %v1589, %v2125
          %v2127 = vpop.f32.mrf.mxu0
          %v2128 = vadd.f32 %v1589, %v2127
          %2129 = vmatmul.bf16.gmra.mxu0 %v1509
          %v2130 = vpop.f32.mrf.mxu0
          %v2131 = vadd.f32 %v1589, %v2130
          %v2132 = vpop.f32.mrf.mxu0
          %v2133 = vadd.f32 %v1589, %v2132
          %2134 = vmatmul.bf16.gmra.mxu0 %v1510
          %v2135 = vpop.f32.mrf.mxu0
          %v2136 = vadd.f32 %v1589, %v2135
          %v2137 = vpop.f32.mrf.mxu0
          %v2138 = vadd.f32 %v1589, %v2137
          %2139 = vmatmul.bf16.gmra.mxu0 %v1511
          %v2140 = vpop.f32.mrf.mxu0
          %v2141 = vadd.f32 %v1589, %v2140
          %v2142 = vpop.f32.mrf.mxu0
          %v2143 = vadd.f32 %v1589, %v2142
          %2144 = vmatmul.bf16.gmra.mxu0 %v1512
          %v2145 = vpop.f32.mrf.mxu0
          %v2146 = vadd.f32 %v1589, %v2145
          %v2147 = vpop.f32.mrf.mxu0
          %v2148 = vadd.f32 %v1589, %v2147
          %2149 = vmatmul.bf16.gmra.mxu0 %v1513
          %v2150 = vpop.f32.mrf.mxu0
          %v2151 = vadd.f32 %v1589, %v2150
          %v2152 = vpop.f32.mrf.mxu0
          %v2153 = vadd.f32 %v1589, %v2152
          %2154 = vmatmul.bf16.gmra.mxu0 %v1514
          %v2155 = vpop.f32.mrf.mxu0
          %v2156 = vadd.f32 %v1589, %v2155
          %v2157 = vpop.f32.mrf.mxu0
          %v2158 = vadd.f32 %v1589, %v2157
          %2159 = vmatmul.bf16.gmra.mxu0 %v1515
          %v2160 = vpop.f32.mrf.mxu0
          %v2161 = vadd.f32 %v1589, %v2160
          %v2162 = vpop.f32.mrf.mxu0
          %v2163 = vadd.f32 %v1589, %v2162
          %2164 = vmatmul.bf16.gmra.mxu0 %v1516
          %v2165 = vpop.f32.mrf.mxu0
          %v2166 = vadd.f32 %v1589, %v2165
          %v2167 = vpop.f32.mrf.mxu0
          %v2168 = vadd.f32 %v1589, %v2167
          %2169 = vmatmul.bf16.gmra.mxu0 %v1517
          %v2170 = vpop.f32.mrf.mxu0
          %v2171 = vadd.f32 %v1589, %v2170
          %v2172 = vpop.f32.mrf.mxu0
          %v2173 = vadd.f32 %v1589, %v2172
          %2174 = vmatmul.bf16.gmra.mxu0 %v1518
          %v2175 = vpop.f32.mrf.mxu0
          %v2176 = vadd.f32 %v1589, %v2175
          %v2177 = vpop.f32.mrf.mxu0
          %v2178 = vadd.f32 %v1589, %v2177
          %2179 = vmatmul.bf16.gmra.mxu0 %v1519
          %v2180 = vpop.f32.mrf.mxu0
          %v2181 = vadd.f32 %v1589, %v2180
          %v2182 = vpop.f32.mrf.mxu0
          %v2183 = vadd.f32 %v1589, %v2182
          %2184 = vmatmul.bf16.gmra.mxu0 %v1520
          %v2185 = vpop.f32.mrf.mxu0
          %v2186 = vadd.f32 %v1589, %v2185
          %v2187 = vpop.f32.mrf.mxu0
          %v2188 = vadd.f32 %v1589, %v2187
          %2189 = vdwg.mxu0
          %2190 = vmatpush.bf16.msra.mxu0 %v1854
          %2191 = vmatpush.bf16.msra.mxu0 %v1846
          %2192 = vmatpush.bf16.msra.mxu0 %v1838
          %2193 = vmatpush.bf16.msra.mxu0 %v1830
          %2194 = vmatpush.bf16.msra.mxu0 %v1822
          %2195 = vmatpush.bf16.msra.mxu0 %v1814
          %2196 = vmatpush.bf16.msra.mxu0 %v1806
          %2197 = vmatpush.bf16.msra.mxu0 %v1798
          %2198 = vmatmul.bf16.gmra.mxu0 %v1505
          %v2199 = vpop.f32.mrf.mxu0
          %v2200 = vadd.f32 %v1590, %v2199
          %v2201 = vpop.f32.mrf.mxu0
          %v2202 = vadd.f32 %v1590, %v2201
          %2203 = vmatmul.bf16.gmra.mxu0 %v1506
          %v2204 = vpop.f32.mrf.mxu0
          %v2205 = vadd.f32 %v1590, %v2204
          %v2206 = vpop.f32.mrf.mxu0
          %v2207 = vadd.f32 %v1590, %v2206
          %2208 = vmatmul.bf16.gmra.mxu0 %v1507
          %v2209 = vpop.f32.mrf.mxu0
          %v2210 = vadd.f32 %v1590, %v2209
          %v2211 = vpop.f32.mrf.mxu0
          %v2212 = vadd.f32 %v1590, %v2211
          %2213 = vmatmul.bf16.gmra.mxu0 %v1508
          %v2214 = vpop.f32.mrf.mxu0
          %v2215 = vadd.f32 %v1590, %v2214
          %v2216 = vpop.f32.mrf.mxu0
          %v2217 = vadd.f32 %v1590, %v2216
          %2218 = vmatmul.bf16.gmra.mxu0 %v1509
          %v2219 = vpop.f32.mrf.mxu0
          %v2220 = vadd.f32 %v1590, %v2219
          %v2221 = vpop.f32.mrf.mxu0
          %v2222 = vadd.f32 %v1590, %v2221
          %2223 = vmatmul.bf16.gmra.mxu0 %v1510
          %v2224 = vpop.f32.mrf.mxu0
          %v2225 = vadd.f32 %v1590, %v2224
          %v2226 = vpop.f32.mrf.mxu0
          %v2227 = vadd.f32 %v1590, %v2226
          %2228 = vmatmul.bf16.gmra.mxu0 %v1511
          %v2229 = vpop.f32.mrf.mxu0
          %v2230 = vadd.f32 %v1590, %v2229
          %v2231 = vpop.f32.mrf.mxu0
          %v2232 = vadd.f32 %v1590, %v2231
          %2233 = vmatmul.bf16.gmra.mxu0 %v1512
          %v2234 = vpop.f32.mrf.mxu0
          %v2235 = vadd.f32 %v1590, %v2234
          %v2236 = vpop.f32.mrf.mxu0
          %v2237 = vadd.f32 %v1590, %v2236
          %2238 = vmatmul.bf16.gmra.mxu0 %v1513
          %v2239 = vpop.f32.mrf.mxu0
          %v2240 = vadd.f32 %v1590, %v2239
          %v2241 = vpop.f32.mrf.mxu0
          %v2242 = vadd.f32 %v1590, %v2241
          %2243 = vmatmul.bf16.gmra.mxu0 %v1514
          %v2244 = vpop.f32.mrf.mxu0
          %v2245 = vadd.f32 %v1590, %v2244
          %v2246 = vpop.f32.mrf.mxu0
          %v2247 = vadd.f32 %v1590, %v2246
          %2248 = vmatmul.bf16.gmra.mxu0 %v1515
          %v2249 = vpop.f32.mrf.mxu0
          %v2250 = vadd.f32 %v1590, %v2249
          %v2251 = vpop.f32.mrf.mxu0
          %v2252 = vadd.f32 %v1590, %v2251
          %2253 = vmatmul.bf16.gmra.mxu0 %v1516
          %v2254 = vpop.f32.mrf.mxu0
          %v2255 = vadd.f32 %v1590, %v2254
          %v2256 = vpop.f32.mrf.mxu0
          %v2257 = vadd.f32 %v1590, %v2256
          %2258 = vmatmul.bf16.gmra.mxu0 %v1517
          %v2259 = vpop.f32.mrf.mxu0
          %v2260 = vadd.f32 %v1590, %v2259
          %v2261 = vpop.f32.mrf.mxu0
          %v2262 = vadd.f32 %v1590, %v2261
          %2263 = vmatmul.bf16.gmra.mxu0 %v1518
          %v2264 = vpop.f32.mrf.mxu0
          %v2265 = vadd.f32 %v1590, %v2264
          %v2266 = vpop.f32.mrf.mxu0
          %v2267 = vadd.f32 %v1590, %v2266
          %2268 = vmatmul.bf16.gmra.mxu0 %v1519
          %v2269 = vpop.f32.mrf.mxu0
          %v2270 = vadd.f32 %v1590, %v2269
          %v2271 = vpop.f32.mrf.mxu0
          %v2272 = vadd.f32 %v1590, %v2271
          %2273 = vmatmul.bf16.gmra.mxu0 %v1520
          %v2274 = vpop.f32.mrf.mxu0
          %v2275 = vadd.f32 %v1590, %v2274
          %v2276 = vpop.f32.mrf.mxu0
          %v2277 = vadd.f32 %v1590, %v2276
          %2278 = vdwg.mxu0
          %2279 = vmatpush.bf16.msra.mxu0 %v1855
          %2280 = vmatpush.bf16.msra.mxu0 %v1847
          %2281 = vmatpush.bf16.msra.mxu0 %v1839
          %2282 = vmatpush.bf16.msra.mxu0 %v1831
          %2283 = vmatpush.bf16.msra.mxu0 %v1823
          %2284 = vmatpush.bf16.msra.mxu0 %v1815
          %2285 = vmatpush.bf16.msra.mxu0 %v1807
          %2286 = vmatpush.bf16.msra.mxu0 %v1799
          %2287 = vmatmul.bf16.gmra.mxu0 %v1505
          %v2288 = vpop.f32.mrf.mxu0
          %v2289 = vadd.f32 %v1591, %v2288
          %v2290 = vpop.f32.mrf.mxu0
          %v2291 = vadd.f32 %v1591, %v2290
          %2292 = vmatmul.bf16.gmra.mxu0 %v1506
          %v2293 = vpop.f32.mrf.mxu0
          %v2294 = vadd.f32 %v1591, %v2293
          %v2295 = vpop.f32.mrf.mxu0
          %v2296 = vadd.f32 %v1591, %v2295
          %2297 = vmatmul.bf16.gmra.mxu0 %v1507
          %v2298 = vpop.f32.mrf.mxu0
          %v2299 = vadd.f32 %v1591, %v2298
          %v2300 = vpop.f32.mrf.mxu0
          %v2301 = vadd.f32 %v1591, %v2300
          %2302 = vmatmul.bf16.gmra.mxu0 %v1508
          %v2303 = vpop.f32.mrf.mxu0
          %v2304 = vadd.f32 %v1591, %v2303
          %v2305 = vpop.f32.mrf.mxu0
          %v2306 = vadd.f32 %v1591, %v2305
          %2307 = vmatmul.bf16.gmra.mxu0 %v1509
          %v2308 = vpop.f32.mrf.mxu0
          %v2309 = vadd.f32 %v1591, %v2308
          %v2310 = vpop.f32.mrf.mxu0
          %v2311 = vadd.f32 %v1591, %v2310
          %2312 = vmatmul.bf16.gmra.mxu0 %v1510
          %v2313 = vpop.f32.mrf.mxu0
          %v2314 = vadd.f32 %v1591, %v2313
          %v2315 = vpop.f32.mrf.mxu0
          %v2316 = vadd.f32 %v1591, %v2315
          %2317 = vmatmul.bf16.gmra.mxu0 %v1511
          %v2318 = vpop.f32.mrf.mxu0
          %v2319 = vadd.f32 %v1591, %v2318
          %v2320 = vpop.f32.mrf.mxu0
          %v2321 = vadd.f32 %v1591, %v2320
          %2322 = vmatmul.bf16.gmra.mxu0 %v1512
          %v2323 = vpop.f32.mrf.mxu0
          %v2324 = vadd.f32 %v1591, %v2323
          %v2325 = vpop.f32.mrf.mxu0
          %v2326 = vadd.f32 %v1591, %v2325
          %2327 = vmatmul.bf16.gmra.mxu0 %v1513
          %v2328 = vpop.f32.mrf.mxu0
          %v2329 = vadd.f32 %v1591, %v2328
          %v2330 = vpop.f32.mrf.mxu0
          %v2331 = vadd.f32 %v1591, %v2330
          %2332 = vmatmul.bf16.gmra.mxu0 %v1514
          %v2333 = vpop.f32.mrf.mxu0
          %v2334 = vadd.f32 %v1591, %v2333
          %v2335 = vpop.f32.mrf.mxu0
          %v2336 = vadd.f32 %v1591, %v2335
          %2337 = vmatmul.bf16.gmra.mxu0 %v1515
          %v2338 = vpop.f32.mrf.mxu0
          %v2339 = vadd.f32 %v1591, %v2338
          %v2340 = vpop.f32.mrf.mxu0
          %v2341 = vadd.f32 %v1591, %v2340
          %2342 = vmatmul.bf16.gmra.mxu0 %v1516
          %v2343 = vpop.f32.mrf.mxu0
          %v2344 = vadd.f32 %v1591, %v2343
          %v2345 = vpop.f32.mrf.mxu0
          %v2346 = vadd.f32 %v1591, %v2345
          %2347 = vmatmul.bf16.gmra.mxu0 %v1517
          %v2348 = vpop.f32.mrf.mxu0
          %v2349 = vadd.f32 %v1591, %v2348
          %v2350 = vpop.f32.mrf.mxu0
          %v2351 = vadd.f32 %v1591, %v2350
          %2352 = vmatmul.bf16.gmra.mxu0 %v1518
          %v2353 = vpop.f32.mrf.mxu0
          %v2354 = vadd.f32 %v1591, %v2353
          %v2355 = vpop.f32.mrf.mxu0
          %v2356 = vadd.f32 %v1591, %v2355
          %2357 = vmatmul.bf16.gmra.mxu0 %v1519
          %v2358 = vpop.f32.mrf.mxu0
          %v2359 = vadd.f32 %v1591, %v2358
          %v2360 = vpop.f32.mrf.mxu0
          %v2361 = vadd.f32 %v1591, %v2360
          %2362 = vmatmul.bf16.gmra.mxu0 %v1520
          %v2363 = vpop.f32.mrf.mxu0
          %v2364 = vadd.f32 %v1591, %v2363
          %v2365 = vpop.f32.mrf.mxu0
          %v2366 = vadd.f32 %v1591, %v2365
          %2367 = vdwg.mxu0
          %2368 = vmatpush.bf16.msra.mxu0 %v1856
          %2369 = vmatpush.bf16.msra.mxu0 %v1848
          %2370 = vmatpush.bf16.msra.mxu0 %v1840
          %2371 = vmatpush.bf16.msra.mxu0 %v1832
          %2372 = vmatpush.bf16.msra.mxu0 %v1824
          %2373 = vmatpush.bf16.msra.mxu0 %v1816
          %2374 = vmatpush.bf16.msra.mxu0 %v1808
          %2375 = vmatpush.bf16.msra.mxu0 %v1800
          %2376 = vmatmul.bf16.gmra.mxu0 %v1505
          %v2377 = vpop.f32.mrf.mxu0
          %v2378 = vadd.f32 %v1592, %v2377
          %v2379 = vpop.f32.mrf.mxu0
          %v2380 = vadd.f32 %v1592, %v2379
          %2381 = vmatmul.bf16.gmra.mxu0 %v1506
          %v2382 = vpop.f32.mrf.mxu0
          %v2383 = vadd.f32 %v1592, %v2382
          %v2384 = vpop.f32.mrf.mxu0
          %v2385 = vadd.f32 %v1592, %v2384
          %2386 = vmatmul.bf16.gmra.mxu0 %v1507
          %v2387 = vpop.f32.mrf.mxu0
          %v2388 = vadd.f32 %v1592, %v2387
          %v2389 = vpop.f32.mrf.mxu0
          %v2390 = vadd.f32 %v1592, %v2389
          %2391 = vmatmul.bf16.gmra.mxu0 %v1508
          %v2392 = vpop.f32.mrf.mxu0
          %v2393 = vadd.f32 %v1592, %v2392
          %v2394 = vpop.f32.mrf.mxu0
          %v2395 = vadd.f32 %v1592, %v2394
          %2396 = vmatmul.bf16.gmra.mxu0 %v1509
          %v2397 = vpop.f32.mrf.mxu0
          %v2398 = vadd.f32 %v1592, %v2397
          %v2399 = vpop.f32.mrf.mxu0
          %v2400 = vadd.f32 %v1592, %v2399
          %2401 = vmatmul.bf16.gmra.mxu0 %v1510
          %v2402 = vpop.f32.mrf.mxu0
          %v2403 = vadd.f32 %v1592, %v2402
          %v2404 = vpop.f32.mrf.mxu0
          %v2405 = vadd.f32 %v1592, %v2404
          %2406 = vmatmul.bf16.gmra.mxu0 %v1511
          %v2407 = vpop.f32.mrf.mxu0
          %v2408 = vadd.f32 %v1592, %v2407
          %v2409 = vpop.f32.mrf.mxu0
          %v2410 = vadd.f32 %v1592, %v2409
          %2411 = vmatmul.bf16.gmra.mxu0 %v1512
          %v2412 = vpop.f32.mrf.mxu0
          %v2413 = vadd.f32 %v1592, %v2412
          %v2414 = vpop.f32.mrf.mxu0
          %v2415 = vadd.f32 %v1592, %v2414
          %2416 = vmatmul.bf16.gmra.mxu0 %v1513
          %v2417 = vpop.f32.mrf.mxu0
          %v2418 = vadd.f32 %v1592, %v2417
          %v2419 = vpop.f32.mrf.mxu0
          %v2420 = vadd.f32 %v1592, %v2419
          %2421 = vmatmul.bf16.gmra.mxu0 %v1514
          %v2422 = vpop.f32.mrf.mxu0
          %v2423 = vadd.f32 %v1592, %v2422
          %v2424 = vpop.f32.mrf.mxu0
          %v2425 = vadd.f32 %v1592, %v2424
          %2426 = vmatmul.bf16.gmra.mxu0 %v1515
          %v2427 = vpop.f32.mrf.mxu0
          %v2428 = vadd.f32 %v1592, %v2427
          %v2429 = vpop.f32.mrf.mxu0
          %v2430 = vadd.f32 %v1592, %v2429
          %2431 = vmatmul.bf16.gmra.mxu0 %v1516
          %v2432 = vpop.f32.mrf.mxu0
          %v2433 = vadd.f32 %v1592, %v2432
          %v2434 = vpop.f32.mrf.mxu0
          %v2435 = vadd.f32 %v1592, %v2434
          %2436 = vmatmul.bf16.gmra.mxu0 %v1517
          %v2437 = vpop.f32.mrf.mxu0
          %v2438 = vadd.f32 %v1592, %v2437
          %v2439 = vpop.f32.mrf.mxu0
          %v2440 = vadd.f32 %v1592, %v2439
          %2441 = vmatmul.bf16.gmra.mxu0 %v1518
          %v2442 = vpop.f32.mrf.mxu0
          %v2443 = vadd.f32 %v1592, %v2442
          %v2444 = vpop.f32.mrf.mxu0
          %v2445 = vadd.f32 %v1592, %v2444
          %2446 = vmatmul.bf16.gmra.mxu0 %v1519
          %v2447 = vpop.f32.mrf.mxu0
          %v2448 = vadd.f32 %v1592, %v2447
          %v2449 = vpop.f32.mrf.mxu0
          %v2450 = vadd.f32 %v1592, %v2449
          %2451 = vmatmul.bf16.gmra.mxu0 %v1520
          %v2452 = vpop.f32.mrf.mxu0
          %v2453 = vadd.f32 %v1592, %v2452
          %v2454 = vpop.f32.mrf.mxu0
          %v2455 = vadd.f32 %v1592, %v2454
          %2456 = vdwg.mxu0
          %2457 = vmatpush.bf16.msra.mxu0 %v1857
          %2458 = vmatpush.bf16.msra.mxu0 %v1849
          %2459 = vmatpush.bf16.msra.mxu0 %v1841
          %2460 = vmatpush.bf16.msra.mxu0 %v1833
          %2461 = vmatpush.bf16.msra.mxu0 %v1825
          %2462 = vmatpush.bf16.msra.mxu0 %v1817
          %2463 = vmatpush.bf16.msra.mxu0 %v1809
          %2464 = vmatpush.bf16.msra.mxu0 %v1801
          %2465 = vmatmul.bf16.gmra.mxu0 %v1505
          %v2466 = vpop.f32.mrf.mxu0
          %v2467 = vadd.f32 %v1593, %v2466
          %v2468 = vpop.f32.mrf.mxu0
          %v2469 = vadd.f32 %v1593, %v2468
          %2470 = vmatmul.bf16.gmra.mxu0 %v1506
          %v2471 = vpop.f32.mrf.mxu0
          %v2472 = vadd.f32 %v1593, %v2471
          %v2473 = vpop.f32.mrf.mxu0
          %v2474 = vadd.f32 %v1593, %v2473
          %2475 = vmatmul.bf16.gmra.mxu0 %v1507
          %v2476 = vpop.f32.mrf.mxu0
          %v2477 = vadd.f32 %v1593, %v2476
          %v2478 = vpop.f32.mrf.mxu0
          %v2479 = vadd.f32 %v1593, %v2478
          %2480 = vmatmul.bf16.gmra.mxu0 %v1508
          %v2481 = vpop.f32.mrf.mxu0
          %v2482 = vadd.f32 %v1593, %v2481
          %v2483 = vpop.f32.mrf.mxu0
          %v2484 = vadd.f32 %v1593, %v2483
          %2485 = vmatmul.bf16.gmra.mxu0 %v1509
          %v2486 = vpop.f32.mrf.mxu0
          %v2487 = vadd.f32 %v1593, %v2486
          %v2488 = vpop.f32.mrf.mxu0
          %v2489 = vadd.f32 %v1593, %v2488
          %2490 = vmatmul.bf16.gmra.mxu0 %v1510
          %v2491 = vpop.f32.mrf.mxu0
          %v2492 = vadd.f32 %v1593, %v2491
          %v2493 = vpop.f32.mrf.mxu0
          %v2494 = vadd.f32 %v1593, %v2493
          %2495 = vmatmul.bf16.gmra.mxu0 %v1511
          %v2496 = vpop.f32.mrf.mxu0
          %v2497 = vadd.f32 %v1593, %v2496
          %v2498 = vpop.f32.mrf.mxu0
          %v2499 = vadd.f32 %v1593, %v2498
          %2500 = vmatmul.bf16.gmra.mxu0 %v1512
          %v2501 = vpop.f32.mrf.mxu0
          %v2502 = vadd.f32 %v1593, %v2501
          %v2503 = vpop.f32.mrf.mxu0
          %v2504 = vadd.f32 %v1593, %v2503
          %2505 = vmatmul.bf16.gmra.mxu0 %v1513
          %v2506 = vpop.f32.mrf.mxu0
          %v2507 = vadd.f32 %v1593, %v2506
          %v2508 = vpop.f32.mrf.mxu0
          %v2509 = vadd.f32 %v1593, %v2508
          %2510 = vmatmul.bf16.gmra.mxu0 %v1514
          %v2511 = vpop.f32.mrf.mxu0
          %v2512 = vadd.f32 %v1593, %v2511
          %v2513 = vpop.f32.mrf.mxu0
          %v2514 = vadd.f32 %v1593, %v2513
          %2515 = vmatmul.bf16.gmra.mxu0 %v1515
          %v2516 = vpop.f32.mrf.mxu0
          %v2517 = vadd.f32 %v1593, %v2516
          %v2518 = vpop.f32.mrf.mxu0
          %v2519 = vadd.f32 %v1593, %v2518
          %2520 = vmatmul.bf16.gmra.mxu0 %v1516
          %v2521 = vpop.f32.mrf.mxu0
          %v2522 = vadd.f32 %v1593, %v2521
          %v2523 = vpop.f32.mrf.mxu0
          %v2524 = vadd.f32 %v1593, %v2523
          %2525 = vmatmul.bf16.gmra.mxu0 %v1517
          %v2526 = vpop.f32.mrf.mxu0
          %v2527 = vadd.f32 %v1593, %v2526
          %v2528 = vpop.f32.mrf.mxu0
          %v2529 = vadd.f32 %v1593, %v2528
          %2530 = vmatmul.bf16.gmra.mxu0 %v1518
          %v2531 = vpop.f32.mrf.mxu0
          %v2532 = vadd.f32 %v1593, %v2531
          %v2533 = vpop.f32.mrf.mxu0
          %v2534 = vadd.f32 %v1593, %v2533
          %2535 = vmatmul.bf16.gmra.mxu0 %v1519
          %v2536 = vpop.f32.mrf.mxu0
          %v2537 = vadd.f32 %v1593, %v2536
          %v2538 = vpop.f32.mrf.mxu0
          %v2539 = vadd.f32 %v1593, %v2538
          %2540 = vmatmul.bf16.gmra.mxu0 %v1520
          %v2541 = vpop.f32.mrf.mxu0
          %v2542 = vadd.f32 %v1593, %v2541
          %v2543 = vpop.f32.mrf.mxu0
          %v2544 = vadd.f32 %v1593, %v2543
          %2545 = vdwg.mxu0
          %2546 = vmatpush.bf16.msra.mxu0 %v1858
          %2547 = vmatpush.bf16.msra.mxu0 %v1850
          %2548 = vmatpush.bf16.msra.mxu0 %v1842
          %2549 = vmatpush.bf16.msra.mxu0 %v1834
          %2550 = vmatpush.bf16.msra.mxu0 %v1826
          %2551 = vmatpush.bf16.msra.mxu0 %v1818
          %2552 = vmatpush.bf16.msra.mxu0 %v1810
          %2553 = vmatpush.bf16.msra.mxu0 %v1802
          %2554 = vmatmul.bf16.gmra.mxu0 %v1505
          %v2555 = vpop.f32.mrf.mxu0
          %v2556 = vadd.f32 %v1594, %v2555
          %v2557 = vpop.f32.mrf.mxu0
          %v2558 = vadd.f32 %v1594, %v2557
          %2559 = vmatmul.bf16.gmra.mxu0 %v1506
          %v2560 = vpop.f32.mrf.mxu0
          %v2561 = vadd.f32 %v1594, %v2560
          %v2562 = vpop.f32.mrf.mxu0
          %v2563 = vadd.f32 %v1594, %v2562
          %2564 = vmatmul.bf16.gmra.mxu0 %v1507
          %v2565 = vpop.f32.mrf.mxu0
          %v2566 = vadd.f32 %v1594, %v2565
          %v2567 = vpop.f32.mrf.mxu0
          %v2568 = vadd.f32 %v1594, %v2567
          %2569 = vmatmul.bf16.gmra.mxu0 %v1508
          %v2570 = vpop.f32.mrf.mxu0
          %v2571 = vadd.f32 %v1594, %v2570
          %v2572 = vpop.f32.mrf.mxu0
          %v2573 = vadd.f32 %v1594, %v2572
          %2574 = vmatmul.bf16.gmra.mxu0 %v1509
          %v2575 = vpop.f32.mrf.mxu0
          %v2576 = vadd.f32 %v1594, %v2575
          %v2577 = vpop.f32.mrf.mxu0
          %v2578 = vadd.f32 %v1594, %v2577
          %2579 = vmatmul.bf16.gmra.mxu0 %v1510
          %v2580 = vpop.f32.mrf.mxu0
          %v2581 = vadd.f32 %v1594, %v2580
          %v2582 = vpop.f32.mrf.mxu0
          %v2583 = vadd.f32 %v1594, %v2582
          %2584 = vmatmul.bf16.gmra.mxu0 %v1511
          %v2585 = vpop.f32.mrf.mxu0
          %v2586 = vadd.f32 %v1594, %v2585
          %v2587 = vpop.f32.mrf.mxu0
          %v2588 = vadd.f32 %v1594, %v2587
          %2589 = vmatmul.bf16.gmra.mxu0 %v1512
          %v2590 = vpop.f32.mrf.mxu0
          %v2591 = vadd.f32 %v1594, %v2590
          %v2592 = vpop.f32.mrf.mxu0
          %v2593 = vadd.f32 %v1594, %v2592
          %2594 = vmatmul.bf16.gmra.mxu0 %v1513
          %v2595 = vpop.f32.mrf.mxu0
          %v2596 = vadd.f32 %v1594, %v2595
          %v2597 = vpop.f32.mrf.mxu0
          %v2598 = vadd.f32 %v1594, %v2597
          %2599 = vmatmul.bf16.gmra.mxu0 %v1514
          %v2600 = vpop.f32.mrf.mxu0
          %v2601 = vadd.f32 %v1594, %v2600
          %v2602 = vpop.f32.mrf.mxu0
          %v2603 = vadd.f32 %v1594, %v2602
          %2604 = vmatmul.bf16.gmra.mxu0 %v1515
          %v2605 = vpop.f32.mrf.mxu0
          %v2606 = vadd.f32 %v1594, %v2605
          %v2607 = vpop.f32.mrf.mxu0
          %v2608 = vadd.f32 %v1594, %v2607
          %2609 = vmatmul.bf16.gmra.mxu0 %v1516
          %v2610 = vpop.f32.mrf.mxu0
          %v2611 = vadd.f32 %v1594, %v2610
          %v2612 = vpop.f32.mrf.mxu0
          %v2613 = vadd.f32 %v1594, %v2612
          %2614 = vmatmul.bf16.gmra.mxu0 %v1517
          %v2615 = vpop.f32.mrf.mxu0
          %v2616 = vadd.f32 %v1594, %v2615
          %v2617 = vpop.f32.mrf.mxu0
          %v2618 = vadd.f32 %v1594, %v2617
          %2619 = vmatmul.bf16.gmra.mxu0 %v1518
          %v2620 = vpop.f32.mrf.mxu0
          %v2621 = vadd.f32 %v1594, %v2620
          %v2622 = vpop.f32.mrf.mxu0
          %v2623 = vadd.f32 %v1594, %v2622
          %2624 = vmatmul.bf16.gmra.mxu0 %v1519
          %v2625 = vpop.f32.mrf.mxu0
          %v2626 = vadd.f32 %v1594, %v2625
          %v2627 = vpop.f32.mrf.mxu0
          %v2628 = vadd.f32 %v1594, %v2627
          %2629 = vmatmul.bf16.gmra.mxu0 %v1520
          %v2630 = vpop.f32.mrf.mxu0
          %v2631 = vadd.f32 %v1594, %v2630
          %v2632 = vpop.f32.mrf.mxu0
          %v2633 = vadd.f32 %v1594, %v2632
          %2634 = vdwg.mxu0
          %v2635 = vmax.f32 %v1933, 0.0
          %v2636 = vmax.f32 %v2022, 0.0
          %v2637 = vmax.f32 %v2111, 0.0
          %v2638 = vmax.f32 %v2200, 0.0
          %v2639 = vmax.f32 %v2289, 0.0
          %v2640 = vmax.f32 %v2378, 0.0
          %v2641 = vmax.f32 %v2467, 0.0
          %v2642 = vmax.f32 %v2556, 0.0
          %v2643 = vmax.f32 %v1935, 0.0
          %v2644 = vmax.f32 %v2024, 0.0
          %v2645 = vmax.f32 %v2113, 0.0
          %v2646 = vmax.f32 %v2202, 0.0
          %v2647 = vmax.f32 %v2291, 0.0
          %v2648 = vmax.f32 %v2380, 0.0
          %v2649 = vmax.f32 %v2469, 0.0
          %v2650 = vmax.f32 %v2558, 0.0
          %v2651 = vmax.f32 %v1938, 0.0
          %v2652 = vmax.f32 %v2027, 0.0
          %v2653 = vmax.f32 %v2116, 0.0
          %v2654 = vmax.f32 %v2205, 0.0
          %v2655 = vmax.f32 %v2294, 0.0
          %v2656 = vmax.f32 %v2383, 0.0
          %v2657 = vmax.f32 %v2472, 0.0
          %v2658 = vmax.f32 %v2561, 0.0
          %v2659 = vmax.f32 %v1940, 0.0
          %v2660 = vmax.f32 %v2029, 0.0
          %v2661 = vmax.f32 %v2118, 0.0
          %v2662 = vmax.f32 %v2207, 0.0
          %v2663 = vmax.f32 %v2296, 0.0
          %v2664 = vmax.f32 %v2385, 0.0
          %v2665 = vmax.f32 %v2474, 0.0
          %v2666 = vmax.f32 %v2563, 0.0
          %v2667 = vmax.f32 %v1943, 0.0
          %v2668 = vmax.f32 %v2032, 0.0
          %v2669 = vmax.f32 %v2121, 0.0
          %v2670 = vmax.f32 %v2210, 0.0
          %v2671 = vmax.f32 %v2299, 0.0
          %v2672 = vmax.f32 %v2388, 0.0
          %v2673 = vmax.f32 %v2477, 0.0
          %v2674 = vmax.f32 %v2566, 0.0
          %v2675 = vmax.f32 %v1945, 0.0
          %v2676 = vmax.f32 %v2034, 0.0
          %v2677 = vmax.f32 %v2123, 0.0
          %v2678 = vmax.f32 %v2212, 0.0
          %v2679 = vmax.f32 %v2301, 0.0
          %v2680 = vmax.f32 %v2390, 0.0
          %v2681 = vmax.f32 %v2479, 0.0
          %v2682 = vmax.f32 %v2568, 0.0
          %v2683 = vmax.f32 %v1948, 0.0
          %v2684 = vmax.f32 %v2037, 0.0
          %v2685 = vmax.f32 %v2126, 0.0
          %v2686 = vmax.f32 %v2215, 0.0
          %v2687 = vmax.f32 %v2304, 0.0
          %v2688 = vmax.f32 %v2393, 0.0
          %v2689 = vmax.f32 %v2482, 0.0
          %v2690 = vmax.f32 %v2571, 0.0
          %v2691 = vmax.f32 %v1950, 0.0
          %v2692 = vmax.f32 %v2039, 0.0
          %v2693 = vmax.f32 %v2128, 0.0
          %v2694 = vmax.f32 %v2217, 0.0
          %v2695 = vmax.f32 %v2306, 0.0
          %v2696 = vmax.f32 %v2395, 0.0
          %v2697 = vmax.f32 %v2484, 0.0
          %v2698 = vmax.f32 %v2573, 0.0
          %v2699 = vmax.f32 %v1953, 0.0
          %v2700 = vmax.f32 %v2042, 0.0
          %v2701 = vmax.f32 %v2131, 0.0
          %v2702 = vmax.f32 %v2220, 0.0
          %v2703 = vmax.f32 %v2309, 0.0
          %v2704 = vmax.f32 %v2398, 0.0
          %v2705 = vmax.f32 %v2487, 0.0
          %v2706 = vmax.f32 %v2576, 0.0
          %v2707 = vmax.f32 %v1955, 0.0
          %v2708 = vmax.f32 %v2044, 0.0
          %v2709 = vmax.f32 %v2133, 0.0
          %v2710 = vmax.f32 %v2222, 0.0
          %v2711 = vmax.f32 %v2311, 0.0
          %v2712 = vmax.f32 %v2400, 0.0
          %v2713 = vmax.f32 %v2489, 0.0
          %v2714 = vmax.f32 %v2578, 0.0
          %v2715 = vmax.f32 %v1958, 0.0
          %v2716 = vmax.f32 %v2047, 0.0
          %v2717 = vmax.f32 %v2136, 0.0
          %v2718 = vmax.f32 %v2225, 0.0
          %v2719 = vmax.f32 %v2314, 0.0
          %v2720 = vmax.f32 %v2403, 0.0
          %v2721 = vmax.f32 %v2492, 0.0
          %v2722 = vmax.f32 %v2581, 0.0
          %v2723 = vmax.f32 %v1960, 0.0
          %v2724 = vmax.f32 %v2049, 0.0
          %v2725 = vmax.f32 %v2138, 0.0
          %v2726 = vmax.f32 %v2227, 0.0
          %v2727 = vmax.f32 %v2316, 0.0
          %v2728 = vmax.f32 %v2405, 0.0
          %v2729 = vmax.f32 %v2494, 0.0
          %v2730 = vmax.f32 %v2583, 0.0
          %v2731 = vmax.f32 %v1963, 0.0
          %v2732 = vmax.f32 %v2052, 0.0
          %v2733 = vmax.f32 %v2141, 0.0
          %v2734 = vmax.f32 %v2230, 0.0
          %v2735 = vmax.f32 %v2319, 0.0
          %v2736 = vmax.f32 %v2408, 0.0
          %v2737 = vmax.f32 %v2497, 0.0
          %v2738 = vmax.f32 %v2586, 0.0
          %v2739 = vmax.f32 %v1965, 0.0
          %v2740 = vmax.f32 %v2054, 0.0
          %v2741 = vmax.f32 %v2143, 0.0
          %v2742 = vmax.f32 %v2232, 0.0
          %v2743 = vmax.f32 %v2321, 0.0
          %v2744 = vmax.f32 %v2410, 0.0
          %v2745 = vmax.f32 %v2499, 0.0
          %v2746 = vmax.f32 %v2588, 0.0
          %v2747 = vmax.f32 %v1968, 0.0
          %v2748 = vmax.f32 %v2057, 0.0
          %v2749 = vmax.f32 %v2146, 0.0
          %v2750 = vmax.f32 %v2235, 0.0
          %v2751 = vmax.f32 %v2324, 0.0
          %v2752 = vmax.f32 %v2413, 0.0
          %v2753 = vmax.f32 %v2502, 0.0
          %v2754 = vmax.f32 %v2591, 0.0
          %v2755 = vmax.f32 %v1970, 0.0
          %v2756 = vmax.f32 %v2059, 0.0
          %v2757 = vmax.f32 %v2148, 0.0
          %v2758 = vmax.f32 %v2237, 0.0
          %v2759 = vmax.f32 %v2326, 0.0
          %v2760 = vmax.f32 %v2415, 0.0
          %v2761 = vmax.f32 %v2504, 0.0
          %v2762 = vmax.f32 %v2593, 0.0
          %v2763 = vmax.f32 %v1973, 0.0
          %v2764 = vmax.f32 %v2062, 0.0
          %v2765 = vmax.f32 %v2151, 0.0
          %v2766 = vmax.f32 %v2240, 0.0
          %v2767 = vmax.f32 %v2329, 0.0
          %v2768 = vmax.f32 %v2418, 0.0
          %v2769 = vmax.f32 %v2507, 0.0
          %v2770 = vmax.f32 %v2596, 0.0
          %v2771 = vmax.f32 %v1975, 0.0
          %v2772 = vmax.f32 %v2064, 0.0
          %v2773 = vmax.f32 %v2153, 0.0
          %v2774 = vmax.f32 %v2242, 0.0
          %v2775 = vmax.f32 %v2331, 0.0
          %v2776 = vmax.f32 %v2420, 0.0
          %v2777 = vmax.f32 %v2509, 0.0
          %v2778 = vmax.f32 %v2598, 0.0
          %v2779 = vmax.f32 %v1978, 0.0
          %v2780 = vmax.f32 %v2067, 0.0
          %v2781 = vmax.f32 %v2156, 0.0
          %v2782 = vmax.f32 %v2245, 0.0
          %v2783 = vmax.f32 %v2334, 0.0
          %v2784 = vmax.f32 %v2423, 0.0
          %v2785 = vmax.f32 %v2512, 0.0
          %v2786 = vmax.f32 %v2601, 0.0
          %v2787 = vmax.f32 %v1980, 0.0
          %v2788 = vmax.f32 %v2069, 0.0
          %v2789 = vmax.f32 %v2158, 0.0
          %v2790 = vmax.f32 %v2247, 0.0
          %v2791 = vmax.f32 %v2336, 0.0
          %v2792 = vmax.f32 %v2425, 0.0
          %v2793 = vmax.f32 %v2514, 0.0
          %v2794 = vmax.f32 %v2603, 0.0
          %v2795 = vmax.f32 %v1983, 0.0
          %v2796 = vmax.f32 %v2072, 0.0
          %v2797 = vmax.f32 %v2161, 0.0
          %v2798 = vmax.f32 %v2250, 0.0
          %v2799 = vmax.f32 %v2339, 0.0
          %v2800 = vmax.f32 %v2428, 0.0
          %v2801 = vmax.f32 %v2517, 0.0
          %v2802 = vmax.f32 %v2606, 0.0
          %v2803 = vmax.f32 %v1985, 0.0
          %v2804 = vmax.f32 %v2074, 0.0
          %v2805 = vmax.f32 %v2163, 0.0
          %v2806 = vmax.f32 %v2252, 0.0
          %v2807 = vmax.f32 %v2341, 0.0
          %v2808 = vmax.f32 %v2430, 0.0
          %v2809 = vmax.f32 %v2519, 0.0
          %v2810 = vmax.f32 %v2608, 0.0
          %v2811 = vmax.f32 %v1988, 0.0
          %v2812 = vmax.f32 %v2077, 0.0
          %v2813 = vmax.f32 %v2166, 0.0
          %v2814 = vmax.f32 %v2255, 0.0
          %v2815 = vmax.f32 %v2344, 0.0
          %v2816 = vmax.f32 %v2433, 0.0
          %v2817 = vmax.f32 %v2522, 0.0
          %v2818 = vmax.f32 %v2611, 0.0
          %v2819 = vmax.f32 %v1990, 0.0
          %v2820 = vmax.f32 %v2079, 0.0
          %v2821 = vmax.f32 %v2168, 0.0
          %v2822 = vmax.f32 %v2257, 0.0
          %v2823 = vmax.f32 %v2346, 0.0
          %v2824 = vmax.f32 %v2435, 0.0
          %v2825 = vmax.f32 %v2524, 0.0
          %v2826 = vmax.f32 %v2613, 0.0
          %v2827 = vmax.f32 %v1993, 0.0
          %v2828 = vmax.f32 %v2082, 0.0
          %v2829 = vmax.f32 %v2171, 0.0
          %v2830 = vmax.f32 %v2260, 0.0
          %v2831 = vmax.f32 %v2349, 0.0
          %v2832 = vmax.f32 %v2438, 0.0
          %v2833 = vmax.f32 %v2527, 0.0
          %v2834 = vmax.f32 %v2616, 0.0
          %v2835 = vmax.f32 %v1995, 0.0
          %v2836 = vmax.f32 %v2084, 0.0
          %v2837 = vmax.f32 %v2173, 0.0
          %v2838 = vmax.f32 %v2262, 0.0
          %v2839 = vmax.f32 %v2351, 0.0
          %v2840 = vmax.f32 %v2440, 0.0
          %v2841 = vmax.f32 %v2529, 0.0
          %v2842 = vmax.f32 %v2618, 0.0
          %v2843 = vmax.f32 %v1998, 0.0
          %v2844 = vmax.f32 %v2087, 0.0
          %v2845 = vmax.f32 %v2176, 0.0
          %v2846 = vmax.f32 %v2265, 0.0
          %v2847 = vmax.f32 %v2354, 0.0
          %v2848 = vmax.f32 %v2443, 0.0
          %v2849 = vmax.f32 %v2532, 0.0
          %v2850 = vmax.f32 %v2621, 0.0
          %v2851 = vmax.f32 %v2000, 0.0
          %v2852 = vmax.f32 %v2089, 0.0
          %v2853 = vmax.f32 %v2178, 0.0
          %v2854 = vmax.f32 %v2267, 0.0
          %v2855 = vmax.f32 %v2356, 0.0
          %v2856 = vmax.f32 %v2445, 0.0
          %v2857 = vmax.f32 %v2534, 0.0
          %v2858 = vmax.f32 %v2623, 0.0
          %v2859 = vmax.f32 %v2003, 0.0
          %v2860 = vmax.f32 %v2092, 0.0
          %v2861 = vmax.f32 %v2181, 0.0
          %v2862 = vmax.f32 %v2270, 0.0
          %v2863 = vmax.f32 %v2359, 0.0
          %v2864 = vmax.f32 %v2448, 0.0
          %v2865 = vmax.f32 %v2537, 0.0
          %v2866 = vmax.f32 %v2626, 0.0
          %v2867 = vmax.f32 %v2005, 0.0
          %v2868 = vmax.f32 %v2094, 0.0
          %v2869 = vmax.f32 %v2183, 0.0
          %v2870 = vmax.f32 %v2272, 0.0
          %v2871 = vmax.f32 %v2361, 0.0
          %v2872 = vmax.f32 %v2450, 0.0
          %v2873 = vmax.f32 %v2539, 0.0
          %v2874 = vmax.f32 %v2628, 0.0
          %v2875 = vmax.f32 %v2008, 0.0
          %v2876 = vmax.f32 %v2097, 0.0
          %v2877 = vmax.f32 %v2186, 0.0
          %v2878 = vmax.f32 %v2275, 0.0
          %v2879 = vmax.f32 %v2364, 0.0
          %v2880 = vmax.f32 %v2453, 0.0
          %v2881 = vmax.f32 %v2542, 0.0
          %v2882 = vmax.f32 %v2631, 0.0
          %v2883 = vmax.f32 %v2010, 0.0
          %v2884 = vmax.f32 %v2099, 0.0
          %v2885 = vmax.f32 %v2188, 0.0
          %v2886 = vmax.f32 %v2277, 0.0
          %v2887 = vmax.f32 %v2366, 0.0
          %v2888 = vmax.f32 %v2455, 0.0
          %v2889 = vmax.f32 %v2544, 0.0
          %v2890 = vmax.f32 %v2633, 0.0
          %v2891 = vpack.c.bf16 %v2636, %v2635
          %v2892 = vpack.c.bf16 %v2638, %v2637
          %v2893 = vpack.c.bf16 %v2640, %v2639
          %v2894 = vpack.c.bf16 %v2642, %v2641
          %v2895 = vpack.c.bf16 %v2644, %v2643
          %v2896 = vpack.c.bf16 %v2646, %v2645
          %v2897 = vpack.c.bf16 %v2648, %v2647
          %v2898 = vpack.c.bf16 %v2650, %v2649
          %v2899 = vpack.c.bf16 %v2652, %v2651
          %v2900 = vpack.c.bf16 %v2654, %v2653
          %v2901 = vpack.c.bf16 %v2656, %v2655
          %v2902 = vpack.c.bf16 %v2658, %v2657
          %v2903 = vpack.c.bf16 %v2660, %v2659
          %v2904 = vpack.c.bf16 %v2662, %v2661
          %v2905 = vpack.c.bf16 %v2664, %v2663
          %v2906 = vpack.c.bf16 %v2666, %v2665
          %v2907 = vpack.c.bf16 %v2668, %v2667
          %v2908 = vpack.c.bf16 %v2670, %v2669
          %v2909 = vpack.c.bf16 %v2672, %v2671
          %v2910 = vpack.c.bf16 %v2674, %v2673
          %v2911 = vpack.c.bf16 %v2676, %v2675
          %v2912 = vpack.c.bf16 %v2678, %v2677
          %v2913 = vpack.c.bf16 %v2680, %v2679
          %v2914 = vpack.c.bf16 %v2682, %v2681
          %v2915 = vpack.c.bf16 %v2684, %v2683
          %v2916 = vpack.c.bf16 %v2686, %v2685
          %v2917 = vpack.c.bf16 %v2688, %v2687
          %v2918 = vpack.c.bf16 %v2690, %v2689
          %v2919 = vpack.c.bf16 %v2692, %v2691
          %v2920 = vpack.c.bf16 %v2694, %v2693
          %v2921 = vpack.c.bf16 %v2696, %v2695
          %v2922 = vpack.c.bf16 %v2698, %v2697
          %v2923 = vpack.c.bf16 %v2700, %v2699
          %v2924 = vpack.c.bf16 %v2702, %v2701
          %v2925 = vpack.c.bf16 %v2704, %v2703
          %v2926 = vpack.c.bf16 %v2706, %v2705
          %v2927 = vpack.c.bf16 %v2708, %v2707
          %v2928 = vpack.c.bf16 %v2710, %v2709
          %v2929 = vpack.c.bf16 %v2712, %v2711
          %v2930 = vpack.c.bf16 %v2714, %v2713
          %v2931 = vpack.c.bf16 %v2716, %v2715
          %v2932 = vpack.c.bf16 %v2718, %v2717
          %v2933 = vpack.c.bf16 %v2720, %v2719
          %v2934 = vpack.c.bf16 %v2722, %v2721
          %v2935 = vpack.c.bf16 %v2724, %v2723
          %v2936 = vpack.c.bf16 %v2726, %v2725
          %v2937 = vpack.c.bf16 %v2728, %v2727
          %v2938 = vpack.c.bf16 %v2730, %v2729
          %v2939 = vpack.c.bf16 %v2732, %v2731
          %v2940 = vpack.c.bf16 %v2734, %v2733
          %v2941 = vpack.c.bf16 %v2736, %v2735
          %v2942 = vpack.c.bf16 %v2738, %v2737
          %v2943 = vpack.c.bf16 %v2740, %v2739
          %v2944 = vpack.c.bf16 %v2742, %v2741
          %v2945 = vpack.c.bf16 %v2744, %v2743
          %v2946 = vpack.c.bf16 %v2746, %v2745
          %v2947 = vpack.c.bf16 %v2748, %v2747
          %v2948 = vpack.c.bf16 %v2750, %v2749
          %v2949 = vpack.c.bf16 %v2752, %v2751
          %v2950 = vpack.c.bf16 %v2754, %v2753
          %v2951 = vpack.c.bf16 %v2756, %v2755
          %v2952 = vpack.c.bf16 %v2758, %v2757
          %v2953 = vpack.c.bf16 %v2760, %v2759
          %v2954 = vpack.c.bf16 %v2762, %v2761
          %v2955 = vpack.c.bf16 %v2764, %v2763
          %v2956 = vpack.c.bf16 %v2766, %v2765
          %v2957 = vpack.c.bf16 %v2768, %v2767
          %v2958 = vpack.c.bf16 %v2770, %v2769
          %v2959 = vpack.c.bf16 %v2772, %v2771
          %v2960 = vpack.c.bf16 %v2774, %v2773
          %v2961 = vpack.c.bf16 %v2776, %v2775
          %v2962 = vpack.c.bf16 %v2778, %v2777
          %v2963 = vpack.c.bf16 %v2780, %v2779
          %v2964 = vpack.c.bf16 %v2782, %v2781
          %v2965 = vpack.c.bf16 %v2784, %v2783
          %v2966 = vpack.c.bf16 %v2786, %v2785
          %v2967 = vpack.c.bf16 %v2788, %v2787
          %v2968 = vpack.c.bf16 %v2790, %v2789
          %v2969 = vpack.c.bf16 %v2792, %v2791
          %v2970 = vpack.c.bf16 %v2794, %v2793
          %v2971 = vpack.c.bf16 %v2796, %v2795
          %v2972 = vpack.c.bf16 %v2798, %v2797
          %v2973 = vpack.c.bf16 %v2800, %v2799
          %v2974 = vpack.c.bf16 %v2802, %v2801
          %v2975 = vpack.c.bf16 %v2804, %v2803
          %v2976 = vpack.c.bf16 %v2806, %v2805
          %v2977 = vpack.c.bf16 %v2808, %v2807
          %v2978 = vpack.c.bf16 %v2810, %v2809
          %v2979 = vpack.c.bf16 %v2812, %v2811
          %v2980 = vpack.c.bf16 %v2814, %v2813
          %v2981 = vpack.c.bf16 %v2816, %v2815
          %v2982 = vpack.c.bf16 %v2818, %v2817
          %v2983 = vpack.c.bf16 %v2820, %v2819
          %v2984 = vpack.c.bf16 %v2822, %v2821
          %v2985 = vpack.c.bf16 %v2824, %v2823
          %v2986 = vpack.c.bf16 %v2826, %v2825
          %v2987 = vpack.c.bf16 %v2828, %v2827
          %v2988 = vpack.c.bf16 %v2830, %v2829
          %v2989 = vpack.c.bf16 %v2832, %v2831
          %v2990 = vpack.c.bf16 %v2834, %v2833
          %v2991 = vpack.c.bf16 %v2836, %v2835
          %v2992 = vpack.c.bf16 %v2838, %v2837
          %v2993 = vpack.c.bf16 %v2840, %v2839
          %v2994 = vpack.c.bf16 %v2842, %v2841
          %v2995 = vpack.c.bf16 %v2844, %v2843
          %v2996 = vpack.c.bf16 %v2846, %v2845
          %v2997 = vpack.c.bf16 %v2848, %v2847
          %v2998 = vpack.c.bf16 %v2850, %v2849
          %v2999 = vpack.c.bf16 %v2852, %v2851
          %v3000 = vpack.c.bf16 %v2854, %v2853
          %v3001 = vpack.c.bf16 %v2856, %v2855
          %v3002 = vpack.c.bf16 %v2858, %v2857
          %v3003 = vpack.c.bf16 %v2860, %v2859
          %v3004 = vpack.c.bf16 %v2862, %v2861
          %v3005 = vpack.c.bf16 %v2864, %v2863
          %v3006 = vpack.c.bf16 %v2866, %v2865
          %v3007 = vpack.c.bf16 %v2868, %v2867
          %v3008 = vpack.c.bf16 %v2870, %v2869
          %v3009 = vpack.c.bf16 %v2872, %v2871
          %v3010 = vpack.c.bf16 %v2874, %v2873
          %v3011 = vpack.c.bf16 %v2876, %v2875
          %v3012 = vpack.c.bf16 %v2878, %v2877
          %v3013 = vpack.c.bf16 %v2880, %v2879
          %v3014 = vpack.c.bf16 %v2882, %v2881
          %v3015 = vpack.c.bf16 %v2884, %v2883
          %v3016 = vpack.c.bf16 %v2886, %v2885
          %v3017 = vpack.c.bf16 %v2888, %v2887
          %v3018 = vpack.c.bf16 %v2890, %v2889
          %s3019 = sshra.s32 %s596, 3
          %s3020 = sand.u32 %s596, 7
          %s3021 = smul.u32 %s3019, 8
          %s3022 = smul.addr %s3021, 4
          %s3023 = scalar_lea.vmem [#allocation2], %s3022
          %3024 = vst [vmem:[%s3023] sm:$0xff] %v2891
          %3025 = vst [vmem:[%s3023 + $0x8] sm:$0xff] %v2892
          %3026 = vst [vmem:[%s3023 + $0x10] sm:$0xff] %v2893
          %3027 = vst [vmem:[%s3023 + $0x18] sm:$0xff] %v2894
          %3028 = vst [vmem:[%s3023 + $0x20] sm:$0xff] %v2895
          %3029 = vst [vmem:[%s3023 + $0x28] sm:$0xff] %v2896
          %3030 = vst [vmem:[%s3023 + $0x30] sm:$0xff] %v2897
          %3031 = vst [vmem:[%s3023 + $0x38] sm:$0xff] %v2898
          %3032 = vst [vmem:[%s3023 + $0x40] sm:$0xff] %v2899
          %3033 = vst [vmem:[%s3023 + $0x48] sm:$0xff] %v2900
          %3034 = vst [vmem:[%s3023 + $0x50] sm:$0xff] %v2901
          %3035 = vst [vmem:[%s3023 + $0x58] sm:$0xff] %v2902
          %3036 = vst [vmem:[%s3023 + $0x60] sm:$0xff] %v2903
          %3037 = vst [vmem:[%s3023 + $0x68] sm:$0xff] %v2904
          %3038 = vst [vmem:[%s3023 + $0x70] sm:$0xff] %v2905
          %3039 = vst [vmem:[%s3023 + $0x78] sm:$0xff] %v2906
          %3040 = vst [vmem:[%s3023 + $0x80] sm:$0xff] %v2907
          %3041 = vst [vmem:[%s3023 + $0x88] sm:$0xff] %v2908
          %3042 = vst [vmem:[%s3023 + $0x90] sm:$0xff] %v2909
          %3043 = vst [vmem:[%s3023 + $0x98] sm:$0xff] %v2910
          %3044 = vst [vmem:[%s3023 + $0xa0] sm:$0xff] %v2911
          %3045 = vst [vmem:[%s3023 + $0xa8] sm:$0xff] %v2912
          %3046 = vst [vmem:[%s3023 + $0xb0] sm:$0xff] %v2913
          %3047 = vst [vmem:[%s3023 + $0xb8] sm:$0xff] %v2914
          %3048 = vst [vmem:[%s3023 + $0xc0] sm:$0xff] %v2915
          %3049 = vst [vmem:[%s3023 + $0xc8] sm:$0xff] %v2916
          %3050 = vst [vmem:[%s3023 + $0xd0] sm:$0xff] %v2917
          %3051 = vst [vmem:[%s3023 + $0xd8] sm:$0xff] %v2918
          %3052 = vst [vmem:[%s3023 + $0xe0] sm:$0xff] %v2919
          %3053 = vst [vmem:[%s3023 + $0xe8] sm:$0xff] %v2920
          %3054 = vst [vmem:[%s3023 + $0xf0] sm:$0xff] %v2921
          %3055 = vst [vmem:[%s3023 + $0xf8] sm:$0xff] %v2922
          %3056 = vst [vmem:[%s3023 + $0x100] sm:$0xff] %v2923
          %3057 = vst [vmem:[%s3023 + $0x108] sm:$0xff] %v2924
          %3058 = vst [vmem:[%s3023 + $0x110] sm:$0xff] %v2925
          %3059 = vst [vmem:[%s3023 + $0x118] sm:$0xff] %v2926
          %3060 = vst [vmem:[%s3023 + $0x120] sm:$0xff] %v2927
          %3061 = vst [vmem:[%s3023 + $0x128] sm:$0xff] %v2928
          %3062 = vst [vmem:[%s3023 + $0x130] sm:$0xff] %v2929
          %3063 = vst [vmem:[%s3023 + $0x138] sm:$0xff] %v2930
          %3064 = vst [vmem:[%s3023 + $0x140] sm:$0xff] %v2931
          %3065 = vst [vmem:[%s3023 + $0x148] sm:$0xff] %v2932
          %3066 = vst [vmem:[%s3023 + $0x150] sm:$0xff] %v2933
          %3067 = vst [vmem:[%s3023 + $0x158] sm:$0xff] %v2934
          %3068 = vst [vmem:[%s3023 + $0x160] sm:$0xff] %v2935
          %3069 = vst [vmem:[%s3023 + $0x168] sm:$0xff] %v2936
          %3070 = vst [vmem:[%s3023 + $0x170] sm:$0xff] %v2937
          %3071 = vst [vmem:[%s3023 + $0x178] sm:$0xff] %v2938
          %3072 = vst [vmem:[%s3023 + $0x180] sm:$0xff] %v2939
          %3073 = vst [vmem:[%s3023 + $0x188] sm:$0xff] %v2940
          %3074 = vst [vmem:[%s3023 + $0x190] sm:$0xff] %v2941
          %3075 = vst [vmem:[%s3023 + $0x198] sm:$0xff] %v2942
          %3076 = vst [vmem:[%s3023 + $0x1a0] sm:$0xff] %v2943
          %3077 = vst [vmem:[%s3023 + $0x1a8] sm:$0xff] %v2944
          %3078 = vst [vmem:[%s3023 + $0x1b0] sm:$0xff] %v2945
          %3079 = vst [vmem:[%s3023 + $0x1b8] sm:$0xff] %v2946
          %3080 = vst [vmem:[%s3023 + $0x1c0] sm:$0xff] %v2947
          %3081 = vst [vmem:[%s3023 + $0x1c8] sm:$0xff] %v2948
          %3082 = vst [vmem:[%s3023 + $0x1d0] sm:$0xff] %v2949
          %3083 = vst [vmem:[%s3023 + $0x1d8] sm:$0xff] %v2950
          %3084 = vst [vmem:[%s3023 + $0x1e0] sm:$0xff] %v2951
          %3085 = vst [vmem:[%s3023 + $0x1e8] sm:$0xff] %v2952
          %3086 = vst [vmem:[%s3023 + $0x1f0] sm:$0xff] %v2953
          %3087 = vst [vmem:[%s3023 + $0x1f8] sm:$0xff] %v2954
          %3088 = vst [vmem:[%s3023 + $0x200] sm:$0xff] %v2955
          %3089 = vst [vmem:[%s3023 + $0x208] sm:$0xff] %v2956
          %3090 = vst [vmem:[%s3023 + $0x210] sm:$0xff] %v2957
          %3091 = vst [vmem:[%s3023 + $0x218] sm:$0xff] %v2958
          %3092 = vst [vmem:[%s3023 + $0x220] sm:$0xff] %v2959
          %3093 = vst [vmem:[%s3023 + $0x228] sm:$0xff] %v2960
          %3094 = vst [vmem:[%s3023 + $0x230] sm:$0xff] %v2961
          %3095 = vst [vmem:[%s3023 + $0x238] sm:$0xff] %v2962
          %3096 = vst [vmem:[%s3023 + $0x240] sm:$0xff] %v2963
          %3097 = vst [vmem:[%s3023 + $0x248] sm:$0xff] %v2964
          %3098 = vst [vmem:[%s3023 + $0x250] sm:$0xff] %v2965
          %3099 = vst [vmem:[%s3023 + $0x258] sm:$0xff] %v2966
          %3100 = vst [vmem:[%s3023 + $0x260] sm:$0xff] %v2967
          %3101 = vst [vmem:[%s3023 + $0x268] sm:$0xff] %v2968
          %3102 = vst [vmem:[%s3023 + $0x270] sm:$0xff] %v2969
          %3103 = vst [vmem:[%s3023 + $0x278] sm:$0xff] %v2970
          %3104 = vst [vmem:[%s3023 + $0x280] sm:$0xff] %v2971
          %3105 = vst [vmem:[%s3023 + $0x288] sm:$0xff] %v2972
          %3106 = vst [vmem:[%s3023 + $0x290] sm:$0xff] %v2973
          %3107 = vst [vmem:[%s3023 + $0x298] sm:$0xff] %v2974
          %3108 = vst [vmem:[%s3023 + $0x2a0] sm:$0xff] %v2975
          %3109 = vst [vmem:[%s3023 + $0x2a8] sm:$0xff] %v2976
          %3110 = vst [vmem:[%s3023 + $0x2b0] sm:$0xff] %v2977
          %3111 = vst [vmem:[%s3023 + $0x2b8] sm:$0xff] %v2978
          %3112 = vst [vmem:[%s3023 + $0x2c0] sm:$0xff] %v2979
          %3113 = vst [vmem:[%s3023 + $0x2c8] sm:$0xff] %v2980
          %3114 = vst [vmem:[%s3023 + $0x2d0] sm:$0xff] %v2981
          %3115 = vst [vmem:[%s3023 + $0x2d8] sm:$0xff] %v2982
          %3116 = vst [vmem:[%s3023 + $0x2e0] sm:$0xff] %v2983
          %3117 = vst [vmem:[%s3023 + $0x2e8] sm:$0xff] %v2984
          %3118 = vst [vmem:[%s3023 + $0x2f0] sm:$0xff] %v2985
          %3119 = vst [vmem:[%s3023 + $0x2f8] sm:$0xff] %v2986
          %3120 = vst [vmem:[%s3023 + $0x300] sm:$0xff] %v2987
          %3121 = vst [vmem:[%s3023 + $0x308] sm:$0xff] %v2988
          %3122 = vst [vmem:[%s3023 + $0x310] sm:$0xff] %v2989
          %3123 = vst [vmem:[%s3023 + $0x318] sm:$0xff] %v2990
          %3124 = vst [vmem:[%s3023 + $0x320] sm:$0xff] %v2991
          %3125 = vst [vmem:[%s3023 + $0x328] sm:$0xff] %v2992
          %3126 = vst [vmem:[%s3023 + $0x330] sm:$0xff] %v2993
          %3127 = vst [vmem:[%s3023 + $0x338] sm:$0xff] %v2994
          %3128 = vst [vmem:[%s3023 + $0x340] sm:$0xff] %v2995
          %3129 = vst [vmem:[%s3023 + $0x348] sm:$0xff] %v2996
          %3130 = vst [vmem:[%s3023 + $0x350] sm:$0xff] %v2997
          %3131 = vst [vmem:[%s3023 + $0x358] sm:$0xff] %v2998
          %3132 = vst [vmem:[%s3023 + $0x360] sm:$0xff] %v2999
          %3133 = vst [vmem:[%s3023 + $0x368] sm:$0xff] %v3000
          %3134 = vst [vmem:[%s3023 + $0x370] sm:$0xff] %v3001
          %3135 = vst [vmem:[%s3023 + $0x378] sm:$0xff] %v3002
          %3136 = vst [vmem:[%s3023 + $0x380] sm:$0xff] %v3003
          %3137 = vst [vmem:[%s3023 + $0x388] sm:$0xff] %v3004
          %3138 = vst [vmem:[%s3023 + $0x390] sm:$0xff] %v3005
          %3139 = vst [vmem:[%s3023 + $0x398] sm:$0xff] %v3006
          %3140 = vst [vmem:[%s3023 + $0x3a0] sm:$0xff] %v3007
          %3141 = vst [vmem:[%s3023 + $0x3a8] sm:$0xff] %v3008
          %3142 = vst [vmem:[%s3023 + $0x3b0] sm:$0xff] %v3009
          %3143 = vst [vmem:[%s3023 + $0x3b8] sm:$0xff] %v3010
          %3144 = vst [vmem:[%s3023 + $0x3c0] sm:$0xff] %v3011
          %3145 = vst [vmem:[%s3023 + $0x3c8] sm:$0xff] %v3012
          %3146 = vst [vmem:[%s3023 + $0x3d0] sm:$0xff] %v3013
          %3147 = vst [vmem:[%s3023 + $0x3d8] sm:$0xff] %v3014
          %3148 = vst [vmem:[%s3023 + $0x3e0] sm:$0xff] %v3015
          %3149 = vst [vmem:[%s3023 + $0x3e8] sm:$0xff] %v3016
          %3150 = vst [vmem:[%s3023 + $0x3f0] sm:$0xff] %v3017
          %3151 = vst [vmem:[%s3023 + $0x3f8] sm:$0xff] %v3018
          %p3152 = scmp.eq.s32.totalorder %s38, 0
          // Predicated region
          $region97: #{tpu_custom_call.1} parent=95 // pred_check
            %p3153 = pneg %p3152
          $region98: #{tpu_custom_call.1} parent=95 // pred_check_branch
            %3155 = sbr.rel (%p3153) target = $region100
          $region99: #{tpu_custom_call.1} parent=95 // pred_region
            %3156 = vst [vmem:[#allocation3] sm:$0xff] -inf
          $region100: #{tpu_custom_call.1} parent=95 // pred_fallthru
            _
          %v3157 = vld [vmem:[#allocation3] sm:$0xff]
          %v3158 = vmax.f32 %v2635, %v2643
          %v3159 = vmax.f32 %v3158, %v2651
          %v3160 = vmax.f32 %v3159, %v2659
          %v3161 = vmax.f32 %v3160, %v2667
          %v3162 = vmax.f32 %v3161, %v2675
          %v3163 = vmax.f32 %v3162, %v2683
          %v3164 = vmax.f32 %v3163, %v2691
          %v3165 = vmax.f32 %v3164, %v2699
          %v3166 = vmax.f32 %v3165, %v2707
          %v3167 = vmax.f32 %v3166, %v2715
          %v3168 = vmax.f32 %v3167, %v2723
          %v3169 = vmax.f32 %v3168, %v2731
          %v3170 = vmax.f32 %v3169, %v2739
          %v3171 = vmax.f32 %v3170, %v2747
          %v3172 = vmax.f32 %v3171, %v2755
          %v3173 = vmax.f32 %v3172, %v2763
          %v3174 = vmax.f32 %v3173, %v2771
          %v3175 = vmax.f32 %v3174, %v2779
          %v3176 = vmax.f32 %v3175, %v2787
          %v3177 = vmax.f32 %v3176, %v2795
          %v3178 = vmax.f32 %v3177, %v2803
          %v3179 = vmax.f32 %v3178, %v2811
          %v3180 = vmax.f32 %v3179, %v2819
          %v3181 = vmax.f32 %v3180, %v2827
          %v3182 = vmax.f32 %v3181, %v2835
          %v3183 = vmax.f32 %v3182, %v2843
          %v3184 = vmax.f32 %v3183, %v2851
          %v3185 = vmax.f32 %v3184, %v2859
          %v3186 = vmax.f32 %v3185, %v2867
          %v3187 = vmax.f32 %v3186, %v2875
          %v3188 = vmax.f32 %v3187, %v2883
          %v3189 = vrot.slane %v3188, 4
          %v3190 = vmax.f32 %v3188, %v3189
          %v3191 = vrot.slane %v3190, 2
          %v3192 = vmax.f32 %v3190, %v3191
          %v3193 = vrot.slane %v3192, 1
          %v3194 = vmax.f32 %v3192, %v3193
          %v3195 = vmax.f32 %v2636, %v2644
          %v3196 = vmax.f32 %v3195, %v2652
          %v3197 = vmax.f32 %v3196, %v2660
          %v3198 = vmax.f32 %v3197, %v2668
          %v3199 = vmax.f32 %v3198, %v2676
          %v3200 = vmax.f32 %v3199, %v2684
          %v3201 = vmax.f32 %v3200, %v2692
          %v3202 = vmax.f32 %v3201, %v2700
          %v3203 = vmax.f32 %v3202, %v2708
          %v3204 = vmax.f32 %v3203, %v2716
          %v3205 = vmax.f32 %v3204, %v2724
          %v3206 = vmax.f32 %v3205, %v2732
          %v3207 = vmax.f32 %v3206, %v2740
          %v3208 = vmax.f32 %v3207, %v2748
          %v3209 = vmax.f32 %v3208, %v2756
          %v3210 = vmax.f32 %v3209, %v2764
          %v3211 = vmax.f32 %v3210, %v2772
          %v3212 = vmax.f32 %v3211, %v2780
          %v3213 = vmax.f32 %v3212, %v2788
          %v3214 = vmax.f32 %v3213, %v2796
          %v3215 = vmax.f32 %v3214, %v2804
          %v3216 = vmax.f32 %v3215, %v2812
          %v3217 = vmax.f32 %v3216, %v2820
          %v3218 = vmax.f32 %v3217, %v2828
          %v3219 = vmax.f32 %v3218, %v2836
          %v3220 = vmax.f32 %v3219, %v2844
          %v3221 = vmax.f32 %v3220, %v2852
          %v3222 = vmax.f32 %v3221, %v2860
          %v3223 = vmax.f32 %v3222, %v2868
          %v3224 = vmax.f32 %v3223, %v2876
          %v3225 = vmax.f32 %v3224, %v2884
          %v3226 = vrot.slane %v3225, 4
          %v3227 = vmax.f32 %v3225, %v3226
          %v3228 = vrot.slane %v3227, 2
          %v3229 = vmax.f32 %v3227, %v3228
          %v3230 = vrot.slane %v3229, 1
          %v3231 = vmax.f32 %v3229, %v3230
          %v3232 = vmax.f32 %v2637, %v2645
          %v3233 = vmax.f32 %v3232, %v2653
          %v3234 = vmax.f32 %v3233, %v2661
          %v3235 = vmax.f32 %v3234, %v2669
          %v3236 = vmax.f32 %v3235, %v2677
          %v3237 = vmax.f32 %v3236, %v2685
          %v3238 = vmax.f32 %v3237, %v2693
          %v3239 = vmax.f32 %v3238, %v2701
          %v3240 = vmax.f32 %v3239, %v2709
          %v3241 = vmax.f32 %v3240, %v2717
          %v3242 = vmax.f32 %v3241, %v2725
          %v3243 = vmax.f32 %v3242, %v2733
          %v3244 = vmax.f32 %v3243, %v2741
          %v3245 = vmax.f32 %v3244, %v2749
          %v3246 = vmax.f32 %v3245, %v2757
          %v3247 = vmax.f32 %v3246, %v2765
          %v3248 = vmax.f32 %v3247, %v2773
          %v3249 = vmax.f32 %v3248, %v2781
          %v3250 = vmax.f32 %v3249, %v2789
          %v3251 = vmax.f32 %v3250, %v2797
          %v3252 = vmax.f32 %v3251, %v2805
          %v3253 = vmax.f32 %v3252, %v2813
          %v3254 = vmax.f32 %v3253, %v2821
          %v3255 = vmax.f32 %v3254, %v2829
          %v3256 = vmax.f32 %v3255, %v2837
          %v3257 = vmax.f32 %v3256, %v2845
          %v3258 = vmax.f32 %v3257, %v2853
          %v3259 = vmax.f32 %v3258, %v2861
          %v3260 = vmax.f32 %v3259, %v2869
          %v3261 = vmax.f32 %v3260, %v2877
          %v3262 = vmax.f32 %v3261, %v2885
          %v3263 = vrot.slane %v3262, 4
          %v3264 = vmax.f32 %v3262, %v3263
          %v3265 = vrot.slane %v3264, 2
          %v3266 = vmax.f32 %v3264, %v3265
          %v3267 = vrot.slane %v3266, 1
          %v3268 = vmax.f32 %v3266, %v3267
          %v3269 = vmax.f32 %v2638, %v2646
          %v3270 = vmax.f32 %v3269, %v2654
          %v3271 = vmax.f32 %v3270, %v2662
          %v3272 = vmax.f32 %v3271, %v2670
          %v3273 = vmax.f32 %v3272, %v2678
          %v3274 = vmax.f32 %v3273, %v2686
          %v3275 = vmax.f32 %v3274, %v2694
          %v3276 = vmax.f32 %v3275, %v2702
          %v3277 = vmax.f32 %v3276, %v2710
          %v3278 = vmax.f32 %v3277, %v2718
          %v3279 = vmax.f32 %v3278, %v2726
          %v3280 = vmax.f32 %v3279, %v2734
          %v3281 = vmax.f32 %v3280, %v2742
          %v3282 = vmax.f32 %v3281, %v2750
          %v3283 = vmax.f32 %v3282, %v2758
          %v3284 = vmax.f32 %v3283, %v2766
          %v3285 = vmax.f32 %v3284, %v2774
          %v3286 = vmax.f32 %v3285, %v2782
          %v3287 = vmax.f32 %v3286, %v2790
          %v3288 = vmax.f32 %v3287, %v2798
          %v3289 = vmax.f32 %v3288, %v2806
          %v3290 = vmax.f32 %v3289, %v2814
          %v3291 = vmax.f32 %v3290, %v2822
          %v3292 = vmax.f32 %v3291, %v2830
          %v3293 = vmax.f32 %v3292, %v2838
          %v3294 = vmax.f32 %v3293, %v2846
          %v3295 = vmax.f32 %v3294, %v2854
          %v3296 = vmax.f32 %v3295, %v2862
          %v3297 = vmax.f32 %v3296, %v2870
          %v3298 = vmax.f32 %v3297, %v2878
          %v3299 = vmax.f32 %v3298, %v2886
          %v3300 = vrot.slane %v3299, 4
          %v3301 = vmax.f32 %v3299, %v3300
          %v3302 = vrot.slane %v3301, 2
          %v3303 = vmax.f32 %v3301, %v3302
          %v3304 = vrot.slane %v3303, 1
          %v3305 = vmax.f32 %v3303, %v3304
          %v3306 = vmax.f32 %v2639, %v2647
          %v3307 = vmax.f32 %v3306, %v2655
          %v3308 = vmax.f32 %v3307, %v2663
          %v3309 = vmax.f32 %v3308, %v2671
          %v3310 = vmax.f32 %v3309, %v2679
          %v3311 = vmax.f32 %v3310, %v2687
          %v3312 = vmax.f32 %v3311, %v2695
          %v3313 = vmax.f32 %v3312, %v2703
          %v3314 = vmax.f32 %v3313, %v2711
          %v3315 = vmax.f32 %v3314, %v2719
          %v3316 = vmax.f32 %v3315, %v2727
          %v3317 = vmax.f32 %v3316, %v2735
          %v3318 = vmax.f32 %v3317, %v2743
          %v3319 = vmax.f32 %v3318, %v2751
          %v3320 = vmax.f32 %v3319, %v2759
          %v3321 = vmax.f32 %v3320, %v2767
          %v3322 = vmax.f32 %v3321, %v2775
          %v3323 = vmax.f32 %v3322, %v2783
          %v3324 = vmax.f32 %v3323, %v2791
          %v3325 = vmax.f32 %v3324, %v2799
          %v3326 = vmax.f32 %v3325, %v2807
          %v3327 = vmax.f32 %v3326, %v2815
          %v3328 = vmax.f32 %v3327, %v2823
          %v3329 = vmax.f32 %v3328, %v2831
          %v3330 = vmax.f32 %v3329, %v2839
          %v3331 = vmax.f32 %v3330, %v2847
          %v3332 = vmax.f32 %v3331, %v2855
          %v3333 = vmax.f32 %v3332, %v2863
          %v3334 = vmax.f32 %v3333, %v2871
          %v3335 = vmax.f32 %v3334, %v2879
          %v3336 = vmax.f32 %v3335, %v2887
          %v3337 = vrot.slane %v3336, 4
          %v3338 = vmax.f32 %v3336, %v3337
          %v3339 = vrot.slane %v3338, 2
          %v3340 = vmax.f32 %v3338, %v3339
          %v3341 = vrot.slane %v3340, 1
          %v3342 = vmax.f32 %v3340, %v3341
          %v3343 = vmax.f32 %v2640, %v2648
          %v3344 = vmax.f32 %v3343, %v2656
          %v3345 = vmax.f32 %v3344, %v2664
          %v3346 = vmax.f32 %v3345, %v2672
          %v3347 = vmax.f32 %v3346, %v2680
          %v3348 = vmax.f32 %v3347, %v2688
          %v3349 = vmax.f32 %v3348, %v2696
          %v3350 = vmax.f32 %v3349, %v2704
          %v3351 = vmax.f32 %v3350, %v2712
          %v3352 = vmax.f32 %v3351, %v2720
          %v3353 = vmax.f32 %v3352, %v2728
          %v3354 = vmax.f32 %v3353, %v2736
          %v3355 = vmax.f32 %v3354, %v2744
          %v3356 = vmax.f32 %v3355, %v2752
          %v3357 = vmax.f32 %v3356, %v2760
          %v3358 = vmax.f32 %v3357, %v2768
          %v3359 = vmax.f32 %v3358, %v2776
          %v3360 = vmax.f32 %v3359, %v2784
          %v3361 = vmax.f32 %v3360, %v2792
          %v3362 = vmax.f32 %v3361, %v2800
          %v3363 = vmax.f32 %v3362, %v2808
          %v3364 = vmax.f32 %v3363, %v2816
          %v3365 = vmax.f32 %v3364, %v2824
          %v3366 = vmax.f32 %v3365, %v2832
          %v3367 = vmax.f32 %v3366, %v2840
          %v3368 = vmax.f32 %v3367, %v2848
          %v3369 = vmax.f32 %v3368, %v2856
          %v3370 = vmax.f32 %v3369, %v2864
          %v3371 = vmax.f32 %v3370, %v2872
          %v3372 = vmax.f32 %v3371, %v2880
          %v3373 = vmax.f32 %v3372, %v2888
          %v3374 = vrot.slane %v3373, 4
          %v3375 = vmax.f32 %v3373, %v3374
          %v3376 = vrot.slane %v3375, 2
          %v3377 = vmax.f32 %v3375, %v3376
          %v3378 = vrot.slane %v3377, 1
          %v3379 = vmax.f32 %v3377, %v3378
          %v3380 = vmax.f32 %v2641, %v2649
          %v3381 = vmax.f32 %v3380, %v2657
          %v3382 = vmax.f32 %v3381, %v2665
          %v3383 = vmax.f32 %v3382, %v2673
          %v3384 = vmax.f32 %v3383, %v2681
          %v3385 = vmax.f32 %v3384, %v2689
          %v3386 = vmax.f32 %v3385, %v2697
          %v3387 = vmax.f32 %v3386, %v2705
          %v3388 = vmax.f32 %v3387, %v2713
          %v3389 = vmax.f32 %v3388, %v2721
          %v3390 = vmax.f32 %v3389, %v2729
          %v3391 = vmax.f32 %v3390, %v2737
          %v3392 = vmax.f32 %v3391, %v2745
          %v3393 = vmax.f32 %v3392, %v2753
          %v3394 = vmax.f32 %v3393, %v2761
          %v3395 = vmax.f32 %v3394, %v2769
          %v3396 = vmax.f32 %v3395, %v2777
          %v3397 = vmax.f32 %v3396, %v2785
          %v3398 = vmax.f32 %v3397, %v2793
          %v3399 = vmax.f32 %v3398, %v2801
          %v3400 = vmax.f32 %v3399, %v2809
          %v3401 = vmax.f32 %v3400, %v2817
          %v3402 = vmax.f32 %v3401, %v2825
          %v3403 = vmax.f32 %v3402, %v2833
          %v3404 = vmax.f32 %v3403, %v2841
          %v3405 = vmax.f32 %v3404, %v2849
          %v3406 = vmax.f32 %v3405, %v2857
          %v3407 = vmax.f32 %v3406, %v2865
          %v3408 = vmax.f32 %v3407, %v2873
          %v3409 = vmax.f32 %v3408, %v2881
          %v3410 = vmax.f32 %v3409, %v2889
          %v3411 = vrot.slane %v3410, 4
          %v3412 = vmax.f32 %v3410, %v3411
          %v3413 = vrot.slane %v3412, 2
          %v3414 = vmax.f32 %v3412, %v3413
          %v3415 = vrot.slane %v3414, 1
          %v3416 = vmax.f32 %v3414, %v3415
          %v3417 = vmax.f32 %v2642, %v2650
          %v3418 = vmax.f32 %v3417, %v2658
          %v3419 = vmax.f32 %v3418, %v2666
          %v3420 = vmax.f32 %v3419, %v2674
          %v3421 = vmax.f32 %v3420, %v2682
          %v3422 = vmax.f32 %v3421, %v2690
          %v3423 = vmax.f32 %v3422, %v2698
          %v3424 = vmax.f32 %v3423, %v2706
          %v3425 = vmax.f32 %v3424, %v2714
          %v3426 = vmax.f32 %v3425, %v2722
          %v3427 = vmax.f32 %v3426, %v2730
          %v3428 = vmax.f32 %v3427, %v2738
          %v3429 = vmax.f32 %v3428, %v2746
          %v3430 = vmax.f32 %v3429, %v2754
          %v3431 = vmax.f32 %v3430, %v2762
          %v3432 = vmax.f32 %v3431, %v2770
          %v3433 = vmax.f32 %v3432, %v2778
          %v3434 = vmax.f32 %v3433, %v2786
          %v3435 = vmax.f32 %v3434, %v2794
          %v3436 = vmax.f32 %v3435, %v2802
          %v3437 = vmax.f32 %v3436, %v2810
          %v3438 = vmax.f32 %v3437, %v2818
          %v3439 = vmax.f32 %v3438, %v2826
          %v3440 = vmax.f32 %v3439, %v2834
          %v3441 = vmax.f32 %v3440, %v2842
          %v3442 = vmax.f32 %v3441, %v2850
          %v3443 = vmax.f32 %v3442, %v2858
          %v3444 = vmax.f32 %v3443, %v2866
          %v3445 = vmax.f32 %v3444, %v2874
          %v3446 = vmax.f32 %v3445, %v2882
          %v3447 = vmax.f32 %v3446, %v2890
          %v3448 = vrot.slane %v3447, 4
          %v3449 = vmax.f32 %v3447, %v3448
          %v3450 = vrot.slane %v3449, 2
          %v3451 = vmax.f32 %v3449, %v3450
          %v3452 = vrot.slane %v3451, 1
          %v3453 = vmax.f32 %v3451, %v3452
          %v3462 = vrot.slane %v3231, 7
          %v3463 = vrot.slane %v3268, 6
          %v3464 = vrot.slane %v3305, 5
          %v3465 = vrot.slane %v3342, 4
          %v3466 = vrot.slane %v3379, 3
          %v3467 = vrot.slane %v3416, 2
          %v3468 = vrot.slane %v3453, 1
          %vm3469 = vcmask 1040384
          %v3470 = vsel %vm3469, %v3194, %v3462
          %vm3471 = vcmask 1042434
          %v3472 = vsel %vm3471, %v3463, %v3464
          %vm3473 = vcmask 1041408
          %v3474 = vsel %vm3473, %v3470, %v3472
          %vm3475 = vcmask 1044484
          %v3476 = vsel %vm3475, %v3465, %v3466
          %vm3477 = vcmask 1046534
          %v3478 = vsel %vm3477, %v3467, %v3468
          %vm3479 = vcmask 1045508
          %v3480 = vsel %vm3479, %v3476, %v3478
          %vm3481 = vcmask 1043456
          %v3482 = vsel %vm3481, %v3474, %v3480
          %v3484 = vmax.f32 %v3157, %v3482
          %3485 = vst [vmem:[#allocation3] sm:$0xff] %v3484
        $region96: #{tpu_custom_call.1} parent=75 // pred_fallthru
          _
        %p3486 = scmp.eq.s32.totalorder %s37, 1
        // Predicated region
        $region101: #{tpu_custom_call.1} parent=75 // pred_check
          %p3487 = pneg %p3486
        $region102: #{tpu_custom_call.1} parent=75 // pred_check_branch
          %3489 = sbr.rel (%p3487) target = $region104
        $region103: #{tpu_custom_call.1} parent=75 // pred_region
          %p3490 = scmp.eq.s32.totalorder %s38, 0
          // Predicated region
          $region105: #{tpu_custom_call.1} parent=103 // pred_check
            %p3491 = pneg %p3490
          $region106: #{tpu_custom_call.1} parent=103 // pred_check_branch
            %3493 = sbr.rel (%p3491) target = $region108
          $region107: #{tpu_custom_call.1} parent=103 // pred_region
            %v3494 = vld [vmem:[#allocation3] sm:$0xff]
            %v3496 = vperm.slane %v3494, 0
            %v3497 = vperm.slane %v3494, 1
            %v3498 = vperm.slane %v3494, 2
            %v3499 = vperm.slane %v3494, 3
            %v3500 = vperm.slane %v3494, 4
            %v3501 = vperm.slane %v3494, 5
            %v3502 = vperm.slane %v3494, 6
            %v3503 = vperm.slane %v3494, 7
            %v3512 = vpack.c.bf16 %v3496, %v3496
            %v3513 = vpack.c.bf16 %v3497, %v3497
            %v3514 = vpack.c.bf16 %v3498, %v3498
            %v3515 = vpack.c.bf16 %v3499, %v3499
            %v3516 = vpack.c.bf16 %v3500, %v3500
            %v3517 = vpack.c.bf16 %v3501, %v3501
            %v3518 = vpack.c.bf16 %v3502, %v3502
            %v3519 = vpack.c.bf16 %v3503, %v3503
            %v3520 = vld [vmem:[#allocation8] sm:$0xff]
            %v3521 = vld [vmem:[#allocation8 + $0x8] sm:$0xff]
            %v3522 = vld [vmem:[#allocation8 + $0x10] sm:$0xff]
            %v3523 = vld [vmem:[#allocation8 + $0x18] sm:$0xff]
            %v3524 = vld [vmem:[#allocation8 + $0x20] sm:$0xff]
            %v3525 = vld [vmem:[#allocation8 + $0x28] sm:$0xff]
            %v3526 = vld [vmem:[#allocation8 + $0x30] sm:$0xff]
            %v3527 = vld [vmem:[#allocation8 + $0x38] sm:$0xff]
            %v3528 = vld [vmem:[#allocation8 + $0x40] sm:$0xff]
            %v3529 = vld [vmem:[#allocation8 + $0x48] sm:$0xff]
            %v3530 = vld [vmem:[#allocation8 + $0x50] sm:$0xff]
            %v3531 = vld [vmem:[#allocation8 + $0x58] sm:$0xff]
            %v3532 = vld [vmem:[#allocation8 + $0x60] sm:$0xff]
            %v3533 = vld [vmem:[#allocation8 + $0x68] sm:$0xff]
            %v3534 = vld [vmem:[#allocation8 + $0x70] sm:$0xff]
            %v3535 = vld [vmem:[#allocation8 + $0x78] sm:$0xff]
            %v3536 = vld [vmem:[#allocation8 + $0x80] sm:$0xff]
            %v3537 = vld [vmem:[#allocation8 + $0x88] sm:$0xff]
            %v3538 = vld [vmem:[#allocation8 + $0x90] sm:$0xff]
            %v3539 = vld [vmem:[#allocation8 + $0x98] sm:$0xff]
            %v3540 = vld [vmem:[#allocation8 + $0xa0] sm:$0xff]
            %v3541 = vld [vmem:[#allocation8 + $0xa8] sm:$0xff]
            %v3542 = vld [vmem:[#allocation8 + $0xb0] sm:$0xff]
            %v3543 = vld [vmem:[#allocation8 + $0xb8] sm:$0xff]
            %v3544 = vld [vmem:[#allocation8 + $0xc0] sm:$0xff]
            %v3545 = vld [vmem:[#allocation8 + $0xc8] sm:$0xff]
            %v3546 = vld [vmem:[#allocation8 + $0xd0] sm:$0xff]
            %v3547 = vld [vmem:[#allocation8 + $0xd8] sm:$0xff]
            %v3548 = vld [vmem:[#allocation8 + $0xe0] sm:$0xff]
            %v3549 = vld [vmem:[#allocation8 + $0xe8] sm:$0xff]
            %v3550 = vld [vmem:[#allocation8 + $0xf0] sm:$0xff]
            %v3551 = vld [vmem:[#allocation8 + $0xf8] sm:$0xff]
            %v3552 = vld [vmem:[#allocation8 + $0x100] sm:$0xff]
            %v3553 = vld [vmem:[#allocation8 + $0x108] sm:$0xff]
            %v3554 = vld [vmem:[#allocation8 + $0x110] sm:$0xff]
            %v3555 = vld [vmem:[#allocation8 + $0x118] sm:$0xff]
            %v3556 = vld [vmem:[#allocation8 + $0x120] sm:$0xff]
            %v3557 = vld [vmem:[#allocation8 + $0x128] sm:$0xff]
            %v3558 = vld [vmem:[#allocation8 + $0x130] sm:$0xff]
            %v3559 = vld [vmem:[#allocation8 + $0x138] sm:$0xff]
            %v3560 = vld [vmem:[#allocation8 + $0x140] sm:$0xff]
            %v3561 = vld [vmem:[#allocation8 + $0x148] sm:$0xff]
            %v3562 = vld [vmem:[#allocation8 + $0x150] sm:$0xff]
            %v3563 = vld [vmem:[#allocation8 + $0x158] sm:$0xff]
            %v3564 = vld [vmem:[#allocation8 + $0x160] sm:$0xff]
            %v3565 = vld [vmem:[#allocation8 + $0x168] sm:$0xff]
            %v3566 = vld [vmem:[#allocation8 + $0x170] sm:$0xff]
            %v3567 = vld [vmem:[#allocation8 + $0x178] sm:$0xff]
            %v3568 = vld [vmem:[#allocation8 + $0x180] sm:$0xff]
            %v3569 = vld [vmem:[#allocation8 + $0x188] sm:$0xff]
            %v3570 = vld [vmem:[#allocation8 + $0x190] sm:$0xff]
            %v3571 = vld [vmem:[#allocation8 + $0x198] sm:$0xff]
            %v3572 = vld [vmem:[#allocation8 + $0x1a0] sm:$0xff]
            %v3573 = vld [vmem:[#allocation8 + $0x1a8] sm:$0xff]
            %v3574 = vld [vmem:[#allocation8 + $0x1b0] sm:$0xff]
            %v3575 = vld [vmem:[#allocation8 + $0x1b8] sm:$0xff]
            %v3576 = vld [vmem:[#allocation8 + $0x1c0] sm:$0xff]
            %v3577 = vld [vmem:[#allocation8 + $0x1c8] sm:$0xff]
            %v3578 = vld [vmem:[#allocation8 + $0x1d0] sm:$0xff]
            %v3579 = vld [vmem:[#allocation8 + $0x1d8] sm:$0xff]
            %v3580 = vld [vmem:[#allocation8 + $0x1e0] sm:$0xff]
            %v3581 = vld [vmem:[#allocation8 + $0x1e8] sm:$0xff]
            %v3582 = vld [vmem:[#allocation8 + $0x1f0] sm:$0xff]
            %v3583 = vld [vmem:[#allocation8 + $0x1f8] sm:$0xff]
            %v3584 = vld [vmem:[#allocation8 + $0x200] sm:$0xff]
            %v3585 = vld [vmem:[#allocation8 + $0x208] sm:$0xff]
            %v3586 = vld [vmem:[#allocation8 + $0x210] sm:$0xff]
            %v3587 = vld [vmem:[#allocation8 + $0x218] sm:$0xff]
            %v3588 = vld [vmem:[#allocation8 + $0x220] sm:$0xff]
            %v3589 = vld [vmem:[#allocation8 + $0x228] sm:$0xff]
            %v3590 = vld [vmem:[#allocation8 + $0x230] sm:$0xff]
            %v3591 = vld [vmem:[#allocation8 + $0x238] sm:$0xff]
            %v3592 = vld [vmem:[#allocation8 + $0x240] sm:$0xff]
            %v3593 = vld [vmem:[#allocation8 + $0x248] sm:$0xff]
            %v3594 = vld [vmem:[#allocation8 + $0x250] sm:$0xff]
            %v3595 = vld [vmem:[#allocation8 + $0x258] sm:$0xff]
            %v3596 = vld [vmem:[#allocation8 + $0x260] sm:$0xff]
            %v3597 = vld [vmem:[#allocation8 + $0x268] sm:$0xff]
            %v3598 = vld [vmem:[#allocation8 + $0x270] sm:$0xff]
            %v3599 = vld [vmem:[#allocation8 + $0x278] sm:$0xff]
            %v3600 = vld [vmem:[#allocation8 + $0x280] sm:$0xff]
            %v3601 = vld [vmem:[#allocation8 + $0x288] sm:$0xff]
            %v3602 = vld [vmem:[#allocation8 + $0x290] sm:$0xff]
            %v3603 = vld [vmem:[#allocation8 + $0x298] sm:$0xff]
            %v3604 = vld [vmem:[#allocation8 + $0x2a0] sm:$0xff]
            %v3605 = vld [vmem:[#allocation8 + $0x2a8] sm:$0xff]
            %v3606 = vld [vmem:[#allocation8 + $0x2b0] sm:$0xff]
            %v3607 = vld [vmem:[#allocation8 + $0x2b8] sm:$0xff]
            %v3608 = vld [vmem:[#allocation8 + $0x2c0] sm:$0xff]
            %v3609 = vld [vmem:[#allocation8 + $0x2c8] sm:$0xff]
            %v3610 = vld [vmem:[#allocation8 + $0x2d0] sm:$0xff]
            %v3611 = vld [vmem:[#allocation8 + $0x2d8] sm:$0xff]
            %v3612 = vld [vmem:[#allocation8 + $0x2e0] sm:$0xff]
            %v3613 = vld [vmem:[#allocation8 + $0x2e8] sm:$0xff]
            %v3614 = vld [vmem:[#allocation8 + $0x2f0] sm:$0xff]
            %v3615 = vld [vmem:[#allocation8 + $0x2f8] sm:$0xff]
            %v3616 = vld [vmem:[#allocation8 + $0x300] sm:$0xff]
            %v3617 = vld [vmem:[#allocation8 + $0x308] sm:$0xff]
            %v3618 = vld [vmem:[#allocation8 + $0x310] sm:$0xff]
            %v3619 = vld [vmem:[#allocation8 + $0x318] sm:$0xff]
            %v3620 = vld [vmem:[#allocation8 + $0x320] sm:$0xff]
            %v3621 = vld [vmem:[#allocation8 + $0x328] sm:$0xff]
            %v3622 = vld [vmem:[#allocation8 + $0x330] sm:$0xff]
            %v3623 = vld [vmem:[#allocation8 + $0x338] sm:$0xff]
            %v3624 = vld [vmem:[#allocation8 + $0x340] sm:$0xff]
            %v3625 = vld [vmem:[#allocation8 + $0x348] sm:$0xff]
            %v3626 = vld [vmem:[#allocation8 + $0x350] sm:$0xff]
            %v3627 = vld [vmem:[#allocation8 + $0x358] sm:$0xff]
            %v3628 = vld [vmem:[#allocation8 + $0x360] sm:$0xff]
            %v3629 = vld [vmem:[#allocation8 + $0x368] sm:$0xff]
            %v3630 = vld [vmem:[#allocation8 + $0x370] sm:$0xff]
            %v3631 = vld [vmem:[#allocation8 + $0x378] sm:$0xff]
            %v3632 = vld [vmem:[#allocation8 + $0x380] sm:$0xff]
            %v3633 = vld [vmem:[#allocation8 + $0x388] sm:$0xff]
            %v3634 = vld [vmem:[#allocation8 + $0x390] sm:$0xff]
            %v3635 = vld [vmem:[#allocation8 + $0x398] sm:$0xff]
            %v3636 = vld [vmem:[#allocation8 + $0x3a0] sm:$0xff]
            %v3637 = vld [vmem:[#allocation8 + $0x3a8] sm:$0xff]
            %v3638 = vld [vmem:[#allocation8 + $0x3b0] sm:$0xff]
            %v3639 = vld [vmem:[#allocation8 + $0x3b8] sm:$0xff]
            %v3640 = vld [vmem:[#allocation8 + $0x3c0] sm:$0xff]
            %v3641 = vld [vmem:[#allocation8 + $0x3c8] sm:$0xff]
            %v3642 = vld [vmem:[#allocation8 + $0x3d0] sm:$0xff]
            %v3643 = vld [vmem:[#allocation8 + $0x3d8] sm:$0xff]
            %v3644 = vld [vmem:[#allocation8 + $0x3e0] sm:$0xff]
            %v3645 = vld [vmem:[#allocation8 + $0x3e8] sm:$0xff]
            %v3646 = vld [vmem:[#allocation8 + $0x3f0] sm:$0xff]
            %v3647 = vld [vmem:[#allocation8 + $0x3f8] sm:$0xff]
            %v3648 = vld [vmem:[#allocation8 + $0x400] sm:$0xff]
            %v3649 = vld [vmem:[#allocation8 + $0x408] sm:$0xff]
            %v3650 = vld [vmem:[#allocation8 + $0x410] sm:$0xff]
            %v3651 = vld [vmem:[#allocation8 + $0x418] sm:$0xff]
            %v3652 = vld [vmem:[#allocation8 + $0x420] sm:$0xff]
            %v3653 = vld [vmem:[#allocation8 + $0x428] sm:$0xff]
            %v3654 = vld [vmem:[#allocation8 + $0x430] sm:$0xff]
            %v3655 = vld [vmem:[#allocation8 + $0x438] sm:$0xff]
            %v3656 = vld [vmem:[#allocation8 + $0x440] sm:$0xff]
            %v3657 = vld [vmem:[#allocation8 + $0x448] sm:$0xff]
            %v3658 = vld [vmem:[#allocation8 + $0x450] sm:$0xff]
            %v3659 = vld [vmem:[#allocation8 + $0x458] sm:$0xff]
            %v3660 = vld [vmem:[#allocation8 + $0x460] sm:$0xff]
            %v3661 = vld [vmem:[#allocation8 + $0x468] sm:$0xff]
            %v3662 = vld [vmem:[#allocation8 + $0x470] sm:$0xff]
            %v3663 = vld [vmem:[#allocation8 + $0x478] sm:$0xff]
            %v3664 = vld [vmem:[#allocation8 + $0x480] sm:$0xff]
            %v3665 = vld [vmem:[#allocation8 + $0x488] sm:$0xff]
            %v3666 = vld [vmem:[#allocation8 + $0x490] sm:$0xff]
            %v3667 = vld [vmem:[#allocation8 + $0x498] sm:$0xff]
            %v3668 = vld [vmem:[#allocation8 + $0x4a0] sm:$0xff]
            %v3669 = vld [vmem:[#allocation8 + $0x4a8] sm:$0xff]
            %v3670 = vld [vmem:[#allocation8 + $0x4b0] sm:$0xff]
            %v3671 = vld [vmem:[#allocation8 + $0x4b8] sm:$0xff]
            %v3672 = vld [vmem:[#allocation8 + $0x4c0] sm:$0xff]
            %v3673 = vld [vmem:[#allocation8 + $0x4c8] sm:$0xff]
            %v3674 = vld [vmem:[#allocation8 + $0x4d0] sm:$0xff]
            %v3675 = vld [vmem:[#allocation8 + $0x4d8] sm:$0xff]
            %v3676 = vld [vmem:[#allocation8 + $0x4e0] sm:$0xff]
            %v3677 = vld [vmem:[#allocation8 + $0x4e8] sm:$0xff]
            %v3678 = vld [vmem:[#allocation8 + $0x4f0] sm:$0xff]
            %v3679 = vld [vmem:[#allocation8 + $0x4f8] sm:$0xff]
            %v3680 = vld [vmem:[#allocation8 + $0x500] sm:$0xff]
            %v3681 = vld [vmem:[#allocation8 + $0x508] sm:$0xff]
            %v3682 = vld [vmem:[#allocation8 + $0x510] sm:$0xff]
            %v3683 = vld [vmem:[#allocation8 + $0x518] sm:$0xff]
            %v3684 = vld [vmem:[#allocation8 + $0x520] sm:$0xff]
            %v3685 = vld [vmem:[#allocation8 + $0x528] sm:$0xff]
            %v3686 = vld [vmem:[#allocation8 + $0x530] sm:$0xff]
            %v3687 = vld [vmem:[#allocation8 + $0x538] sm:$0xff]
            %v3688 = vld [vmem:[#allocation8 + $0x540] sm:$0xff]
            %v3689 = vld [vmem:[#allocation8 + $0x548] sm:$0xff]
            %v3690 = vld [vmem:[#allocation8 + $0x550] sm:$0xff]
            %v3691 = vld [vmem:[#allocation8 + $0x558] sm:$0xff]
            %v3692 = vld [vmem:[#allocation8 + $0x560] sm:$0xff]
            %v3693 = vld [vmem:[#allocation8 + $0x568] sm:$0xff]
            %v3694 = vld [vmem:[#allocation8 + $0x570] sm:$0xff]
            %v3695 = vld [vmem:[#allocation8 + $0x578] sm:$0xff]
            %v3696 = vld [vmem:[#allocation8 + $0x580] sm:$0xff]
            %v3697 = vld [vmem:[#allocation8 + $0x588] sm:$0xff]
            %v3698 = vld [vmem:[#allocation8 + $0x590] sm:$0xff]
            %v3699 = vld [vmem:[#allocation8 + $0x598] sm:$0xff]
            %v3700 = vld [vmem:[#allocation8 + $0x5a0] sm:$0xff]
            %v3701 = vld [vmem:[#allocation8 + $0x5a8] sm:$0xff]
            %v3702 = vld [vmem:[#allocation8 + $0x5b0] sm:$0xff]
            %v3703 = vld [vmem:[#allocation8 + $0x5b8] sm:$0xff]
            %v3704 = vld [vmem:[#allocation8 + $0x5c0] sm:$0xff]
            %v3705 = vld [vmem:[#allocation8 + $0x5c8] sm:$0xff]
            %v3706 = vld [vmem:[#allocation8 + $0x5d0] sm:$0xff]
            %v3707 = vld [vmem:[#allocation8 + $0x5d8] sm:$0xff]
            %v3708 = vld [vmem:[#allocation8 + $0x5e0] sm:$0xff]
            %v3709 = vld [vmem:[#allocation8 + $0x5e8] sm:$0xff]
            %v3710 = vld [vmem:[#allocation8 + $0x5f0] sm:$0xff]
            %v3711 = vld [vmem:[#allocation8 + $0x5f8] sm:$0xff]
            %v3712 = vld [vmem:[#allocation8 + $0x600] sm:$0xff]
            %v3713 = vld [vmem:[#allocation8 + $0x608] sm:$0xff]
            %v3714 = vld [vmem:[#allocation8 + $0x610] sm:$0xff]
            %v3715 = vld [vmem:[#allocation8 + $0x618] sm:$0xff]
            %v3716 = vld [vmem:[#allocation8 + $0x620] sm:$0xff]
            %v3717 = vld [vmem:[#allocation8 + $0x628] sm:$0xff]
            %v3718 = vld [vmem:[#allocation8 + $0x630] sm:$0xff]
            %v3719 = vld [vmem:[#allocation8 + $0x638] sm:$0xff]
            %v3720 = vld [vmem:[#allocation8 + $0x640] sm:$0xff]
            %v3721 = vld [vmem:[#allocation8 + $0x648] sm:$0xff]
            %v3722 = vld [vmem:[#allocation8 + $0x650] sm:$0xff]
            %v3723 = vld [vmem:[#allocation8 + $0x658] sm:$0xff]
            %v3724 = vld [vmem:[#allocation8 + $0x660] sm:$0xff]
            %v3725 = vld [vmem:[#allocation8 + $0x668] sm:$0xff]
            %v3726 = vld [vmem:[#allocation8 + $0x670] sm:$0xff]
            %v3727 = vld [vmem:[#allocation8 + $0x678] sm:$0xff]
            %v3728 = vld [vmem:[#allocation8 + $0x680] sm:$0xff]
            %v3729 = vld [vmem:[#allocation8 + $0x688] sm:$0xff]
            %v3730 = vld [vmem:[#allocation8 + $0x690] sm:$0xff]
            %v3731 = vld [vmem:[#allocation8 + $0x698] sm:$0xff]
            %v3732 = vld [vmem:[#allocation8 + $0x6a0] sm:$0xff]
            %v3733 = vld [vmem:[#allocation8 + $0x6a8] sm:$0xff]
            %v3734 = vld [vmem:[#allocation8 + $0x6b0] sm:$0xff]
            %v3735 = vld [vmem:[#allocation8 + $0x6b8] sm:$0xff]
            %v3736 = vld [vmem:[#allocation8 + $0x6c0] sm:$0xff]
            %v3737 = vld [vmem:[#allocation8 + $0x6c8] sm:$0xff]
            %v3738 = vld [vmem:[#allocation8 + $0x6d0] sm:$0xff]
            %v3739 = vld [vmem:[#allocation8 + $0x6d8] sm:$0xff]
            %v3740 = vld [vmem:[#allocation8 + $0x6e0] sm:$0xff]
            %v3741 = vld [vmem:[#allocation8 + $0x6e8] sm:$0xff]
            %v3742 = vld [vmem:[#allocation8 + $0x6f0] sm:$0xff]
            %v3743 = vld [vmem:[#allocation8 + $0x6f8] sm:$0xff]
            %v3744 = vld [vmem:[#allocation8 + $0x700] sm:$0xff]
            %v3745 = vld [vmem:[#allocation8 + $0x708] sm:$0xff]
            %v3746 = vld [vmem:[#allocation8 + $0x710] sm:$0xff]
            %v3747 = vld [vmem:[#allocation8 + $0x718] sm:$0xff]
            %v3748 = vld [vmem:[#allocation8 + $0x720] sm:$0xff]
            %v3749 = vld [vmem:[#allocation8 + $0x728] sm:$0xff]
            %v3750 = vld [vmem:[#allocation8 + $0x730] sm:$0xff]
            %v3751 = vld [vmem:[#allocation8 + $0x738] sm:$0xff]
            %v3752 = vld [vmem:[#allocation8 + $0x740] sm:$0xff]
            %v3753 = vld [vmem:[#allocation8 + $0x748] sm:$0xff]
            %v3754 = vld [vmem:[#allocation8 + $0x750] sm:$0xff]
            %v3755 = vld [vmem:[#allocation8 + $0x758] sm:$0xff]
            %v3756 = vld [vmem:[#allocation8 + $0x760] sm:$0xff]
            %v3757 = vld [vmem:[#allocation8 + $0x768] sm:$0xff]
            %v3758 = vld [vmem:[#allocation8 + $0x770] sm:$0xff]
            %v3759 = vld [vmem:[#allocation8 + $0x778] sm:$0xff]
            %v3760 = vld [vmem:[#allocation8 + $0x780] sm:$0xff]
            %v3761 = vld [vmem:[#allocation8 + $0x788] sm:$0xff]
            %v3762 = vld [vmem:[#allocation8 + $0x790] sm:$0xff]
            %v3763 = vld [vmem:[#allocation8 + $0x798] sm:$0xff]
            %v3764 = vld [vmem:[#allocation8 + $0x7a0] sm:$0xff]
            %v3765 = vld [vmem:[#allocation8 + $0x7a8] sm:$0xff]
            %v3766 = vld [vmem:[#allocation8 + $0x7b0] sm:$0xff]
            %v3767 = vld [vmem:[#allocation8 + $0x7b8] sm:$0xff]
            %v3768 = vld [vmem:[#allocation8 + $0x7c0] sm:$0xff]
            %v3769 = vld [vmem:[#allocation8 + $0x7c8] sm:$0xff]
            %v3770 = vld [vmem:[#allocation8 + $0x7d0] sm:$0xff]
            %v3771 = vld [vmem:[#allocation8 + $0x7d8] sm:$0xff]
            %v3772 = vld [vmem:[#allocation8 + $0x7e0] sm:$0xff]
            %v3773 = vld [vmem:[#allocation8 + $0x7e8] sm:$0xff]
            %v3774 = vld [vmem:[#allocation8 + $0x7f0] sm:$0xff]
            %v3775 = vld [vmem:[#allocation8 + $0x7f8] sm:$0xff]
            %v3776 = vld [vmem:[%s8] sm:$0xf]
            %v4033 = vunpack.c.l.b16 %v3520
            %v4034 = vunpack.c.h.b16 %v3520
            %v4035 = vunpack.c.l.b16 %v3521
            %v4036 = vunpack.c.h.b16 %v3521
            %v4037 = vunpack.c.l.b16 %v3522
            %v4038 = vunpack.c.h.b16 %v3522
            %v4039 = vunpack.c.l.b16 %v3523
            %v4040 = vunpack.c.h.b16 %v3523
            %v4041 = vunpack.c.l.b16 %v3524
            %v4042 = vunpack.c.h.b16 %v3524
            %v4043 = vunpack.c.l.b16 %v3525
            %v4044 = vunpack.c.h.b16 %v3525
            %v4045 = vunpack.c.l.b16 %v3526
            %v4046 = vunpack.c.h.b16 %v3526
            %v4047 = vunpack.c.l.b16 %v3527
            %v4048 = vunpack.c.h.b16 %v3527
            %v4049 = vunpack.c.l.b16 %v3528
            %v4050 = vunpack.c.h.b16 %v3528
            %v4051 = vunpack.c.l.b16 %v3529
            %v4052 = vunpack.c.h.b16 %v3529
            %v4053 = vunpack.c.l.b16 %v3530
            %v4054 = vunpack.c.h.b16 %v3530
            %v4055 = vunpack.c.l.b16 %v3531
            %v4056 = vunpack.c.h.b16 %v3531
            %v4057 = vunpack.c.l.b16 %v3532
            %v4058 = vunpack.c.h.b16 %v3532
            %v4059 = vunpack.c.l.b16 %v3533
            %v4060 = vunpack.c.h.b16 %v3533
            %v4061 = vunpack.c.l.b16 %v3534
            %v4062 = vunpack.c.h.b16 %v3534
            %v4063 = vunpack.c.l.b16 %v3535
            %v4064 = vunpack.c.h.b16 %v3535
            %v4065 = vunpack.c.l.b16 %v3536
            %v4066 = vunpack.c.h.b16 %v3536
            %v4067 = vunpack.c.l.b16 %v3537
            %v4068 = vunpack.c.h.b16 %v3537
            %v4069 = vunpack.c.l.b16 %v3538
            %v4070 = vunpack.c.h.b16 %v3538
            %v4071 = vunpack.c.l.b16 %v3539
            %v4072 = vunpack.c.h.b16 %v3539
            %v4073 = vunpack.c.l.b16 %v3540
            %v4074 = vunpack.c.h.b16 %v3540
            %v4075 = vunpack.c.l.b16 %v3541
            %v4076 = vunpack.c.h.b16 %v3541
            %v4077 = vunpack.c.l.b16 %v3542
            %v4078 = vunpack.c.h.b16 %v3542
            %v4079 = vunpack.c.l.b16 %v3543
            %v4080 = vunpack.c.h.b16 %v3543
            %v4081 = vunpack.c.l.b16 %v3544
            %v4082 = vunpack.c.h.b16 %v3544
            %v4083 = vunpack.c.l.b16 %v3545
            %v4084 = vunpack.c.h.b16 %v3545
            %v4085 = vunpack.c.l.b16 %v3546
            %v4086 = vunpack.c.h.b16 %v3546
            %v4087 = vunpack.c.l.b16 %v3547
            %v4088 = vunpack.c.h.b16 %v3547
            %v4089 = vunpack.c.l.b16 %v3548
            %v4090 = vunpack.c.h.b16 %v3548
            %v4091 = vunpack.c.l.b16 %v3549
            %v4092 = vunpack.c.h.b16 %v3549
            %v4093 = vunpack.c.l.b16 %v3550
            %v4094 = vunpack.c.h.b16 %v3550
            %v4095 = vunpack.c.l.b16 %v3551
            %v4096 = vunpack.c.h.b16 %v3551
            %v4097 = vunpack.c.l.b16 %v3552
            %v4098 = vunpack.c.h.b16 %v3552
            %v4099 = vunpack.c.l.b16 %v3553
            %v4100 = vunpack.c.h.b16 %v3553
            %v4101 = vunpack.c.l.b16 %v3554
            %v4102 = vunpack.c.h.b16 %v3554
            %v4103 = vunpack.c.l.b16 %v3555
            %v4104 = vunpack.c.h.b16 %v3555
            %v4105 = vunpack.c.l.b16 %v3556
            %v4106 = vunpack.c.h.b16 %v3556
            %v4107 = vunpack.c.l.b16 %v3557
            %v4108 = vunpack.c.h.b16 %v3557
            %v4109 = vunpack.c.l.b16 %v3558
            %v4110 = vunpack.c.h.b16 %v3558
            %v4111 = vunpack.c.l.b16 %v3559
            %v4112 = vunpack.c.h.b16 %v3559
            %v4113 = vunpack.c.l.b16 %v3560
            %v4114 = vunpack.c.h.b16 %v3560
            %v4115 = vunpack.c.l.b16 %v3561
            %v4116 = vunpack.c.h.b16 %v3561
            %v4117 = vunpack.c.l.b16 %v3562
            %v4118 = vunpack.c.h.b16 %v3562
            %v4119 = vunpack.c.l.b16 %v3563
            %v4120 = vunpack.c.h.b16 %v3563
            %v4121 = vunpack.c.l.b16 %v3564
            %v4122 = vunpack.c.h.b16 %v3564
            %v4123 = vunpack.c.l.b16 %v3565
            %v4124 = vunpack.c.h.b16 %v3565
            %v4125 = vunpack.c.l.b16 %v3566
            %v4126 = vunpack.c.h.b16 %v3566
            %v4127 = vunpack.c.l.b16 %v3567
            %v4128 = vunpack.c.h.b16 %v3567
            %v4129 = vunpack.c.l.b16 %v3568
            %v4130 = vunpack.c.h.b16 %v3568
            %v4131 = vunpack.c.l.b16 %v3569
            %v4132 = vunpack.c.h.b16 %v3569
            %v4133 = vunpack.c.l.b16 %v3570
            %v4134 = vunpack.c.h.b16 %v3570
            %v4135 = vunpack.c.l.b16 %v3571
            %v4136 = vunpack.c.h.b16 %v3571
            %v4137 = vunpack.c.l.b16 %v3572
            %v4138 = vunpack.c.h.b16 %v3572
            %v4139 = vunpack.c.l.b16 %v3573
            %v4140 = vunpack.c.h.b16 %v3573
            %v4141 = vunpack.c.l.b16 %v3574
            %v4142 = vunpack.c.h.b16 %v3574
            %v4143 = vunpack.c.l.b16 %v3575
            %v4144 = vunpack.c.h.b16 %v3575
            %v4145 = vunpack.c.l.b16 %v3576
            %v4146 = vunpack.c.h.b16 %v3576
            %v4147 = vunpack.c.l.b16 %v3577
            %v4148 = vunpack.c.h.b16 %v3577
            %v4149 = vunpack.c.l.b16 %v3578
            %v4150 = vunpack.c.h.b16 %v3578
            %v4151 = vunpack.c.l.b16 %v3579
            %v4152 = vunpack.c.h.b16 %v3579
            %v4153 = vunpack.c.l.b16 %v3580
            %v4154 = vunpack.c.h.b16 %v3580
            %v4155 = vunpack.c.l.b16 %v3581
            %v4156 = vunpack.c.h.b16 %v3581
            %v4157 = vunpack.c.l.b16 %v3582
            %v4158 = vunpack.c.h.b16 %v3582
            %v4159 = vunpack.c.l.b16 %v3583
            %v4160 = vunpack.c.h.b16 %v3583
            %v4161 = vunpack.c.l.b16 %v3584
            %v4162 = vunpack.c.h.b16 %v3584
            %v4163 = vunpack.c.l.b16 %v3585
            %v4164 = vunpack.c.h.b16 %v3585
            %v4165 = vunpack.c.l.b16 %v3586
            %v4166 = vunpack.c.h.b16 %v3586
            %v4167 = vunpack.c.l.b16 %v3587
            %v4168 = vunpack.c.h.b16 %v3587
            %v4169 = vunpack.c.l.b16 %v3588
            %v4170 = vunpack.c.h.b16 %v3588
            %v4171 = vunpack.c.l.b16 %v3589
            %v4172 = vunpack.c.h.b16 %v3589
            %v4173 = vunpack.c.l.b16 %v3590
            %v4174 = vunpack.c.h.b16 %v3590
            %v4175 = vunpack.c.l.b16 %v3591
            %v4176 = vunpack.c.h.b16 %v3591
            %v4177 = vunpack.c.l.b16 %v3592
            %v4178 = vunpack.c.h.b16 %v3592
            %v4179 = vunpack.c.l.b16 %v3593
            %v4180 = vunpack.c.h.b16 %v3593
            %v4181 = vunpack.c.l.b16 %v3594
            %v4182 = vunpack.c.h.b16 %v3594
            %v4183 = vunpack.c.l.b16 %v3595
            %v4184 = vunpack.c.h.b16 %v3595
            %v4185 = vunpack.c.l.b16 %v3596
            %v4186 = vunpack.c.h.b16 %v3596
            %v4187 = vunpack.c.l.b16 %v3597
            %v4188 = vunpack.c.h.b16 %v3597
            %v4189 = vunpack.c.l.b16 %v3598
            %v4190 = vunpack.c.h.b16 %v3598
            %v4191 = vunpack.c.l.b16 %v3599
            %v4192 = vunpack.c.h.b16 %v3599
            %v4193 = vunpack.c.l.b16 %v3600
            %v4194 = vunpack.c.h.b16 %v3600
            %v4195 = vunpack.c.l.b16 %v3601
            %v4196 = vunpack.c.h.b16 %v3601
            %v4197 = vunpack.c.l.b16 %v3602
            %v4198 = vunpack.c.h.b16 %v3602
            %v4199 = vunpack.c.l.b16 %v3603
            %v4200 = vunpack.c.h.b16 %v3603
            %v4201 = vunpack.c.l.b16 %v3604
            %v4202 = vunpack.c.h.b16 %v3604
            %v4203 = vunpack.c.l.b16 %v3605
            %v4204 = vunpack.c.h.b16 %v3605
            %v4205 = vunpack.c.l.b16 %v3606
            %v4206 = vunpack.c.h.b16 %v3606
            %v4207 = vunpack.c.l.b16 %v3607
            %v4208 = vunpack.c.h.b16 %v3607
            %v4209 = vunpack.c.l.b16 %v3608
            %v4210 = vunpack.c.h.b16 %v3608
            %v4211 = vunpack.c.l.b16 %v3609
            %v4212 = vunpack.c.h.b16 %v3609
            %v4213 = vunpack.c.l.b16 %v3610
            %v4214 = vunpack.c.h.b16 %v3610
            %v4215 = vunpack.c.l.b16 %v3611
            %v4216 = vunpack.c.h.b16 %v3611
            %v4217 = vunpack.c.l.b16 %v3612
            %v4218 = vunpack.c.h.b16 %v3612
            %v4219 = vunpack.c.l.b16 %v3613
            %v4220 = vunpack.c.h.b16 %v3613
            %v4221 = vunpack.c.l.b16 %v3614
            %v4222 = vunpack.c.h.b16 %v3614
            %v4223 = vunpack.c.l.b16 %v3615
            %v4224 = vunpack.c.h.b16 %v3615
            %v4225 = vunpack.c.l.b16 %v3616
            %v4226 = vunpack.c.h.b16 %v3616
            %v4227 = vunpack.c.l.b16 %v3617
            %v4228 = vunpack.c.h.b16 %v3617
            %v4229 = vunpack.c.l.b16 %v3618
            %v4230 = vunpack.c.h.b16 %v3618
            %v4231 = vunpack.c.l.b16 %v3619
            %v4232 = vunpack.c.h.b16 %v3619
            %v4233 = vunpack.c.l.b16 %v3620
            %v4234 = vunpack.c.h.b16 %v3620
            %v4235 = vunpack.c.l.b16 %v3621
            %v4236 = vunpack.c.h.b16 %v3621
            %v4237 = vunpack.c.l.b16 %v3622
            %v4238 = vunpack.c.h.b16 %v3622
            %v4239 = vunpack.c.l.b16 %v3623
            %v4240 = vunpack.c.h.b16 %v3623
            %v4241 = vunpack.c.l.b16 %v3624
            %v4242 = vunpack.c.h.b16 %v3624
            %v4243 = vunpack.c.l.b16 %v3625
            %v4244 = vunpack.c.h.b16 %v3625
            %v4245 = vunpack.c.l.b16 %v3626
            %v4246 = vunpack.c.h.b16 %v3626
            %v4247 = vunpack.c.l.b16 %v3627
            %v4248 = vunpack.c.h.b16 %v3627
            %v4249 = vunpack.c.l.b16 %v3628
            %v4250 = vunpack.c.h.b16 %v3628
            %v4251 = vunpack.c.l.b16 %v3629
            %v4252 = vunpack.c.h.b16 %v3629
            %v4253 = vunpack.c.l.b16 %v3630
            %v4254 = vunpack.c.h.b16 %v3630
            %v4255 = vunpack.c.l.b16 %v3631
            %v4256 = vunpack.c.h.b16 %v3631
            %v4257 = vunpack.c.l.b16 %v3632
            %v4258 = vunpack.c.h.b16 %v3632
            %v4259 = vunpack.c.l.b16 %v3633
            %v4260 = vunpack.c.h.b16 %v3633
            %v4261 = vunpack.c.l.b16 %v3634
            %v4262 = vunpack.c.h.b16 %v3634
            %v4263 = vunpack.c.l.b16 %v3635
            %v4264 = vunpack.c.h.b16 %v3635
            %v4265 = vunpack.c.l.b16 %v3636
            %v4266 = vunpack.c.h.b16 %v3636
            %v4267 = vunpack.c.l.b16 %v3637
            %v4268 = vunpack.c.h.b16 %v3637
            %v4269 = vunpack.c.l.b16 %v3638
            %v4270 = vunpack.c.h.b16 %v3638
            %v4271 = vunpack.c.l.b16 %v3639
            %v4272 = vunpack.c.h.b16 %v3639
            %v4273 = vunpack.c.l.b16 %v3640
            %v4274 = vunpack.c.h.b16 %v3640
            %v4275 = vunpack.c.l.b16 %v3641
            %v4276 = vunpack.c.h.b16 %v3641
            %v4277 = vunpack.c.l.b16 %v3642
            %v4278 = vunpack.c.h.b16 %v3642
            %v4279 = vunpack.c.l.b16 %v3643
            %v4280 = vunpack.c.h.b16 %v3643
            %v4281 = vunpack.c.l.b16 %v3644
            %v4282 = vunpack.c.h.b16 %v3644
            %v4283 = vunpack.c.l.b16 %v3645
            %v4284 = vunpack.c.h.b16 %v3645
            %v4285 = vunpack.c.l.b16 %v3646
            %v4286 = vunpack.c.h.b16 %v3646
            %v4287 = vunpack.c.l.b16 %v3647
            %v4288 = vunpack.c.h.b16 %v3647
            %v4289 = vunpack.c.l.b16 %v3648
            %v4290 = vunpack.c.h.b16 %v3648
            %v4291 = vunpack.c.l.b16 %v3649
            %v4292 = vunpack.c.h.b16 %v3649
            %v4293 = vunpack.c.l.b16 %v3650
            %v4294 = vunpack.c.h.b16 %v3650
            %v4295 = vunpack.c.l.b16 %v3651
            %v4296 = vunpack.c.h.b16 %v3651
            %v4297 = vunpack.c.l.b16 %v3652
            %v4298 = vunpack.c.h.b16 %v3652
            %v4299 = vunpack.c.l.b16 %v3653
            %v4300 = vunpack.c.h.b16 %v3653
            %v4301 = vunpack.c.l.b16 %v3654
            %v4302 = vunpack.c.h.b16 %v3654
            %v4303 = vunpack.c.l.b16 %v3655
            %v4304 = vunpack.c.h.b16 %v3655
            %v4305 = vunpack.c.l.b16 %v3656
            %v4306 = vunpack.c.h.b16 %v3656
            %v4307 = vunpack.c.l.b16 %v3657
            %v4308 = vunpack.c.h.b16 %v3657
            %v4309 = vunpack.c.l.b16 %v3658
            %v4310 = vunpack.c.h.b16 %v3658
            %v4311 = vunpack.c.l.b16 %v3659
            %v4312 = vunpack.c.h.b16 %v3659
            %v4313 = vunpack.c.l.b16 %v3660
            %v4314 = vunpack.c.h.b16 %v3660
            %v4315 = vunpack.c.l.b16 %v3661
            %v4316 = vunpack.c.h.b16 %v3661
            %v4317 = vunpack.c.l.b16 %v3662
            %v4318 = vunpack.c.h.b16 %v3662
            %v4319 = vunpack.c.l.b16 %v3663
            %v4320 = vunpack.c.h.b16 %v3663
            %v4321 = vunpack.c.l.b16 %v3664
            %v4322 = vunpack.c.h.b16 %v3664
            %v4323 = vunpack.c.l.b16 %v3665
            %v4324 = vunpack.c.h.b16 %v3665
            %v4325 = vunpack.c.l.b16 %v3666
            %v4326 = vunpack.c.h.b16 %v3666
            %v4327 = vunpack.c.l.b16 %v3667
            %v4328 = vunpack.c.h.b16 %v3667
            %v4329 = vunpack.c.l.b16 %v3668
            %v4330 = vunpack.c.h.b16 %v3668
            %v4331 = vunpack.c.l.b16 %v3669
            %v4332 = vunpack.c.h.b16 %v3669
            %v4333 = vunpack.c.l.b16 %v3670
            %v4334 = vunpack.c.h.b16 %v3670
            %v4335 = vunpack.c.l.b16 %v3671
            %v4336 = vunpack.c.h.b16 %v3671
            %v4337 = vunpack.c.l.b16 %v3672
            %v4338 = vunpack.c.h.b16 %v3672
            %v4339 = vunpack.c.l.b16 %v3673
            %v4340 = vunpack.c.h.b16 %v3673
            %v4341 = vunpack.c.l.b16 %v3674
            %v4342 = vunpack.c.h.b16 %v3674
            %v4343 = vunpack.c.l.b16 %v3675
            %v4344 = vunpack.c.h.b16 %v3675
            %v4345 = vunpack.c.l.b16 %v3676
            %v4346 = vunpack.c.h.b16 %v3676
            %v4347 = vunpack.c.l.b16 %v3677
            %v4348 = vunpack.c.h.b16 %v3677
            %v4349 = vunpack.c.l.b16 %v3678
            %v4350 = vunpack.c.h.b16 %v3678
            %v4351 = vunpack.c.l.b16 %v3679
            %v4352 = vunpack.c.h.b16 %v3679
            %v4353 = vunpack.c.l.b16 %v3680
            %v4354 = vunpack.c.h.b16 %v3680
            %v4355 = vunpack.c.l.b16 %v3681
            %v4356 = vunpack.c.h.b16 %v3681
            %v4357 = vunpack.c.l.b16 %v3682
            %v4358 = vunpack.c.h.b16 %v3682
            %v4359 = vunpack.c.l.b16 %v3683
            %v4360 = vunpack.c.h.b16 %v3683
            %v4361 = vunpack.c.l.b16 %v3684
            %v4362 = vunpack.c.h.b16 %v3684
            %v4363 = vunpack.c.l.b16 %v3685
            %v4364 = vunpack.c.h.b16 %v3685
            %v4365 = vunpack.c.l.b16 %v3686
            %v4366 = vunpack.c.h.b16 %v3686
            %v4367 = vunpack.c.l.b16 %v3687
            %v4368 = vunpack.c.h.b16 %v3687
            %v4369 = vunpack.c.l.b16 %v3688
            %v4370 = vunpack.c.h.b16 %v3688
            %v4371 = vunpack.c.l.b16 %v3689
            %v4372 = vunpack.c.h.b16 %v3689
            %v4373 = vunpack.c.l.b16 %v3690
            %v4374 = vunpack.c.h.b16 %v3690
            %v4375 = vunpack.c.l.b16 %v3691
            %v4376 = vunpack.c.h.b16 %v3691
            %v4377 = vunpack.c.l.b16 %v3692
            %v4378 = vunpack.c.h.b16 %v3692
            %v4379 = vunpack.c.l.b16 %v3693
            %v4380 = vunpack.c.h.b16 %v3693
            %v4381 = vunpack.c.l.b16 %v3694
            %v4382 = vunpack.c.h.b16 %v3694
            %v4383 = vunpack.c.l.b16 %v3695
            %v4384 = vunpack.c.h.b16 %v3695
            %v4385 = vunpack.c.l.b16 %v3696
            %v4386 = vunpack.c.h.b16 %v3696
            %v4387 = vunpack.c.l.b16 %v3697
            %v4388 = vunpack.c.h.b16 %v3697
            %v4389 = vunpack.c.l.b16 %v3698
            %v4390 = vunpack.c.h.b16 %v3698
            %v4391 = vunpack.c.l.b16 %v3699
            %v4392 = vunpack.c.h.b16 %v3699
            %v4393 = vunpack.c.l.b16 %v3700
            %v4394 = vunpack.c.h.b16 %v3700
            %v4395 = vunpack.c.l.b16 %v3701
            %v4396 = vunpack.c.h.b16 %v3701
            %v4397 = vunpack.c.l.b16 %v3702
            %v4398 = vunpack.c.h.b16 %v3702
            %v4399 = vunpack.c.l.b16 %v3703
            %v4400 = vunpack.c.h.b16 %v3703
            %v4401 = vunpack.c.l.b16 %v3704
            %v4402 = vunpack.c.h.b16 %v3704
            %v4403 = vunpack.c.l.b16 %v3705
            %v4404 = vunpack.c.h.b16 %v3705
            %v4405 = vunpack.c.l.b16 %v3706
            %v4406 = vunpack.c.h.b16 %v3706
            %v4407 = vunpack.c.l.b16 %v3707
            %v4408 = vunpack.c.h.b16 %v3707
            %v4409 = vunpack.c.l.b16 %v3708
            %v4410 = vunpack.c.h.b16 %v3708
            %v4411 = vunpack.c.l.b16 %v3709
            %v4412 = vunpack.c.h.b16 %v3709
            %v4413 = vunpack.c.l.b16 %v3710
            %v4414 = vunpack.c.h.b16 %v3710
            %v4415 = vunpack.c.l.b16 %v3711
            %v4416 = vunpack.c.h.b16 %v3711
            %v4417 = vunpack.c.l.b16 %v3712
            %v4418 = vunpack.c.h.b16 %v3712
            %v4419 = vunpack.c.l.b16 %v3713
            %v4420 = vunpack.c.h.b16 %v3713
            %v4421 = vunpack.c.l.b16 %v3714
            %v4422 = vunpack.c.h.b16 %v3714
            %v4423 = vunpack.c.l.b16 %v3715
            %v4424 = vunpack.c.h.b16 %v3715
            %v4425 = vunpack.c.l.b16 %v3716
            %v4426 = vunpack.c.h.b16 %v3716
            %v4427 = vunpack.c.l.b16 %v3717
            %v4428 = vunpack.c.h.b16 %v3717
            %v4429 = vunpack.c.l.b16 %v3718
            %v4430 = vunpack.c.h.b16 %v3718
            %v4431 = vunpack.c.l.b16 %v3719
            %v4432 = vunpack.c.h.b16 %v3719
            %v4433 = vunpack.c.l.b16 %v3720
            %v4434 = vunpack.c.h.b16 %v3720
            %v4435 = vunpack.c.l.b16 %v3721
            %v4436 = vunpack.c.h.b16 %v3721
            %v4437 = vunpack.c.l.b16 %v3722
            %v4438 = vunpack.c.h.b16 %v3722
            %v4439 = vunpack.c.l.b16 %v3723
            %v4440 = vunpack.c.h.b16 %v3723
            %v4441 = vunpack.c.l.b16 %v3724
            %v4442 = vunpack.c.h.b16 %v3724
            %v4443 = vunpack.c.l.b16 %v3725
            %v4444 = vunpack.c.h.b16 %v3725
            %v4445 = vunpack.c.l.b16 %v3726
            %v4446 = vunpack.c.h.b16 %v3726
            %v4447 = vunpack.c.l.b16 %v3727
            %v4448 = vunpack.c.h.b16 %v3727
            %v4449 = vunpack.c.l.b16 %v3728
            %v4450 = vunpack.c.h.b16 %v3728
            %v4451 = vunpack.c.l.b16 %v3729
            %v4452 = vunpack.c.h.b16 %v3729
            %v4453 = vunpack.c.l.b16 %v3730
            %v4454 = vunpack.c.h.b16 %v3730
            %v4455 = vunpack.c.l.b16 %v3731
            %v4456 = vunpack.c.h.b16 %v3731
            %v4457 = vunpack.c.l.b16 %v3732
            %v4458 = vunpack.c.h.b16 %v3732
            %v4459 = vunpack.c.l.b16 %v3733
            %v4460 = vunpack.c.h.b16 %v3733
            %v4461 = vunpack.c.l.b16 %v3734
            %v4462 = vunpack.c.h.b16 %v3734
            %v4463 = vunpack.c.l.b16 %v3735
            %v4464 = vunpack.c.h.b16 %v3735
            %v4465 = vunpack.c.l.b16 %v3736
            %v4466 = vunpack.c.h.b16 %v3736
            %v4467 = vunpack.c.l.b16 %v3737
            %v4468 = vunpack.c.h.b16 %v3737
            %v4469 = vunpack.c.l.b16 %v3738
            %v4470 = vunpack.c.h.b16 %v3738
            %v4471 = vunpack.c.l.b16 %v3739
            %v4472 = vunpack.c.h.b16 %v3739
            %v4473 = vunpack.c.l.b16 %v3740
            %v4474 = vunpack.c.h.b16 %v3740
            %v4475 = vunpack.c.l.b16 %v3741
            %v4476 = vunpack.c.h.b16 %v3741
            %v4477 = vunpack.c.l.b16 %v3742
            %v4478 = vunpack.c.h.b16 %v3742
            %v4479 = vunpack.c.l.b16 %v3743
            %v4480 = vunpack.c.h.b16 %v3743
            %v4481 = vunpack.c.l.b16 %v3744
            %v4482 = vunpack.c.h.b16 %v3744
            %v4483 = vunpack.c.l.b16 %v3745
            %v4484 = vunpack.c.h.b16 %v3745
            %v4485 = vunpack.c.l.b16 %v3746
            %v4486 = vunpack.c.h.b16 %v3746
            %v4487 = vunpack.c.l.b16 %v3747
            %v4488 = vunpack.c.h.b16 %v3747
            %v4489 = vunpack.c.l.b16 %v3748
            %v4490 = vunpack.c.h.b16 %v3748
            %v4491 = vunpack.c.l.b16 %v3749
            %v4492 = vunpack.c.h.b16 %v3749
            %v4493 = vunpack.c.l.b16 %v3750
            %v4494 = vunpack.c.h.b16 %v3750
            %v4495 = vunpack.c.l.b16 %v3751
            %v4496 = vunpack.c.h.b16 %v3751
            %v4497 = vunpack.c.l.b16 %v3752
            %v4498 = vunpack.c.h.b16 %v3752
            %v4499 = vunpack.c.l.b16 %v3753
            %v4500 = vunpack.c.h.b16 %v3753
            %v4501 = vunpack.c.l.b16 %v3754
            %v4502 = vunpack.c.h.b16 %v3754
            %v4503 = vunpack.c.l.b16 %v3755
            %v4504 = vunpack.c.h.b16 %v3755
            %v4505 = vunpack.c.l.b16 %v3756
            %v4506 = vunpack.c.h.b16 %v3756
            %v4507 = vunpack.c.l.b16 %v3757
            %v4508 = vunpack.c.h.b16 %v3757
            %v4509 = vunpack.c.l.b16 %v3758
            %v4510 = vunpack.c.h.b16 %v3758
            %v4511 = vunpack.c.l.b16 %v3759
            %v4512 = vunpack.c.h.b16 %v3759
            %v4513 = vunpack.c.l.b16 %v3760
            %v4514 = vunpack.c.h.b16 %v3760
            %v4515 = vunpack.c.l.b16 %v3761
            %v4516 = vunpack.c.h.b16 %v3761
            %v4517 = vunpack.c.l.b16 %v3762
            %v4518 = vunpack.c.h.b16 %v3762
            %v4519 = vunpack.c.l.b16 %v3763
            %v4520 = vunpack.c.h.b16 %v3763
            %v4521 = vunpack.c.l.b16 %v3764
            %v4522 = vunpack.c.h.b16 %v3764
            %v4523 = vunpack.c.l.b16 %v3765
            %v4524 = vunpack.c.h.b16 %v3765
            %v4525 = vunpack.c.l.b16 %v3766
            %v4526 = vunpack.c.h.b16 %v3766
            %v4527 = vunpack.c.l.b16 %v3767
            %v4528 = vunpack.c.h.b16 %v3767
            %v4529 = vunpack.c.l.b16 %v3768
            %v4530 = vunpack.c.h.b16 %v3768
            %v4531 = vunpack.c.l.b16 %v3769
            %v4532 = vunpack.c.h.b16 %v3769
            %v4533 = vunpack.c.l.b16 %v3770
            %v4534 = vunpack.c.h.b16 %v3770
            %v4535 = vunpack.c.l.b16 %v3771
            %v4536 = vunpack.c.h.b16 %v3771
            %v4537 = vunpack.c.l.b16 %v3772
            %v4538 = vunpack.c.h.b16 %v3772
            %v4539 = vunpack.c.l.b16 %v3773
            %v4540 = vunpack.c.h.b16 %v3773
            %v4541 = vunpack.c.l.b16 %v3774
            %v4542 = vunpack.c.h.b16 %v3774
            %v4543 = vunpack.c.l.b16 %v3775
            %v4544 = vunpack.c.h.b16 %v3775
            %v4545 = vpack.c.b16 %v4037, %v4033
            %v4546 = vpack.c.b16 %v4038, %v4034
            %v4547 = vpack.c.b16 %v4039, %v4035
            %v4548 = vpack.c.b16 %v4040, %v4036
            %v4549 = vpack.c.b16 %v4045, %v4041
            %v4550 = vpack.c.b16 %v4046, %v4042
            %v4551 = vpack.c.b16 %v4047, %v4043
            %v4552 = vpack.c.b16 %v4048, %v4044
            %v4553 = vpack.c.b16 %v4053, %v4049
            %v4554 = vpack.c.b16 %v4054, %v4050
            %v4555 = vpack.c.b16 %v4055, %v4051
            %v4556 = vpack.c.b16 %v4056, %v4052
            %v4557 = vpack.c.b16 %v4061, %v4057
            %v4558 = vpack.c.b16 %v4062, %v4058
            %v4559 = vpack.c.b16 %v4063, %v4059
            %v4560 = vpack.c.b16 %v4064, %v4060
            %v4561 = vpack.c.b16 %v4069, %v4065
            %v4562 = vpack.c.b16 %v4070, %v4066
            %v4563 = vpack.c.b16 %v4071, %v4067
            %v4564 = vpack.c.b16 %v4072, %v4068
            %v4565 = vpack.c.b16 %v4077, %v4073
            %v4566 = vpack.c.b16 %v4078, %v4074
            %v4567 = vpack.c.b16 %v4079, %v4075
            %v4568 = vpack.c.b16 %v4080, %v4076
            %v4569 = vpack.c.b16 %v4085, %v4081
            %v4570 = vpack.c.b16 %v4086, %v4082
            %v4571 = vpack.c.b16 %v4087, %v4083
            %v4572 = vpack.c.b16 %v4088, %v4084
            %v4573 = vpack.c.b16 %v4093, %v4089
            %v4574 = vpack.c.b16 %v4094, %v4090
            %v4575 = vpack.c.b16 %v4095, %v4091
            %v4576 = vpack.c.b16 %v4096, %v4092
            %v4577 = vpack.c.b16 %v4101, %v4097
            %v4578 = vpack.c.b16 %v4102, %v4098
            %v4579 = vpack.c.b16 %v4103, %v4099
            %v4580 = vpack.c.b16 %v4104, %v4100
            %v4581 = vpack.c.b16 %v4109, %v4105
            %v4582 = vpack.c.b16 %v4110, %v4106
            %v4583 = vpack.c.b16 %v4111, %v4107
            %v4584 = vpack.c.b16 %v4112, %v4108
            %v4585 = vpack.c.b16 %v4117, %v4113
            %v4586 = vpack.c.b16 %v4118, %v4114
            %v4587 = vpack.c.b16 %v4119, %v4115
            %v4588 = vpack.c.b16 %v4120, %v4116
            %v4589 = vpack.c.b16 %v4125, %v4121
            %v4590 = vpack.c.b16 %v4126, %v4122
            %v4591 = vpack.c.b16 %v4127, %v4123
            %v4592 = vpack.c.b16 %v4128, %v4124
            %v4593 = vpack.c.b16 %v4133, %v4129
            %v4594 = vpack.c.b16 %v4134, %v4130
            %v4595 = vpack.c.b16 %v4135, %v4131
            %v4596 = vpack.c.b16 %v4136, %v4132
            %v4597 = vpack.c.b16 %v4141, %v4137
            %v4598 = vpack.c.b16 %v4142, %v4138
            %v4599 = vpack.c.b16 %v4143, %v4139
            %v4600 = vpack.c.b16 %v4144, %v4140
            %v4601 = vpack.c.b16 %v4149, %v4145
            %v4602 = vpack.c.b16 %v4150, %v4146
            %v4603 = vpack.c.b16 %v4151, %v4147
            %v4604 = vpack.c.b16 %v4152, %v4148
            %v4605 = vpack.c.b16 %v4157, %v4153
            %v4606 = vpack.c.b16 %v4158, %v4154
            %v4607 = vpack.c.b16 %v4159, %v4155
            %v4608 = vpack.c.b16 %v4160, %v4156
            %v4609 = vpack.c.b16 %v4165, %v4161
            %v4610 = vpack.c.b16 %v4166, %v4162
            %v4611 = vpack.c.b16 %v4167, %v4163
            %v4612 = vpack.c.b16 %v4168, %v4164
            %v4613 = vpack.c.b16 %v4173, %v4169
            %v4614 = vpack.c.b16 %v4174, %v4170
            %v4615 = vpack.c.b16 %v4175, %v4171
            %v4616 = vpack.c.b16 %v4176, %v4172
            %v4617 = vpack.c.b16 %v4181, %v4177
            %v4618 = vpack.c.b16 %v4182, %v4178
            %v4619 = vpack.c.b16 %v4183, %v4179
            %v4620 = vpack.c.b16 %v4184, %v4180
            %v4621 = vpack.c.b16 %v4189, %v4185
            %v4622 = vpack.c.b16 %v4190, %v4186
            %v4623 = vpack.c.b16 %v4191, %v4187
            %v4624 = vpack.c.b16 %v4192, %v4188
            %v4625 = vpack.c.b16 %v4197, %v4193
            %v4626 = vpack.c.b16 %v4198, %v4194
            %v4627 = vpack.c.b16 %v4199, %v4195
            %v4628 = vpack.c.b16 %v4200, %v4196
            %v4629 = vpack.c.b16 %v4205, %v4201
            %v4630 = vpack.c.b16 %v4206, %v4202
            %v4631 = vpack.c.b16 %v4207, %v4203
            %v4632 = vpack.c.b16 %v4208, %v4204
            %v4633 = vpack.c.b16 %v4213, %v4209
            %v4634 = vpack.c.b16 %v4214, %v4210
            %v4635 = vpack.c.b16 %v4215, %v4211
            %v4636 = vpack.c.b16 %v4216, %v4212
            %v4637 = vpack.c.b16 %v4221, %v4217
            %v4638 = vpack.c.b16 %v4222, %v4218
            %v4639 = vpack.c.b16 %v4223, %v4219
            %v4640 = vpack.c.b16 %v4224, %v4220
            %v4641 = vpack.c.b16 %v4229, %v4225
            %v4642 = vpack.c.b16 %v4230, %v4226
            %v4643 = vpack.c.b16 %v4231, %v4227
            %v4644 = vpack.c.b16 %v4232, %v4228
            %v4645 = vpack.c.b16 %v4237, %v4233
            %v4646 = vpack.c.b16 %v4238, %v4234
            %v4647 = vpack.c.b16 %v4239, %v4235
            %v4648 = vpack.c.b16 %v4240, %v4236
            %v4649 = vpack.c.b16 %v4245, %v4241
            %v4650 = vpack.c.b16 %v4246, %v4242
            %v4651 = vpack.c.b16 %v4247, %v4243
            %v4652 = vpack.c.b16 %v4248, %v4244
            %v4653 = vpack.c.b16 %v4253, %v4249
            %v4654 = vpack.c.b16 %v4254, %v4250
            %v4655 = vpack.c.b16 %v4255, %v4251
            %v4656 = vpack.c.b16 %v4256, %v4252
            %v4657 = vpack.c.b16 %v4261, %v4257
            %v4658 = vpack.c.b16 %v4262, %v4258
            %v4659 = vpack.c.b16 %v4263, %v4259
            %v4660 = vpack.c.b16 %v4264, %v4260
            %v4661 = vpack.c.b16 %v4269, %v4265
            %v4662 = vpack.c.b16 %v4270, %v4266
            %v4663 = vpack.c.b16 %v4271, %v4267
            %v4664 = vpack.c.b16 %v4272, %v4268
            %v4665 = vpack.c.b16 %v4277, %v4273
            %v4666 = vpack.c.b16 %v4278, %v4274
            %v4667 = vpack.c.b16 %v4279, %v4275
            %v4668 = vpack.c.b16 %v4280, %v4276
            %v4669 = vpack.c.b16 %v4285, %v4281
            %v4670 = vpack.c.b16 %v4286, %v4282
            %v4671 = vpack.c.b16 %v4287, %v4283
            %v4672 = vpack.c.b16 %v4288, %v4284
            %v4673 = vpack.c.b16 %v4293, %v4289
            %v4674 = vpack.c.b16 %v4294, %v4290
            %v4675 = vpack.c.b16 %v4295, %v4291
            %v4676 = vpack.c.b16 %v4296, %v4292
            %v4677 = vpack.c.b16 %v4301, %v4297
            %v4678 = vpack.c.b16 %v4302, %v4298
            %v4679 = vpack.c.b16 %v4303, %v4299
            %v4680 = vpack.c.b16 %v4304, %v4300
            %v4681 = vpack.c.b16 %v4309, %v4305
            %v4682 = vpack.c.b16 %v4310, %v4306
            %v4683 = vpack.c.b16 %v4311, %v4307
            %v4684 = vpack.c.b16 %v4312, %v4308
            %v4685 = vpack.c.b16 %v4317, %v4313
            %v4686 = vpack.c.b16 %v4318, %v4314
            %v4687 = vpack.c.b16 %v4319, %v4315
            %v4688 = vpack.c.b16 %v4320, %v4316
            %v4689 = vpack.c.b16 %v4325, %v4321
            %v4690 = vpack.c.b16 %v4326, %v4322
            %v4691 = vpack.c.b16 %v4327, %v4323
            %v4692 = vpack.c.b16 %v4328, %v4324
            %v4693 = vpack.c.b16 %v4333, %v4329
            %v4694 = vpack.c.b16 %v4334, %v4330
            %v4695 = vpack.c.b16 %v4335, %v4331
            %v4696 = vpack.c.b16 %v4336, %v4332
            %v4697 = vpack.c.b16 %v4341, %v4337
            %v4698 = vpack.c.b16 %v4342, %v4338
            %v4699 = vpack.c.b16 %v4343, %v4339
            %v4700 = vpack.c.b16 %v4344, %v4340
            %v4701 = vpack.c.b16 %v4349, %v4345
            %v4702 = vpack.c.b16 %v4350, %v4346
            %v4703 = vpack.c.b16 %v4351, %v4347
            %v4704 = vpack.c.b16 %v4352, %v4348
            %v4705 = vpack.c.b16 %v4357, %v4353
            %v4706 = vpack.c.b16 %v4358, %v4354
            %v4707 = vpack.c.b16 %v4359, %v4355
            %v4708 = vpack.c.b16 %v4360, %v4356
            %v4709 = vpack.c.b16 %v4365, %v4361
            %v4710 = vpack.c.b16 %v4366, %v4362
            %v4711 = vpack.c.b16 %v4367, %v4363
            %v4712 = vpack.c.b16 %v4368, %v4364
            %v4713 = vpack.c.b16 %v4373, %v4369
            %v4714 = vpack.c.b16 %v4374, %v4370
            %v4715 = vpack.c.b16 %v4375, %v4371
            %v4716 = vpack.c.b16 %v4376, %v4372
            %v4717 = vpack.c.b16 %v4381, %v4377
            %v4718 = vpack.c.b16 %v4382, %v4378
            %v4719 = vpack.c.b16 %v4383, %v4379
            %v4720 = vpack.c.b16 %v4384, %v4380
            %v4721 = vpack.c.b16 %v4389, %v4385
            %v4722 = vpack.c.b16 %v4390, %v4386
            %v4723 = vpack.c.b16 %v4391, %v4387
            %v4724 = vpack.c.b16 %v4392, %v4388
            %v4725 = vpack.c.b16 %v4397, %v4393
            %v4726 = vpack.c.b16 %v4398, %v4394
            %v4727 = vpack.c.b16 %v4399, %v4395
            %v4728 = vpack.c.b16 %v4400, %v4396
            %v4729 = vpack.c.b16 %v4405, %v4401
            %v4730 = vpack.c.b16 %v4406, %v4402
            %v4731 = vpack.c.b16 %v4407, %v4403
            %v4732 = vpack.c.b16 %v4408, %v4404
            %v4733 = vpack.c.b16 %v4413, %v4409
            %v4734 = vpack.c.b16 %v4414, %v4410
            %v4735 = vpack.c.b16 %v4415, %v4411
            %v4736 = vpack.c.b16 %v4416, %v4412
            %v4737 = vpack.c.b16 %v4421, %v4417
            %v4738 = vpack.c.b16 %v4422, %v4418
            %v4739 = vpack.c.b16 %v4423, %v4419
            %v4740 = vpack.c.b16 %v4424, %v4420
            %v4741 = vpack.c.b16 %v4429, %v4425
            %v4742 = vpack.c.b16 %v4430, %v4426
            %v4743 = vpack.c.b16 %v4431, %v4427
            %v4744 = vpack.c.b16 %v4432, %v4428
            %v4745 = vpack.c.b16 %v4437, %v4433
            %v4746 = vpack.c.b16 %v4438, %v4434
            %v4747 = vpack.c.b16 %v4439, %v4435
            %v4748 = vpack.c.b16 %v4440, %v4436
            %v4749 = vpack.c.b16 %v4445, %v4441
            %v4750 = vpack.c.b16 %v4446, %v4442
            %v4751 = vpack.c.b16 %v4447, %v4443
            %v4752 = vpack.c.b16 %v4448, %v4444
            %v4753 = vpack.c.b16 %v4453, %v4449
            %v4754 = vpack.c.b16 %v4454, %v4450
            %v4755 = vpack.c.b16 %v4455, %v4451
            %v4756 = vpack.c.b16 %v4456, %v4452
            %v4757 = vpack.c.b16 %v4461, %v4457
            %v4758 = vpack.c.b16 %v4462, %v4458
            %v4759 = vpack.c.b16 %v4463, %v4459
            %v4760 = vpack.c.b16 %v4464, %v4460
            %v4761 = vpack.c.b16 %v4469, %v4465
            %v4762 = vpack.c.b16 %v4470, %v4466
            %v4763 = vpack.c.b16 %v4471, %v4467
            %v4764 = vpack.c.b16 %v4472, %v4468
            %v4765 = vpack.c.b16 %v4477, %v4473
            %v4766 = vpack.c.b16 %v4478, %v4474
            %v4767 = vpack.c.b16 %v4479, %v4475
            %v4768 = vpack.c.b16 %v4480, %v4476
            %v4769 = vpack.c.b16 %v4485, %v4481
            %v4770 = vpack.c.b16 %v4486, %v4482
            %v4771 = vpack.c.b16 %v4487, %v4483
            %v4772 = vpack.c.b16 %v4488, %v4484
            %v4773 = vpack.c.b16 %v4493, %v4489
            %v4774 = vpack.c.b16 %v4494, %v4490
            %v4775 = vpack.c.b16 %v4495, %v4491
            %v4776 = vpack.c.b16 %v4496, %v4492
            %v4777 = vpack.c.b16 %v4501, %v4497
            %v4778 = vpack.c.b16 %v4502, %v4498
            %v4779 = vpack.c.b16 %v4503, %v4499
            %v4780 = vpack.c.b16 %v4504, %v4500
            %v4781 = vpack.c.b16 %v4509, %v4505
            %v4782 = vpack.c.b16 %v4510, %v4506
            %v4783 = vpack.c.b16 %v4511, %v4507
            %v4784 = vpack.c.b16 %v4512, %v4508
            %v4785 = vpack.c.b16 %v4517, %v4513
            %v4786 = vpack.c.b16 %v4518, %v4514
            %v4787 = vpack.c.b16 %v4519, %v4515
            %v4788 = vpack.c.b16 %v4520, %v4516
            %v4789 = vpack.c.b16 %v4525, %v4521
            %v4790 = vpack.c.b16 %v4526, %v4522
            %v4791 = vpack.c.b16 %v4527, %v4523
            %v4792 = vpack.c.b16 %v4528, %v4524
            %v4793 = vpack.c.b16 %v4533, %v4529
            %v4794 = vpack.c.b16 %v4534, %v4530
            %v4795 = vpack.c.b16 %v4535, %v4531
            %v4796 = vpack.c.b16 %v4536, %v4532
            %v4797 = vpack.c.b16 %v4541, %v4537
            %v4798 = vpack.c.b16 %v4542, %v4538
            %v4799 = vpack.c.b16 %v4543, %v4539
            %v4800 = vpack.c.b16 %v4544, %v4540
            %v5058 = vperm.slane %v3776, 0
            %v5059 = vperm.slane %v3776, 1
            %v5060 = vperm.slane %v3776, 2
            %v5061 = vperm.slane %v3776, 3
            %5066 = vmatpush.bf16.msra.mxu0 %v4573
            %5067 = vmatpush.bf16.msra.mxu0 %v4569
            %5068 = vmatpush.bf16.msra.mxu0 %v4565
            %5069 = vmatpush.bf16.msra.mxu0 %v4561
            %5070 = vmatpush.bf16.msra.mxu0 %v4557
            %5071 = vmatpush.bf16.msra.mxu0 %v4553
            %5072 = vmatpush.bf16.msra.mxu0 %v4549
            %5073 = vmatpush.bf16.msra.mxu0 %v4545
            %5074 = vmatmul.bf16.gmra.mxu0 %v3512
            %v5075 = vpop.f32.mrf.mxu0
            %v5076 = vadd.f32 %v5058, %v5075
            %v5077 = vpop.f32.mrf.mxu0
            %5078 = vdwg.mxu0
            %5079 = vmatpush.bf16.msra.mxu0 %v4605
            %5080 = vmatpush.bf16.msra.mxu0 %v4601
            %5081 = vmatpush.bf16.msra.mxu0 %v4597
            %5082 = vmatpush.bf16.msra.mxu0 %v4593
            %5083 = vmatpush.bf16.msra.mxu0 %v4589
            %5084 = vmatpush.bf16.msra.mxu0 %v4585
            %5085 = vmatpush.bf16.msra.mxu0 %v4581
            %5086 = vmatpush.bf16.msra.mxu0 %v4577
            %5087 = vmatmul.bf16.gmra.mxu0 %v3513
            %v5088 = vpop.f32.mrf.mxu0
            %v5089 = vadd.f32 %v5076, %v5088
            %v5090 = vpop.f32.mrf.mxu0
            %5091 = vdwg.mxu0
            %5092 = vmatpush.bf16.msra.mxu0 %v4637
            %5093 = vmatpush.bf16.msra.mxu0 %v4633
            %5094 = vmatpush.bf16.msra.mxu0 %v4629
            %5095 = vmatpush.bf16.msra.mxu0 %v4625
            %5096 = vmatpush.bf16.msra.mxu0 %v4621
            %5097 = vmatpush.bf16.msra.mxu0 %v4617
            %5098 = vmatpush.bf16.msra.mxu0 %v4613
            %5099 = vmatpush.bf16.msra.mxu0 %v4609
            %5100 = vmatmul.bf16.gmra.mxu0 %v3514
            %v5101 = vpop.f32.mrf.mxu0
            %v5102 = vadd.f32 %v5089, %v5101
            %v5103 = vpop.f32.mrf.mxu0
            %5104 = vdwg.mxu0
            %5105 = vmatpush.bf16.msra.mxu0 %v4669
            %5106 = vmatpush.bf16.msra.mxu0 %v4665
            %5107 = vmatpush.bf16.msra.mxu0 %v4661
            %5108 = vmatpush.bf16.msra.mxu0 %v4657
            %5109 = vmatpush.bf16.msra.mxu0 %v4653
            %5110 = vmatpush.bf16.msra.mxu0 %v4649
            %5111 = vmatpush.bf16.msra.mxu0 %v4645
            %5112 = vmatpush.bf16.msra.mxu0 %v4641
            %5113 = vmatmul.bf16.gmra.mxu0 %v3515
            %v5114 = vpop.f32.mrf.mxu0
            %v5115 = vadd.f32 %v5102, %v5114
            %v5116 = vpop.f32.mrf.mxu0
            %5117 = vdwg.mxu0
            %5118 = vmatpush.bf16.msra.mxu0 %v4701
            %5119 = vmatpush.bf16.msra.mxu0 %v4697
            %5120 = vmatpush.bf16.msra.mxu0 %v4693
            %5121 = vmatpush.bf16.msra.mxu0 %v4689
            %5122 = vmatpush.bf16.msra.mxu0 %v4685
            %5123 = vmatpush.bf16.msra.mxu0 %v4681
            %5124 = vmatpush.bf16.msra.mxu0 %v4677
            %5125 = vmatpush.bf16.msra.mxu0 %v4673
            %5126 = vmatmul.bf16.gmra.mxu0 %v3516
            %v5127 = vpop.f32.mrf.mxu0
            %v5128 = vadd.f32 %v5115, %v5127
            %v5129 = vpop.f32.mrf.mxu0
            %5130 = vdwg.mxu0
            %5131 = vmatpush.bf16.msra.mxu0 %v4733
            %5132 = vmatpush.bf16.msra.mxu0 %v4729
            %5133 = vmatpush.bf16.msra.mxu0 %v4725
            %5134 = vmatpush.bf16.msra.mxu0 %v4721
            %5135 = vmatpush.bf16.msra.mxu0 %v4717
            %5136 = vmatpush.bf16.msra.mxu0 %v4713
            %5137 = vmatpush.bf16.msra.mxu0 %v4709
            %5138 = vmatpush.bf16.msra.mxu0 %v4705
            %5139 = vmatmul.bf16.gmra.mxu0 %v3517
            %v5140 = vpop.f32.mrf.mxu0
            %v5141 = vadd.f32 %v5128, %v5140
            %v5142 = vpop.f32.mrf.mxu0
            %5143 = vdwg.mxu0
            %5144 = vmatpush.bf16.msra.mxu0 %v4765
            %5145 = vmatpush.bf16.msra.mxu0 %v4761
            %5146 = vmatpush.bf16.msra.mxu0 %v4757
            %5147 = vmatpush.bf16.msra.mxu0 %v4753
            %5148 = vmatpush.bf16.msra.mxu0 %v4749
            %5149 = vmatpush.bf16.msra.mxu0 %v4745
            %5150 = vmatpush.bf16.msra.mxu0 %v4741
            %5151 = vmatpush.bf16.msra.mxu0 %v4737
            %5152 = vmatmul.bf16.gmra.mxu0 %v3518
            %v5153 = vpop.f32.mrf.mxu0
            %v5154 = vadd.f32 %v5141, %v5153
            %v5155 = vpop.f32.mrf.mxu0
            %5156 = vdwg.mxu0
            %5157 = vmatpush.bf16.msra.mxu0 %v4797
            %5158 = vmatpush.bf16.msra.mxu0 %v4793
            %5159 = vmatpush.bf16.msra.mxu0 %v4789
            %5160 = vmatpush.bf16.msra.mxu0 %v4785
            %5161 = vmatpush.bf16.msra.mxu0 %v4781
            %5162 = vmatpush.bf16.msra.mxu0 %v4777
            %5163 = vmatpush.bf16.msra.mxu0 %v4773
            %5164 = vmatpush.bf16.msra.mxu0 %v4769
            %5165 = vmatmul.bf16.gmra.mxu0 %v3519
            %v5166 = vpop.f32.mrf.mxu0
            %v5167 = vadd.f32 %v5154, %v5166
            %v5168 = vpop.f32.mrf.mxu0
            %5169 = vdwg.mxu0
            %5170 = vmatpush.bf16.msra.mxu0 %v4574
            %5171 = vmatpush.bf16.msra.mxu0 %v4570
            %5172 = vmatpush.bf16.msra.mxu0 %v4566
            %5173 = vmatpush.bf16.msra.mxu0 %v4562
            %5174 = vmatpush.bf16.msra.mxu0 %v4558
            %5175 = vmatpush.bf16.msra.mxu0 %v4554
            %5176 = vmatpush.bf16.msra.mxu0 %v4550
            %5177 = vmatpush.bf16.msra.mxu0 %v4546
            %5178 = vmatmul.bf16.gmra.mxu0 %v3512
            %v5179 = vpop.f32.mrf.mxu0
            %v5180 = vadd.f32 %v5059, %v5179
            %v5181 = vpop.f32.mrf.mxu0
            %5182 = vdwg.mxu0
            %5183 = vmatpush.bf16.msra.mxu0 %v4606
            %5184 = vmatpush.bf16.msra.mxu0 %v4602
            %5185 = vmatpush.bf16.msra.mxu0 %v4598
            %5186 = vmatpush.bf16.msra.mxu0 %v4594
            %5187 = vmatpush.bf16.msra.mxu0 %v4590
            %5188 = vmatpush.bf16.msra.mxu0 %v4586
            %5189 = vmatpush.bf16.msra.mxu0 %v4582
            %5190 = vmatpush.bf16.msra.mxu0 %v4578
            %5191 = vmatmul.bf16.gmra.mxu0 %v3513
            %v5192 = vpop.f32.mrf.mxu0
            %v5193 = vadd.f32 %v5180, %v5192
            %v5194 = vpop.f32.mrf.mxu0
            %5195 = vdwg.mxu0
            %5196 = vmatpush.bf16.msra.mxu0 %v4638
            %5197 = vmatpush.bf16.msra.mxu0 %v4634
            %5198 = vmatpush.bf16.msra.mxu0 %v4630
            %5199 = vmatpush.bf16.msra.mxu0 %v4626
            %5200 = vmatpush.bf16.msra.mxu0 %v4622
            %5201 = vmatpush.bf16.msra.mxu0 %v4618
            %5202 = vmatpush.bf16.msra.mxu0 %v4614
            %5203 = vmatpush.bf16.msra.mxu0 %v4610
            %5204 = vmatmul.bf16.gmra.mxu0 %v3514
            %v5205 = vpop.f32.mrf.mxu0
            %v5206 = vadd.f32 %v5193, %v5205
            %v5207 = vpop.f32.mrf.mxu0
            %5208 = vdwg.mxu0
            %5209 = vmatpush.bf16.msra.mxu0 %v4670
            %5210 = vmatpush.bf16.msra.mxu0 %v4666
            %5211 = vmatpush.bf16.msra.mxu0 %v4662
            %5212 = vmatpush.bf16.msra.mxu0 %v4658
            %5213 = vmatpush.bf16.msra.mxu0 %v4654
            %5214 = vmatpush.bf16.msra.mxu0 %v4650
            %5215 = vmatpush.bf16.msra.mxu0 %v4646
            %5216 = vmatpush.bf16.msra.mxu0 %v4642
            %5217 = vmatmul.bf16.gmra.mxu0 %v3515
            %v5218 = vpop.f32.mrf.mxu0
            %v5219 = vadd.f32 %v5206, %v5218
            %v5220 = vpop.f32.mrf.mxu0
            %5221 = vdwg.mxu0
            %5222 = vmatpush.bf16.msra.mxu0 %v4702
            %5223 = vmatpush.bf16.msra.mxu0 %v4698
            %5224 = vmatpush.bf16.msra.mxu0 %v4694
            %5225 = vmatpush.bf16.msra.mxu0 %v4690
            %5226 = vmatpush.bf16.msra.mxu0 %v4686
            %5227 = vmatpush.bf16.msra.mxu0 %v4682
            %5228 = vmatpush.bf16.msra.mxu0 %v4678
            %5229 = vmatpush.bf16.msra.mxu0 %v4674
            %5230 = vmatmul.bf16.gmra.mxu0 %v3516
            %v5231 = vpop.f32.mrf.mxu0
            %v5232 = vadd.f32 %v5219, %v5231
            %v5233 = vpop.f32.mrf.mxu0
            %5234 = vdwg.mxu0
            %5235 = vmatpush.bf16.msra.mxu0 %v4734
            %5236 = vmatpush.bf16.msra.mxu0 %v4730
            %5237 = vmatpush.bf16.msra.mxu0 %v4726
            %5238 = vmatpush.bf16.msra.mxu0 %v4722
            %5239 = vmatpush.bf16.msra.mxu0 %v4718
            %5240 = vmatpush.bf16.msra.mxu0 %v4714
            %5241 = vmatpush.bf16.msra.mxu0 %v4710
            %5242 = vmatpush.bf16.msra.mxu0 %v4706
            %5243 = vmatmul.bf16.gmra.mxu0 %v3517
            %v5244 = vpop.f32.mrf.mxu0
            %v5245 = vadd.f32 %v5232, %v5244
            %v5246 = vpop.f32.mrf.mxu0
            %5247 = vdwg.mxu0
            %5248 = vmatpush.bf16.msra.mxu0 %v4766
            %5249 = vmatpush.bf16.msra.mxu0 %v4762
            %5250 = vmatpush.bf16.msra.mxu0 %v4758
            %5251 = vmatpush.bf16.msra.mxu0 %v4754
            %5252 = vmatpush.bf16.msra.mxu0 %v4750
            %5253 = vmatpush.bf16.msra.mxu0 %v4746
            %5254 = vmatpush.bf16.msra.mxu0 %v4742
            %5255 = vmatpush.bf16.msra.mxu0 %v4738
            %5256 = vmatmul.bf16.gmra.mxu0 %v3518
            %v5257 = vpop.f32.mrf.mxu0
            %v5258 = vadd.f32 %v5245, %v5257
            %v5259 = vpop.f32.mrf.mxu0
            %5260 = vdwg.mxu0
            %5261 = vmatpush.bf16.msra.mxu0 %v4798
            %5262 = vmatpush.bf16.msra.mxu0 %v4794
            %5263 = vmatpush.bf16.msra.mxu0 %v4790
            %5264 = vmatpush.bf16.msra.mxu0 %v4786
            %5265 = vmatpush.bf16.msra.mxu0 %v4782
            %5266 = vmatpush.bf16.msra.mxu0 %v4778
            %5267 = vmatpush.bf16.msra.mxu0 %v4774
            %5268 = vmatpush.bf16.msra.mxu0 %v4770
            %5269 = vmatmul.bf16.gmra.mxu0 %v3519
            %v5270 = vpop.f32.mrf.mxu0
            %v5271 = vadd.f32 %v5258, %v5270
            %v5272 = vpop.f32.mrf.mxu0
            %5273 = vdwg.mxu0
            %5274 = vmatpush.bf16.msra.mxu0 %v4575
            %5275 = vmatpush.bf16.msra.mxu0 %v4571
            %5276 = vmatpush.bf16.msra.mxu0 %v4567
            %5277 = vmatpush.bf16.msra.mxu0 %v4563
            %5278 = vmatpush.bf16.msra.mxu0 %v4559
            %5279 = vmatpush.bf16.msra.mxu0 %v4555
            %5280 = vmatpush.bf16.msra.mxu0 %v4551
            %5281 = vmatpush.bf16.msra.mxu0 %v4547
            %5282 = vmatmul.bf16.gmra.mxu0 %v3512
            %v5283 = vpop.f32.mrf.mxu0
            %v5284 = vadd.f32 %v5060, %v5283
            %v5285 = vpop.f32.mrf.mxu0
            %5286 = vdwg.mxu0
            %5287 = vmatpush.bf16.msra.mxu0 %v4607
            %5288 = vmatpush.bf16.msra.mxu0 %v4603
            %5289 = vmatpush.bf16.msra.mxu0 %v4599
            %5290 = vmatpush.bf16.msra.mxu0 %v4595
            %5291 = vmatpush.bf16.msra.mxu0 %v4591
            %5292 = vmatpush.bf16.msra.mxu0 %v4587
            %5293 = vmatpush.bf16.msra.mxu0 %v4583
            %5294 = vmatpush.bf16.msra.mxu0 %v4579
            %5295 = vmatmul.bf16.gmra.mxu0 %v3513
            %v5296 = vpop.f32.mrf.mxu0
            %v5297 = vadd.f32 %v5284, %v5296
            %v5298 = vpop.f32.mrf.mxu0
            %5299 = vdwg.mxu0
            %5300 = vmatpush.bf16.msra.mxu0 %v4639
            %5301 = vmatpush.bf16.msra.mxu0 %v4635
            %5302 = vmatpush.bf16.msra.mxu0 %v4631
            %5303 = vmatpush.bf16.msra.mxu0 %v4627
            %5304 = vmatpush.bf16.msra.mxu0 %v4623
            %5305 = vmatpush.bf16.msra.mxu0 %v4619
            %5306 = vmatpush.bf16.msra.mxu0 %v4615
            %5307 = vmatpush.bf16.msra.mxu0 %v4611
            %5308 = vmatmul.bf16.gmra.mxu0 %v3514
            %v5309 = vpop.f32.mrf.mxu0
            %v5310 = vadd.f32 %v5297, %v5309
            %v5311 = vpop.f32.mrf.mxu0
            %5312 = vdwg.mxu0
            %5313 = vmatpush.bf16.msra.mxu0 %v4671
            %5314 = vmatpush.bf16.msra.mxu0 %v4667
            %5315 = vmatpush.bf16.msra.mxu0 %v4663
            %5316 = vmatpush.bf16.msra.mxu0 %v4659
            %5317 = vmatpush.bf16.msra.mxu0 %v4655
            %5318 = vmatpush.bf16.msra.mxu0 %v4651
            %5319 = vmatpush.bf16.msra.mxu0 %v4647
            %5320 = vmatpush.bf16.msra.mxu0 %v4643
            %5321 = vmatmul.bf16.gmra.mxu0 %v3515
            %v5322 = vpop.f32.mrf.mxu0
            %v5323 = vadd.f32 %v5310, %v5322
            %v5324 = vpop.f32.mrf.mxu0
            %5325 = vdwg.mxu0
            %5326 = vmatpush.bf16.msra.mxu0 %v4703
            %5327 = vmatpush.bf16.msra.mxu0 %v4699
            %5328 = vmatpush.bf16.msra.mxu0 %v4695
            %5329 = vmatpush.bf16.msra.mxu0 %v4691
            %5330 = vmatpush.bf16.msra.mxu0 %v4687
            %5331 = vmatpush.bf16.msra.mxu0 %v4683
            %5332 = vmatpush.bf16.msra.mxu0 %v4679
            %5333 = vmatpush.bf16.msra.mxu0 %v4675
            %5334 = vmatmul.bf16.gmra.mxu0 %v3516
            %v5335 = vpop.f32.mrf.mxu0
            %v5336 = vadd.f32 %v5323, %v5335
            %v5337 = vpop.f32.mrf.mxu0
            %5338 = vdwg.mxu0
            %5339 = vmatpush.bf16.msra.mxu0 %v4735
            %5340 = vmatpush.bf16.msra.mxu0 %v4731
            %5341 = vmatpush.bf16.msra.mxu0 %v4727
            %5342 = vmatpush.bf16.msra.mxu0 %v4723
            %5343 = vmatpush.bf16.msra.mxu0 %v4719
            %5344 = vmatpush.bf16.msra.mxu0 %v4715
            %5345 = vmatpush.bf16.msra.mxu0 %v4711
            %5346 = vmatpush.bf16.msra.mxu0 %v4707
            %5347 = vmatmul.bf16.gmra.mxu0 %v3517
            %v5348 = vpop.f32.mrf.mxu0
            %v5349 = vadd.f32 %v5336, %v5348
            %v5350 = vpop.f32.mrf.mxu0
            %5351 = vdwg.mxu0
            %5352 = vmatpush.bf16.msra.mxu0 %v4767
            %5353 = vmatpush.bf16.msra.mxu0 %v4763
            %5354 = vmatpush.bf16.msra.mxu0 %v4759
            %5355 = vmatpush.bf16.msra.mxu0 %v4755
            %5356 = vmatpush.bf16.msra.mxu0 %v4751
            %5357 = vmatpush.bf16.msra.mxu0 %v4747
            %5358 = vmatpush.bf16.msra.mxu0 %v4743
            %5359 = vmatpush.bf16.msra.mxu0 %v4739
            %5360 = vmatmul.bf16.gmra.mxu0 %v3518
            %v5361 = vpop.f32.mrf.mxu0
            %v5362 = vadd.f32 %v5349, %v5361
            %v5363 = vpop.f32.mrf.mxu0
            %5364 = vdwg.mxu0
            %5365 = vmatpush.bf16.msra.mxu0 %v4799
            %5366 = vmatpush.bf16.msra.mxu0 %v4795
            %5367 = vmatpush.bf16.msra.mxu0 %v4791
            %5368 = vmatpush.bf16.msra.mxu0 %v4787
            %5369 = vmatpush.bf16.msra.mxu0 %v4783
            %5370 = vmatpush.bf16.msra.mxu0 %v4779
            %5371 = vmatpush.bf16.msra.mxu0 %v4775
            %5372 = vmatpush.bf16.msra.mxu0 %v4771
            %5373 = vmatmul.bf16.gmra.mxu0 %v3519
            %v5374 = vpop.f32.mrf.mxu0
            %v5375 = vadd.f32 %v5362, %v5374
            %v5376 = vpop.f32.mrf.mxu0
            %5377 = vdwg.mxu0
            %5378 = vmatpush.bf16.msra.mxu0 %v4576
            %5379 = vmatpush.bf16.msra.mxu0 %v4572
            %5380 = vmatpush.bf16.msra.mxu0 %v4568
            %5381 = vmatpush.bf16.msra.mxu0 %v4564
            %5382 = vmatpush.bf16.msra.mxu0 %v4560
            %5383 = vmatpush.bf16.msra.mxu0 %v4556
            %5384 = vmatpush.bf16.msra.mxu0 %v4552
            %5385 = vmatpush.bf16.msra.mxu0 %v4548
            %5386 = vmatmul.bf16.gmra.mxu0 %v3512
            %v5387 = vpop.f32.mrf.mxu0
            %v5388 = vadd.f32 %v5061, %v5387
            %v5389 = vpop.f32.mrf.mxu0
            %5390 = vdwg.mxu0
            %5391 = vmatpush.bf16.msra.mxu0 %v4608
            %5392 = vmatpush.bf16.msra.mxu0 %v4604
            %5393 = vmatpush.bf16.msra.mxu0 %v4600
            %5394 = vmatpush.bf16.msra.mxu0 %v4596
            %5395 = vmatpush.bf16.msra.mxu0 %v4592
            %5396 = vmatpush.bf16.msra.mxu0 %v4588
            %5397 = vmatpush.bf16.msra.mxu0 %v4584
            %5398 = vmatpush.bf16.msra.mxu0 %v4580
            %5399 = vmatmul.bf16.gmra.mxu0 %v3513
            %v5400 = vpop.f32.mrf.mxu0
            %v5401 = vadd.f32 %v5388, %v5400
            %v5402 = vpop.f32.mrf.mxu0
            %5403 = vdwg.mxu0
            %5404 = vmatpush.bf16.msra.mxu0 %v4640
            %5405 = vmatpush.bf16.msra.mxu0 %v4636
            %5406 = vmatpush.bf16.msra.mxu0 %v4632
            %5407 = vmatpush.bf16.msra.mxu0 %v4628
            %5408 = vmatpush.bf16.msra.mxu0 %v4624
            %5409 = vmatpush.bf16.msra.mxu0 %v4620
            %5410 = vmatpush.bf16.msra.mxu0 %v4616
            %5411 = vmatpush.bf16.msra.mxu0 %v4612
            %5412 = vmatmul.bf16.gmra.mxu0 %v3514
            %v5413 = vpop.f32.mrf.mxu0
            %v5414 = vadd.f32 %v5401, %v5413
            %v5415 = vpop.f32.mrf.mxu0
            %5416 = vdwg.mxu0
            %5417 = vmatpush.bf16.msra.mxu0 %v4672
            %5418 = vmatpush.bf16.msra.mxu0 %v4668
            %5419 = vmatpush.bf16.msra.mxu0 %v4664
            %5420 = vmatpush.bf16.msra.mxu0 %v4660
            %5421 = vmatpush.bf16.msra.mxu0 %v4656
            %5422 = vmatpush.bf16.msra.mxu0 %v4652
            %5423 = vmatpush.bf16.msra.mxu0 %v4648
            %5424 = vmatpush.bf16.msra.mxu0 %v4644
            %5425 = vmatmul.bf16.gmra.mxu0 %v3515
            %v5426 = vpop.f32.mrf.mxu0
            %v5427 = vadd.f32 %v5414, %v5426
            %v5428 = vpop.f32.mrf.mxu0
            %5429 = vdwg.mxu0
            %5430 = vmatpush.bf16.msra.mxu0 %v4704
            %5431 = vmatpush.bf16.msra.mxu0 %v4700
            %5432 = vmatpush.bf16.msra.mxu0 %v4696
            %5433 = vmatpush.bf16.msra.mxu0 %v4692
            %5434 = vmatpush.bf16.msra.mxu0 %v4688
            %5435 = vmatpush.bf16.msra.mxu0 %v4684
            %5436 = vmatpush.bf16.msra.mxu0 %v4680
            %5437 = vmatpush.bf16.msra.mxu0 %v4676
            %5438 = vmatmul.bf16.gmra.mxu0 %v3516
            %v5439 = vpop.f32.mrf.mxu0
            %v5440 = vadd.f32 %v5427, %v5439
            %v5441 = vpop.f32.mrf.mxu0
            %5442 = vdwg.mxu0
            %5443 = vmatpush.bf16.msra.mxu0 %v4736
            %5444 = vmatpush.bf16.msra.mxu0 %v4732
            %5445 = vmatpush.bf16.msra.mxu0 %v4728
            %5446 = vmatpush.bf16.msra.mxu0 %v4724
            %5447 = vmatpush.bf16.msra.mxu0 %v4720
            %5448 = vmatpush.bf16.msra.mxu0 %v4716
            %5449 = vmatpush.bf16.msra.mxu0 %v4712
            %5450 = vmatpush.bf16.msra.mxu0 %v4708
            %5451 = vmatmul.bf16.gmra.mxu0 %v3517
            %v5452 = vpop.f32.mrf.mxu0
            %v5453 = vadd.f32 %v5440, %v5452
            %v5454 = vpop.f32.mrf.mxu0
            %5455 = vdwg.mxu0
            %5456 = vmatpush.bf16.msra.mxu0 %v4768
            %5457 = vmatpush.bf16.msra.mxu0 %v4764
            %5458 = vmatpush.bf16.msra.mxu0 %v4760
            %5459 = vmatpush.bf16.msra.mxu0 %v4756
            %5460 = vmatpush.bf16.msra.mxu0 %v4752
            %5461 = vmatpush.bf16.msra.mxu0 %v4748
            %5462 = vmatpush.bf16.msra.mxu0 %v4744
            %5463 = vmatpush.bf16.msra.mxu0 %v4740
            %5464 = vmatmul.bf16.gmra.mxu0 %v3518
            %v5465 = vpop.f32.mrf.mxu0
            %v5466 = vadd.f32 %v5453, %v5465
            %v5467 = vpop.f32.mrf.mxu0
            %5468 = vdwg.mxu0
            %5469 = vmatpush.bf16.msra.mxu0 %v4800
            %5470 = vmatpush.bf16.msra.mxu0 %v4796
            %5471 = vmatpush.bf16.msra.mxu0 %v4792
            %5472 = vmatpush.bf16.msra.mxu0 %v4788
            %5473 = vmatpush.bf16.msra.mxu0 %v4784
            %5474 = vmatpush.bf16.msra.mxu0 %v4780
            %5475 = vmatpush.bf16.msra.mxu0 %v4776
            %5476 = vmatpush.bf16.msra.mxu0 %v4772
            %5477 = vmatmul.bf16.gmra.mxu0 %v3519
            %v5478 = vpop.f32.mrf.mxu0
            %v5479 = vadd.f32 %v5466, %v5478
            %v5480 = vpop.f32.mrf.mxu0
            %5481 = vdwg.mxu0
            %v5482 = vmax.f32 %v5167, 0.0
            %v5483 = vmax.f32 %v5271, 0.0
            %v5484 = vmax.f32 %v5375, 0.0
            %v5485 = vmax.f32 %v5479, 0.0
            %v5486 = vpack.c.bf16 %v5482, %v5482
            %v5487 = vpack.c.bf16 %v5483, %v5483
            %v5488 = vpack.c.bf16 %v5484, %v5484
            %v5489 = vpack.c.bf16 %v5485, %v5485
            %v5490 = vld [vmem:[%s9] sm:$0xff]
            %v5491 = vld [vmem:[%s9 + $0x8] sm:$0xff]
            %v5492 = vld [vmem:[%s9 + $0x10] sm:$0xff]
            %v5493 = vld [vmem:[%s9 + $0x18] sm:$0xff]
            %v5494 = vld [vmem:[%s9 + $0x20] sm:$0xff]
            %v5495 = vld [vmem:[%s9 + $0x28] sm:$0xff]
            %v5496 = vld [vmem:[%s9 + $0x30] sm:$0xff]
            %v5497 = vld [vmem:[%s9 + $0x38] sm:$0xff]
            %v5498 = vld [vmem:[%s9 + $0x40] sm:$0xff]
            %v5499 = vld [vmem:[%s9 + $0x48] sm:$0xff]
            %v5500 = vld [vmem:[%s9 + $0x50] sm:$0xff]
            %v5501 = vld [vmem:[%s9 + $0x58] sm:$0xff]
            %v5502 = vld [vmem:[%s9 + $0x60] sm:$0xff]
            %v5503 = vld [vmem:[%s9 + $0x68] sm:$0xff]
            %v5504 = vld [vmem:[%s9 + $0x70] sm:$0xff]
            %v5505 = vld [vmem:[%s9 + $0x78] sm:$0xff]
            %v5506 = vld [vmem:[%s9 + $0x80] sm:$0xff]
            %v5507 = vld [vmem:[%s9 + $0x88] sm:$0xff]
            %v5508 = vld [vmem:[%s9 + $0x90] sm:$0xff]
            %v5509 = vld [vmem:[%s9 + $0x98] sm:$0xff]
            %v5510 = vld [vmem:[%s9 + $0xa0] sm:$0xff]
            %v5511 = vld [vmem:[%s9 + $0xa8] sm:$0xff]
            %v5512 = vld [vmem:[%s9 + $0xb0] sm:$0xff]
            %v5513 = vld [vmem:[%s9 + $0xb8] sm:$0xff]
            %v5514 = vld [vmem:[%s9 + $0xc0] sm:$0xff]
            %v5515 = vld [vmem:[%s9 + $0xc8] sm:$0xff]
            %v5516 = vld [vmem:[%s9 + $0xd0] sm:$0xff]
            %v5517 = vld [vmem:[%s9 + $0xd8] sm:$0xff]
            %v5518 = vld [vmem:[%s9 + $0xe0] sm:$0xff]
            %v5519 = vld [vmem:[%s9 + $0xe8] sm:$0xff]
            %v5520 = vld [vmem:[%s9 + $0xf0] sm:$0xff]
            %v5521 = vld [vmem:[%s9 + $0xf8] sm:$0xff]
            %v5522 = vld [vmem:[%s9 + $0x100] sm:$0xff]
            %v5523 = vld [vmem:[%s9 + $0x108] sm:$0xff]
            %v5524 = vld [vmem:[%s9 + $0x110] sm:$0xff]
            %v5525 = vld [vmem:[%s9 + $0x118] sm:$0xff]
            %v5526 = vld [vmem:[%s9 + $0x120] sm:$0xff]
            %v5527 = vld [vmem:[%s9 + $0x128] sm:$0xff]
            %v5528 = vld [vmem:[%s9 + $0x130] sm:$0xff]
            %v5529 = vld [vmem:[%s9 + $0x138] sm:$0xff]
            %v5530 = vld [vmem:[%s9 + $0x140] sm:$0xff]
            %v5531 = vld [vmem:[%s9 + $0x148] sm:$0xff]
            %v5532 = vld [vmem:[%s9 + $0x150] sm:$0xff]
            %v5533 = vld [vmem:[%s9 + $0x158] sm:$0xff]
            %v5534 = vld [vmem:[%s9 + $0x160] sm:$0xff]
            %v5535 = vld [vmem:[%s9 + $0x168] sm:$0xff]
            %v5536 = vld [vmem:[%s9 + $0x170] sm:$0xff]
            %v5537 = vld [vmem:[%s9 + $0x178] sm:$0xff]
            %v5538 = vld [vmem:[%s9 + $0x180] sm:$0xff]
            %v5539 = vld [vmem:[%s9 + $0x188] sm:$0xff]
            %v5540 = vld [vmem:[%s9 + $0x190] sm:$0xff]
            %v5541 = vld [vmem:[%s9 + $0x198] sm:$0xff]
            %v5542 = vld [vmem:[%s9 + $0x1a0] sm:$0xff]
            %v5543 = vld [vmem:[%s9 + $0x1a8] sm:$0xff]
            %v5544 = vld [vmem:[%s9 + $0x1b0] sm:$0xff]
            %v5545 = vld [vmem:[%s9 + $0x1b8] sm:$0xff]
            %v5546 = vld [vmem:[%s9 + $0x1c0] sm:$0xff]
            %v5547 = vld [vmem:[%s9 + $0x1c8] sm:$0xff]
            %v5548 = vld [vmem:[%s9 + $0x1d0] sm:$0xff]
            %v5549 = vld [vmem:[%s9 + $0x1d8] sm:$0xff]
            %v5550 = vld [vmem:[%s9 + $0x1e0] sm:$0xff]
            %v5551 = vld [vmem:[%s9 + $0x1e8] sm:$0xff]
            %v5552 = vld [vmem:[%s9 + $0x1f0] sm:$0xff]
            %v5553 = vld [vmem:[%s9 + $0x1f8] sm:$0xff]
            %v5554 = vld [vmem:[%s10] sm:$0x3]
            %v5619 = vunpack.c.l.b16 %v5490
            %v5620 = vunpack.c.h.b16 %v5490
            %v5621 = vunpack.c.l.b16 %v5491
            %v5622 = vunpack.c.h.b16 %v5491
            %v5623 = vunpack.c.l.b16 %v5492
            %v5624 = vunpack.c.h.b16 %v5492
            %v5625 = vunpack.c.l.b16 %v5493
            %v5626 = vunpack.c.h.b16 %v5493
            %v5627 = vunpack.c.l.b16 %v5494
            %v5628 = vunpack.c.h.b16 %v5494
            %v5629 = vunpack.c.l.b16 %v5495
            %v5630 = vunpack.c.h.b16 %v5495
            %v5631 = vunpack.c.l.b16 %v5496
            %v5632 = vunpack.c.h.b16 %v5496
            %v5633 = vunpack.c.l.b16 %v5497
            %v5634 = vunpack.c.h.b16 %v5497
            %v5635 = vunpack.c.l.b16 %v5498
            %v5636 = vunpack.c.h.b16 %v5498
            %v5637 = vunpack.c.l.b16 %v5499
            %v5638 = vunpack.c.h.b16 %v5499
            %v5639 = vunpack.c.l.b16 %v5500
            %v5640 = vunpack.c.h.b16 %v5500
            %v5641 = vunpack.c.l.b16 %v5501
            %v5642 = vunpack.c.h.b16 %v5501
            %v5643 = vunpack.c.l.b16 %v5502
            %v5644 = vunpack.c.h.b16 %v5502
            %v5645 = vunpack.c.l.b16 %v5503
            %v5646 = vunpack.c.h.b16 %v5503
            %v5647 = vunpack.c.l.b16 %v5504
            %v5648 = vunpack.c.h.b16 %v5504
            %v5649 = vunpack.c.l.b16 %v5505
            %v5650 = vunpack.c.h.b16 %v5505
            %v5651 = vunpack.c.l.b16 %v5506
            %v5652 = vunpack.c.h.b16 %v5506
            %v5653 = vunpack.c.l.b16 %v5507
            %v5654 = vunpack.c.h.b16 %v5507
            %v5655 = vunpack.c.l.b16 %v5508
            %v5656 = vunpack.c.h.b16 %v5508
            %v5657 = vunpack.c.l.b16 %v5509
            %v5658 = vunpack.c.h.b16 %v5509
            %v5659 = vunpack.c.l.b16 %v5510
            %v5660 = vunpack.c.h.b16 %v5510
            %v5661 = vunpack.c.l.b16 %v5511
            %v5662 = vunpack.c.h.b16 %v5511
            %v5663 = vunpack.c.l.b16 %v5512
            %v5664 = vunpack.c.h.b16 %v5512
            %v5665 = vunpack.c.l.b16 %v5513
            %v5666 = vunpack.c.h.b16 %v5513
            %v5667 = vunpack.c.l.b16 %v5514
            %v5668 = vunpack.c.h.b16 %v5514
            %v5669 = vunpack.c.l.b16 %v5515
            %v5670 = vunpack.c.h.b16 %v5515
            %v5671 = vunpack.c.l.b16 %v5516
            %v5672 = vunpack.c.h.b16 %v5516
            %v5673 = vunpack.c.l.b16 %v5517
            %v5674 = vunpack.c.h.b16 %v5517
            %v5675 = vunpack.c.l.b16 %v5518
            %v5676 = vunpack.c.h.b16 %v5518
            %v5677 = vunpack.c.l.b16 %v5519
            %v5678 = vunpack.c.h.b16 %v5519
            %v5679 = vunpack.c.l.b16 %v5520
            %v5680 = vunpack.c.h.b16 %v5520
            %v5681 = vunpack.c.l.b16 %v5521
            %v5682 = vunpack.c.h.b16 %v5521
            %v5683 = vunpack.c.l.b16 %v5522
            %v5684 = vunpack.c.h.b16 %v5522
            %v5685 = vunpack.c.l.b16 %v5523
            %v5686 = vunpack.c.h.b16 %v5523
            %v5687 = vunpack.c.l.b16 %v5524
            %v5688 = vunpack.c.h.b16 %v5524
            %v5689 = vunpack.c.l.b16 %v5525
            %v5690 = vunpack.c.h.b16 %v5525
            %v5691 = vunpack.c.l.b16 %v5526
            %v5692 = vunpack.c.h.b16 %v5526
            %v5693 = vunpack.c.l.b16 %v5527
            %v5694 = vunpack.c.h.b16 %v5527
            %v5695 = vunpack.c.l.b16 %v5528
            %v5696 = vunpack.c.h.b16 %v5528
            %v5697 = vunpack.c.l.b16 %v5529
            %v5698 = vunpack.c.h.b16 %v5529
            %v5699 = vunpack.c.l.b16 %v5530
            %v5700 = vunpack.c.h.b16 %v5530
            %v5701 = vunpack.c.l.b16 %v5531
            %v5702 = vunpack.c.h.b16 %v5531
            %v5703 = vunpack.c.l.b16 %v5532
            %v5704 = vunpack.c.h.b16 %v5532
            %v5705 = vunpack.c.l.b16 %v5533
            %v5706 = vunpack.c.h.b16 %v5533
            %v5707 = vunpack.c.l.b16 %v5534
            %v5708 = vunpack.c.h.b16 %v5534
            %v5709 = vunpack.c.l.b16 %v5535
            %v5710 = vunpack.c.h.b16 %v5535
            %v5711 = vunpack.c.l.b16 %v5536
            %v5712 = vunpack.c.h.b16 %v5536
            %v5713 = vunpack.c.l.b16 %v5537
            %v5714 = vunpack.c.h.b16 %v5537
            %v5715 = vunpack.c.l.b16 %v5538
            %v5716 = vunpack.c.h.b16 %v5538
            %v5717 = vunpack.c.l.b16 %v5539
            %v5718 = vunpack.c.h.b16 %v5539
            %v5719 = vunpack.c.l.b16 %v5540
            %v5720 = vunpack.c.h.b16 %v5540
            %v5721 = vunpack.c.l.b16 %v5541
            %v5722 = vunpack.c.h.b16 %v5541
            %v5723 = vunpack.c.l.b16 %v5542
            %v5724 = vunpack.c.h.b16 %v5542
            %v5725 = vunpack.c.l.b16 %v5543
            %v5726 = vunpack.c.h.b16 %v5543
            %v5727 = vunpack.c.l.b16 %v5544
            %v5728 = vunpack.c.h.b16 %v5544
            %v5729 = vunpack.c.l.b16 %v5545
            %v5730 = vunpack.c.h.b16 %v5545
            %v5731 = vunpack.c.l.b16 %v5546
            %v5732 = vunpack.c.h.b16 %v5546
            %v5733 = vunpack.c.l.b16 %v5547
            %v5734 = vunpack.c.h.b16 %v5547
            %v5735 = vunpack.c.l.b16 %v5548
            %v5736 = vunpack.c.h.b16 %v5548
            %v5737 = vunpack.c.l.b16 %v5549
            %v5738 = vunpack.c.h.b16 %v5549
            %v5739 = vunpack.c.l.b16 %v5550
            %v5740 = vunpack.c.h.b16 %v5550
            %v5741 = vunpack.c.l.b16 %v5551
            %v5742 = vunpack.c.h.b16 %v5551
            %v5743 = vunpack.c.l.b16 %v5552
            %v5744 = vunpack.c.h.b16 %v5552
            %v5745 = vunpack.c.l.b16 %v5553
            %v5746 = vunpack.c.h.b16 %v5553
            %v5747 = vpack.c.b16 %v5621, %v5619
            %v5748 = vpack.c.b16 %v5622, %v5620
            %v5749 = vpack.c.b16 %v5625, %v5623
            %v5750 = vpack.c.b16 %v5626, %v5624
            %v5751 = vpack.c.b16 %v5629, %v5627
            %v5752 = vpack.c.b16 %v5630, %v5628
            %v5753 = vpack.c.b16 %v5633, %v5631
            %v5754 = vpack.c.b16 %v5634, %v5632
            %v5755 = vpack.c.b16 %v5637, %v5635
            %v5756 = vpack.c.b16 %v5638, %v5636
            %v5757 = vpack.c.b16 %v5641, %v5639
            %v5758 = vpack.c.b16 %v5642, %v5640
            %v5759 = vpack.c.b16 %v5645, %v5643
            %v5760 = vpack.c.b16 %v5646, %v5644
            %v5761 = vpack.c.b16 %v5649, %v5647
            %v5762 = vpack.c.b16 %v5650, %v5648
            %v5763 = vpack.c.b16 %v5653, %v5651
            %v5764 = vpack.c.b16 %v5654, %v5652
            %v5765 = vpack.c.b16 %v5657, %v5655
            %v5766 = vpack.c.b16 %v5658, %v5656
            %v5767 = vpack.c.b16 %v5661, %v5659
            %v5768 = vpack.c.b16 %v5662, %v5660
            %v5769 = vpack.c.b16 %v5665, %v5663
            %v5770 = vpack.c.b16 %v5666, %v5664
            %v5771 = vpack.c.b16 %v5669, %v5667
            %v5772 = vpack.c.b16 %v5670, %v5668
            %v5773 = vpack.c.b16 %v5673, %v5671
            %v5774 = vpack.c.b16 %v5674, %v5672
            %v5775 = vpack.c.b16 %v5677, %v5675
            %v5776 = vpack.c.b16 %v5678, %v5676
            %v5777 = vpack.c.b16 %v5681, %v5679
            %v5778 = vpack.c.b16 %v5682, %v5680
            %v5779 = vpack.c.b16 %v5685, %v5683
            %v5780 = vpack.c.b16 %v5686, %v5684
            %v5781 = vpack.c.b16 %v5689, %v5687
            %v5782 = vpack.c.b16 %v5690, %v5688
            %v5783 = vpack.c.b16 %v5693, %v5691
            %v5784 = vpack.c.b16 %v5694, %v5692
            %v5785 = vpack.c.b16 %v5697, %v5695
            %v5786 = vpack.c.b16 %v5698, %v5696
            %v5787 = vpack.c.b16 %v5701, %v5699
            %v5788 = vpack.c.b16 %v5702, %v5700
            %v5789 = vpack.c.b16 %v5705, %v5703
            %v5790 = vpack.c.b16 %v5706, %v5704
            %v5791 = vpack.c.b16 %v5709, %v5707
            %v5792 = vpack.c.b16 %v5710, %v5708
            %v5793 = vpack.c.b16 %v5713, %v5711
            %v5794 = vpack.c.b16 %v5714, %v5712
            %v5795 = vpack.c.b16 %v5717, %v5715
            %v5796 = vpack.c.b16 %v5718, %v5716
            %v5797 = vpack.c.b16 %v5721, %v5719
            %v5798 = vpack.c.b16 %v5722, %v5720
            %v5799 = vpack.c.b16 %v5725, %v5723
            %v5800 = vpack.c.b16 %v5726, %v5724
            %v5801 = vpack.c.b16 %v5729, %v5727
            %v5802 = vpack.c.b16 %v5730, %v5728
            %v5803 = vpack.c.b16 %v5733, %v5731
            %v5804 = vpack.c.b16 %v5734, %v5732
            %v5805 = vpack.c.b16 %v5737, %v5735
            %v5806 = vpack.c.b16 %v5738, %v5736
            %v5807 = vpack.c.b16 %v5741, %v5739
            %v5808 = vpack.c.b16 %v5742, %v5740
            %v5809 = vpack.c.b16 %v5745, %v5743
            %v5810 = vpack.c.b16 %v5746, %v5744
            %v5876 = vperm.slane %v5554, 0
            %v5877 = vperm.slane %v5554, 1
            %5880 = vmatpush.bf16.msra.mxu0 %v5761
            %5881 = vmatpush.bf16.msra.mxu0 %v5759
            %5882 = vmatpush.bf16.msra.mxu0 %v5757
            %5883 = vmatpush.bf16.msra.mxu0 %v5755
            %5884 = vmatpush.bf16.msra.mxu0 %v5753
            %5885 = vmatpush.bf16.msra.mxu0 %v5751
            %5886 = vmatpush.bf16.msra.mxu0 %v5749
            %5887 = vmatpush.bf16.msra.mxu0 %v5747
            %5888 = vmatmul.bf16.gmra.mxu0 %v5486
            %v5889 = vpop.f32.mrf.mxu0
            %v5890 = vadd.f32 %v5876, %v5889
            %v5891 = vpop.f32.mrf.mxu0
            %5892 = vdwg.mxu0
            %5893 = vmatpush.bf16.msra.mxu0 %v5777
            %5894 = vmatpush.bf16.msra.mxu0 %v5775
            %5895 = vmatpush.bf16.msra.mxu0 %v5773
            %5896 = vmatpush.bf16.msra.mxu0 %v5771
            %5897 = vmatpush.bf16.msra.mxu0 %v5769
            %5898 = vmatpush.bf16.msra.mxu0 %v5767
            %5899 = vmatpush.bf16.msra.mxu0 %v5765
            %5900 = vmatpush.bf16.msra.mxu0 %v5763
            %5901 = vmatmul.bf16.gmra.mxu0 %v5487
            %v5902 = vpop.f32.mrf.mxu0
            %v5903 = vadd.f32 %v5890, %v5902
            %v5904 = vpop.f32.mrf.mxu0
            %5905 = vdwg.mxu0
            %5906 = vmatpush.bf16.msra.mxu0 %v5793
            %5907 = vmatpush.bf16.msra.mxu0 %v5791
            %5908 = vmatpush.bf16.msra.mxu0 %v5789
            %5909 = vmatpush.bf16.msra.mxu0 %v5787
            %5910 = vmatpush.bf16.msra.mxu0 %v5785
            %5911 = vmatpush.bf16.msra.mxu0 %v5783
            %5912 = vmatpush.bf16.msra.mxu0 %v5781
            %5913 = vmatpush.bf16.msra.mxu0 %v5779
            %5914 = vmatmul.bf16.gmra.mxu0 %v5488
            %v5915 = vpop.f32.mrf.mxu0
            %v5916 = vadd.f32 %v5903, %v5915
            %v5917 = vpop.f32.mrf.mxu0
            %5918 = vdwg.mxu0
            %5919 = vmatpush.bf16.msra.mxu0 %v5809
            %5920 = vmatpush.bf16.msra.mxu0 %v5807
            %5921 = vmatpush.bf16.msra.mxu0 %v5805
            %5922 = vmatpush.bf16.msra.mxu0 %v5803
            %5923 = vmatpush.bf16.msra.mxu0 %v5801
            %5924 = vmatpush.bf16.msra.mxu0 %v5799
            %5925 = vmatpush.bf16.msra.mxu0 %v5797
            %5926 = vmatpush.bf16.msra.mxu0 %v5795
            %5927 = vmatmul.bf16.gmra.mxu0 %v5489
            %v5928 = vpop.f32.mrf.mxu0
            %v5929 = vadd.f32 %v5916, %v5928
            %v5930 = vpop.f32.mrf.mxu0
            %5931 = vdwg.mxu0
            %5932 = vmatpush.bf16.msra.mxu0 %v5762
            %5933 = vmatpush.bf16.msra.mxu0 %v5760
            %5934 = vmatpush.bf16.msra.mxu0 %v5758
            %5935 = vmatpush.bf16.msra.mxu0 %v5756
            %5936 = vmatpush.bf16.msra.mxu0 %v5754
            %5937 = vmatpush.bf16.msra.mxu0 %v5752
            %5938 = vmatpush.bf16.msra.mxu0 %v5750
            %5939 = vmatpush.bf16.msra.mxu0 %v5748
            %5940 = vmatmul.bf16.gmra.mxu0 %v5486
            %v5941 = vpop.f32.mrf.mxu0
            %v5942 = vadd.f32 %v5877, %v5941
            %v5943 = vpop.f32.mrf.mxu0
            %5944 = vdwg.mxu0
            %5945 = vmatpush.bf16.msra.mxu0 %v5778
            %5946 = vmatpush.bf16.msra.mxu0 %v5776
            %5947 = vmatpush.bf16.msra.mxu0 %v5774
            %5948 = vmatpush.bf16.msra.mxu0 %v5772
            %5949 = vmatpush.bf16.msra.mxu0 %v5770
            %5950 = vmatpush.bf16.msra.mxu0 %v5768
            %5951 = vmatpush.bf16.msra.mxu0 %v5766
            %5952 = vmatpush.bf16.msra.mxu0 %v5764
            %5953 = vmatmul.bf16.gmra.mxu0 %v5487
            %v5954 = vpop.f32.mrf.mxu0
            %v5955 = vadd.f32 %v5942, %v5954
            %v5956 = vpop.f32.mrf.mxu0
            %5957 = vdwg.mxu0
            %5958 = vmatpush.bf16.msra.mxu0 %v5794
            %5959 = vmatpush.bf16.msra.mxu0 %v5792
            %5960 = vmatpush.bf16.msra.mxu0 %v5790
            %5961 = vmatpush.bf16.msra.mxu0 %v5788
            %5962 = vmatpush.bf16.msra.mxu0 %v5786
            %5963 = vmatpush.bf16.msra.mxu0 %v5784
            %5964 = vmatpush.bf16.msra.mxu0 %v5782
            %5965 = vmatpush.bf16.msra.mxu0 %v5780
            %5966 = vmatmul.bf16.gmra.mxu0 %v5488
            %v5967 = vpop.f32.mrf.mxu0
            %v5968 = vadd.f32 %v5955, %v5967
            %v5969 = vpop.f32.mrf.mxu0
            %5970 = vdwg.mxu0
            %5971 = vmatpush.bf16.msra.mxu0 %v5810
            %5972 = vmatpush.bf16.msra.mxu0 %v5808
            %5973 = vmatpush.bf16.msra.mxu0 %v5806
            %5974 = vmatpush.bf16.msra.mxu0 %v5804
            %5975 = vmatpush.bf16.msra.mxu0 %v5802
            %5976 = vmatpush.bf16.msra.mxu0 %v5800
            %5977 = vmatpush.bf16.msra.mxu0 %v5798
            %5978 = vmatpush.bf16.msra.mxu0 %v5796
            %5979 = vmatmul.bf16.gmra.mxu0 %v5489
            %v5980 = vpop.f32.mrf.mxu0
            %v5981 = vadd.f32 %v5968, %v5980
            %v5982 = vpop.f32.mrf.mxu0
            %5983 = vdwg.mxu0
            %v5984 = vmax.f32 %v5929, 0.0
            %v5985 = vmax.f32 %v5981, 0.0
            %v5986 = vpack.c.bf16 %v5984, %v5984
            %v5987 = vpack.c.bf16 %v5985, %v5985
            %v5988 = vld [vmem:[#allocation11] sm:$0xf]
            %v5989 = vld [vmem:[#allocation11 + $0x4] sm:$0xf]
            %v5990 = vld [vmem:[#allocation11 + $0x8] sm:$0xf]
            %v5991 = vld [vmem:[#allocation11 + $0xc] sm:$0xf]
            %v5992 = vld [vmem:[#allocation11 + $0x10] sm:$0xf]
            %v5993 = vld [vmem:[#allocation11 + $0x14] sm:$0xf]
            %v5994 = vld [vmem:[#allocation11 + $0x18] sm:$0xf]
            %v5995 = vld [vmem:[#allocation11 + $0x1c] sm:$0xf]
            %v5996 = vld [vmem:[#allocation11 + $0x20] sm:$0xf]
            %v5997 = vld [vmem:[#allocation11 + $0x24] sm:$0xf]
            %v5998 = vld [vmem:[#allocation11 + $0x28] sm:$0xf]
            %v5999 = vld [vmem:[#allocation11 + $0x2c] sm:$0xf]
            %v6000 = vld [vmem:[#allocation11 + $0x30] sm:$0xf]
            %v6001 = vld [vmem:[#allocation11 + $0x34] sm:$0xf]
            %v6002 = vld [vmem:[#allocation11 + $0x38] sm:$0xf]
            %v6003 = vld [vmem:[#allocation11 + $0x3c] sm:$0xf]
            %v6004 = vld [vmem:[#allocation11 + $0x40] sm:$0xf]
            %v6005 = vld [vmem:[#allocation11 + $0x44] sm:$0xf]
            %v6006 = vld [vmem:[#allocation11 + $0x48] sm:$0xf]
            %v6007 = vld [vmem:[#allocation11 + $0x4c] sm:$0xf]
            %v6008 = vld [vmem:[#allocation11 + $0x50] sm:$0xf]
            %v6009 = vld [vmem:[#allocation11 + $0x54] sm:$0xf]
            %v6010 = vld [vmem:[#allocation11 + $0x58] sm:$0xf]
            %v6011 = vld [vmem:[#allocation11 + $0x5c] sm:$0xf]
            %v6012 = vld [vmem:[#allocation11 + $0x60] sm:$0xf]
            %v6013 = vld [vmem:[#allocation11 + $0x64] sm:$0xf]
            %v6014 = vld [vmem:[#allocation11 + $0x68] sm:$0xf]
            %v6015 = vld [vmem:[#allocation11 + $0x6c] sm:$0xf]
            %v6016 = vld [vmem:[#allocation11 + $0x70] sm:$0xf]
            %v6017 = vld [vmem:[#allocation11 + $0x74] sm:$0xf]
            %v6018 = vld [vmem:[#allocation11 + $0x78] sm:$0xf]
            %v6019 = vld [vmem:[#allocation11 + $0x7c] sm:$0xf]
            %v6020 = vld [vmem:[%s13] sm:$0x1]
            %v6053 = vunpack.c.l.b16 %v5988
            %v6054 = vunpack.c.l.b16 %v5989
            %v6055 = vunpack.c.l.b16 %v5990
            %v6056 = vunpack.c.l.b16 %v5991
            %v6057 = vunpack.c.l.b16 %v5992
            %v6058 = vunpack.c.l.b16 %v5993
            %v6059 = vunpack.c.l.b16 %v5994
            %v6060 = vunpack.c.l.b16 %v5995
            %v6061 = vunpack.c.l.b16 %v5996
            %v6062 = vunpack.c.l.b16 %v5997
            %v6063 = vunpack.c.l.b16 %v5998
            %v6064 = vunpack.c.l.b16 %v5999
            %v6065 = vunpack.c.l.b16 %v6000
            %v6066 = vunpack.c.l.b16 %v6001
            %v6067 = vunpack.c.l.b16 %v6002
            %v6068 = vunpack.c.l.b16 %v6003
            %v6069 = vunpack.c.l.b16 %v6004
            %v6070 = vunpack.c.l.b16 %v6005
            %v6071 = vunpack.c.l.b16 %v6006
            %v6072 = vunpack.c.l.b16 %v6007
            %v6073 = vunpack.c.l.b16 %v6008
            %v6074 = vunpack.c.l.b16 %v6009
            %v6075 = vunpack.c.l.b16 %v6010
            %v6076 = vunpack.c.l.b16 %v6011
            %v6077 = vunpack.c.l.b16 %v6012
            %v6078 = vunpack.c.l.b16 %v6013
            %v6079 = vunpack.c.l.b16 %v6014
            %v6080 = vunpack.c.l.b16 %v6015
            %v6081 = vunpack.c.l.b16 %v6016
            %v6082 = vunpack.c.l.b16 %v6017
            %v6083 = vunpack.c.l.b16 %v6018
            %v6084 = vunpack.c.l.b16 %v6019
            %v6085 = vpack.c.b16 %v6054, %v6053
            %v6086 = vpack.c.b16 %v6056, %v6055
            %v6087 = vpack.c.b16 %v6058, %v6057
            %v6088 = vpack.c.b16 %v6060, %v6059
            %v6089 = vpack.c.b16 %v6062, %v6061
            %v6090 = vpack.c.b16 %v6064, %v6063
            %v6091 = vpack.c.b16 %v6066, %v6065
            %v6092 = vpack.c.b16 %v6068, %v6067
            %v6093 = vpack.c.b16 %v6070, %v6069
            %v6094 = vpack.c.b16 %v6072, %v6071
            %v6095 = vpack.c.b16 %v6074, %v6073
            %v6096 = vpack.c.b16 %v6076, %v6075
            %v6097 = vpack.c.b16 %v6078, %v6077
            %v6098 = vpack.c.b16 %v6080, %v6079
            %v6099 = vpack.c.b16 %v6082, %v6081
            %v6100 = vpack.c.b16 %v6084, %v6083
            %6117 = vmatpush.bf16.msra.mxu0 %v6092
            %6118 = vmatpush.bf16.msra.mxu0 %v6091
            %6119 = vmatpush.bf16.msra.mxu0 %v6090
            %6120 = vmatpush.bf16.msra.mxu0 %v6089
            %6121 = vmatpush.bf16.msra.mxu0 %v6088
            %6122 = vmatpush.bf16.msra.mxu0 %v6087
            %6123 = vmatpush.bf16.msra.mxu0 %v6086
            %6124 = vmatpush.bf16.msra.mxu0 %v6085
            %6125 = vmatmul.bf16.gmra.mxu0 %v5986
            %v6126 = vpop.f32.mrf.mxu0
            %v6127 = vadd.f32 %v6020, %v6126
            %v6128 = vpop.f32.mrf.mxu0
            %6129 = vdwg.mxu0
            %6130 = vmatpush.bf16.msra.mxu0 %v6100
            %6131 = vmatpush.bf16.msra.mxu0 %v6099
            %6132 = vmatpush.bf16.msra.mxu0 %v6098
            %6133 = vmatpush.bf16.msra.mxu0 %v6097
            %6134 = vmatpush.bf16.msra.mxu0 %v6096
            %6135 = vmatpush.bf16.msra.mxu0 %v6095
            %6136 = vmatpush.bf16.msra.mxu0 %v6094
            %6137 = vmatpush.bf16.msra.mxu0 %v6093
            %6138 = vmatmul.bf16.gmra.mxu0 %v5987
            %v6139 = vpop.f32.mrf.mxu0
            %v6140 = vadd.f32 %v6127, %v6139
            %v6141 = vpop.f32.mrf.mxu0
            %6142 = vdwg.mxu0
            %6143 = vst [vmem:[#allocation4] sm:$0x1] %v6140
          $region108: #{tpu_custom_call.1} parent=103 // pred_fallthru
            _
          %s6144 = sshra.s32 %s596, 3
          %s6145 = sand.u32 %s596, 7
          %s6146 = smul.u32 %s6144, 8
          %s6147 = smul.addr %s6146, 4
          %s6148 = scalar_lea.vmem [#allocation2], %s6147
          %v6149 = vld [vmem:[%s6148] sm:$0xff]
          %v6150 = vld [vmem:[%s6148 + $0x8] sm:$0xff]
          %v6151 = vld [vmem:[%s6148 + $0x10] sm:$0xff]
          %v6152 = vld [vmem:[%s6148 + $0x18] sm:$0xff]
          %v6153 = vld [vmem:[%s6148 + $0x20] sm:$0xff]
          %v6154 = vld [vmem:[%s6148 + $0x28] sm:$0xff]
          %v6155 = vld [vmem:[%s6148 + $0x30] sm:$0xff]
          %v6156 = vld [vmem:[%s6148 + $0x38] sm:$0xff]
          %v6157 = vld [vmem:[%s6148 + $0x40] sm:$0xff]
          %v6158 = vld [vmem:[%s6148 + $0x48] sm:$0xff]
          %v6159 = vld [vmem:[%s6148 + $0x50] sm:$0xff]
          %v6160 = vld [vmem:[%s6148 + $0x58] sm:$0xff]
          %v6161 = vld [vmem:[%s6148 + $0x60] sm:$0xff]
          %v6162 = vld [vmem:[%s6148 + $0x68] sm:$0xff]
          %v6163 = vld [vmem:[%s6148 + $0x70] sm:$0xff]
          %v6164 = vld [vmem:[%s6148 + $0x78] sm:$0xff]
          %v6165 = vld [vmem:[%s6148 + $0x80] sm:$0xff]
          %v6166 = vld [vmem:[%s6148 + $0x88] sm:$0xff]
          %v6167 = vld [vmem:[%s6148 + $0x90] sm:$0xff]
          %v6168 = vld [vmem:[%s6148 + $0x98] sm:$0xff]
          %v6169 = vld [vmem:[%s6148 + $0xa0] sm:$0xff]
          %v6170 = vld [vmem:[%s6148 + $0xa8] sm:$0xff]
          %v6171 = vld [vmem:[%s6148 + $0xb0] sm:$0xff]
          %v6172 = vld [vmem:[%s6148 + $0xb8] sm:$0xff]
          %v6173 = vld [vmem:[%s6148 + $0xc0] sm:$0xff]
          %v6174 = vld [vmem:[%s6148 + $0xc8] sm:$0xff]
          %v6175 = vld [vmem:[%s6148 + $0xd0] sm:$0xff]
          %v6176 = vld [vmem:[%s6148 + $0xd8] sm:$0xff]
          %v6177 = vld [vmem:[%s6148 + $0xe0] sm:$0xff]
          %v6178 = vld [vmem:[%s6148 + $0xe8] sm:$0xff]
          %v6179 = vld [vmem:[%s6148 + $0xf0] sm:$0xff]
          %v6180 = vld [vmem:[%s6148 + $0xf8] sm:$0xff]
          %v6181 = vld [vmem:[%s6148 + $0x100] sm:$0xff]
          %v6182 = vld [vmem:[%s6148 + $0x108] sm:$0xff]
          %v6183 = vld [vmem:[%s6148 + $0x110] sm:$0xff]
          %v6184 = vld [vmem:[%s6148 + $0x118] sm:$0xff]
          %v6185 = vld [vmem:[%s6148 + $0x120] sm:$0xff]
          %v6186 = vld [vmem:[%s6148 + $0x128] sm:$0xff]
          %v6187 = vld [vmem:[%s6148 + $0x130] sm:$0xff]
          %v6188 = vld [vmem:[%s6148 + $0x138] sm:$0xff]
          %v6189 = vld [vmem:[%s6148 + $0x140] sm:$0xff]
          %v6190 = vld [vmem:[%s6148 + $0x148] sm:$0xff]
          %v6191 = vld [vmem:[%s6148 + $0x150] sm:$0xff]
          %v6192 = vld [vmem:[%s6148 + $0x158] sm:$0xff]
          %v6193 = vld [vmem:[%s6148 + $0x160] sm:$0xff]
          %v6194 = vld [vmem:[%s6148 + $0x168] sm:$0xff]
          %v6195 = vld [vmem:[%s6148 + $0x170] sm:$0xff]
          %v6196 = vld [vmem:[%s6148 + $0x178] sm:$0xff]
          %v6197 = vld [vmem:[%s6148 + $0x180] sm:$0xff]
          %v6198 = vld [vmem:[%s6148 + $0x188] sm:$0xff]
          %v6199 = vld [vmem:[%s6148 + $0x190] sm:$0xff]
          %v6200 = vld [vmem:[%s6148 + $0x198] sm:$0xff]
          %v6201 = vld [vmem:[%s6148 + $0x1a0] sm:$0xff]
          %v6202 = vld [vmem:[%s6148 + $0x1a8] sm:$0xff]
          %v6203 = vld [vmem:[%s6148 + $0x1b0] sm:$0xff]
          %v6204 = vld [vmem:[%s6148 + $0x1b8] sm:$0xff]
          %v6205 = vld [vmem:[%s6148 + $0x1c0] sm:$0xff]
          %v6206 = vld [vmem:[%s6148 + $0x1c8] sm:$0xff]
          %v6207 = vld [vmem:[%s6148 + $0x1d0] sm:$0xff]
          %v6208 = vld [vmem:[%s6148 + $0x1d8] sm:$0xff]
          %v6209 = vld [vmem:[%s6148 + $0x1e0] sm:$0xff]
          %v6210 = vld [vmem:[%s6148 + $0x1e8] sm:$0xff]
          %v6211 = vld [vmem:[%s6148 + $0x1f0] sm:$0xff]
          %v6212 = vld [vmem:[%s6148 + $0x1f8] sm:$0xff]
          %v6213 = vld [vmem:[%s6148 + $0x200] sm:$0xff]
          %v6214 = vld [vmem:[%s6148 + $0x208] sm:$0xff]
          %v6215 = vld [vmem:[%s6148 + $0x210] sm:$0xff]
          %v6216 = vld [vmem:[%s6148 + $0x218] sm:$0xff]
          %v6217 = vld [vmem:[%s6148 + $0x220] sm:$0xff]
          %v6218 = vld [vmem:[%s6148 + $0x228] sm:$0xff]
          %v6219 = vld [vmem:[%s6148 + $0x230] sm:$0xff]
          %v6220 = vld [vmem:[%s6148 + $0x238] sm:$0xff]
          %v6221 = vld [vmem:[%s6148 + $0x240] sm:$0xff]
          %v6222 = vld [vmem:[%s6148 + $0x248] sm:$0xff]
          %v6223 = vld [vmem:[%s6148 + $0x250] sm:$0xff]
          %v6224 = vld [vmem:[%s6148 + $0x258] sm:$0xff]
          %v6225 = vld [vmem:[%s6148 + $0x260] sm:$0xff]
          %v6226 = vld [vmem:[%s6148 + $0x268] sm:$0xff]
          %v6227 = vld [vmem:[%s6148 + $0x270] sm:$0xff]
          %v6228 = vld [vmem:[%s6148 + $0x278] sm:$0xff]
          %v6229 = vld [vmem:[%s6148 + $0x280] sm:$0xff]
          %v6230 = vld [vmem:[%s6148 + $0x288] sm:$0xff]
          %v6231 = vld [vmem:[%s6148 + $0x290] sm:$0xff]
          %v6232 = vld [vmem:[%s6148 + $0x298] sm:$0xff]
          %v6233 = vld [vmem:[%s6148 + $0x2a0] sm:$0xff]
          %v6234 = vld [vmem:[%s6148 + $0x2a8] sm:$0xff]
          %v6235 = vld [vmem:[%s6148 + $0x2b0] sm:$0xff]
          %v6236 = vld [vmem:[%s6148 + $0x2b8] sm:$0xff]
          %v6237 = vld [vmem:[%s6148 + $0x2c0] sm:$0xff]
          %v6238 = vld [vmem:[%s6148 + $0x2c8] sm:$0xff]
          %v6239 = vld [vmem:[%s6148 + $0x2d0] sm:$0xff]
          %v6240 = vld [vmem:[%s6148 + $0x2d8] sm:$0xff]
          %v6241 = vld [vmem:[%s6148 + $0x2e0] sm:$0xff]
          %v6242 = vld [vmem:[%s6148 + $0x2e8] sm:$0xff]
          %v6243 = vld [vmem:[%s6148 + $0x2f0] sm:$0xff]
          %v6244 = vld [vmem:[%s6148 + $0x2f8] sm:$0xff]
          %v6245 = vld [vmem:[%s6148 + $0x300] sm:$0xff]
          %v6246 = vld [vmem:[%s6148 + $0x308] sm:$0xff]
          %v6247 = vld [vmem:[%s6148 + $0x310] sm:$0xff]
          %v6248 = vld [vmem:[%s6148 + $0x318] sm:$0xff]
          %v6249 = vld [vmem:[%s6148 + $0x320] sm:$0xff]
          %v6250 = vld [vmem:[%s6148 + $0x328] sm:$0xff]
          %v6251 = vld [vmem:[%s6148 + $0x330] sm:$0xff]
          %v6252 = vld [vmem:[%s6148 + $0x338] sm:$0xff]
          %v6253 = vld [vmem:[%s6148 + $0x340] sm:$0xff]
          %v6254 = vld [vmem:[%s6148 + $0x348] sm:$0xff]
          %v6255 = vld [vmem:[%s6148 + $0x350] sm:$0xff]
          %v6256 = vld [vmem:[%s6148 + $0x358] sm:$0xff]
          %v6257 = vld [vmem:[%s6148 + $0x360] sm:$0xff]
          %v6258 = vld [vmem:[%s6148 + $0x368] sm:$0xff]
          %v6259 = vld [vmem:[%s6148 + $0x370] sm:$0xff]
          %v6260 = vld [vmem:[%s6148 + $0x378] sm:$0xff]
          %v6261 = vld [vmem:[%s6148 + $0x380] sm:$0xff]
          %v6262 = vld [vmem:[%s6148 + $0x388] sm:$0xff]
          %v6263 = vld [vmem:[%s6148 + $0x390] sm:$0xff]
          %v6264 = vld [vmem:[%s6148 + $0x398] sm:$0xff]
          %v6265 = vld [vmem:[%s6148 + $0x3a0] sm:$0xff]
          %v6266 = vld [vmem:[%s6148 + $0x3a8] sm:$0xff]
          %v6267 = vld [vmem:[%s6148 + $0x3b0] sm:$0xff]
          %v6268 = vld [vmem:[%s6148 + $0x3b8] sm:$0xff]
          %v6269 = vld [vmem:[%s6148 + $0x3c0] sm:$0xff]
          %v6270 = vld [vmem:[%s6148 + $0x3c8] sm:$0xff]
          %v6271 = vld [vmem:[%s6148 + $0x3d0] sm:$0xff]
          %v6272 = vld [vmem:[%s6148 + $0x3d8] sm:$0xff]
          %v6273 = vld [vmem:[%s6148 + $0x3e0] sm:$0xff]
          %v6274 = vld [vmem:[%s6148 + $0x3e8] sm:$0xff]
          %v6275 = vld [vmem:[%s6148 + $0x3f0] sm:$0xff]
          %v6276 = vld [vmem:[%s6148 + $0x3f8] sm:$0xff]
          %v6277 = vld [vmem:[#allocation10] sm:$0xf]
          %v6278 = vld [vmem:[#allocation10 + $0x4] sm:$0xf]
          %v6279 = vld [vmem:[#allocation10 + $0x8] sm:$0xf]
          %v6280 = vld [vmem:[#allocation10 + $0xc] sm:$0xf]
          %v6281 = vld [vmem:[#allocation10 + $0x10] sm:$0xf]
          %v6282 = vld [vmem:[#allocation10 + $0x14] sm:$0xf]
          %v6283 = vld [vmem:[#allocation10 + $0x18] sm:$0xf]
          %v6284 = vld [vmem:[#allocation10 + $0x1c] sm:$0xf]
          %v6285 = vld [vmem:[#allocation10 + $0x20] sm:$0xf]
          %v6286 = vld [vmem:[#allocation10 + $0x24] sm:$0xf]
          %v6287 = vld [vmem:[#allocation10 + $0x28] sm:$0xf]
          %v6288 = vld [vmem:[#allocation10 + $0x2c] sm:$0xf]
          %v6289 = vld [vmem:[#allocation10 + $0x30] sm:$0xf]
          %v6290 = vld [vmem:[#allocation10 + $0x34] sm:$0xf]
          %v6291 = vld [vmem:[#allocation10 + $0x38] sm:$0xf]
          %v6292 = vld [vmem:[#allocation10 + $0x3c] sm:$0xf]
          %v6293 = vld [vmem:[#allocation10 + $0x40] sm:$0xf]
          %v6294 = vld [vmem:[#allocation10 + $0x44] sm:$0xf]
          %v6295 = vld [vmem:[#allocation10 + $0x48] sm:$0xf]
          %v6296 = vld [vmem:[#allocation10 + $0x4c] sm:$0xf]
          %v6297 = vld [vmem:[#allocation10 + $0x50] sm:$0xf]
          %v6298 = vld [vmem:[#allocation10 + $0x54] sm:$0xf]
          %v6299 = vld [vmem:[#allocation10 + $0x58] sm:$0xf]
          %v6300 = vld [vmem:[#allocation10 + $0x5c] sm:$0xf]
          %v6301 = vld [vmem:[#allocation10 + $0x60] sm:$0xf]
          %v6302 = vld [vmem:[#allocation10 + $0x64] sm:$0xf]
          %v6303 = vld [vmem:[#allocation10 + $0x68] sm:$0xf]
          %v6304 = vld [vmem:[#allocation10 + $0x6c] sm:$0xf]
          %v6305 = vld [vmem:[#allocation10 + $0x70] sm:$0xf]
          %v6306 = vld [vmem:[#allocation10 + $0x74] sm:$0xf]
          %v6307 = vld [vmem:[#allocation10 + $0x78] sm:$0xf]
          %v6308 = vld [vmem:[#allocation10 + $0x7c] sm:$0xf]
          %v6309 = vld [vmem:[#allocation10 + $0x80] sm:$0xf]
          %v6310 = vld [vmem:[#allocation10 + $0x84] sm:$0xf]
          %v6311 = vld [vmem:[#allocation10 + $0x88] sm:$0xf]
          %v6312 = vld [vmem:[#allocation10 + $0x8c] sm:$0xf]
          %v6313 = vld [vmem:[#allocation10 + $0x90] sm:$0xf]
          %v6314 = vld [vmem:[#allocation10 + $0x94] sm:$0xf]
          %v6315 = vld [vmem:[#allocation10 + $0x98] sm:$0xf]
          %v6316 = vld [vmem:[#allocation10 + $0x9c] sm:$0xf]
          %v6317 = vld [vmem:[#allocation10 + $0xa0] sm:$0xf]
          %v6318 = vld [vmem:[#allocation10 + $0xa4] sm:$0xf]
          %v6319 = vld [vmem:[#allocation10 + $0xa8] sm:$0xf]
          %v6320 = vld [vmem:[#allocation10 + $0xac] sm:$0xf]
          %v6321 = vld [vmem:[#allocation10 + $0xb0] sm:$0xf]
          %v6322 = vld [vmem:[#allocation10 + $0xb4] sm:$0xf]
          %v6323 = vld [vmem:[#allocation10 + $0xb8] sm:$0xf]
          %v6324 = vld [vmem:[#allocation10 + $0xbc] sm:$0xf]
          %v6325 = vld [vmem:[#allocation10 + $0xc0] sm:$0xf]
          %v6326 = vld [vmem:[#allocation10 + $0xc4] sm:$0xf]
          %v6327 = vld [vmem:[#allocation10 + $0xc8] sm:$0xf]
          %v6328 = vld [vmem:[#allocation10 + $0xcc] sm:$0xf]
          %v6329 = vld [vmem:[#allocation10 + $0xd0] sm:$0xf]
          %v6330 = vld [vmem:[#allocation10 + $0xd4] sm:$0xf]
          %v6331 = vld [vmem:[#allocation10 + $0xd8] sm:$0xf]
          %v6332 = vld [vmem:[#allocation10 + $0xdc] sm:$0xf]
          %v6333 = vld [vmem:[#allocation10 + $0xe0] sm:$0xf]
          %v6334 = vld [vmem:[#allocation10 + $0xe4] sm:$0xf]
          %v6335 = vld [vmem:[#allocation10 + $0xe8] sm:$0xf]
          %v6336 = vld [vmem:[#allocation10 + $0xec] sm:$0xf]
          %v6337 = vld [vmem:[#allocation10 + $0xf0] sm:$0xf]
          %v6338 = vld [vmem:[#allocation10 + $0xf4] sm:$0xf]
          %v6339 = vld [vmem:[#allocation10 + $0xf8] sm:$0xf]
          %v6340 = vld [vmem:[#allocation10 + $0xfc] sm:$0xf]
          %v6341 = vld [vmem:[#allocation10 + $0x100] sm:$0xf]
          %v6342 = vld [vmem:[#allocation10 + $0x104] sm:$0xf]
          %v6343 = vld [vmem:[#allocation10 + $0x108] sm:$0xf]
          %v6344 = vld [vmem:[#allocation10 + $0x10c] sm:$0xf]
          %v6345 = vld [vmem:[#allocation10 + $0x110] sm:$0xf]
          %v6346 = vld [vmem:[#allocation10 + $0x114] sm:$0xf]
          %v6347 = vld [vmem:[#allocation10 + $0x118] sm:$0xf]
          %v6348 = vld [vmem:[#allocation10 + $0x11c] sm:$0xf]
          %v6349 = vld [vmem:[#allocation10 + $0x120] sm:$0xf]
          %v6350 = vld [vmem:[#allocation10 + $0x124] sm:$0xf]
          %v6351 = vld [vmem:[#allocation10 + $0x128] sm:$0xf]
          %v6352 = vld [vmem:[#allocation10 + $0x12c] sm:$0xf]
          %v6353 = vld [vmem:[#allocation10 + $0x130] sm:$0xf]
          %v6354 = vld [vmem:[#allocation10 + $0x134] sm:$0xf]
          %v6355 = vld [vmem:[#allocation10 + $0x138] sm:$0xf]
          %v6356 = vld [vmem:[#allocation10 + $0x13c] sm:$0xf]
          %v6357 = vld [vmem:[#allocation10 + $0x140] sm:$0xf]
          %v6358 = vld [vmem:[#allocation10 + $0x144] sm:$0xf]
          %v6359 = vld [vmem:[#allocation10 + $0x148] sm:$0xf]
          %v6360 = vld [vmem:[#allocation10 + $0x14c] sm:$0xf]
          %v6361 = vld [vmem:[#allocation10 + $0x150] sm:$0xf]
          %v6362 = vld [vmem:[#allocation10 + $0x154] sm:$0xf]
          %v6363 = vld [vmem:[#allocation10 + $0x158] sm:$0xf]
          %v6364 = vld [vmem:[#allocation10 + $0x15c] sm:$0xf]
          %v6365 = vld [vmem:[#allocation10 + $0x160] sm:$0xf]
          %v6366 = vld [vmem:[#allocation10 + $0x164] sm:$0xf]
          %v6367 = vld [vmem:[#allocation10 + $0x168] sm:$0xf]
          %v6368 = vld [vmem:[#allocation10 + $0x16c] sm:$0xf]
          %v6369 = vld [vmem:[#allocation10 + $0x170] sm:$0xf]
          %v6370 = vld [vmem:[#allocation10 + $0x174] sm:$0xf]
          %v6371 = vld [vmem:[#allocation10 + $0x178] sm:$0xf]
          %v6372 = vld [vmem:[#allocation10 + $0x17c] sm:$0xf]
          %v6373 = vld [vmem:[#allocation10 + $0x180] sm:$0xf]
          %v6374 = vld [vmem:[#allocation10 + $0x184] sm:$0xf]
          %v6375 = vld [vmem:[#allocation10 + $0x188] sm:$0xf]
          %v6376 = vld [vmem:[#allocation10 + $0x18c] sm:$0xf]
          %v6377 = vld [vmem:[#allocation10 + $0x190] sm:$0xf]
          %v6378 = vld [vmem:[#allocation10 + $0x194] sm:$0xf]
          %v6379 = vld [vmem:[#allocation10 + $0x198] sm:$0xf]
          %v6380 = vld [vmem:[#allocation10 + $0x19c] sm:$0xf]
          %v6381 = vld [vmem:[#allocation10 + $0x1a0] sm:$0xf]
          %v6382 = vld [vmem:[#allocation10 + $0x1a4] sm:$0xf]
          %v6383 = vld [vmem:[#allocation10 + $0x1a8] sm:$0xf]
          %v6384 = vld [vmem:[#allocation10 + $0x1ac] sm:$0xf]
          %v6385 = vld [vmem:[#allocation10 + $0x1b0] sm:$0xf]
          %v6386 = vld [vmem:[#allocation10 + $0x1b4] sm:$0xf]
          %v6387 = vld [vmem:[#allocation10 + $0x1b8] sm:$0xf]
          %v6388 = vld [vmem:[#allocation10 + $0x1bc] sm:$0xf]
          %v6389 = vld [vmem:[#allocation10 + $0x1c0] sm:$0xf]
          %v6390 = vld [vmem:[#allocation10 + $0x1c4] sm:$0xf]
          %v6391 = vld [vmem:[#allocation10 + $0x1c8] sm:$0xf]
          %v6392 = vld [vmem:[#allocation10 + $0x1cc] sm:$0xf]
          %v6393 = vld [vmem:[#allocation10 + $0x1d0] sm:$0xf]
          %v6394 = vld [vmem:[#allocation10 + $0x1d4] sm:$0xf]
          %v6395 = vld [vmem:[#allocation10 + $0x1d8] sm:$0xf]
          %v6396 = vld [vmem:[#allocation10 + $0x1dc] sm:$0xf]
          %v6397 = vld [vmem:[#allocation10 + $0x1e0] sm:$0xf]
          %v6398 = vld [vmem:[#allocation10 + $0x1e4] sm:$0xf]
          %v6399 = vld [vmem:[#allocation10 + $0x1e8] sm:$0xf]
          %v6400 = vld [vmem:[#allocation10 + $0x1ec] sm:$0xf]
          %v6401 = vld [vmem:[#allocation10 + $0x1f0] sm:$0xf]
          %v6402 = vld [vmem:[#allocation10 + $0x1f4] sm:$0xf]
          %v6403 = vld [vmem:[#allocation10 + $0x1f8] sm:$0xf]
          %v6404 = vld [vmem:[#allocation10 + $0x1fc] sm:$0xf]
          %v6405 = vld [vmem:[#allocation4] sm:$0x1]
          %v6407 = vperm.slane %v6405, 0
          %v6537 = vunpack.c.l.b16 %v6149
          %v6538 = vunpack.c.h.b16 %v6149
          %v6539 = vunpack.c.l.b16 %v6150
          %v6540 = vunpack.c.h.b16 %v6150
          %v6541 = vunpack.c.l.b16 %v6151
          %v6542 = vunpack.c.h.b16 %v6151
          %v6543 = vunpack.c.l.b16 %v6152
          %v6544 = vunpack.c.h.b16 %v6152
          %v6545 = vunpack.c.l.b16 %v6153
          %v6546 = vunpack.c.h.b16 %v6153
          %v6547 = vunpack.c.l.b16 %v6154
          %v6548 = vunpack.c.h.b16 %v6154
          %v6549 = vunpack.c.l.b16 %v6155
          %v6550 = vunpack.c.h.b16 %v6155
          %v6551 = vunpack.c.l.b16 %v6156
          %v6552 = vunpack.c.h.b16 %v6156
          %v6553 = vunpack.c.l.b16 %v6157
          %v6554 = vunpack.c.h.b16 %v6157
          %v6555 = vunpack.c.l.b16 %v6158
          %v6556 = vunpack.c.h.b16 %v6158
          %v6557 = vunpack.c.l.b16 %v6159
          %v6558 = vunpack.c.h.b16 %v6159
          %v6559 = vunpack.c.l.b16 %v6160
          %v6560 = vunpack.c.h.b16 %v6160
          %v6561 = vunpack.c.l.b16 %v6161
          %v6562 = vunpack.c.h.b16 %v6161
          %v6563 = vunpack.c.l.b16 %v6162
          %v6564 = vunpack.c.h.b16 %v6162
          %v6565 = vunpack.c.l.b16 %v6163
          %v6566 = vunpack.c.h.b16 %v6163
          %v6567 = vunpack.c.l.b16 %v6164
          %v6568 = vunpack.c.h.b16 %v6164
          %v6569 = vunpack.c.l.b16 %v6165
          %v6570 = vunpack.c.h.b16 %v6165
          %v6571 = vunpack.c.l.b16 %v6166
          %v6572 = vunpack.c.h.b16 %v6166
          %v6573 = vunpack.c.l.b16 %v6167
          %v6574 = vunpack.c.h.b16 %v6167
          %v6575 = vunpack.c.l.b16 %v6168
          %v6576 = vunpack.c.h.b16 %v6168
          %v6577 = vunpack.c.l.b16 %v6169
          %v6578 = vunpack.c.h.b16 %v6169
          %v6579 = vunpack.c.l.b16 %v6170
          %v6580 = vunpack.c.h.b16 %v6170
          %v6581 = vunpack.c.l.b16 %v6171
          %v6582 = vunpack.c.h.b16 %v6171
          %v6583 = vunpack.c.l.b16 %v6172
          %v6584 = vunpack.c.h.b16 %v6172
          %v6585 = vunpack.c.l.b16 %v6173
          %v6586 = vunpack.c.h.b16 %v6173
          %v6587 = vunpack.c.l.b16 %v6174
          %v6588 = vunpack.c.h.b16 %v6174
          %v6589 = vunpack.c.l.b16 %v6175
          %v6590 = vunpack.c.h.b16 %v6175
          %v6591 = vunpack.c.l.b16 %v6176
          %v6592 = vunpack.c.h.b16 %v6176
          %v6593 = vunpack.c.l.b16 %v6177
          %v6594 = vunpack.c.h.b16 %v6177
          %v6595 = vunpack.c.l.b16 %v6178
          %v6596 = vunpack.c.h.b16 %v6178
          %v6597 = vunpack.c.l.b16 %v6179
          %v6598 = vunpack.c.h.b16 %v6179
          %v6599 = vunpack.c.l.b16 %v6180
          %v6600 = vunpack.c.h.b16 %v6180
          %v6601 = vunpack.c.l.b16 %v6181
          %v6602 = vunpack.c.h.b16 %v6181
          %v6603 = vunpack.c.l.b16 %v6182
          %v6604 = vunpack.c.h.b16 %v6182
          %v6605 = vunpack.c.l.b16 %v6183
          %v6606 = vunpack.c.h.b16 %v6183
          %v6607 = vunpack.c.l.b16 %v6184
          %v6608 = vunpack.c.h.b16 %v6184
          %v6609 = vunpack.c.l.b16 %v6185
          %v6610 = vunpack.c.h.b16 %v6185
          %v6611 = vunpack.c.l.b16 %v6186
          %v6612 = vunpack.c.h.b16 %v6186
          %v6613 = vunpack.c.l.b16 %v6187
          %v6614 = vunpack.c.h.b16 %v6187
          %v6615 = vunpack.c.l.b16 %v6188
          %v6616 = vunpack.c.h.b16 %v6188
          %v6617 = vunpack.c.l.b16 %v6189
          %v6618 = vunpack.c.h.b16 %v6189
          %v6619 = vunpack.c.l.b16 %v6190
          %v6620 = vunpack.c.h.b16 %v6190
          %v6621 = vunpack.c.l.b16 %v6191
          %v6622 = vunpack.c.h.b16 %v6191
          %v6623 = vunpack.c.l.b16 %v6192
          %v6624 = vunpack.c.h.b16 %v6192
          %v6625 = vunpack.c.l.b16 %v6193
          %v6626 = vunpack.c.h.b16 %v6193
          %v6627 = vunpack.c.l.b16 %v6194
          %v6628 = vunpack.c.h.b16 %v6194
          %v6629 = vunpack.c.l.b16 %v6195
          %v6630 = vunpack.c.h.b16 %v6195
          %v6631 = vunpack.c.l.b16 %v6196
          %v6632 = vunpack.c.h.b16 %v6196
          %v6633 = vunpack.c.l.b16 %v6197
          %v6634 = vunpack.c.h.b16 %v6197
          %v6635 = vunpack.c.l.b16 %v6198
          %v6636 = vunpack.c.h.b16 %v6198
          %v6637 = vunpack.c.l.b16 %v6199
          %v6638 = vunpack.c.h.b16 %v6199
          %v6639 = vunpack.c.l.b16 %v6200
          %v6640 = vunpack.c.h.b16 %v6200
          %v6641 = vunpack.c.l.b16 %v6201
          %v6642 = vunpack.c.h.b16 %v6201
          %v6643 = vunpack.c.l.b16 %v6202
          %v6644 = vunpack.c.h.b16 %v6202
          %v6645 = vunpack.c.l.b16 %v6203
          %v6646 = vunpack.c.h.b16 %v6203
          %v6647 = vunpack.c.l.b16 %v6204
          %v6648 = vunpack.c.h.b16 %v6204
          %v6649 = vunpack.c.l.b16 %v6205
          %v6650 = vunpack.c.h.b16 %v6205
          %v6651 = vunpack.c.l.b16 %v6206
          %v6652 = vunpack.c.h.b16 %v6206
          %v6653 = vunpack.c.l.b16 %v6207
          %v6654 = vunpack.c.h.b16 %v6207
          %v6655 = vunpack.c.l.b16 %v6208
          %v6656 = vunpack.c.h.b16 %v6208
          %v6657 = vunpack.c.l.b16 %v6209
          %v6658 = vunpack.c.h.b16 %v6209
          %v6659 = vunpack.c.l.b16 %v6210
          %v6660 = vunpack.c.h.b16 %v6210
          %v6661 = vunpack.c.l.b16 %v6211
          %v6662 = vunpack.c.h.b16 %v6211
          %v6663 = vunpack.c.l.b16 %v6212
          %v6664 = vunpack.c.h.b16 %v6212
          %v6665 = vunpack.c.l.b16 %v6213
          %v6666 = vunpack.c.h.b16 %v6213
          %v6667 = vunpack.c.l.b16 %v6214
          %v6668 = vunpack.c.h.b16 %v6214
          %v6669 = vunpack.c.l.b16 %v6215
          %v6670 = vunpack.c.h.b16 %v6215
          %v6671 = vunpack.c.l.b16 %v6216
          %v6672 = vunpack.c.h.b16 %v6216
          %v6673 = vunpack.c.l.b16 %v6217
          %v6674 = vunpack.c.h.b16 %v6217
          %v6675 = vunpack.c.l.b16 %v6218
          %v6676 = vunpack.c.h.b16 %v6218
          %v6677 = vunpack.c.l.b16 %v6219
          %v6678 = vunpack.c.h.b16 %v6219
          %v6679 = vunpack.c.l.b16 %v6220
          %v6680 = vunpack.c.h.b16 %v6220
          %v6681 = vunpack.c.l.b16 %v6221
          %v6682 = vunpack.c.h.b16 %v6221
          %v6683 = vunpack.c.l.b16 %v6222
          %v6684 = vunpack.c.h.b16 %v6222
          %v6685 = vunpack.c.l.b16 %v6223
          %v6686 = vunpack.c.h.b16 %v6223
          %v6687 = vunpack.c.l.b16 %v6224
          %v6688 = vunpack.c.h.b16 %v6224
          %v6689 = vunpack.c.l.b16 %v6225
          %v6690 = vunpack.c.h.b16 %v6225
          %v6691 = vunpack.c.l.b16 %v6226
          %v6692 = vunpack.c.h.b16 %v6226
          %v6693 = vunpack.c.l.b16 %v6227
          %v6694 = vunpack.c.h.b16 %v6227
          %v6695 = vunpack.c.l.b16 %v6228
          %v6696 = vunpack.c.h.b16 %v6228
          %v6697 = vunpack.c.l.b16 %v6229
          %v6698 = vunpack.c.h.b16 %v6229
          %v6699 = vunpack.c.l.b16 %v6230
          %v6700 = vunpack.c.h.b16 %v6230
          %v6701 = vunpack.c.l.b16 %v6231
          %v6702 = vunpack.c.h.b16 %v6231
          %v6703 = vunpack.c.l.b16 %v6232
          %v6704 = vunpack.c.h.b16 %v6232
          %v6705 = vunpack.c.l.b16 %v6233
          %v6706 = vunpack.c.h.b16 %v6233
          %v6707 = vunpack.c.l.b16 %v6234
          %v6708 = vunpack.c.h.b16 %v6234
          %v6709 = vunpack.c.l.b16 %v6235
          %v6710 = vunpack.c.h.b16 %v6235
          %v6711 = vunpack.c.l.b16 %v6236
          %v6712 = vunpack.c.h.b16 %v6236
          %v6713 = vunpack.c.l.b16 %v6237
          %v6714 = vunpack.c.h.b16 %v6237
          %v6715 = vunpack.c.l.b16 %v6238
          %v6716 = vunpack.c.h.b16 %v6238
          %v6717 = vunpack.c.l.b16 %v6239
          %v6718 = vunpack.c.h.b16 %v6239
          %v6719 = vunpack.c.l.b16 %v6240
          %v6720 = vunpack.c.h.b16 %v6240
          %v6721 = vunpack.c.l.b16 %v6241
          %v6722 = vunpack.c.h.b16 %v6241
          %v6723 = vunpack.c.l.b16 %v6242
          %v6724 = vunpack.c.h.b16 %v6242
          %v6725 = vunpack.c.l.b16 %v6243
          %v6726 = vunpack.c.h.b16 %v6243
          %v6727 = vunpack.c.l.b16 %v6244
          %v6728 = vunpack.c.h.b16 %v6244
          %v6729 = vunpack.c.l.b16 %v6245
          %v6730 = vunpack.c.h.b16 %v6245
          %v6731 = vunpack.c.l.b16 %v6246
          %v6732 = vunpack.c.h.b16 %v6246
          %v6733 = vunpack.c.l.b16 %v6247
          %v6734 = vunpack.c.h.b16 %v6247
          %v6735 = vunpack.c.l.b16 %v6248
          %v6736 = vunpack.c.h.b16 %v6248
          %v6737 = vunpack.c.l.b16 %v6249
          %v6738 = vunpack.c.h.b16 %v6249
          %v6739 = vunpack.c.l.b16 %v6250
          %v6740 = vunpack.c.h.b16 %v6250
          %v6741 = vunpack.c.l.b16 %v6251
          %v6742 = vunpack.c.h.b16 %v6251
          %v6743 = vunpack.c.l.b16 %v6252
          %v6744 = vunpack.c.h.b16 %v6252
          %v6745 = vunpack.c.l.b16 %v6253
          %v6746 = vunpack.c.h.b16 %v6253
          %v6747 = vunpack.c.l.b16 %v6254
          %v6748 = vunpack.c.h.b16 %v6254
          %v6749 = vunpack.c.l.b16 %v6255
          %v6750 = vunpack.c.h.b16 %v6255
          %v6751 = vunpack.c.l.b16 %v6256
          %v6752 = vunpack.c.h.b16 %v6256
          %v6753 = vunpack.c.l.b16 %v6257
          %v6754 = vunpack.c.h.b16 %v6257
          %v6755 = vunpack.c.l.b16 %v6258
          %v6756 = vunpack.c.h.b16 %v6258
          %v6757 = vunpack.c.l.b16 %v6259
          %v6758 = vunpack.c.h.b16 %v6259
          %v6759 = vunpack.c.l.b16 %v6260
          %v6760 = vunpack.c.h.b16 %v6260
          %v6761 = vunpack.c.l.b16 %v6261
          %v6762 = vunpack.c.h.b16 %v6261
          %v6763 = vunpack.c.l.b16 %v6262
          %v6764 = vunpack.c.h.b16 %v6262
          %v6765 = vunpack.c.l.b16 %v6263
          %v6766 = vunpack.c.h.b16 %v6263
          %v6767 = vunpack.c.l.b16 %v6264
          %v6768 = vunpack.c.h.b16 %v6264
          %v6769 = vunpack.c.l.b16 %v6265
          %v6770 = vunpack.c.h.b16 %v6265
          %v6771 = vunpack.c.l.b16 %v6266
          %v6772 = vunpack.c.h.b16 %v6266
          %v6773 = vunpack.c.l.b16 %v6267
          %v6774 = vunpack.c.h.b16 %v6267
          %v6775 = vunpack.c.l.b16 %v6268
          %v6776 = vunpack.c.h.b16 %v6268
          %v6777 = vunpack.c.l.b16 %v6269
          %v6778 = vunpack.c.h.b16 %v6269
          %v6779 = vunpack.c.l.b16 %v6270
          %v6780 = vunpack.c.h.b16 %v6270
          %v6781 = vunpack.c.l.b16 %v6271
          %v6782 = vunpack.c.h.b16 %v6271
          %v6783 = vunpack.c.l.b16 %v6272
          %v6784 = vunpack.c.h.b16 %v6272
          %v6785 = vunpack.c.l.b16 %v6273
          %v6786 = vunpack.c.h.b16 %v6273
          %v6787 = vunpack.c.l.b16 %v6274
          %v6788 = vunpack.c.h.b16 %v6274
          %v6789 = vunpack.c.l.b16 %v6275
          %v6790 = vunpack.c.h.b16 %v6275
          %v6791 = vunpack.c.l.b16 %v6276
          %v6792 = vunpack.c.h.b16 %v6276
          %v6793 = vpack.c.b16 %v6545, %v6537
          %v6794 = vpack.c.b16 %v6546, %v6538
          %v6795 = vpack.c.b16 %v6547, %v6539
          %v6796 = vpack.c.b16 %v6548, %v6540
          %v6797 = vpack.c.b16 %v6549, %v6541
          %v6798 = vpack.c.b16 %v6550, %v6542
          %v6799 = vpack.c.b16 %v6551, %v6543
          %v6800 = vpack.c.b16 %v6552, %v6544
          %v6801 = vpack.c.b16 %v6561, %v6553
          %v6802 = vpack.c.b16 %v6562, %v6554
          %v6803 = vpack.c.b16 %v6563, %v6555
          %v6804 = vpack.c.b16 %v6564, %v6556
          %v6805 = vpack.c.b16 %v6565, %v6557
          %v6806 = vpack.c.b16 %v6566, %v6558
          %v6807 = vpack.c.b16 %v6567, %v6559
          %v6808 = vpack.c.b16 %v6568, %v6560
          %v6809 = vpack.c.b16 %v6577, %v6569
          %v6810 = vpack.c.b16 %v6578, %v6570
          %v6811 = vpack.c.b16 %v6579, %v6571
          %v6812 = vpack.c.b16 %v6580, %v6572
          %v6813 = vpack.c.b16 %v6581, %v6573
          %v6814 = vpack.c.b16 %v6582, %v6574
          %v6815 = vpack.c.b16 %v6583, %v6575
          %v6816 = vpack.c.b16 %v6584, %v6576
          %v6817 = vpack.c.b16 %v6593, %v6585
          %v6818 = vpack.c.b16 %v6594, %v6586
          %v6819 = vpack.c.b16 %v6595, %v6587
          %v6820 = vpack.c.b16 %v6596, %v6588
          %v6821 = vpack.c.b16 %v6597, %v6589
          %v6822 = vpack.c.b16 %v6598, %v6590
          %v6823 = vpack.c.b16 %v6599, %v6591
          %v6824 = vpack.c.b16 %v6600, %v6592
          %v6825 = vpack.c.b16 %v6609, %v6601
          %v6826 = vpack.c.b16 %v6610, %v6602
          %v6827 = vpack.c.b16 %v6611, %v6603
          %v6828 = vpack.c.b16 %v6612, %v6604
          %v6829 = vpack.c.b16 %v6613, %v6605
          %v6830 = vpack.c.b16 %v6614, %v6606
          %v6831 = vpack.c.b16 %v6615, %v6607
          %v6832 = vpack.c.b16 %v6616, %v6608
          %v6833 = vpack.c.b16 %v6625, %v6617
          %v6834 = vpack.c.b16 %v6626, %v6618
          %v6835 = vpack.c.b16 %v6627, %v6619
          %v6836 = vpack.c.b16 %v6628, %v6620
          %v6837 = vpack.c.b16 %v6629, %v6621
          %v6838 = vpack.c.b16 %v6630, %v6622
          %v6839 = vpack.c.b16 %v6631, %v6623
          %v6840 = vpack.c.b16 %v6632, %v6624
          %v6841 = vpack.c.b16 %v6641, %v6633
          %v6842 = vpack.c.b16 %v6642, %v6634
          %v6843 = vpack.c.b16 %v6643, %v6635
          %v6844 = vpack.c.b16 %v6644, %v6636
          %v6845 = vpack.c.b16 %v6645, %v6637
          %v6846 = vpack.c.b16 %v6646, %v6638
          %v6847 = vpack.c.b16 %v6647, %v6639
          %v6848 = vpack.c.b16 %v6648, %v6640
          %v6849 = vpack.c.b16 %v6657, %v6649
          %v6850 = vpack.c.b16 %v6658, %v6650
          %v6851 = vpack.c.b16 %v6659, %v6651
          %v6852 = vpack.c.b16 %v6660, %v6652
          %v6853 = vpack.c.b16 %v6661, %v6653
          %v6854 = vpack.c.b16 %v6662, %v6654
          %v6855 = vpack.c.b16 %v6663, %v6655
          %v6856 = vpack.c.b16 %v6664, %v6656
          %v6857 = vpack.c.b16 %v6673, %v6665
          %v6858 = vpack.c.b16 %v6674, %v6666
          %v6859 = vpack.c.b16 %v6675, %v6667
          %v6860 = vpack.c.b16 %v6676, %v6668
          %v6861 = vpack.c.b16 %v6677, %v6669
          %v6862 = vpack.c.b16 %v6678, %v6670
          %v6863 = vpack.c.b16 %v6679, %v6671
          %v6864 = vpack.c.b16 %v6680, %v6672
          %v6865 = vpack.c.b16 %v6689, %v6681
          %v6866 = vpack.c.b16 %v6690, %v6682
          %v6867 = vpack.c.b16 %v6691, %v6683
          %v6868 = vpack.c.b16 %v6692, %v6684
          %v6869 = vpack.c.b16 %v6693, %v6685
          %v6870 = vpack.c.b16 %v6694, %v6686
          %v6871 = vpack.c.b16 %v6695, %v6687
          %v6872 = vpack.c.b16 %v6696, %v6688
          %v6873 = vpack.c.b16 %v6705, %v6697
          %v6874 = vpack.c.b16 %v6706, %v6698
          %v6875 = vpack.c.b16 %v6707, %v6699
          %v6876 = vpack.c.b16 %v6708, %v6700
          %v6877 = vpack.c.b16 %v6709, %v6701
          %v6878 = vpack.c.b16 %v6710, %v6702
          %v6879 = vpack.c.b16 %v6711, %v6703
          %v6880 = vpack.c.b16 %v6712, %v6704
          %v6881 = vpack.c.b16 %v6721, %v6713
          %v6882 = vpack.c.b16 %v6722, %v6714
          %v6883 = vpack.c.b16 %v6723, %v6715
          %v6884 = vpack.c.b16 %v6724, %v6716
          %v6885 = vpack.c.b16 %v6725, %v6717
          %v6886 = vpack.c.b16 %v6726, %v6718
          %v6887 = vpack.c.b16 %v6727, %v6719
          %v6888 = vpack.c.b16 %v6728, %v6720
          %v6889 = vpack.c.b16 %v6737, %v6729
          %v6890 = vpack.c.b16 %v6738, %v6730
          %v6891 = vpack.c.b16 %v6739, %v6731
          %v6892 = vpack.c.b16 %v6740, %v6732
          %v6893 = vpack.c.b16 %v6741, %v6733
          %v6894 = vpack.c.b16 %v6742, %v6734
          %v6895 = vpack.c.b16 %v6743, %v6735
          %v6896 = vpack.c.b16 %v6744, %v6736
          %v6897 = vpack.c.b16 %v6753, %v6745
          %v6898 = vpack.c.b16 %v6754, %v6746
          %v6899 = vpack.c.b16 %v6755, %v6747
          %v6900 = vpack.c.b16 %v6756, %v6748
          %v6901 = vpack.c.b16 %v6757, %v6749
          %v6902 = vpack.c.b16 %v6758, %v6750
          %v6903 = vpack.c.b16 %v6759, %v6751
          %v6904 = vpack.c.b16 %v6760, %v6752
          %v6905 = vpack.c.b16 %v6769, %v6761
          %v6906 = vpack.c.b16 %v6770, %v6762
          %v6907 = vpack.c.b16 %v6771, %v6763
          %v6908 = vpack.c.b16 %v6772, %v6764
          %v6909 = vpack.c.b16 %v6773, %v6765
          %v6910 = vpack.c.b16 %v6774, %v6766
          %v6911 = vpack.c.b16 %v6775, %v6767
          %v6912 = vpack.c.b16 %v6776, %v6768
          %v6913 = vpack.c.b16 %v6785, %v6777
          %v6914 = vpack.c.b16 %v6786, %v6778
          %v6915 = vpack.c.b16 %v6787, %v6779
          %v6916 = vpack.c.b16 %v6788, %v6780
          %v6917 = vpack.c.b16 %v6789, %v6781
          %v6918 = vpack.c.b16 %v6790, %v6782
          %v6919 = vpack.c.b16 %v6791, %v6783
          %v6920 = vpack.c.b16 %v6792, %v6784
          %v7177 = vunpack.c.l.b16 %v6277
          %v7178 = vunpack.c.l.b16 %v6278
          %v7179 = vunpack.c.l.b16 %v6279
          %v7180 = vunpack.c.l.b16 %v6280
          %v7181 = vunpack.c.l.b16 %v6281
          %v7182 = vunpack.c.l.b16 %v6282
          %v7183 = vunpack.c.l.b16 %v6283
          %v7184 = vunpack.c.l.b16 %v6284
          %v7185 = vunpack.c.l.b16 %v6285
          %v7186 = vunpack.c.l.b16 %v6286
          %v7187 = vunpack.c.l.b16 %v6287
          %v7188 = vunpack.c.l.b16 %v6288
          %v7189 = vunpack.c.l.b16 %v6289
          %v7190 = vunpack.c.l.b16 %v6290
          %v7191 = vunpack.c.l.b16 %v6291
          %v7192 = vunpack.c.l.b16 %v6292
          %v7193 = vunpack.c.l.b16 %v6293
          %v7194 = vunpack.c.l.b16 %v6294
          %v7195 = vunpack.c.l.b16 %v6295
          %v7196 = vunpack.c.l.b16 %v6296
          %v7197 = vunpack.c.l.b16 %v6297
          %v7198 = vunpack.c.l.b16 %v6298
          %v7199 = vunpack.c.l.b16 %v6299
          %v7200 = vunpack.c.l.b16 %v6300
          %v7201 = vunpack.c.l.b16 %v6301
          %v7202 = vunpack.c.l.b16 %v6302
          %v7203 = vunpack.c.l.b16 %v6303
          %v7204 = vunpack.c.l.b16 %v6304
          %v7205 = vunpack.c.l.b16 %v6305
          %v7206 = vunpack.c.l.b16 %v6306
          %v7207 = vunpack.c.l.b16 %v6307
          %v7208 = vunpack.c.l.b16 %v6308
          %v7209 = vunpack.c.l.b16 %v6309
          %v7210 = vunpack.c.l.b16 %v6310
          %v7211 = vunpack.c.l.b16 %v6311
          %v7212 = vunpack.c.l.b16 %v6312
          %v7213 = vunpack.c.l.b16 %v6313
          %v7214 = vunpack.c.l.b16 %v6314
          %v7215 = vunpack.c.l.b16 %v6315
          %v7216 = vunpack.c.l.b16 %v6316
          %v7217 = vunpack.c.l.b16 %v6317
          %v7218 = vunpack.c.l.b16 %v6318
          %v7219 = vunpack.c.l.b16 %v6319
          %v7220 = vunpack.c.l.b16 %v6320
          %v7221 = vunpack.c.l.b16 %v6321
          %v7222 = vunpack.c.l.b16 %v6322
          %v7223 = vunpack.c.l.b16 %v6323
          %v7224 = vunpack.c.l.b16 %v6324
          %v7225 = vunpack.c.l.b16 %v6325
          %v7226 = vunpack.c.l.b16 %v6326
          %v7227 = vunpack.c.l.b16 %v6327
          %v7228 = vunpack.c.l.b16 %v6328
          %v7229 = vunpack.c.l.b16 %v6329
          %v7230 = vunpack.c.l.b16 %v6330
          %v7231 = vunpack.c.l.b16 %v6331
          %v7232 = vunpack.c.l.b16 %v6332
          %v7233 = vunpack.c.l.b16 %v6333
          %v7234 = vunpack.c.l.b16 %v6334
          %v7235 = vunpack.c.l.b16 %v6335
          %v7236 = vunpack.c.l.b16 %v6336
          %v7237 = vunpack.c.l.b16 %v6337
          %v7238 = vunpack.c.l.b16 %v6338
          %v7239 = vunpack.c.l.b16 %v6339
          %v7240 = vunpack.c.l.b16 %v6340
          %v7241 = vunpack.c.l.b16 %v6341
          %v7242 = vunpack.c.l.b16 %v6342
          %v7243 = vunpack.c.l.b16 %v6343
          %v7244 = vunpack.c.l.b16 %v6344
          %v7245 = vunpack.c.l.b16 %v6345
          %v7246 = vunpack.c.l.b16 %v6346
          %v7247 = vunpack.c.l.b16 %v6347
          %v7248 = vunpack.c.l.b16 %v6348
          %v7249 = vunpack.c.l.b16 %v6349
          %v7250 = vunpack.c.l.b16 %v6350
          %v7251 = vunpack.c.l.b16 %v6351
          %v7252 = vunpack.c.l.b16 %v6352
          %v7253 = vunpack.c.l.b16 %v6353
          %v7254 = vunpack.c.l.b16 %v6354
          %v7255 = vunpack.c.l.b16 %v6355
          %v7256 = vunpack.c.l.b16 %v6356
          %v7257 = vunpack.c.l.b16 %v6357
          %v7258 = vunpack.c.l.b16 %v6358
          %v7259 = vunpack.c.l.b16 %v6359
          %v7260 = vunpack.c.l.b16 %v6360
          %v7261 = vunpack.c.l.b16 %v6361
          %v7262 = vunpack.c.l.b16 %v6362
          %v7263 = vunpack.c.l.b16 %v6363
          %v7264 = vunpack.c.l.b16 %v6364
          %v7265 = vunpack.c.l.b16 %v6365
          %v7266 = vunpack.c.l.b16 %v6366
          %v7267 = vunpack.c.l.b16 %v6367
          %v7268 = vunpack.c.l.b16 %v6368
          %v7269 = vunpack.c.l.b16 %v6369
          %v7270 = vunpack.c.l.b16 %v6370
          %v7271 = vunpack.c.l.b16 %v6371
          %v7272 = vunpack.c.l.b16 %v6372
          %v7273 = vunpack.c.l.b16 %v6373
          %v7274 = vunpack.c.l.b16 %v6374
          %v7275 = vunpack.c.l.b16 %v6375
          %v7276 = vunpack.c.l.b16 %v6376
          %v7277 = vunpack.c.l.b16 %v6377
          %v7278 = vunpack.c.l.b16 %v6378
          %v7279 = vunpack.c.l.b16 %v6379
          %v7280 = vunpack.c.l.b16 %v6380
          %v7281 = vunpack.c.l.b16 %v6381
          %v7282 = vunpack.c.l.b16 %v6382
          %v7283 = vunpack.c.l.b16 %v6383
          %v7284 = vunpack.c.l.b16 %v6384
          %v7285 = vunpack.c.l.b16 %v6385
          %v7286 = vunpack.c.l.b16 %v6386
          %v7287 = vunpack.c.l.b16 %v6387
          %v7288 = vunpack.c.l.b16 %v6388
          %v7289 = vunpack.c.l.b16 %v6389
          %v7290 = vunpack.c.l.b16 %v6390
          %v7291 = vunpack.c.l.b16 %v6391
          %v7292 = vunpack.c.l.b16 %v6392
          %v7293 = vunpack.c.l.b16 %v6393
          %v7294 = vunpack.c.l.b16 %v6394
          %v7295 = vunpack.c.l.b16 %v6395
          %v7296 = vunpack.c.l.b16 %v6396
          %v7297 = vunpack.c.l.b16 %v6397
          %v7298 = vunpack.c.l.b16 %v6398
          %v7299 = vunpack.c.l.b16 %v6399
          %v7300 = vunpack.c.l.b16 %v6400
          %v7301 = vunpack.c.l.b16 %v6401
          %v7302 = vunpack.c.l.b16 %v6402
          %v7303 = vunpack.c.l.b16 %v6403
          %v7304 = vunpack.c.l.b16 %v6404
          %v7305 = vpack.c.b16 %v7178, %v7177
          %v7306 = vpack.c.b16 %v7180, %v7179
          %v7307 = vpack.c.b16 %v7182, %v7181
          %v7308 = vpack.c.b16 %v7184, %v7183
          %v7309 = vpack.c.b16 %v7186, %v7185
          %v7310 = vpack.c.b16 %v7188, %v7187
          %v7311 = vpack.c.b16 %v7190, %v7189
          %v7312 = vpack.c.b16 %v7192, %v7191
          %v7313 = vpack.c.b16 %v7194, %v7193
          %v7314 = vpack.c.b16 %v7196, %v7195
          %v7315 = vpack.c.b16 %v7198, %v7197
          %v7316 = vpack.c.b16 %v7200, %v7199
          %v7317 = vpack.c.b16 %v7202, %v7201
          %v7318 = vpack.c.b16 %v7204, %v7203
          %v7319 = vpack.c.b16 %v7206, %v7205
          %v7320 = vpack.c.b16 %v7208, %v7207
          %v7321 = vpack.c.b16 %v7210, %v7209
          %v7322 = vpack.c.b16 %v7212, %v7211
          %v7323 = vpack.c.b16 %v7214, %v7213
          %v7324 = vpack.c.b16 %v7216, %v7215
          %v7325 = vpack.c.b16 %v7218, %v7217
          %v7326 = vpack.c.b16 %v7220, %v7219
          %v7327 = vpack.c.b16 %v7222, %v7221
          %v7328 = vpack.c.b16 %v7224, %v7223
          %v7329 = vpack.c.b16 %v7226, %v7225
          %v7330 = vpack.c.b16 %v7228, %v7227
          %v7331 = vpack.c.b16 %v7230, %v7229
          %v7332 = vpack.c.b16 %v7232, %v7231
          %v7333 = vpack.c.b16 %v7234, %v7233
          %v7334 = vpack.c.b16 %v7236, %v7235
          %v7335 = vpack.c.b16 %v7238, %v7237
          %v7336 = vpack.c.b16 %v7240, %v7239
          %v7337 = vpack.c.b16 %v7242, %v7241
          %v7338 = vpack.c.b16 %v7244, %v7243
          %v7339 = vpack.c.b16 %v7246, %v7245
          %v7340 = vpack.c.b16 %v7248, %v7247
          %v7341 = vpack.c.b16 %v7250, %v7249
          %v7342 = vpack.c.b16 %v7252, %v7251
          %v7343 = vpack.c.b16 %v7254, %v7253
          %v7344 = vpack.c.b16 %v7256, %v7255
          %v7345 = vpack.c.b16 %v7258, %v7257
          %v7346 = vpack.c.b16 %v7260, %v7259
          %v7347 = vpack.c.b16 %v7262, %v7261
          %v7348 = vpack.c.b16 %v7264, %v7263
          %v7349 = vpack.c.b16 %v7266, %v7265
          %v7350 = vpack.c.b16 %v7268, %v7267
          %v7351 = vpack.c.b16 %v7270, %v7269
          %v7352 = vpack.c.b16 %v7272, %v7271
          %v7353 = vpack.c.b16 %v7274, %v7273
          %v7354 = vpack.c.b16 %v7276, %v7275
          %v7355 = vpack.c.b16 %v7278, %v7277
          %v7356 = vpack.c.b16 %v7280, %v7279
          %v7357 = vpack.c.b16 %v7282, %v7281
          %v7358 = vpack.c.b16 %v7284, %v7283
          %v7359 = vpack.c.b16 %v7286, %v7285
          %v7360 = vpack.c.b16 %v7288, %v7287
          %v7361 = vpack.c.b16 %v7290, %v7289
          %v7362 = vpack.c.b16 %v7292, %v7291
          %v7363 = vpack.c.b16 %v7294, %v7293
          %v7364 = vpack.c.b16 %v7296, %v7295
          %v7365 = vpack.c.b16 %v7298, %v7297
          %v7366 = vpack.c.b16 %v7300, %v7299
          %v7367 = vpack.c.b16 %v7302, %v7301
          %v7368 = vpack.c.b16 %v7304, %v7303
          %7433 = vmatpush.bf16.msra.mxu0 %v7312
          %7434 = vmatpush.bf16.msra.mxu0 %v7311
          %7435 = vmatpush.bf16.msra.mxu0 %v7310
          %7436 = vmatpush.bf16.msra.mxu0 %v7309
          %7437 = vmatpush.bf16.msra.mxu0 %v7308
          %7438 = vmatpush.bf16.msra.mxu0 %v7307
          %7439 = vmatpush.bf16.msra.mxu0 %v7306
          %7440 = vmatpush.bf16.msra.mxu0 %v7305
          %7441 = vmatmul.bf16.gmra.mxu0 %v6793
          %v7442 = vpop.f32.mrf.mxu0
          %v7443 = vadd.f32 %v6407, %v7442
          %v7444 = vpop.f32.mrf.mxu0
          %v7445 = vadd.f32 %v6407, %v7444
          %7446 = vmatmul.bf16.gmra.mxu0 %v6801
          %v7447 = vpop.f32.mrf.mxu0
          %v7448 = vadd.f32 %v6407, %v7447
          %v7449 = vpop.f32.mrf.mxu0
          %v7450 = vadd.f32 %v6407, %v7449
          %7451 = vmatmul.bf16.gmra.mxu0 %v6809
          %v7452 = vpop.f32.mrf.mxu0
          %v7453 = vadd.f32 %v6407, %v7452
          %v7454 = vpop.f32.mrf.mxu0
          %v7455 = vadd.f32 %v6407, %v7454
          %7456 = vmatmul.bf16.gmra.mxu0 %v6817
          %v7457 = vpop.f32.mrf.mxu0
          %v7458 = vadd.f32 %v6407, %v7457
          %v7459 = vpop.f32.mrf.mxu0
          %v7460 = vadd.f32 %v6407, %v7459
          %7461 = vmatmul.bf16.gmra.mxu0 %v6825
          %v7462 = vpop.f32.mrf.mxu0
          %v7463 = vadd.f32 %v6407, %v7462
          %v7464 = vpop.f32.mrf.mxu0
          %v7465 = vadd.f32 %v6407, %v7464
          %7466 = vmatmul.bf16.gmra.mxu0 %v6833
          %v7467 = vpop.f32.mrf.mxu0
          %v7468 = vadd.f32 %v6407, %v7467
          %v7469 = vpop.f32.mrf.mxu0
          %v7470 = vadd.f32 %v6407, %v7469
          %7471 = vmatmul.bf16.gmra.mxu0 %v6841
          %v7472 = vpop.f32.mrf.mxu0
          %v7473 = vadd.f32 %v6407, %v7472
          %v7474 = vpop.f32.mrf.mxu0
          %v7475 = vadd.f32 %v6407, %v7474
          %7476 = vmatmul.bf16.gmra.mxu0 %v6849
          %v7477 = vpop.f32.mrf.mxu0
          %v7478 = vadd.f32 %v6407, %v7477
          %v7479 = vpop.f32.mrf.mxu0
          %v7480 = vadd.f32 %v6407, %v7479
          %7481 = vmatmul.bf16.gmra.mxu0 %v6857
          %v7482 = vpop.f32.mrf.mxu0
          %v7483 = vadd.f32 %v6407, %v7482
          %v7484 = vpop.f32.mrf.mxu0
          %v7485 = vadd.f32 %v6407, %v7484
          %7486 = vmatmul.bf16.gmra.mxu0 %v6865
          %v7487 = vpop.f32.mrf.mxu0
          %v7488 = vadd.f32 %v6407, %v7487
          %v7489 = vpop.f32.mrf.mxu0
          %v7490 = vadd.f32 %v6407, %v7489
          %7491 = vmatmul.bf16.gmra.mxu0 %v6873
          %v7492 = vpop.f32.mrf.mxu0
          %v7493 = vadd.f32 %v6407, %v7492
          %v7494 = vpop.f32.mrf.mxu0
          %v7495 = vadd.f32 %v6407, %v7494
          %7496 = vmatmul.bf16.gmra.mxu0 %v6881
          %v7497 = vpop.f32.mrf.mxu0
          %v7498 = vadd.f32 %v6407, %v7497
          %v7499 = vpop.f32.mrf.mxu0
          %v7500 = vadd.f32 %v6407, %v7499
          %7501 = vmatmul.bf16.gmra.mxu0 %v6889
          %v7502 = vpop.f32.mrf.mxu0
          %v7503 = vadd.f32 %v6407, %v7502
          %v7504 = vpop.f32.mrf.mxu0
          %v7505 = vadd.f32 %v6407, %v7504
          %7506 = vmatmul.bf16.gmra.mxu0 %v6897
          %v7507 = vpop.f32.mrf.mxu0
          %v7508 = vadd.f32 %v6407, %v7507
          %v7509 = vpop.f32.mrf.mxu0
          %v7510 = vadd.f32 %v6407, %v7509
          %7511 = vmatmul.bf16.gmra.mxu0 %v6905
          %v7512 = vpop.f32.mrf.mxu0
          %v7513 = vadd.f32 %v6407, %v7512
          %v7514 = vpop.f32.mrf.mxu0
          %v7515 = vadd.f32 %v6407, %v7514
          %7516 = vmatmul.bf16.gmra.mxu0 %v6913
          %v7517 = vpop.f32.mrf.mxu0
          %v7518 = vadd.f32 %v6407, %v7517
          %v7519 = vpop.f32.mrf.mxu0
          %v7520 = vadd.f32 %v6407, %v7519
          %7521 = vdwg.mxu0
          %7522 = vmatpush.bf16.msra.mxu0 %v7320
          %7523 = vmatpush.bf16.msra.mxu0 %v7319
          %7524 = vmatpush.bf16.msra.mxu0 %v7318
          %7525 = vmatpush.bf16.msra.mxu0 %v7317
          %7526 = vmatpush.bf16.msra.mxu0 %v7316
          %7527 = vmatpush.bf16.msra.mxu0 %v7315
          %7528 = vmatpush.bf16.msra.mxu0 %v7314
          %7529 = vmatpush.bf16.msra.mxu0 %v7313
          %7530 = vmatmul.bf16.gmra.mxu0 %v6794
          %v7531 = vpop.f32.mrf.mxu0
          %v7532 = vadd.f32 %v7443, %v7531
          %v7533 = vpop.f32.mrf.mxu0
          %v7534 = vadd.f32 %v7445, %v7533
          %7535 = vmatmul.bf16.gmra.mxu0 %v6802
          %v7536 = vpop.f32.mrf.mxu0
          %v7537 = vadd.f32 %v7448, %v7536
          %v7538 = vpop.f32.mrf.mxu0
          %v7539 = vadd.f32 %v7450, %v7538
          %7540 = vmatmul.bf16.gmra.mxu0 %v6810
          %v7541 = vpop.f32.mrf.mxu0
          %v7542 = vadd.f32 %v7453, %v7541
          %v7543 = vpop.f32.mrf.mxu0
          %v7544 = vadd.f32 %v7455, %v7543
          %7545 = vmatmul.bf16.gmra.mxu0 %v6818
          %v7546 = vpop.f32.mrf.mxu0
          %v7547 = vadd.f32 %v7458, %v7546
          %v7548 = vpop.f32.mrf.mxu0
          %v7549 = vadd.f32 %v7460, %v7548
          %7550 = vmatmul.bf16.gmra.mxu0 %v6826
          %v7551 = vpop.f32.mrf.mxu0
          %v7552 = vadd.f32 %v7463, %v7551
          %v7553 = vpop.f32.mrf.mxu0
          %v7554 = vadd.f32 %v7465, %v7553
          %7555 = vmatmul.bf16.gmra.mxu0 %v6834
          %v7556 = vpop.f32.mrf.mxu0
          %v7557 = vadd.f32 %v7468, %v7556
          %v7558 = vpop.f32.mrf.mxu0
          %v7559 = vadd.f32 %v7470, %v7558
          %7560 = vmatmul.bf16.gmra.mxu0 %v6842
          %v7561 = vpop.f32.mrf.mxu0
          %v7562 = vadd.f32 %v7473, %v7561
          %v7563 = vpop.f32.mrf.mxu0
          %v7564 = vadd.f32 %v7475, %v7563
          %7565 = vmatmul.bf16.gmra.mxu0 %v6850
          %v7566 = vpop.f32.mrf.mxu0
          %v7567 = vadd.f32 %v7478, %v7566
          %v7568 = vpop.f32.mrf.mxu0
          %v7569 = vadd.f32 %v7480, %v7568
          %7570 = vmatmul.bf16.gmra.mxu0 %v6858
          %v7571 = vpop.f32.mrf.mxu0
          %v7572 = vadd.f32 %v7483, %v7571
          %v7573 = vpop.f32.mrf.mxu0
          %v7574 = vadd.f32 %v7485, %v7573
          %7575 = vmatmul.bf16.gmra.mxu0 %v6866
          %v7576 = vpop.f32.mrf.mxu0
          %v7577 = vadd.f32 %v7488, %v7576
          %v7578 = vpop.f32.mrf.mxu0
          %v7579 = vadd.f32 %v7490, %v7578
          %7580 = vmatmul.bf16.gmra.mxu0 %v6874
          %v7581 = vpop.f32.mrf.mxu0
          %v7582 = vadd.f32 %v7493, %v7581
          %v7583 = vpop.f32.mrf.mxu0
          %v7584 = vadd.f32 %v7495, %v7583
          %7585 = vmatmul.bf16.gmra.mxu0 %v6882
          %v7586 = vpop.f32.mrf.mxu0
          %v7587 = vadd.f32 %v7498, %v7586
          %v7588 = vpop.f32.mrf.mxu0
          %v7589 = vadd.f32 %v7500, %v7588
          %7590 = vmatmul.bf16.gmra.mxu0 %v6890
          %v7591 = vpop.f32.mrf.mxu0
          %v7592 = vadd.f32 %v7503, %v7591
          %v7593 = vpop.f32.mrf.mxu0
          %v7594 = vadd.f32 %v7505, %v7593
          %7595 = vmatmul.bf16.gmra.mxu0 %v6898
          %v7596 = vpop.f32.mrf.mxu0
          %v7597 = vadd.f32 %v7508, %v7596
          %v7598 = vpop.f32.mrf.mxu0
          %v7599 = vadd.f32 %v7510, %v7598
          %7600 = vmatmul.bf16.gmra.mxu0 %v6906
          %v7601 = vpop.f32.mrf.mxu0
          %v7602 = vadd.f32 %v7513, %v7601
          %v7603 = vpop.f32.mrf.mxu0
          %v7604 = vadd.f32 %v7515, %v7603
          %7605 = vmatmul.bf16.gmra.mxu0 %v6914
          %v7606 = vpop.f32.mrf.mxu0
          %v7607 = vadd.f32 %v7518, %v7606
          %v7608 = vpop.f32.mrf.mxu0
          %v7609 = vadd.f32 %v7520, %v7608
          %7610 = vdwg.mxu0
          %7611 = vmatpush.bf16.msra.mxu0 %v7328
          %7612 = vmatpush.bf16.msra.mxu0 %v7327
          %7613 = vmatpush.bf16.msra.mxu0 %v7326
          %7614 = vmatpush.bf16.msra.mxu0 %v7325
          %7615 = vmatpush.bf16.msra.mxu0 %v7324
          %7616 = vmatpush.bf16.msra.mxu0 %v7323
          %7617 = vmatpush.bf16.msra.mxu0 %v7322
          %7618 = vmatpush.bf16.msra.mxu0 %v7321
          %7619 = vmatmul.bf16.gmra.mxu0 %v6795
          %v7620 = vpop.f32.mrf.mxu0
          %v7621 = vadd.f32 %v7532, %v7620
          %v7622 = vpop.f32.mrf.mxu0
          %v7623 = vadd.f32 %v7534, %v7622
          %7624 = vmatmul.bf16.gmra.mxu0 %v6803
          %v7625 = vpop.f32.mrf.mxu0
          %v7626 = vadd.f32 %v7537, %v7625
          %v7627 = vpop.f32.mrf.mxu0
          %v7628 = vadd.f32 %v7539, %v7627
          %7629 = vmatmul.bf16.gmra.mxu0 %v6811
          %v7630 = vpop.f32.mrf.mxu0
          %v7631 = vadd.f32 %v7542, %v7630
          %v7632 = vpop.f32.mrf.mxu0
          %v7633 = vadd.f32 %v7544, %v7632
          %7634 = vmatmul.bf16.gmra.mxu0 %v6819
          %v7635 = vpop.f32.mrf.mxu0
          %v7636 = vadd.f32 %v7547, %v7635
          %v7637 = vpop.f32.mrf.mxu0
          %v7638 = vadd.f32 %v7549, %v7637
          %7639 = vmatmul.bf16.gmra.mxu0 %v6827
          %v7640 = vpop.f32.mrf.mxu0
          %v7641 = vadd.f32 %v7552, %v7640
          %v7642 = vpop.f32.mrf.mxu0
          %v7643 = vadd.f32 %v7554, %v7642
          %7644 = vmatmul.bf16.gmra.mxu0 %v6835
          %v7645 = vpop.f32.mrf.mxu0
          %v7646 = vadd.f32 %v7557, %v7645
          %v7647 = vpop.f32.mrf.mxu0
          %v7648 = vadd.f32 %v7559, %v7647
          %7649 = vmatmul.bf16.gmra.mxu0 %v6843
          %v7650 = vpop.f32.mrf.mxu0
          %v7651 = vadd.f32 %v7562, %v7650
          %v7652 = vpop.f32.mrf.mxu0
          %v7653 = vadd.f32 %v7564, %v7652
          %7654 = vmatmul.bf16.gmra.mxu0 %v6851
          %v7655 = vpop.f32.mrf.mxu0
          %v7656 = vadd.f32 %v7567, %v7655
          %v7657 = vpop.f32.mrf.mxu0
          %v7658 = vadd.f32 %v7569, %v7657
          %7659 = vmatmul.bf16.gmra.mxu0 %v6859
          %v7660 = vpop.f32.mrf.mxu0
          %v7661 = vadd.f32 %v7572, %v7660
          %v7662 = vpop.f32.mrf.mxu0
          %v7663 = vadd.f32 %v7574, %v7662
          %7664 = vmatmul.bf16.gmra.mxu0 %v6867
          %v7665 = vpop.f32.mrf.mxu0
          %v7666 = vadd.f32 %v7577, %v7665
          %v7667 = vpop.f32.mrf.mxu0
          %v7668 = vadd.f32 %v7579, %v7667
          %7669 = vmatmul.bf16.gmra.mxu0 %v6875
          %v7670 = vpop.f32.mrf.mxu0
          %v7671 = vadd.f32 %v7582, %v7670
          %v7672 = vpop.f32.mrf.mxu0
          %v7673 = vadd.f32 %v7584, %v7672
          %7674 = vmatmul.bf16.gmra.mxu0 %v6883
          %v7675 = vpop.f32.mrf.mxu0
          %v7676 = vadd.f32 %v7587, %v7675
          %v7677 = vpop.f32.mrf.mxu0
          %v7678 = vadd.f32 %v7589, %v7677
          %7679 = vmatmul.bf16.gmra.mxu0 %v6891
          %v7680 = vpop.f32.mrf.mxu0
          %v7681 = vadd.f32 %v7592, %v7680
          %v7682 = vpop.f32.mrf.mxu0
          %v7683 = vadd.f32 %v7594, %v7682
          %7684 = vmatmul.bf16.gmra.mxu0 %v6899
          %v7685 = vpop.f32.mrf.mxu0
          %v7686 = vadd.f32 %v7597, %v7685
          %v7687 = vpop.f32.mrf.mxu0
          %v7688 = vadd.f32 %v7599, %v7687
          %7689 = vmatmul.bf16.gmra.mxu0 %v6907
          %v7690 = vpop.f32.mrf.mxu0
          %v7691 = vadd.f32 %v7602, %v7690
          %v7692 = vpop.f32.mrf.mxu0
          %v7693 = vadd.f32 %v7604, %v7692
          %7694 = vmatmul.bf16.gmra.mxu0 %v6915
          %v7695 = vpop.f32.mrf.mxu0
          %v7696 = vadd.f32 %v7607, %v7695
          %v7697 = vpop.f32.mrf.mxu0
          %v7698 = vadd.f32 %v7609, %v7697
          %7699 = vdwg.mxu0
          %7700 = vmatpush.bf16.msra.mxu0 %v7336
          %7701 = vmatpush.bf16.msra.mxu0 %v7335
          %7702 = vmatpush.bf16.msra.mxu0 %v7334
          %7703 = vmatpush.bf16.msra.mxu0 %v7333
          %7704 = vmatpush.bf16.msra.mxu0 %v7332
          %7705 = vmatpush.bf16.msra.mxu0 %v7331
          %7706 = vmatpush.bf16.msra.mxu0 %v7330
          %7707 = vmatpush.bf16.msra.mxu0 %v7329
          %7708 = vmatmul.bf16.gmra.mxu0 %v6796
          %v7709 = vpop.f32.mrf.mxu0
          %v7710 = vadd.f32 %v7621, %v7709
          %v7711 = vpop.f32.mrf.mxu0
          %v7712 = vadd.f32 %v7623, %v7711
          %7713 = vmatmul.bf16.gmra.mxu0 %v6804
          %v7714 = vpop.f32.mrf.mxu0
          %v7715 = vadd.f32 %v7626, %v7714
          %v7716 = vpop.f32.mrf.mxu0
          %v7717 = vadd.f32 %v7628, %v7716
          %7718 = vmatmul.bf16.gmra.mxu0 %v6812
          %v7719 = vpop.f32.mrf.mxu0
          %v7720 = vadd.f32 %v7631, %v7719
          %v7721 = vpop.f32.mrf.mxu0
          %v7722 = vadd.f32 %v7633, %v7721
          %7723 = vmatmul.bf16.gmra.mxu0 %v6820
          %v7724 = vpop.f32.mrf.mxu0
          %v7725 = vadd.f32 %v7636, %v7724
          %v7726 = vpop.f32.mrf.mxu0
          %v7727 = vadd.f32 %v7638, %v7726
          %7728 = vmatmul.bf16.gmra.mxu0 %v6828
          %v7729 = vpop.f32.mrf.mxu0
          %v7730 = vadd.f32 %v7641, %v7729
          %v7731 = vpop.f32.mrf.mxu0
          %v7732 = vadd.f32 %v7643, %v7731
          %7733 = vmatmul.bf16.gmra.mxu0 %v6836
          %v7734 = vpop.f32.mrf.mxu0
          %v7735 = vadd.f32 %v7646, %v7734
          %v7736 = vpop.f32.mrf.mxu0
          %v7737 = vadd.f32 %v7648, %v7736
          %7738 = vmatmul.bf16.gmra.mxu0 %v6844
          %v7739 = vpop.f32.mrf.mxu0
          %v7740 = vadd.f32 %v7651, %v7739
          %v7741 = vpop.f32.mrf.mxu0
          %v7742 = vadd.f32 %v7653, %v7741
          %7743 = vmatmul.bf16.gmra.mxu0 %v6852
          %v7744 = vpop.f32.mrf.mxu0
          %v7745 = vadd.f32 %v7656, %v7744
          %v7746 = vpop.f32.mrf.mxu0
          %v7747 = vadd.f32 %v7658, %v7746
          %7748 = vmatmul.bf16.gmra.mxu0 %v6860
          %v7749 = vpop.f32.mrf.mxu0
          %v7750 = vadd.f32 %v7661, %v7749
          %v7751 = vpop.f32.mrf.mxu0
          %v7752 = vadd.f32 %v7663, %v7751
          %7753 = vmatmul.bf16.gmra.mxu0 %v6868
          %v7754 = vpop.f32.mrf.mxu0
          %v7755 = vadd.f32 %v7666, %v7754
          %v7756 = vpop.f32.mrf.mxu0
          %v7757 = vadd.f32 %v7668, %v7756
          %7758 = vmatmul.bf16.gmra.mxu0 %v6876
          %v7759 = vpop.f32.mrf.mxu0
          %v7760 = vadd.f32 %v7671, %v7759
          %v7761 = vpop.f32.mrf.mxu0
          %v7762 = vadd.f32 %v7673, %v7761
          %7763 = vmatmul.bf16.gmra.mxu0 %v6884
          %v7764 = vpop.f32.mrf.mxu0
          %v7765 = vadd.f32 %v7676, %v7764
          %v7766 = vpop.f32.mrf.mxu0
          %v7767 = vadd.f32 %v7678, %v7766
          %7768 = vmatmul.bf16.gmra.mxu0 %v6892
          %v7769 = vpop.f32.mrf.mxu0
          %v7770 = vadd.f32 %v7681, %v7769
          %v7771 = vpop.f32.mrf.mxu0
          %v7772 = vadd.f32 %v7683, %v7771
          %7773 = vmatmul.bf16.gmra.mxu0 %v6900
          %v7774 = vpop.f32.mrf.mxu0
          %v7775 = vadd.f32 %v7686, %v7774
          %v7776 = vpop.f32.mrf.mxu0
          %v7777 = vadd.f32 %v7688, %v7776
          %7778 = vmatmul.bf16.gmra.mxu0 %v6908
          %v7779 = vpop.f32.mrf.mxu0
          %v7780 = vadd.f32 %v7691, %v7779
          %v7781 = vpop.f32.mrf.mxu0
          %v7782 = vadd.f32 %v7693, %v7781
          %7783 = vmatmul.bf16.gmra.mxu0 %v6916
          %v7784 = vpop.f32.mrf.mxu0
          %v7785 = vadd.f32 %v7696, %v7784
          %v7786 = vpop.f32.mrf.mxu0
          %v7787 = vadd.f32 %v7698, %v7786
          %7788 = vdwg.mxu0
          %7789 = vmatpush.bf16.msra.mxu0 %v7344
          %7790 = vmatpush.bf16.msra.mxu0 %v7343
          %7791 = vmatpush.bf16.msra.mxu0 %v7342
          %7792 = vmatpush.bf16.msra.mxu0 %v7341
          %7793 = vmatpush.bf16.msra.mxu0 %v7340
          %7794 = vmatpush.bf16.msra.mxu0 %v7339
          %7795 = vmatpush.bf16.msra.mxu0 %v7338
          %7796 = vmatpush.bf16.msra.mxu0 %v7337
          %7797 = vmatmul.bf16.gmra.mxu0 %v6797
          %v7798 = vpop.f32.mrf.mxu0
          %v7799 = vadd.f32 %v7710, %v7798
          %v7800 = vpop.f32.mrf.mxu0
          %v7801 = vadd.f32 %v7712, %v7800
          %7802 = vmatmul.bf16.gmra.mxu0 %v6805
          %v7803 = vpop.f32.mrf.mxu0
          %v7804 = vadd.f32 %v7715, %v7803
          %v7805 = vpop.f32.mrf.mxu0
          %v7806 = vadd.f32 %v7717, %v7805
          %7807 = vmatmul.bf16.gmra.mxu0 %v6813
          %v7808 = vpop.f32.mrf.mxu0
          %v7809 = vadd.f32 %v7720, %v7808
          %v7810 = vpop.f32.mrf.mxu0
          %v7811 = vadd.f32 %v7722, %v7810
          %7812 = vmatmul.bf16.gmra.mxu0 %v6821
          %v7813 = vpop.f32.mrf.mxu0
          %v7814 = vadd.f32 %v7725, %v7813
          %v7815 = vpop.f32.mrf.mxu0
          %v7816 = vadd.f32 %v7727, %v7815
          %7817 = vmatmul.bf16.gmra.mxu0 %v6829
          %v7818 = vpop.f32.mrf.mxu0
          %v7819 = vadd.f32 %v7730, %v7818
          %v7820 = vpop.f32.mrf.mxu0
          %v7821 = vadd.f32 %v7732, %v7820
          %7822 = vmatmul.bf16.gmra.mxu0 %v6837
          %v7823 = vpop.f32.mrf.mxu0
          %v7824 = vadd.f32 %v7735, %v7823
          %v7825 = vpop.f32.mrf.mxu0
          %v7826 = vadd.f32 %v7737, %v7825
          %7827 = vmatmul.bf16.gmra.mxu0 %v6845
          %v7828 = vpop.f32.mrf.mxu0
          %v7829 = vadd.f32 %v7740, %v7828
          %v7830 = vpop.f32.mrf.mxu0
          %v7831 = vadd.f32 %v7742, %v7830
          %7832 = vmatmul.bf16.gmra.mxu0 %v6853
          %v7833 = vpop.f32.mrf.mxu0
          %v7834 = vadd.f32 %v7745, %v7833
          %v7835 = vpop.f32.mrf.mxu0
          %v7836 = vadd.f32 %v7747, %v7835
          %7837 = vmatmul.bf16.gmra.mxu0 %v6861
          %v7838 = vpop.f32.mrf.mxu0
          %v7839 = vadd.f32 %v7750, %v7838
          %v7840 = vpop.f32.mrf.mxu0
          %v7841 = vadd.f32 %v7752, %v7840
          %7842 = vmatmul.bf16.gmra.mxu0 %v6869
          %v7843 = vpop.f32.mrf.mxu0
          %v7844 = vadd.f32 %v7755, %v7843
          %v7845 = vpop.f32.mrf.mxu0
          %v7846 = vadd.f32 %v7757, %v7845
          %7847 = vmatmul.bf16.gmra.mxu0 %v6877
          %v7848 = vpop.f32.mrf.mxu0
          %v7849 = vadd.f32 %v7760, %v7848
          %v7850 = vpop.f32.mrf.mxu0
          %v7851 = vadd.f32 %v7762, %v7850
          %7852 = vmatmul.bf16.gmra.mxu0 %v6885
          %v7853 = vpop.f32.mrf.mxu0
          %v7854 = vadd.f32 %v7765, %v7853
          %v7855 = vpop.f32.mrf.mxu0
          %v7856 = vadd.f32 %v7767, %v7855
          %7857 = vmatmul.bf16.gmra.mxu0 %v6893
          %v7858 = vpop.f32.mrf.mxu0
          %v7859 = vadd.f32 %v7770, %v7858
          %v7860 = vpop.f32.mrf.mxu0
          %v7861 = vadd.f32 %v7772, %v7860
          %7862 = vmatmul.bf16.gmra.mxu0 %v6901
          %v7863 = vpop.f32.mrf.mxu0
          %v7864 = vadd.f32 %v7775, %v7863
          %v7865 = vpop.f32.mrf.mxu0
          %v7866 = vadd.f32 %v7777, %v7865
          %7867 = vmatmul.bf16.gmra.mxu0 %v6909
          %v7868 = vpop.f32.mrf.mxu0
          %v7869 = vadd.f32 %v7780, %v7868
          %v7870 = vpop.f32.mrf.mxu0
          %v7871 = vadd.f32 %v7782, %v7870
          %7872 = vmatmul.bf16.gmra.mxu0 %v6917
          %v7873 = vpop.f32.mrf.mxu0
          %v7874 = vadd.f32 %v7785, %v7873
          %v7875 = vpop.f32.mrf.mxu0
          %v7876 = vadd.f32 %v7787, %v7875
          %7877 = vdwg.mxu0
          %7878 = vmatpush.bf16.msra.mxu0 %v7352
          %7879 = vmatpush.bf16.msra.mxu0 %v7351
          %7880 = vmatpush.bf16.msra.mxu0 %v7350
          %7881 = vmatpush.bf16.msra.mxu0 %v7349
          %7882 = vmatpush.bf16.msra.mxu0 %v7348
          %7883 = vmatpush.bf16.msra.mxu0 %v7347
          %7884 = vmatpush.bf16.msra.mxu0 %v7346
          %7885 = vmatpush.bf16.msra.mxu0 %v7345
          %7886 = vmatmul.bf16.gmra.mxu0 %v6798
          %v7887 = vpop.f32.mrf.mxu0
          %v7888 = vadd.f32 %v7799, %v7887
          %v7889 = vpop.f32.mrf.mxu0
          %v7890 = vadd.f32 %v7801, %v7889
          %7891 = vmatmul.bf16.gmra.mxu0 %v6806
          %v7892 = vpop.f32.mrf.mxu0
          %v7893 = vadd.f32 %v7804, %v7892
          %v7894 = vpop.f32.mrf.mxu0
          %v7895 = vadd.f32 %v7806, %v7894
          %7896 = vmatmul.bf16.gmra.mxu0 %v6814
          %v7897 = vpop.f32.mrf.mxu0
          %v7898 = vadd.f32 %v7809, %v7897
          %v7899 = vpop.f32.mrf.mxu0
          %v7900 = vadd.f32 %v7811, %v7899
          %7901 = vmatmul.bf16.gmra.mxu0 %v6822
          %v7902 = vpop.f32.mrf.mxu0
          %v7903 = vadd.f32 %v7814, %v7902
          %v7904 = vpop.f32.mrf.mxu0
          %v7905 = vadd.f32 %v7816, %v7904
          %7906 = vmatmul.bf16.gmra.mxu0 %v6830
          %v7907 = vpop.f32.mrf.mxu0
          %v7908 = vadd.f32 %v7819, %v7907
          %v7909 = vpop.f32.mrf.mxu0
          %v7910 = vadd.f32 %v7821, %v7909
          %7911 = vmatmul.bf16.gmra.mxu0 %v6838
          %v7912 = vpop.f32.mrf.mxu0
          %v7913 = vadd.f32 %v7824, %v7912
          %v7914 = vpop.f32.mrf.mxu0
          %v7915 = vadd.f32 %v7826, %v7914
          %7916 = vmatmul.bf16.gmra.mxu0 %v6846
          %v7917 = vpop.f32.mrf.mxu0
          %v7918 = vadd.f32 %v7829, %v7917
          %v7919 = vpop.f32.mrf.mxu0
          %v7920 = vadd.f32 %v7831, %v7919
          %7921 = vmatmul.bf16.gmra.mxu0 %v6854
          %v7922 = vpop.f32.mrf.mxu0
          %v7923 = vadd.f32 %v7834, %v7922
          %v7924 = vpop.f32.mrf.mxu0
          %v7925 = vadd.f32 %v7836, %v7924
          %7926 = vmatmul.bf16.gmra.mxu0 %v6862
          %v7927 = vpop.f32.mrf.mxu0
          %v7928 = vadd.f32 %v7839, %v7927
          %v7929 = vpop.f32.mrf.mxu0
          %v7930 = vadd.f32 %v7841, %v7929
          %7931 = vmatmul.bf16.gmra.mxu0 %v6870
          %v7932 = vpop.f32.mrf.mxu0
          %v7933 = vadd.f32 %v7844, %v7932
          %v7934 = vpop.f32.mrf.mxu0
          %v7935 = vadd.f32 %v7846, %v7934
          %7936 = vmatmul.bf16.gmra.mxu0 %v6878
          %v7937 = vpop.f32.mrf.mxu0
          %v7938 = vadd.f32 %v7849, %v7937
          %v7939 = vpop.f32.mrf.mxu0
          %v7940 = vadd.f32 %v7851, %v7939
          %7941 = vmatmul.bf16.gmra.mxu0 %v6886
          %v7942 = vpop.f32.mrf.mxu0
          %v7943 = vadd.f32 %v7854, %v7942
          %v7944 = vpop.f32.mrf.mxu0
          %v7945 = vadd.f32 %v7856, %v7944
          %7946 = vmatmul.bf16.gmra.mxu0 %v6894
          %v7947 = vpop.f32.mrf.mxu0
          %v7948 = vadd.f32 %v7859, %v7947
          %v7949 = vpop.f32.mrf.mxu0
          %v7950 = vadd.f32 %v7861, %v7949
          %7951 = vmatmul.bf16.gmra.mxu0 %v6902
          %v7952 = vpop.f32.mrf.mxu0
          %v7953 = vadd.f32 %v7864, %v7952
          %v7954 = vpop.f32.mrf.mxu0
          %v7955 = vadd.f32 %v7866, %v7954
          %7956 = vmatmul.bf16.gmra.mxu0 %v6910
          %v7957 = vpop.f32.mrf.mxu0
          %v7958 = vadd.f32 %v7869, %v7957
          %v7959 = vpop.f32.mrf.mxu0
          %v7960 = vadd.f32 %v7871, %v7959
          %7961 = vmatmul.bf16.gmra.mxu0 %v6918
          %v7962 = vpop.f32.mrf.mxu0
          %v7963 = vadd.f32 %v7874, %v7962
          %v7964 = vpop.f32.mrf.mxu0
          %v7965 = vadd.f32 %v7876, %v7964
          %7966 = vdwg.mxu0
          %7967 = vmatpush.bf16.msra.mxu0 %v7360
          %7968 = vmatpush.bf16.msra.mxu0 %v7359
          %7969 = vmatpush.bf16.msra.mxu0 %v7358
          %7970 = vmatpush.bf16.msra.mxu0 %v7357
          %7971 = vmatpush.bf16.msra.mxu0 %v7356
          %7972 = vmatpush.bf16.msra.mxu0 %v7355
          %7973 = vmatpush.bf16.msra.mxu0 %v7354
          %7974 = vmatpush.bf16.msra.mxu0 %v7353
          %7975 = vmatmul.bf16.gmra.mxu0 %v6799
          %v7976 = vpop.f32.mrf.mxu0
          %v7977 = vadd.f32 %v7888, %v7976
          %v7978 = vpop.f32.mrf.mxu0
          %v7979 = vadd.f32 %v7890, %v7978
          %7980 = vmatmul.bf16.gmra.mxu0 %v6807
          %v7981 = vpop.f32.mrf.mxu0
          %v7982 = vadd.f32 %v7893, %v7981
          %v7983 = vpop.f32.mrf.mxu0
          %v7984 = vadd.f32 %v7895, %v7983
          %7985 = vmatmul.bf16.gmra.mxu0 %v6815
          %v7986 = vpop.f32.mrf.mxu0
          %v7987 = vadd.f32 %v7898, %v7986
          %v7988 = vpop.f32.mrf.mxu0
          %v7989 = vadd.f32 %v7900, %v7988
          %7990 = vmatmul.bf16.gmra.mxu0 %v6823
          %v7991 = vpop.f32.mrf.mxu0
          %v7992 = vadd.f32 %v7903, %v7991
          %v7993 = vpop.f32.mrf.mxu0
          %v7994 = vadd.f32 %v7905, %v7993
          %7995 = vmatmul.bf16.gmra.mxu0 %v6831
          %v7996 = vpop.f32.mrf.mxu0
          %v7997 = vadd.f32 %v7908, %v7996
          %v7998 = vpop.f32.mrf.mxu0
          %v7999 = vadd.f32 %v7910, %v7998
          %8000 = vmatmul.bf16.gmra.mxu0 %v6839
          %v8001 = vpop.f32.mrf.mxu0
          %v8002 = vadd.f32 %v7913, %v8001
          %v8003 = vpop.f32.mrf.mxu0
          %v8004 = vadd.f32 %v7915, %v8003
          %8005 = vmatmul.bf16.gmra.mxu0 %v6847
          %v8006 = vpop.f32.mrf.mxu0
          %v8007 = vadd.f32 %v7918, %v8006
          %v8008 = vpop.f32.mrf.mxu0
          %v8009 = vadd.f32 %v7920, %v8008
          %8010 = vmatmul.bf16.gmra.mxu0 %v6855
          %v8011 = vpop.f32.mrf.mxu0
          %v8012 = vadd.f32 %v7923, %v8011
          %v8013 = vpop.f32.mrf.mxu0
          %v8014 = vadd.f32 %v7925, %v8013
          %8015 = vmatmul.bf16.gmra.mxu0 %v6863
          %v8016 = vpop.f32.mrf.mxu0
          %v8017 = vadd.f32 %v7928, %v8016
          %v8018 = vpop.f32.mrf.mxu0
          %v8019 = vadd.f32 %v7930, %v8018
          %8020 = vmatmul.bf16.gmra.mxu0 %v6871
          %v8021 = vpop.f32.mrf.mxu0
          %v8022 = vadd.f32 %v7933, %v8021
          %v8023 = vpop.f32.mrf.mxu0
          %v8024 = vadd.f32 %v7935, %v8023
          %8025 = vmatmul.bf16.gmra.mxu0 %v6879
          %v8026 = vpop.f32.mrf.mxu0
          %v8027 = vadd.f32 %v7938, %v8026
          %v8028 = vpop.f32.mrf.mxu0
          %v8029 = vadd.f32 %v7940, %v8028
          %8030 = vmatmul.bf16.gmra.mxu0 %v6887
          %v8031 = vpop.f32.mrf.mxu0
          %v8032 = vadd.f32 %v7943, %v8031
          %v8033 = vpop.f32.mrf.mxu0
          %v8034 = vadd.f32 %v7945, %v8033
          %8035 = vmatmul.bf16.gmra.mxu0 %v6895
          %v8036 = vpop.f32.mrf.mxu0
          %v8037 = vadd.f32 %v7948, %v8036
          %v8038 = vpop.f32.mrf.mxu0
          %v8039 = vadd.f32 %v7950, %v8038
          %8040 = vmatmul.bf16.gmra.mxu0 %v6903
          %v8041 = vpop.f32.mrf.mxu0
          %v8042 = vadd.f32 %v7953, %v8041
          %v8043 = vpop.f32.mrf.mxu0
          %v8044 = vadd.f32 %v7955, %v8043
          %8045 = vmatmul.bf16.gmra.mxu0 %v6911
          %v8046 = vpop.f32.mrf.mxu0
          %v8047 = vadd.f32 %v7958, %v8046
          %v8048 = vpop.f32.mrf.mxu0
          %v8049 = vadd.f32 %v7960, %v8048
          %8050 = vmatmul.bf16.gmra.mxu0 %v6919
          %v8051 = vpop.f32.mrf.mxu0
          %v8052 = vadd.f32 %v7963, %v8051
          %v8053 = vpop.f32.mrf.mxu0
          %v8054 = vadd.f32 %v7965, %v8053
          %8055 = vdwg.mxu0
          %8056 = vmatpush.bf16.msra.mxu0 %v7368
          %8057 = vmatpush.bf16.msra.mxu0 %v7367
          %8058 = vmatpush.bf16.msra.mxu0 %v7366
          %8059 = vmatpush.bf16.msra.mxu0 %v7365
          %8060 = vmatpush.bf16.msra.mxu0 %v7364
          %8061 = vmatpush.bf16.msra.mxu0 %v7363
          %8062 = vmatpush.bf16.msra.mxu0 %v7362
          %8063 = vmatpush.bf16.msra.mxu0 %v7361
          %8064 = vmatmul.bf16.gmra.mxu0 %v6800
          %v8065 = vpop.f32.mrf.mxu0
          %v8066 = vadd.f32 %v7977, %v8065
          %v8067 = vpop.f32.mrf.mxu0
          %v8068 = vadd.f32 %v7979, %v8067
          %8069 = vmatmul.bf16.gmra.mxu0 %v6808
          %v8070 = vpop.f32.mrf.mxu0
          %v8071 = vadd.f32 %v7982, %v8070
          %v8072 = vpop.f32.mrf.mxu0
          %v8073 = vadd.f32 %v7984, %v8072
          %8074 = vmatmul.bf16.gmra.mxu0 %v6816
          %v8075 = vpop.f32.mrf.mxu0
          %v8076 = vadd.f32 %v7987, %v8075
          %v8077 = vpop.f32.mrf.mxu0
          %v8078 = vadd.f32 %v7989, %v8077
          %8079 = vmatmul.bf16.gmra.mxu0 %v6824
          %v8080 = vpop.f32.mrf.mxu0
          %v8081 = vadd.f32 %v7992, %v8080
          %v8082 = vpop.f32.mrf.mxu0
          %v8083 = vadd.f32 %v7994, %v8082
          %8084 = vmatmul.bf16.gmra.mxu0 %v6832
          %v8085 = vpop.f32.mrf.mxu0
          %v8086 = vadd.f32 %v7997, %v8085
          %v8087 = vpop.f32.mrf.mxu0
          %v8088 = vadd.f32 %v7999, %v8087
          %8089 = vmatmul.bf16.gmra.mxu0 %v6840
          %v8090 = vpop.f32.mrf.mxu0
          %v8091 = vadd.f32 %v8002, %v8090
          %v8092 = vpop.f32.mrf.mxu0
          %v8093 = vadd.f32 %v8004, %v8092
          %8094 = vmatmul.bf16.gmra.mxu0 %v6848
          %v8095 = vpop.f32.mrf.mxu0
          %v8096 = vadd.f32 %v8007, %v8095
          %v8097 = vpop.f32.mrf.mxu0
          %v8098 = vadd.f32 %v8009, %v8097
          %8099 = vmatmul.bf16.gmra.mxu0 %v6856
          %v8100 = vpop.f32.mrf.mxu0
          %v8101 = vadd.f32 %v8012, %v8100
          %v8102 = vpop.f32.mrf.mxu0
          %v8103 = vadd.f32 %v8014, %v8102
          %8104 = vmatmul.bf16.gmra.mxu0 %v6864
          %v8105 = vpop.f32.mrf.mxu0
          %v8106 = vadd.f32 %v8017, %v8105
          %v8107 = vpop.f32.mrf.mxu0
          %v8108 = vadd.f32 %v8019, %v8107
          %8109 = vmatmul.bf16.gmra.mxu0 %v6872
          %v8110 = vpop.f32.mrf.mxu0
          %v8111 = vadd.f32 %v8022, %v8110
          %v8112 = vpop.f32.mrf.mxu0
          %v8113 = vadd.f32 %v8024, %v8112
          %8114 = vmatmul.bf16.gmra.mxu0 %v6880
          %v8115 = vpop.f32.mrf.mxu0
          %v8116 = vadd.f32 %v8027, %v8115
          %v8117 = vpop.f32.mrf.mxu0
          %v8118 = vadd.f32 %v8029, %v8117
          %8119 = vmatmul.bf16.gmra.mxu0 %v6888
          %v8120 = vpop.f32.mrf.mxu0
          %v8121 = vadd.f32 %v8032, %v8120
          %v8122 = vpop.f32.mrf.mxu0
          %v8123 = vadd.f32 %v8034, %v8122
          %8124 = vmatmul.bf16.gmra.mxu0 %v6896
          %v8125 = vpop.f32.mrf.mxu0
          %v8126 = vadd.f32 %v8037, %v8125
          %v8127 = vpop.f32.mrf.mxu0
          %v8128 = vadd.f32 %v8039, %v8127
          %8129 = vmatmul.bf16.gmra.mxu0 %v6904
          %v8130 = vpop.f32.mrf.mxu0
          %v8131 = vadd.f32 %v8042, %v8130
          %v8132 = vpop.f32.mrf.mxu0
          %v8133 = vadd.f32 %v8044, %v8132
          %8134 = vmatmul.bf16.gmra.mxu0 %v6912
          %v8135 = vpop.f32.mrf.mxu0
          %v8136 = vadd.f32 %v8047, %v8135
          %v8137 = vpop.f32.mrf.mxu0
          %v8138 = vadd.f32 %v8049, %v8137
          %8139 = vmatmul.bf16.gmra.mxu0 %v6920
          %v8140 = vpop.f32.mrf.mxu0
          %v8141 = vadd.f32 %v8052, %v8140
          %v8142 = vpop.f32.mrf.mxu0
          %v8143 = vadd.f32 %v8054, %v8142
          %8144 = vdwg.mxu0
          %8145 = vst [vmem:[%s576] sm:$0xff] %v8066
          %8146 = vst [vmem:[%s576 + $0x8] sm:$0xff] %v8068
          %8147 = vst [vmem:[%s576 + $0x10] sm:$0xff] %v8071
          %8148 = vst [vmem:[%s576 + $0x18] sm:$0xff] %v8073
          %8149 = vst [vmem:[%s576 + $0x20] sm:$0xff] %v8076
          %8150 = vst [vmem:[%s576 + $0x28] sm:$0xff] %v8078
          %8151 = vst [vmem:[%s576 + $0x30] sm:$0xff] %v8081
          %8152 = vst [vmem:[%s576 + $0x38] sm:$0xff] %v8083
          %8153 = vst [vmem:[%s576 + $0x40] sm:$0xff] %v8086
          %8154 = vst [vmem:[%s576 + $0x48] sm:$0xff] %v8088
          %8155 = vst [vmem:[%s576 + $0x50] sm:$0xff] %v8091
          %8156 = vst [vmem:[%s576 + $0x58] sm:$0xff] %v8093
          %8157 = vst [vmem:[%s576 + $0x60] sm:$0xff] %v8096
          %8158 = vst [vmem:[%s576 + $0x68] sm:$0xff] %v8098
          %8159 = vst [vmem:[%s576 + $0x70] sm:$0xff] %v8101
          %8160 = vst [vmem:[%s576 + $0x78] sm:$0xff] %v8103
          %8161 = vst [vmem:[%s576 + $0x80] sm:$0xff] %v8106
          %8162 = vst [vmem:[%s576 + $0x88] sm:$0xff] %v8108
          %8163 = vst [vmem:[%s576 + $0x90] sm:$0xff] %v8111
          %8164 = vst [vmem:[%s576 + $0x98] sm:$0xff] %v8113
          %8165 = vst [vmem:[%s576 + $0xa0] sm:$0xff] %v8116
          %8166 = vst [vmem:[%s576 + $0xa8] sm:$0xff] %v8118
          %8167 = vst [vmem:[%s576 + $0xb0] sm:$0xff] %v8121
          %8168 = vst [vmem:[%s576 + $0xb8] sm:$0xff] %v8123
          %8169 = vst [vmem:[%s576 + $0xc0] sm:$0xff] %v8126
          %8170 = vst [vmem:[%s576 + $0xc8] sm:$0xff] %v8128
          %8171 = vst [vmem:[%s576 + $0xd0] sm:$0xff] %v8131
          %8172 = vst [vmem:[%s576 + $0xd8] sm:$0xff] %v8133
          %8173 = vst [vmem:[%s576 + $0xe0] sm:$0xff] %v8136
          %8174 = vst [vmem:[%s576 + $0xe8] sm:$0xff] %v8138
          %8175 = vst [vmem:[%s576 + $0xf0] sm:$0xff] %v8141
          %8176 = vst [vmem:[%s576 + $0xf8] sm:$0xff] %v8143
        $region104: #{tpu_custom_call.1} parent=75 // pred_fallthru
          _
        %s8177 = sand.u32 %s369, 1
        %s8178 = scalar_lea.sflag [#allocation7], %s8177
        %s8179 = sand.u32 %s369, 1
        %s8180 = smul.addr %s8179, 256
        %s8181 = scalar_lea.vmem [#allocation13], %s8180
        // Predicated region
        $region109: #{tpu_custom_call.1} parent=75 // pred_check
          %p8182 = pneg %p379
        $region110: #{tpu_custom_call.1} parent=75 // pred_check_branch
          %8184 = sbr.rel (%p8182) target = $region112
        $region111: #{tpu_custom_call.1} parent=75 // pred_region
          %s8185 = smul.u32 %s38, %s37
          %s8186 = smul.u32 32, %s8185
          %8188 = vsyncadd %s8178, 0
          %s8189 = smul.addr %s36, 64
          %s8190 = sadd.s32 %s8186, %s8189
          %s8191 = smul.addr %s8190, 8
          %s8192 = scalar_lea.hbm %s14, %s8191
          %s8193 = sshll.u32 %s8181, 4
          %s8194 = int_to_ptr.vmem [resolvable:$true] %s8193
          %s8195 = sshll.u32 %s8192, 4
          %s8196 = int_to_ptr.hbm [resolvable:$true] %s8195
          %8201 = dma.vmem_to_hbm [thread:$0]  %s8194, 4096, %s8196, %s8178, 128, 128, 8
        $region112: #{tpu_custom_call.1} parent=75 // pred_fallthru
          _
      $region76: #{tpu_custom_call.1} parent=5 // pred_fallthru
        _
      %p8202 = scmp.le.s32.totalorder 2, %s26
      // Predicated region
      $region113: #{tpu_custom_call.1} parent=5 // pred_check
        %p8203 = pneg %p8202
      $region114: #{tpu_custom_call.1} parent=5 // pred_check_branch
        %8205 = sbr.rel (%p8203) target = $region116
      $region115: #{tpu_custom_call.1} parent=5 // pred_region
        %s8206 = ssub.s32 %s26, 2
        // Predicated region
        $region117: #{tpu_custom_call.1} parent=115 // pred_check
          %p8207 = pneg %p385
        $region118: #{tpu_custom_call.1} parent=115 // pred_check_branch
          %8209 = sbr.rel (%p8207) target = $region120
        $region119: #{tpu_custom_call.1} parent=115 // pred_region
          %s8210 = sand.u32 %s370, 1
          %s8211 = scalar_lea.sflag [#allocation7], %s8210
          %s8212 = sand.u32 %s370, 1
          %s8213 = smul.addr %s8212, 256
          %s8214 = scalar_lea.vmem [#allocation13], %s8213
          %8216 = dma.done %s8211, 4096
        $region120: #{tpu_custom_call.1} parent=115 // pred_fallthru
          _
      $region116: #{tpu_custom_call.1} parent=5 // pred_fallthru
        _
    $region6: #{tpu_custom_call.1} parent=1 // loop_footer
      %s30 = sadd.s32 1, %s26
    $region7: #{tpu_custom_call.1} parent=1 // loop_footer_branch
      %25 = sbr.rel target = $region3
    $region8: #{tpu_custom_call.1} parent=1 // loop_exit
      _
    %8217 = vsyncpa [#allocation6], 1
    %s8218 = scalar_lea.sflag [#allocation6], 1
    %8219 = vsyncpa %s8218, 1
    %8220 = vsyncpa [#allocation9], 1
    %8221 = vsyncpa [#allocation12], 1
    %8222 = vsyncpa [#allocation7], 1
    %s8223 = scalar_lea.sflag [#allocation7], 1
    %8224 = vsyncpa %s8223, 1

</llo_original>
